<compile_context>
chip_gen: v7x
topology: tpu7x:2x2x1
jax: 0.10.0
libtpu: 0.0.40
codegen_flags: <defaults>
</compile_context>

<pallas_src>
import numpy as np
import jax
import jax.numpy as jnp
from jax import lax
from jax.experimental import pallas as pl
from jax.experimental.pallas import tpu as pltpu

# ----------------------------- configuration ---------------------------------
VOCAB_LEN = 32          # vocab.get_tokens_length()
EMBED_DIM = 16          # config.embed_dim
HIDDEN = 32             # config.blstm_dim == hidden_size
NUM_LAYERS = 2          # config.num_layers
NUM_DIR = 2             # bidirectional
OUT_DIM = 2             # config.out_dim
BATCH = 2
SEQ = 8
BEFF = 8                # stacked batch (2 sequences * BATCH) padded to a full sublane tile

DH = 2 * HIDDEN         # fused [fwd|bwd] hidden width (64)
GIW = 4 * DH            # packed gate width [r_f r_b | z_f z_b | n_f n_b | pad] (256)


# --------------------------- fully fused Pallas kernel ------------------------
def _fused_kernel(ids_ref, ew0_ref, w1_ref, b1_ref, whh_ref, bhn_ref,
                  hw1_ref, hb1_ref, hw2_ref, hb2_ref, wd_ref, bd_ref,
                  wfc_ref, bfc_ref, o_ref, gi_scr, seq_scr):
    H, T, BE, B = HIDDEN, SEQ, BEFF, BATCH

    def run_layer(s, layer, write_seq):
        """Fused fwd+bwd GRU recurrence.  Carry h = [h_fwd(t) | h_bwd(T-1-t)]."""
        whh = whh_ref[s, layer]                                        # (DH, GIW) block-diagonal
        bhn = jnp.broadcast_to(bhn_ref[s, layer], (BE, GIW))           # hoisted, added once per step
        h = jnp.zeros((BE, DH), jnp.float32)
        for t in range(T):                                             # static fully-unrolled loop
            r0 = t * BE
            g = gi_scr[r0:r0 + BE, :]                                  # (BE, GIW): one aligned load
            hw = jnp.dot(h, whh, preferred_element_type=jnp.float32) + bhn
            rz = jax.nn.sigmoid(g[:, 0:2 * DH] + hw[:, 0:2 * DH])      # r|z for both dirs, one vreg
            r = rz[:, 0:DH]
            z = rz[:, DH:2 * DH]
            n = jnp.tanh(g[:, 2 * DH:3 * DH] + r * hw[:, 2 * DH:3 * DH])
            h = (1.0 - z) * n + z * h
            if write_seq:
                # seq row j layout: [fwd(j) | bwd(T-1-j) | fwd(T-1-j) | bwd(j)]
                seq_scr[r0:r0 + BE, 0:DH] = h
                rr = (T - 1 - t) * BE
                seq_scr[rr:rr + BE, DH:2 * DH] = h
        return h                                                       # final [h_fwd(T-1) | h_bwd(0)]

    iota = lax.broadcasted_iota(jnp.int32, (T * BE, 2 * VOCAB_LEN), 1)
    lps = []
    for s in range(2):                                                 # stack 0: gru1{x1,x3}, 1: gru2{x2,x3}
        # ---- embedding + layer-0 input projection: one-hot @ (embed @ W_ih + b) ----
        ids = ids_ref[s]                                               # (T*BE, 2): [fwd id, rev id + V]
        oh = jnp.logical_or(ids[:, 0:1] == iota,
                            ids[:, 1:2] == iota).astype(jnp.float32)   # (T*BE, 2V)
        gi_scr[...] = jnp.dot(oh, ew0_ref[s], preferred_element_type=jnp.float32)
        h0 = run_layer(s, 0, write_seq=True)

        # ---- layer-1 input projection, hoisted out of the recurrence ----
        gi_scr[...] = (jnp.dot(seq_scr[...], w1_ref[s], preferred_element_type=jnp.float32)
                       + b1_ref[s])
        h1 = run_layer(s, 1, write_seq=False)

        # ---- MLP head branch for this stack (PyTorch h_n order: l0f|l0b|l1f|l1b) ----
        hcat = jnp.concatenate([h0, h1], axis=1)                       # (BE, 4H)
        a = jax.nn.sigmoid(jnp.dot(hcat, hw1_ref[s], preferred_element_type=jnp.float32)
                           + hb1_ref[s])
        a = jax.nn.sigmoid(jnp.dot(a, hw2_ref[s], preferred_element_type=jnp.float32)
                           + hb2_ref[s])
        da = jnp.concatenate([a[0:B, :], a[B:2 * B, :]], axis=1)       # [demo_out | generation_out]
        lps.append(jax.nn.sigmoid(jnp.dot(da, wd_ref[s], preferred_element_type=jnp.float32)
                                  + bd_ref[s]))

    logits = jnp.concatenate(lps, axis=1)                              # (B, 2H)
    o_ref[...] = jax.nn.sigmoid(jnp.dot(logits, wfc_ref[...], preferred_element_type=jnp.float32)
                                + bfc_ref[...])


def rnn_dlgn_pallas(ids, p):
    vmem = pl.BlockSpec(memory_space=pltpu.MemorySpace.VMEM)           # whole-array, VMEM resident
    args = (ids, p["ew0"], p["w1"], p["b1"], p["whh"], p["bhn"],
            p["hw1"], p["hb1"], p["hw2"], p["hb2"], p["wd"], p["bd"],
            p["wfc"], p["bfc"])
    return pl.pallas_call(
        _fused_kernel,
        out_shape=jax.ShapeDtypeStruct((BATCH, OUT_DIM), jnp.float32),
        in_specs=[vmem] * len(args),
        out_specs=vmem,
        scratch_shapes=[
            pltpu.VMEM((SEQ * BEFF, GIW), jnp.float32),     # packed per-step gate inputs
            pltpu.VMEM((SEQ * BEFF, 2 * DH), jnp.float32),  # layer-0 output seq (both time orders)
        ],
    )(*args)


# ------------------------------ parameter init --------------------------------
def _uniform(key, shape, scale):
    return jax.random.uniform(key, shape, jnp.float32, -scale, scale)


def init_params(key):
    keys = iter(jax.random.split(key, 64))
    params = {}
    emb = jax.random.normal(next(keys), (VOCAB_LEN, EMBED_DIM), jnp.float32)
    params["embed"] = emb.at[0].set(0.0)                    # padding_idx = 0

    def init_gru():
        gp = {}
        s = 1.0 / float(HIDDEN) ** 0.5
        for layer in range(NUM_LAYERS):
            in_dim = EMBED_DIM if layer == 0 else NUM_DIR * HIDDEN
            for d in range(NUM_DIR):
                gp[(layer, d)] = {
                    "w_ih": _uniform(next(keys), (3 * HIDDEN, in_dim), s),   # PyTorch layout
                    "w_hh": _uniform(next(keys), (3 * HIDDEN, HIDDEN), s),
                    "b_ih": _uniform(next(keys), (3 * HIDDEN,), s),
                    "b_hh": _uniform(next(keys), (3 * HIDDEN,), s),
                }
        return gp

    params["gru1"] = init_gru()
    params["gru2"] = init_gru()

    h2o_in = 2 * NUM_DIR * HIDDEN

    def init_mlp(in_dim, out_dim):
        s = 1.0 / float(in_dim) ** 0.5
        return {"w": _uniform(next(keys), (in_dim, out_dim), s),
                "b": _uniform(next(keys), (out_dim,), s)}

    params["hidden2out1"] = {"l1": init_mlp(h2o_in, HIDDEN), "l2": init_mlp(HIDDEN, HIDDEN)}
    params["hidden2out2"] = {"l1": init_mlp(h2o_in, HIDDEN), "l2": init_mlp(HIDDEN, HIDDEN)}
    params["double_out1"] = init_mlp(2 * HIDDEN, HIDDEN)
    params["double_out2"] = init_mlp(2 * HIDDEN, HIDDEN)
    params["fc"] = init_mlp(2 * HIDDEN, OUT_DIM)
    return params


# ------------------- one-time weight prep into kernel layout ------------------
def _pack_stack(gp, embed):
    """PyTorch-layout GRU params for one stack -> fused, lane-dense kernel layout."""
    H, V = HIDDEN, VOCAB_LEN
    embed = np.asarray(embed, np.float32)

    def gcol(g, d):                                  # r_f=0, r_b=32, z_f=64, z_b=96, n_f=128, n_b=160
        return g * DH + d * H

    def pt(a):
        return np.asarray(a, np.float32)

    # layer 0: (embedding @ W_ih + folded biases); rows 0:V fwd-time ids, V:2V reversed-time ids
    ew0 = np.zeros((2 * V, GIW), np.float32)
    for d in range(NUM_DIR):
        p = gp[(0, d)]
        w_ih, b_ih, b_hh = pt(p["w_ih"]), pt(p["b_ih"]), pt(p["b_hh"])
        for g in range(3):
            b = b_ih[g * H:(g + 1) * H] + (b_hh[g * H:(g + 1) * H] if g < 2 else 0.0)
            ew0[d * V:(d + 1) * V, gcol(g, d):gcol(g, d) + H] = \
                embed @ w_ih[g * H:(g + 1) * H, :].T + b[None, :]

    # layer 1: input rows follow seq layout [fwd(t) | bwd(T-1-t) | fwd(T-1-t) | bwd(t)]
    w1 = np.zeros((2 * DH, GIW), np.float32)
    b1 = np.zeros((1, GIW), np.float32)
    for d in range(NUM_DIR):
        p = gp[(1, d)]
        w_ih, b_ih, b_hh = pt(p["w_ih"]), pt(p["b_ih"]), pt(p["b_hh"])
        for g in range(3):
            c = gcol(g, d)
            wg = w_ih[g * H:(g + 1) * H, :]          # (H, 2H): cols 0:H fwd feat, H:2H bwd feat
            if d == 0:                               # fwd gates read original time t
                w1[0:H, c:c + H] = wg[:, 0:H].T
                w1[3 * H:4 * H, c:c + H] = wg[:, H:2 * H].T
            else:                                    # bwd gates read original time T-1-t
                w1[2 * H:3 * H, c:c + H] = wg[:, 0:H].T
                w1[H:2 * H, c:c + H] = wg[:, H:2 * H].T
            b1[0, c:c + H] = b_ih[g * H:(g + 1) * H] + (b_hh[g * H:(g + 1) * H] if g < 2 else 0.0)

    # fused block-diagonal recurrent weights + tanh-side bias (b_hn)
    whh = np.zeros((NUM_LAYERS, DH, GIW), np.float32)
    bhn = np.zeros((NUM_LAYERS, 1, GIW), np.float32)
    for layer in range(NUM_LAYERS):
        for d in range(NUM_DIR):
            p = gp[(layer, d)]
            w_hh, b_hh = pt(p["w_hh"]), pt(p["b_hh"])
            for g in range(3):
                whh[layer, d * H:(d + 1) * H, gcol(g, d):gcol(g, d) + H] = \
                    w_hh[g * H:(g + 1) * H, :].T
            bhn[layer, 0, gcol(2, d):gcol(2, d) + H] = b_hh[2 * H:3 * H]
    return dict(ew0=ew0, w1=w1, b1=b1, whh=whh, bhn=bhn)


def prepare_params(params):
    s1 = _pack_stack(params["gru1"], params["embed"])
    s2 = _pack_stack(params["gru2"], params["embed"])
    p = {k: jnp.asarray(np.stack([s1[k], s2[k]])) for k in s1}

    def pt(a):
        return np.asarray(a, np.float32)

    h1, h2 = params["hidden2out1"], params["hidden2out2"]
    d1, d2 = params["double_out1"], params["double_out2"]
    fc = params["fc"]
    p["hw1"] = jnp.asarray(np.stack([pt(h1["l1"]["w"]), pt(h2["l1"]["w"])]))              # (2, 4H, H)
    p["hb1"] = jnp.asarray(np.stack([pt(h1["l1"]["b"])[None, :], pt(h2["l1"]["b"])[None, :]]))
    p["hw2"] = jnp.asarray(np.stack([pt(h1["l2"]["w"]), pt(h2["l2"]["w"])]))              # (2, H, H)
    p["hb2"] = jnp.asarray(np.stack([pt(h1["l2"]["b"])[None, :], pt(h2["l2"]["b"])[None, :]]))
    p["wd"] = jnp.asarray(np.stack([pt(d1["w"]), pt(d2["w"])]))                           # (2, 2H, H)
    p["bd"] = jnp.asarray(np.stack([pt(d1["b"])[None, :], pt(d2["b"])[None, :]]))
    p["wfc"] = jnp.asarray(pt(fc["w"]))                                                   # (2H, OUT)
    p["bfc"] = jnp.asarray(pt(fc["b"])[None, :])
    return p


# ------------------------------- forward pass ---------------------------------
def _build_ids(a, b):
    """Stack two (B,T) id matrices + pad rows, time-major; col0 fwd id, col1 reversed id + V."""
    pad = jnp.zeros((BEFF - 2 * BATCH, SEQ), jnp.int32)
    toks = jnp.concatenate([a.astype(jnp.int32), b.astype(jnp.int32), pad], axis=0)  # (BEFF, SEQ)
    fwd = jnp.transpose(toks).reshape(SEQ * BEFF)
    rev = jnp.transpose(toks[:, ::-1]).reshape(SEQ * BEFF) + VOCAB_LEN
    return jnp.stack([fwd, rev], axis=1)                                             # (SEQ*BEFF, 2)


@jax.jit
def forward(prepped, inp1, inp2, inp3):
    ids = jnp.stack([_build_ids(inp1, inp3), _build_ids(inp2, inp3)])   # (2, SEQ*BEFF, 2) int32
    return rnn_dlgn_pallas(ids, prepped)                                # (BATCH, OUT_DIM)


# ----------------------------------- main --------------------------------------
if __name__ == "__main__":
    key = jax.random.PRNGKey(0)
    k_params, k1, k2, k3 = jax.random.split(key, 4)

    params = init_params(k_params)
    prepped = prepare_params(params)                  # one-time host-side layout packing

    inp1 = jax.random.randint(k1, (BATCH, SEQ), 0, VOCAB_LEN, dtype=jnp.int32)
    inp2 = jax.random.randint(k2, (BATCH, SEQ), 0, VOCAB_LEN, dtype=jnp.int32)
    inp3 = jax.random.randint(k3, (BATCH, SEQ), 0, VOCAB_LEN, dtype=jnp.int32)

    out = forward(prepped, inp1, inp2, inp3)
    out = jax.block_until_ready(out)
    assert out.shape == (BATCH, OUT_DIM)
    assert bool(jnp.all(jnp.isfinite(out)))
    print("KERNEL_OK")
</pallas_src>

<mosaic_0001>
module attributes {stable_mosaic.version = 11 : i64} {
  func.func @_fused_kernel(%arg0: memref<2x64x2xi32, #tpu.memory_space<vmem>>, %arg1: memref<2x64x256xf32, #tpu.memory_space<vmem>>, %arg2: memref<2x128x256xf32, #tpu.memory_space<vmem>>, %arg3: memref<2x1x256xf32, #tpu.memory_space<vmem>>, %arg4: memref<2x2x64x256xf32, #tpu.memory_space<vmem>>, %arg5: memref<2x2x1x256xf32, #tpu.memory_space<vmem>>, %arg6: memref<2x128x32xf32, #tpu.memory_space<vmem>>, %arg7: memref<2x1x32xf32, #tpu.memory_space<vmem>>, %arg8: memref<2x32x32xf32, #tpu.memory_space<vmem>>, %arg9: memref<2x1x32xf32, #tpu.memory_space<vmem>>, %arg10: memref<2x64x32xf32, #tpu.memory_space<vmem>>, %arg11: memref<2x1x32xf32, #tpu.memory_space<vmem>>, %arg12: memref<64x2xf32, #tpu.memory_space<vmem>>, %arg13: memref<1x2xf32, #tpu.memory_space<vmem>>, %arg14: memref<2x2xf32, #tpu.memory_space<vmem>>, %arg15: memref<64x256xf32, #tpu.memory_space<vmem>>, %arg16: memref<64x128xf32, #tpu.memory_space<vmem>>) attributes {dimension_semantics = [], scalar_prefetch = 0 : i64, scratch_operands = 2 : i64, tpu.core_type = #tpu.core_type<tc>} {
    %0 = tpu.iota {dimensions = array<i32: 1>} : vector<64x64xi32>
    %c0 = arith.constant 0 : index
    %c0_0 = arith.constant 0 : index
    %c0_1 = arith.constant 0 : index
    %1 = vector.load %arg0[%c0, %c0_0, %c0_1] : memref<2x64x2xi32, #tpu.memory_space<vmem>>, vector<1x64x2xi32>
    %2 = vector.shape_cast %1 : vector<1x64x2xi32> to vector<64x2xi32>
    %3 = vector.extract_strided_slice %2 {offsets = [0, 0], sizes = [64, 1], strides = [1, 1]} : vector<64x2xi32> to vector<64x1xi32>
    %4 = vector.broadcast %3 : vector<64x1xi32> to vector<64x64xi32>
    %5 = arith.cmpi eq, %4, %0 : vector<64x64xi32>
    %6 = vector.extract_strided_slice %2 {offsets = [0, 1], sizes = [64, 1], strides = [1, 1]} : vector<64x2xi32> to vector<64x1xi32>
    %7 = vector.broadcast %6 : vector<64x1xi32> to vector<64x64xi32>
    %8 = arith.cmpi eq, %7, %0 : vector<64x64xi32>
    %9 = arith.ori %5, %8 : vector<64x64xi1>
    %10 = arith.extui %9 : vector<64x64xi1> to vector<64x64xi32>
    %11 = arith.sitofp %10 : vector<64x64xi32> to vector<64x64xf32>
    %c0_2 = arith.constant 0 : index
    %c0_3 = arith.constant 0 : index
    %c0_4 = arith.constant 0 : index
    %12 = vector.load %arg1[%c0_2, %c0_3, %c0_4] : memref<2x64x256xf32, #tpu.memory_space<vmem>>, vector<1x64x256xf32>
    %13 = vector.shape_cast %12 : vector<1x64x256xf32> to vector<64x256xf32>
    %cst = arith.constant dense<0.000000e+00> : vector<64x256xf32>
    %14 = tpu.matmul %11, %13, %cst {dimension_numbers = #tpu.dot_dimension_numbers<[1], [0], [0], [1], [0, 0, 1, 1], [], []>} : vector<64x64xf32>, vector<64x256xf32>, vector<64x256xf32> -> vector<64x256xf32>
    %c0_5 = arith.constant 0 : index
    %c0_6 = arith.constant 0 : index
    %15 = vector.load %arg15[%c0_5, %c0_6] : memref<64x256xf32, #tpu.memory_space<vmem>>, vector<64x256xf32>
    tpu.vector_store %arg15[%c0_5, %c0_6], %14 {strides = array<i32>} : memref<64x256xf32, #tpu.memory_space<vmem>>, vector<64x256xf32>,
    %c0_7 = arith.constant 0 : index
    %c0_8 = arith.constant 0 : index
    %c0_9 = arith.constant 0 : index
    %c0_10 = arith.constant 0 : index
    %16 = vector.load %arg4[%c0_7, %c0_8, %c0_9, %c0_10] : memref<2x2x64x256xf32, #tpu.memory_space<vmem>>, vector<1x1x64x256xf32>
    %17 = vector.shape_cast %16 : vector<1x1x64x256xf32> to vector<64x256xf32>
    %c0_11 = arith.constant 0 : index
    %c0_12 = arith.constant 0 : index
    %c0_13 = arith.constant 0 : index
    %c0_14 = arith.constant 0 : index
    %18 = vector.load %arg5[%c0_11, %c0_12, %c0_13, %c0_14] : memref<2x2x1x256xf32, #tpu.memory_space<vmem>>, vector<1x1x1x256xf32>
    %19 = vector.shape_cast %18 : vector<1x1x1x256xf32> to vector<1x256xf32>
    %20 = vector.shape_cast %19 : vector<1x256xf32> to vector<1x256xf32>
    %21 = vector.broadcast %20 : vector<1x256xf32> to vector<8x256xf32>
    %cst_15 = arith.constant 0.000000e+00 : f32
    %22 = vector.broadcast %cst_15 : f32 to vector<8x64xf32>
    %c0_16 = arith.constant 0 : index
    %c0_17 = arith.constant 0 : index
    %23 = vector.load %arg15[%c0_16, %c0_17] : memref<64x256xf32, #tpu.memory_space<vmem>>, vector<8x256xf32>
    %cst_18 = arith.constant dense<0.000000e+00> : vector<8x256xf32>
    %24 = tpu.matmul %22, %17, %cst_18 {dimension_numbers = #tpu.dot_dimension_numbers<[1], [0], [0], [1], [0, 0, 1, 1], [], []>} : vector<8x64xf32>, vector<64x256xf32>, vector<8x256xf32> -> vector<8x256xf32>
    %25 = arith.addf %24, %21 : vector<8x256xf32>
    %26 = vector.extract_strided_slice %23 {offsets = [0, 0], sizes = [8, 128], strides = [1, 1]} : vector<8x256xf32> to vector<8x128xf32>
    %27 = vector.extract_strided_slice %25 {offsets = [0, 0], sizes = [8, 128], strides = [1, 1]} : vector<8x256xf32> to vector<8x128xf32>
    %28 = arith.addf %26, %27 : vector<8x128xf32>
    %29 = arith.negf %28 : vector<8x128xf32>
    %30 = math.exp %29 : vector<8x128xf32>
    %cst_19 = arith.constant 1.000000e+00 : f32
    %31 = vector.broadcast %cst_19 : f32 to vector<8x128xf32>
    %32 = arith.addf %31, %30 : vector<8x128xf32>
    %33 = arith.divf %31, %32 : vector<8x128xf32>
    %34 = vector.extract_strided_slice %33 {offsets = [0, 0], sizes = [8, 64], strides = [1, 1]} : vector<8x128xf32> to vector<8x64xf32>
    %35 = vector.extract_strided_slice %33 {offsets = [0, 64], sizes = [8, 64], strides = [1, 1]} : vector<8x128xf32> to vector<8x64xf32>
    %36 = vector.extract_strided_slice %23 {offsets = [0, 128], sizes = [8, 64], strides = [1, 1]} : vector<8x256xf32> to vector<8x64xf32>
    %37 = vector.extract_strided_slice %25 {offsets = [0, 128], sizes = [8, 64], strides = [1, 1]} : vector<8x256xf32> to vector<8x64xf32>
    %38 = arith.mulf %34, %37 : vector<8x64xf32>
    %39 = arith.addf %36, %38 : vector<8x64xf32>
    %40 = math.tanh %39 : vector<8x64xf32>
    %cst_20 = arith.constant 1.000000e+00 : f32
    %41 = vector.broadcast %cst_20 : f32 to vector<8x64xf32>
    %42 = arith.subf %41, %35 : vector<8x64xf32>
    %43 = arith.mulf %42, %40 : vector<8x64xf32>
    %44 = arith.mulf %35, %22 : vector<8x64xf32>
    %45 = arith.addf %43, %44 : vector<8x64xf32>
    %c0_21 = arith.constant 0 : index
    %c0_22 = arith.constant 0 : index
    %46 = vector.load %arg16[%c0_21, %c0_22] : memref<64x128xf32, #tpu.memory_space<vmem>>, vector<8x64xf32>
    tpu.vector_store %arg16[%c0_21, %c0_22], %45 {strides = array<i32>} : memref<64x128xf32, #tpu.memory_space<vmem>>, vector<8x64xf32>,
    %c56 = arith.constant 56 : index
    %c64 = arith.constant 64 : index
    %47 = vector.load %arg16[%c56, %c64] : memref<64x128xf32, #tpu.memory_space<vmem>>, vector<8x64xf32>
    tpu.vector_store %arg16[%c56, %c64], %45 {strides = array<i32>} : memref<64x128xf32, #tpu.memory_space<vmem>>, vector<8x64xf32>,
    %c8 = arith.constant 8 : index
    %c0_23 = arith.constant 0 : index
    %48 = vector.load %arg15[%c8, %c0_23] : memref<64x256xf32, #tpu.memory_space<vmem>>, vector<8x256xf32>
    %cst_24 = arith.constant dense<0.000000e+00> : vector<8x256xf32>
    %49 = tpu.matmul %45, %17, %cst_24 {dimension_numbers = #tpu.dot_dimension_numbers<[1], [0], [0], [1], [0, 0, 1, 1], [], []>} : vector<8x64xf32>, vector<64x256xf32>, vector<8x256xf32> -> vector<8x256xf32>
    %50 = arith.addf %49, %21 : vector<8x256xf32>
    %51 = vector.extract_strided_slice %48 {offsets = [0, 0], sizes = [8, 128], strides = [1, 1]} : vector<8x256xf32> to vector<8x128xf32>
    %52 = vector.extract_strided_slice %50 {offsets = [0, 0], sizes = [8, 128], strides = [1, 1]} : vector<8x256xf32> to vector<8x128xf32>
    %53 = arith.addf %51, %52 : vector<8x128xf32>
    %54 = arith.negf %53 : vector<8x128xf32>
    %55 = math.exp %54 : vector<8x128xf32>
    %cst_25 = arith.constant 1.000000e+00 : f32
    %56 = vector.broadcast %cst_25 : f32 to vector<8x128xf32>
    %57 = arith.addf %56, %55 : vector<8x128xf32>
    %58 = arith.divf %56, %57 : vector<8x128xf32>
    %59 = vector.extract_strided_slice %58 {offsets = [0, 0], sizes = [8, 64], strides = [1, 1]} : vector<8x128xf32> to vector<8x64xf32>
    %60 = vector.extract_strided_slice %58 {offsets = [0, 64], sizes = [8, 64], strides = [1, 1]} : vector<8x128xf32> to vector<8x64xf32>
    %61 = vector.extract_strided_slice %48 {offsets = [0, 128], sizes = [8, 64], strides = [1, 1]} : vector<8x256xf32> to vector<8x64xf32>
    %62 = vector.extract_strided_slice %50 {offsets = [0, 128], sizes = [8, 64], strides = [1, 1]} : vector<8x256xf32> to vector<8x64xf32>
    %63 = arith.mulf %59, %62 : vector<8x64xf32>
    %64 = arith.addf %61, %63 : vector<8x64xf32>
    %65 = math.tanh %64 : vector<8x64xf32>
    %cst_26 = arith.constant 1.000000e+00 : f32
    %66 = vector.broadcast %cst_26 : f32 to vector<8x64xf32>
    %67 = arith.subf %66, %60 : vector<8x64xf32>
    %68 = arith.mulf %67, %65 : vector<8x64xf32>
    %69 = arith.mulf %60, %45 : vector<8x64xf32>
    %70 = arith.addf %68, %69 : vector<8x64xf32>
    %c8_27 = arith.constant 8 : index
    %c0_28 = arith.constant 0 : index
    %71 = vector.load %arg16[%c8_27, %c0_28] : memref<64x128xf32, #tpu.memory_space<vmem>>, vector<8x64xf32>
    tpu.vector_store %arg16[%c8_27, %c0_28], %70 {strides = array<i32>} : memref<64x128xf32, #tpu.memory_space<vmem>>, vector<8x64xf32>,
    %c48 = arith.constant 48 : index
    %c64_29 = arith.constant 64 : index
    %72 = vector.load %arg16[%c48, %c64_29] : memref<64x128xf32, #tpu.memory_space<vmem>>, vector<8x64xf32>
    tpu.vector_store %arg16[%c48, %c64_29], %70 {strides = array<i32>} : memref<64x128xf32, #tpu.memory_space<vmem>>, vector<8x64xf32>,
    %c16 = arith.constant 16 : index
    %c0_30 = arith.constant 0 : index
    %73 = vector.load %arg15[%c16, %c0_30] : memref<64x256xf32, #tpu.memory_space<vmem>>, vector<8x256xf32>
    %cst_31 = arith.constant dense<0.000000e+00> : vector<8x256xf32>
    %74 = tpu.matmul %70, %17, %cst_31 {dimension_numbers = #tpu.dot_dimension_numbers<[1], [0], [0], [1], [0, 0, 1, 1], [], []>} : vector<8x64xf32>, vector<64x256xf32>, vector<8x256xf32> -> vector<8x256xf32>
    %75 = arith.addf %74, %21 : vector<8x256xf32>
    %76 = vector.extract_strided_slice %73 {offsets = [0, 0], sizes = [8, 128], strides = [1, 1]} : vector<8x256xf32> to vector<8x128xf32>
    %77 = vector.extract_strided_slice %75 {offsets = [0, 0], sizes = [8, 128], strides = [1, 1]} : vector<8x256xf32> to vector<8x128xf32>
    %78 = arith.addf %76, %77 : vector<8x128xf32>
    %79 = arith.negf %78 : vector<8x128xf32>
    %80 = math.exp %79 : vector<8x128xf32>
    %cst_32 = arith.constant 1.000000e+00 : f32
    %81 = vector.broadcast %cst_32 : f32 to vector<8x128xf32>
    %82 = arith.addf %81, %80 : vector<8x128xf32>
    %83 = arith.divf %81, %82 : vector<8x128xf32>
    %84 = vector.extract_strided_slice %83 {offsets = [0, 0], sizes = [8, 64], strides = [1, 1]} : vector<8x128xf32> to vector<8x64xf32>
    %85 = vector.extract_strided_slice %83 {offsets = [0, 64], sizes = [8, 64], strides = [1, 1]} : vector<8x128xf32> to vector<8x64xf32>
    %86 = vector.extract_strided_slice %73 {offsets = [0, 128], sizes = [8, 64], strides = [1, 1]} : vector<8x256xf32> to vector<8x64xf32>
    %87 = vector.extract_strided_slice %75 {offsets = [0, 128], sizes = [8, 64], strides = [1, 1]} : vector<8x256xf32> to vector<8x64xf32>
    %88 = arith.mulf %84, %87 : vector<8x64xf32>
    %89 = arith.addf %86, %88 : vector<8x64xf32>
    %90 = math.tanh %89 : vector<8x64xf32>
    %cst_33 = arith.constant 1.000000e+00 : f32
    %91 = vector.broadcast %cst_33 : f32 to vector<8x64xf32>
    %92 = arith.subf %91, %85 : vector<8x64xf32>
    %93 = arith.mulf %92, %90 : vector<8x64xf32>
    %94 = arith.mulf %85, %70 : vector<8x64xf32>
    %95 = arith.addf %93, %94 : vector<8x64xf32>
    %c16_34 = arith.constant 16 : index
    %c0_35 = arith.constant 0 : index
    %96 = vector.load %arg16[%c16_34, %c0_35] : memref<64x128xf32, #tpu.memory_space<vmem>>, vector<8x64xf32>
    tpu.vector_store %arg16[%c16_34, %c0_35], %95 {strides = array<i32>} : memref<64x128xf32, #tpu.memory_space<vmem>>, vector<8x64xf32>,
    %c40 = arith.constant 40 : index
    %c64_36 = arith.constant 64 : index
    %97 = vector.load %arg16[%c40, %c64_36] : memref<64x128xf32, #tpu.memory_space<vmem>>, vector<8x64xf32>
    tpu.vector_store %arg16[%c40, %c64_36], %95 {strides = array<i32>} : memref<64x128xf32, #tpu.memory_space<vmem>>, vector<8x64xf32>,
    %c24 = arith.constant 24 : index
    %c0_37 = arith.constant 0 : index
    %98 = vector.load %arg15[%c24, %c0_37] : memref<64x256xf32, #tpu.memory_space<vmem>>, vector<8x256xf32>
    %cst_38 = arith.constant dense<0.000000e+00> : vector<8x256xf32>
    %99 = tpu.matmul %95, %17, %cst_38 {dimension_numbers = #tpu.dot_dimension_numbers<[1], [0], [0], [1], [0, 0, 1, 1], [], []>} : vector<8x64xf32>, vector<64x256xf32>, vector<8x256xf32> -> vector<8x256xf32>
    %100 = arith.addf %99, %21 : vector<8x256xf32>
    %101 = vector.extract_strided_slice %98 {offsets = [0, 0], sizes = [8, 128], strides = [1, 1]} : vector<8x256xf32> to vector<8x128xf32>
    %102 = vector.extract_strided_slice %100 {offsets = [0, 0], sizes = [8, 128], strides = [1, 1]} : vector<8x256xf32> to vector<8x128xf32>
    %103 = arith.addf %101, %102 : vector<8x128xf32>
    %104 = arith.negf %103 : vector<8x128xf32>
    %105 = math.exp %104 : vector<8x128xf32>
    %cst_39 = arith.constant 1.000000e+00 : f32
    %106 = vector.broadcast %cst_39 : f32 to vector<8x128xf32>
    %107 = arith.addf %106, %105 : vector<8x128xf32>
    %108 = arith.divf %106, %107 : vector<8x128xf32>
    %109 = vector.extract_strided_slice %108 {offsets = [0, 0], sizes = [8, 64], strides = [1, 1]} : vector<8x128xf32> to vector<8x64xf32>
    %110 = vector.extract_strided_slice %108 {offsets = [0, 64], sizes = [8, 64], strides = [1, 1]} : vector<8x128xf32> to vector<8x64xf32>
    %111 = vector.extract_strided_slice %98 {offsets = [0, 128], sizes = [8, 64], strides = [1, 1]} : vector<8x256xf32> to vector<8x64xf32>
    %112 = vector.extract_strided_slice %100 {offsets = [0, 128], sizes = [8, 64], strides = [1, 1]} : vector<8x256xf32> to vector<8x64xf32>
    %113 = arith.mulf %109, %112 : vector<8x64xf32>
    %114 = arith.addf %111, %113 : vector<8x64xf32>
    %115 = math.tanh %114 : vector<8x64xf32>
    %cst_40 = arith.constant 1.000000e+00 : f32
    %116 = vector.broadcast %cst_40 : f32 to vector<8x64xf32>
    %117 = arith.subf %116, %110 : vector<8x64xf32>
    %118 = arith.mulf %117, %115 : vector<8x64xf32>
    %119 = arith.mulf %110, %95 : vector<8x64xf32>
    %120 = arith.addf %118, %119 : vector<8x64xf32>
    %c24_41 = arith.constant 24 : index
    %c0_42 = arith.constant 0 : index
    %121 = vector.load %arg16[%c24_41, %c0_42] : memref<64x128xf32, #tpu.memory_space<vmem>>, vector<8x64xf32>
    tpu.vector_store %arg16[%c24_41, %c0_42], %120 {strides = array<i32>} : memref<64x128xf32, #tpu.memory_space<vmem>>, vector<8x64xf32>,
    %c32 = arith.constant 32 : index
    %c64_43 = arith.constant 64 : index
    %122 = vector.load %arg16[%c32, %c64_43] : memref<64x128xf32, #tpu.memory_space<vmem>>, vector<8x64xf32>
    tpu.vector_store %arg16[%c32, %c64_43], %120 {strides = array<i32>} : memref<64x128xf32, #tpu.memory_space<vmem>>, vector<8x64xf32>,
    %c32_44 = arith.constant 32 : index
    %c0_45 = arith.constant 0 : index
    %123 = vector.load %arg15[%c32_44, %c0_45] : memref<64x256xf32, #tpu.memory_space<vmem>>, vector<8x256xf32>
    %cst_46 = arith.constant dense<0.000000e+00> : vector<8x256xf32>
    %124 = tpu.matmul %120, %17, %cst_46 {dimension_numbers = #tpu.dot_dimension_numbers<[1], [0], [0], [1], [0, 0, 1, 1], [], []>} : vector<8x64xf32>, vector<64x256xf32>, vector<8x256xf32> -> vector<8x256xf32>
    %125 = arith.addf %124, %21 : vector<8x256xf32>
    %126 = vector.extract_strided_slice %123 {offsets = [0, 0], sizes = [8, 128], strides = [1, 1]} : vector<8x256xf32> to vector<8x128xf32>
    %127 = vector.extract_strided_slice %125 {offsets = [0, 0], sizes = [8, 128], strides = [1, 1]} : vector<8x256xf32> to vector<8x128xf32>
    %128 = arith.addf %126, %127 : vector<8x128xf32>
    %129 = arith.negf %128 : vector<8x128xf32>
    %130 = math.exp %129 : vector<8x128xf32>
    %cst_47 = arith.constant 1.000000e+00 : f32
    %131 = vector.broadcast %cst_47 : f32 to vector<8x128xf32>
    %132 = arith.addf %131, %130 : vector<8x128xf32>
    %133 = arith.divf %131, %132 : vector<8x128xf32>
    %134 = vector.extract_strided_slice %133 {offsets = [0, 0], sizes = [8, 64], strides = [1, 1]} : vector<8x128xf32> to vector<8x64xf32>
    %135 = vector.extract_strided_slice %133 {offsets = [0, 64], sizes = [8, 64], strides = [1, 1]} : vector<8x128xf32> to vector<8x64xf32>
    %136 = vector.extract_strided_slice %123 {offsets = [0, 128], sizes = [8, 64], strides = [1, 1]} : vector<8x256xf32> to vector<8x64xf32>
    %137 = vector.extract_strided_slice %125 {offsets = [0, 128], sizes = [8, 64], strides = [1, 1]} : vector<8x256xf32> to vector<8x64xf32>
    %138 = arith.mulf %134, %137 : vector<8x64xf32>
    %139 = arith.addf %136, %138 : vector<8x64xf32>
    %140 = math.tanh %139 : vector<8x64xf32>
    %cst_48 = arith.constant 1.000000e+00 : f32
    %141 = vector.broadcast %cst_48 : f32 to vector<8x64xf32>
    %142 = arith.subf %141, %135 : vector<8x64xf32>
    %143 = arith.mulf %142, %140 : vector<8x64xf32>
    %144 = arith.mulf %135, %120 : vector<8x64xf32>
    %145 = arith.addf %143, %144 : vector<8x64xf32>
    %c32_49 = arith.constant 32 : index
    %c0_50 = arith.constant 0 : index
    %146 = vector.load %arg16[%c32_49, %c0_50] : memref<64x128xf32, #tpu.memory_space<vmem>>, vector<8x64xf32>
    tpu.vector_store %arg16[%c32_49, %c0_50], %145 {strides = array<i32>} : memref<64x128xf32, #tpu.memory_space<vmem>>, vector<8x64xf32>,
    %c24_51 = arith.constant 24 : index
    %c64_52 = arith.constant 64 : index
    %147 = vector.load %arg16[%c24_51, %c64_52] : memref<64x128xf32, #tpu.memory_space<vmem>>, vector<8x64xf32>
    tpu.vector_store %arg16[%c24_51, %c64_52], %145 {strides = array<i32>} : memref<64x128xf32, #tpu.memory_space<vmem>>, vector<8x64xf32>,
    %c40_53 = arith.constant 40 : index
    %c0_54 = arith.constant 0 : index
    %148 = vector.load %arg15[%c40_53, %c0_54] : memref<64x256xf32, #tpu.memory_space<vmem>>, vector<8x256xf32>
    %cst_55 = arith.constant dense<0.000000e+00> : vector<8x256xf32>
    %149 = tpu.matmul %145, %17, %cst_55 {dimension_numbers = #tpu.dot_dimension_numbers<[1], [0], [0], [1], [0, 0, 1, 1], [], []>} : vector<8x64xf32>, vector<64x256xf32>, vector<8x256xf32> -> vector<8x256xf32>
    %150 = arith.addf %149, %21 : vector<8x256xf32>
    %151 = vector.extract_strided_slice %148 {offsets = [0, 0], sizes = [8, 128], strides = [1, 1]} : vector<8x256xf32> to vector<8x128xf32>
    %152 = vector.extract_strided_slice %150 {offsets = [0, 0], sizes = [8, 128], strides = [1, 1]} : vector<8x256xf32> to vector<8x128xf32>
    %153 = arith.addf %151, %152 : vector<8x128xf32>
    %154 = arith.negf %153 : vector<8x128xf32>
    %155 = math.exp %154 : vector<8x128xf32>
    %cst_56 = arith.constant 1.000000e+00 : f32
    %156 = vector.broadcast %cst_56 : f32 to vector<8x128xf32>
    %157 = arith.addf %156, %155 : vector<8x128xf32>
    %158 = arith.divf %156, %157 : vector<8x128xf32>
    %159 = vector.extract_strided_slice %158 {offsets = [0, 0], sizes = [8, 64], strides = [1, 1]} : vector<8x128xf32> to vector<8x64xf32>
    %160 = vector.extract_strided_slice %158 {offsets = [0, 64], sizes = [8, 64], strides = [1, 1]} : vector<8x128xf32> to vector<8x64xf32>
    %161 = vector.extract_strided_slice %148 {offsets = [0, 128], sizes = [8, 64], strides = [1, 1]} : vector<8x256xf32> to vector<8x64xf32>
    %162 = vector.extract_strided_slice %150 {offsets = [0, 128], sizes = [8, 64], strides = [1, 1]} : vector<8x256xf32> to vector<8x64xf32>
    %163 = arith.mulf %159, %162 : vector<8x64xf32>
    %164 = arith.addf %161, %163 : vector<8x64xf32>
    %165 = math.tanh %164 : vector<8x64xf32>
    %cst_57 = arith.constant 1.000000e+00 : f32
    %166 = vector.broadcast %cst_57 : f32 to vector<8x64xf32>
    %167 = arith.subf %166, %160 : vector<8x64xf32>
    %168 = arith.mulf %167, %165 : vector<8x64xf32>
    %169 = arith.mulf %160, %145 : vector<8x64xf32>
    %170 = arith.addf %168, %169 : vector<8x64xf32>
    %c40_58 = arith.constant 40 : index
    %c0_59 = arith.constant 0 : index
    %171 = vector.load %arg16[%c40_58, %c0_59] : memref<64x128xf32, #tpu.memory_space<vmem>>, vector<8x64xf32>
    tpu.vector_store %arg16[%c40_58, %c0_59], %170 {strides = array<i32>} : memref<64x128xf32, #tpu.memory_space<vmem>>, vector<8x64xf32>,
    %c16_60 = arith.constant 16 : index
    %c64_61 = arith.constant 64 : index
    %172 = vector.load %arg16[%c16_60, %c64_61] : memref<64x128xf32, #tpu.memory_space<vmem>>, vector<8x64xf32>
    tpu.vector_store %arg16[%c16_60, %c64_61], %170 {strides = array<i32>} : memref<64x128xf32, #tpu.memory_space<vmem>>, vector<8x64xf32>,
    %c48_62 = arith.constant 48 : index
    %c0_63 = arith.constant 0 : index
    %173 = vector.load %arg15[%c48_62, %c0_63] : memref<64x256xf32, #tpu.memory_space<vmem>>, vector<8x256xf32>
    %cst_64 = arith.constant dense<0.000000e+00> : vector<8x256xf32>
    %174 = tpu.matmul %170, %17, %cst_64 {dimension_numbers = #tpu.dot_dimension_numbers<[1], [0], [0], [1], [0, 0, 1, 1], [], []>} : vector<8x64xf32>, vector<64x256xf32>, vector<8x256xf32> -> vector<8x256xf32>
    %175 = arith.addf %174, %21 : vector<8x256xf32>
    %176 = vector.extract_strided_slice %173 {offsets = [0, 0], sizes = [8, 128], strides = [1, 1]} : vector<8x256xf32> to vector<8x128xf32>
    %177 = vector.extract_strided_slice %175 {offsets = [0, 0], sizes = [8, 128], strides = [1, 1]} : vector<8x256xf32> to vector<8x128xf32>
    %178 = arith.addf %176, %177 : vector<8x128xf32>
    %179 = arith.negf %178 : vector<8x128xf32>
    %180 = math.exp %179 : vector<8x128xf32>
    %cst_65 = arith.constant 1.000000e+00 : f32
    %181 = vector.broadcast %cst_65 : f32 to vector<8x128xf32>
    %182 = arith.addf %181, %180 : vector<8x128xf32>
    %183 = arith.divf %181, %182 : vector<8x128xf32>
    %184 = vector.extract_strided_slice %183 {offsets = [0, 0], sizes = [8, 64], strides = [1, 1]} : vector<8x128xf32> to vector<8x64xf32>
    %185 = vector.extract_strided_slice %183 {offsets = [0, 64], sizes = [8, 64], strides = [1, 1]} : vector<8x128xf32> to vector<8x64xf32>
    %186 = vector.extract_strided_slice %173 {offsets = [0, 128], sizes = [8, 64], strides = [1, 1]} : vector<8x256xf32> to vector<8x64xf32>
    %187 = vector.extract_strided_slice %175 {offsets = [0, 128], sizes = [8, 64], strides = [1, 1]} : vector<8x256xf32> to vector<8x64xf32>
    %188 = arith.mulf %184, %187 : vector<8x64xf32>
    %189 = arith.addf %186, %188 : vector<8x64xf32>
    %190 = math.tanh %189 : vector<8x64xf32>
    %cst_66 = arith.constant 1.000000e+00 : f32
    %191 = vector.broadcast %cst_66 : f32 to vector<8x64xf32>
    %192 = arith.subf %191, %185 : vector<8x64xf32>
    %193 = arith.mulf %192, %190 : vector<8x64xf32>
    %194 = arith.mulf %185, %170 : vector<8x64xf32>
    %195 = arith.addf %193, %194 : vector<8x64xf32>
    %c48_67 = arith.constant 48 : index
    %c0_68 = arith.constant 0 : index
    %196 = vector.load %arg16[%c48_67, %c0_68] : memref<64x128xf32, #tpu.memory_space<vmem>>, vector<8x64xf32>
    tpu.vector_store %arg16[%c48_67, %c0_68], %195 {strides = array<i32>} : memref<64x128xf32, #tpu.memory_space<vmem>>, vector<8x64xf32>,
    %c8_69 = arith.constant 8 : index
    %c64_70 = arith.constant 64 : index
    %197 = vector.load %arg16[%c8_69, %c64_70] : memref<64x128xf32, #tpu.memory_space<vmem>>, vector<8x64xf32>
    tpu.vector_store %arg16[%c8_69, %c64_70], %195 {strides = array<i32>} : memref<64x128xf32, #tpu.memory_space<vmem>>, vector<8x64xf32>,
    %c56_71 = arith.constant 56 : index
    %c0_72 = arith.constant 0 : index
    %198 = vector.load %arg15[%c56_71, %c0_72] : memref<64x256xf32, #tpu.memory_space<vmem>>, vector<8x256xf32>
    %cst_73 = arith.constant dense<0.000000e+00> : vector<8x256xf32>
    %199 = tpu.matmul %195, %17, %cst_73 {dimension_numbers = #tpu.dot_dimension_numbers<[1], [0], [0], [1], [0, 0, 1, 1], [], []>} : vector<8x64xf32>, vector<64x256xf32>, vector<8x256xf32> -> vector<8x256xf32>
    %200 = arith.addf %199, %21 : vector<8x256xf32>
    %201 = vector.extract_strided_slice %198 {offsets = [0, 0], sizes = [8, 128], strides = [1, 1]} : vector<8x256xf32> to vector<8x128xf32>
    %202 = vector.extract_strided_slice %200 {offsets = [0, 0], sizes = [8, 128], strides = [1, 1]} : vector<8x256xf32> to vector<8x128xf32>
    %203 = arith.addf %201, %202 : vector<8x128xf32>
    %204 = arith.negf %203 : vector<8x128xf32>
    %205 = math.exp %204 : vector<8x128xf32>
    %cst_74 = arith.constant 1.000000e+00 : f32
    %206 = vector.broadcast %cst_74 : f32 to vector<8x128xf32>
    %207 = arith.addf %206, %205 : vector<8x128xf32>
    %208 = arith.divf %206, %207 : vector<8x128xf32>
    %209 = vector.extract_strided_slice %208 {offsets = [0, 0], sizes = [8, 64], strides = [1, 1]} : vector<8x128xf32> to vector<8x64xf32>
    %210 = vector.extract_strided_slice %208 {offsets = [0, 64], sizes = [8, 64], strides = [1, 1]} : vector<8x128xf32> to vector<8x64xf32>
    %211 = vector.extract_strided_slice %198 {offsets = [0, 128], sizes = [8, 64], strides = [1, 1]} : vector<8x256xf32> to vector<8x64xf32>
    %212 = vector.extract_strided_slice %200 {offsets = [0, 128], sizes = [8, 64], strides = [1, 1]} : vector<8x256xf32> to vector<8x64xf32>
    %213 = arith.mulf %209, %212 : vector<8x64xf32>
    %214 = arith.addf %211, %213 : vector<8x64xf32>
    %215 = math.tanh %214 : vector<8x64xf32>
    %cst_75 = arith.constant 1.000000e+00 : f32
    %216 = vector.broadcast %cst_75 : f32 to vector<8x64xf32>
    %217 = arith.subf %216, %210 : vector<8x64xf32>
    %218 = arith.mulf %217, %215 : vector<8x64xf32>
    %219 = arith.mulf %210, %195 : vector<8x64xf32>
    %220 = arith.addf %218, %219 : vector<8x64xf32>
    %c56_76 = arith.constant 56 : index
    %c0_77 = arith.constant 0 : index
    %221 = vector.load %arg16[%c56_76, %c0_77] : memref<64x128xf32, #tpu.memory_space<vmem>>, vector<8x64xf32>
    tpu.vector_store %arg16[%c56_76, %c0_77], %220 {strides = array<i32>} : memref<64x128xf32, #tpu.memory_space<vmem>>, vector<8x64xf32>,
    %c0_78 = arith.constant 0 : index
    %c64_79 = arith.constant 64 : index
    %222 = vector.load %arg16[%c0_78, %c64_79] : memref<64x128xf32, #tpu.memory_space<vmem>>, vector<8x64xf32>
    tpu.vector_store %arg16[%c0_78, %c64_79], %220 {strides = array<i32>} : memref<64x128xf32, #tpu.memory_space<vmem>>, vector<8x64xf32>,
    %c0_80 = arith.constant 0 : index
    %c0_81 = arith.constant 0 : index
    %223 = vector.load %arg16[%c0_80, %c0_81] : memref<64x128xf32, #tpu.memory_space<vmem>>, vector<64x128xf32>
    %c0_82 = arith.constant 0 : index
    %c0_83 = arith.constant 0 : index
    %c0_84 = arith.constant 0 : index
    %224 = vector.load %arg2[%c0_82, %c0_83, %c0_84] : memref<2x128x256xf32, #tpu.memory_space<vmem>>, vector<1x128x256xf32>
    %225 = vector.shape_cast %224 : vector<1x128x256xf32> to vector<128x256xf32>
    %cst_85 = arith.constant dense<0.000000e+00> : vector<64x256xf32>
    %226 = tpu.matmul %223, %225, %cst_85 {dimension_numbers = #tpu.dot_dimension_numbers<[1], [0], [0], [1], [0, 0, 1, 1], [], []>} : vector<64x128xf32>, vector<128x256xf32>, vector<64x256xf32> -> vector<64x256xf32>
    %c0_86 = arith.constant 0 : index
    %c0_87 = arith.constant 0 : index
    %c0_88 = arith.constant 0 : index
    %227 = vector.load %arg3[%c0_86, %c0_87, %c0_88] : memref<2x1x256xf32, #tpu.memory_space<vmem>>, vector<1x1x256xf32>
    %228 = vector.shape_cast %227 : vector<1x1x256xf32> to vector<1x256xf32>
    %229 = vector.broadcast %228 : vector<1x256xf32> to vector<64x256xf32>
    %230 = arith.addf %226, %229 : vector<64x256xf32>
    %c0_89 = arith.constant 0 : index
    %c0_90 = arith.constant 0 : index
    %231 = vector.load %arg15[%c0_89, %c0_90] : memref<64x256xf32, #tpu.memory_space<vmem>>, vector<64x256xf32>
    tpu.vector_store %arg15[%c0_89, %c0_90], %230 {strides = array<i32>} : memref<64x256xf32, #tpu.memory_space<vmem>>, vector<64x256xf32>,
    %c0_91 = arith.constant 0 : index
    %c1 = arith.constant 1 : index
    %c0_92 = arith.constant 0 : index
    %c0_93 = arith.constant 0 : index
    %232 = vector.load %arg4[%c0_91, %c1, %c0_92, %c0_93] : memref<2x2x64x256xf32, #tpu.memory_space<vmem>>, vector<1x1x64x256xf32>
    %233 = vector.shape_cast %232 : vector<1x1x64x256xf32> to vector<64x256xf32>
    %c0_94 = arith.constant 0 : index
    %c1_95 = arith.constant 1 : index
    %c0_96 = arith.constant 0 : index
    %c0_97 = arith.constant 0 : index
    %234 = vector.load %arg5[%c0_94, %c1_95, %c0_96, %c0_97] : memref<2x2x1x256xf32, #tpu.memory_space<vmem>>, vector<1x1x1x256xf32>
    %235 = vector.shape_cast %234 : vector<1x1x1x256xf32> to vector<1x256xf32>
    %236 = vector.shape_cast %235 : vector<1x256xf32> to vector<1x256xf32>
    %237 = vector.broadcast %236 : vector<1x256xf32> to vector<8x256xf32>
    %cst_98 = arith.constant 0.000000e+00 : f32
    %238 = vector.broadcast %cst_98 : f32 to vector<8x64xf32>
    %c0_99 = arith.constant 0 : index
    %c0_100 = arith.constant 0 : index
    %239 = vector.load %arg15[%c0_99, %c0_100] : memref<64x256xf32, #tpu.memory_space<vmem>>, vector<8x256xf32>
    %cst_101 = arith.constant dense<0.000000e+00> : vector<8x256xf32>
    %240 = tpu.matmul %238, %233, %cst_101 {dimension_numbers = #tpu.dot_dimension_numbers<[1], [0], [0], [1], [0, 0, 1, 1], [], []>} : vector<8x64xf32>, vector<64x256xf32>, vector<8x256xf32> -> vector<8x256xf32>
    %241 = arith.addf %240, %237 : vector<8x256xf32>
    %242 = vector.extract_strided_slice %239 {offsets = [0, 0], sizes = [8, 128], strides = [1, 1]} : vector<8x256xf32> to vector<8x128xf32>
    %243 = vector.extract_strided_slice %241 {offsets = [0, 0], sizes = [8, 128], strides = [1, 1]} : vector<8x256xf32> to vector<8x128xf32>
    %244 = arith.addf %242, %243 : vector<8x128xf32>
    %245 = arith.negf %244 : vector<8x128xf32>
    %246 = math.exp %245 : vector<8x128xf32>
    %cst_102 = arith.constant 1.000000e+00 : f32
    %247 = vector.broadcast %cst_102 : f32 to vector<8x128xf32>
    %248 = arith.addf %247, %246 : vector<8x128xf32>
    %249 = arith.divf %247, %248 : vector<8x128xf32>
    %250 = vector.extract_strided_slice %249 {offsets = [0, 0], sizes = [8, 64], strides = [1, 1]} : vector<8x128xf32> to vector<8x64xf32>
    %251 = vector.extract_strided_slice %249 {offsets = [0, 64], sizes = [8, 64], strides = [1, 1]} : vector<8x128xf32> to vector<8x64xf32>
    %252 = vector.extract_strided_slice %239 {offsets = [0, 128], sizes = [8, 64], strides = [1, 1]} : vector<8x256xf32> to vector<8x64xf32>
    %253 = vector.extract_strided_slice %241 {offsets = [0, 128], sizes = [8, 64], strides = [1, 1]} : vector<8x256xf32> to vector<8x64xf32>
    %254 = arith.mulf %250, %253 : vector<8x64xf32>
    %255 = arith.addf %252, %254 : vector<8x64xf32>
    %256 = math.tanh %255 : vector<8x64xf32>
    %cst_103 = arith.constant 1.000000e+00 : f32
    %257 = vector.broadcast %cst_103 : f32 to vector<8x64xf32>
    %258 = arith.subf %257, %251 : vector<8x64xf32>
    %259 = arith.mulf %258, %256 : vector<8x64xf32>
    %260 = arith.mulf %251, %238 : vector<8x64xf32>
    %261 = arith.addf %259, %260 : vector<8x64xf32>
    %c8_104 = arith.constant 8 : index
    %c0_105 = arith.constant 0 : index
    %262 = vector.load %arg15[%c8_104, %c0_105] : memref<64x256xf32, #tpu.memory_space<vmem>>, vector<8x256xf32>
    %cst_106 = arith.constant dense<0.000000e+00> : vector<8x256xf32>
    %263 = tpu.matmul %261, %233, %cst_106 {dimension_numbers = #tpu.dot_dimension_numbers<[1], [0], [0], [1], [0, 0, 1, 1], [], []>} : vector<8x64xf32>, vector<64x256xf32>, vector<8x256xf32> -> vector<8x256xf32>
    %264 = arith.addf %263, %237 : vector<8x256xf32>
    %265 = vector.extract_strided_slice %262 {offsets = [0, 0], sizes = [8, 128], strides = [1, 1]} : vector<8x256xf32> to vector<8x128xf32>
    %266 = vector.extract_strided_slice %264 {offsets = [0, 0], sizes = [8, 128], strides = [1, 1]} : vector<8x256xf32> to vector<8x128xf32>
    %267 = arith.addf %265, %266 : vector<8x128xf32>
    %268 = arith.negf %267 : vector<8x128xf32>
    %269 = math.exp %268 : vector<8x128xf32>
    %cst_107 = arith.constant 1.000000e+00 : f32
    %270 = vector.broadcast %cst_107 : f32 to vector<8x128xf32>
    %271 = arith.addf %270, %269 : vector<8x128xf32>
    %272 = arith.divf %270, %271 : vector<8x128xf32>
    %273 = vector.extract_strided_slice %272 {offsets = [0, 0], sizes = [8, 64], strides = [1, 1]} : vector<8x128xf32> to vector<8x64xf32>
    %274 = vector.extract_strided_slice %272 {offsets = [0, 64], sizes = [8, 64], strides = [1, 1]} : vector<8x128xf32> to vector<8x64xf32>
    %275 = vector.extract_strided_slice %262 {offsets = [0, 128], sizes = [8, 64], strides = [1, 1]} : vector<8x256xf32> to vector<8x64xf32>
    %276 = vector.extract_strided_slice %264 {offsets = [0, 128], sizes = [8, 64], strides = [1, 1]} : vector<8x256xf32> to vector<8x64xf32>
    %277 = arith.mulf %273, %276 : vector<8x64xf32>
    %278 = arith.addf %275, %277 : vector<8x64xf32>
    %279 = math.tanh %278 : vector<8x64xf32>
    %cst_108 = arith.constant 1.000000e+00 : f32
    %280 = vector.broadcast %cst_108 : f32 to vector<8x64xf32>
    %281 = arith.subf %280, %274 : vector<8x64xf32>
    %282 = arith.mulf %281, %279 : vector<8x64xf32>
    %283 = arith.mulf %274, %261 : vector<8x64xf32>
    %284 = arith.addf %282, %283 : vector<8x64xf32>
    %c16_109 = arith.constant 16 : index
    %c0_110 = arith.constant 0 : index
    %285 = vector.load %arg15[%c16_109, %c0_110] : memref<64x256xf32, #tpu.memory_space<vmem>>, vector<8x256xf32>
    %cst_111 = arith.constant dense<0.000000e+00> : vector<8x256xf32>
    %286 = tpu.matmul %284, %233, %cst_111 {dimension_numbers = #tpu.dot_dimension_numbers<[1], [0], [0], [1], [0, 0, 1, 1], [], []>} : vector<8x64xf32>, vector<64x256xf32>, vector<8x256xf32> -> vector<8x256xf32>
    %287 = arith.addf %286, %237 : vector<8x256xf32>
    %288 = vector.extract_strided_slice %285 {offsets = [0, 0], sizes = [8, 128], strides = [1, 1]} : vector<8x256xf32> to vector<8x128xf32>
    %289 = vector.extract_strided_slice %287 {offsets = [0, 0], sizes = [8, 128], strides = [1, 1]} : vector<8x256xf32> to vector<8x128xf32>
    %290 = arith.addf %288, %289 : vector<8x128xf32>
    %291 = arith.negf %290 : vector<8x128xf32>
    %292 = math.exp %291 : vector<8x128xf32>
    %cst_112 = arith.constant 1.000000e+00 : f32
    %293 = vector.broadcast %cst_112 : f32 to vector<8x128xf32>
    %294 = arith.addf %293, %292 : vector<8x128xf32>
    %295 = arith.divf %293, %294 : vector<8x128xf32>
    %296 = vector.extract_strided_slice %295 {offsets = [0, 0], sizes = [8, 64], strides = [1, 1]} : vector<8x128xf32> to vector<8x64xf32>
    %297 = vector.extract_strided_slice %295 {offsets = [0, 64], sizes = [8, 64], strides = [1, 1]} : vector<8x128xf32> to vector<8x64xf32>
    %298 = vector.extract_strided_slice %285 {offsets = [0, 128], sizes = [8, 64], strides = [1, 1]} : vector<8x256xf32> to vector<8x64xf32>
    %299 = vector.extract_strided_slice %287 {offsets = [0, 128], sizes = [8, 64], strides = [1, 1]} : vector<8x256xf32> to vector<8x64xf32>
    %300 = arith.mulf %296, %299 : vector<8x64xf32>
    %301 = arith.addf %298, %300 : vector<8x64xf32>
    %302 = math.tanh %301 : vector<8x64xf32>
    %cst_113 = arith.constant 1.000000e+00 : f32
    %303 = vector.broadcast %cst_113 : f32 to vector<8x64xf32>
    %304 = arith.subf %303, %297 : vector<8x64xf32>
    %305 = arith.mulf %304, %302 : vector<8x64xf32>
    %306 = arith.mulf %297, %284 : vector<8x64xf32>
    %307 = arith.addf %305, %306 : vector<8x64xf32>
    %c24_114 = arith.constant 24 : index
    %c0_115 = arith.constant 0 : index
    %308 = vector.load %arg15[%c24_114, %c0_115] : memref<64x256xf32, #tpu.memory_space<vmem>>, vector<8x256xf32>
    %cst_116 = arith.constant dense<0.000000e+00> : vector<8x256xf32>
    %309 = tpu.matmul %307, %233, %cst_116 {dimension_numbers = #tpu.dot_dimension_numbers<[1], [0], [0], [1], [0, 0, 1, 1], [], []>} : vector<8x64xf32>, vector<64x256xf32>, vector<8x256xf32> -> vector<8x256xf32>
    %310 = arith.addf %309, %237 : vector<8x256xf32>
    %311 = vector.extract_strided_slice %308 {offsets = [0, 0], sizes = [8, 128], strides = [1, 1]} : vector<8x256xf32> to vector<8x128xf32>
    %312 = vector.extract_strided_slice %310 {offsets = [0, 0], sizes = [8, 128], strides = [1, 1]} : vector<8x256xf32> to vector<8x128xf32>
    %313 = arith.addf %311, %312 : vector<8x128xf32>
    %314 = arith.negf %313 : vector<8x128xf32>
    %315 = math.exp %314 : vector<8x128xf32>
    %cst_117 = arith.constant 1.000000e+00 : f32
    %316 = vector.broadcast %cst_117 : f32 to vector<8x128xf32>
    %317 = arith.addf %316, %315 : vector<8x128xf32>
    %318 = arith.divf %316, %317 : vector<8x128xf32>
    %319 = vector.extract_strided_slice %318 {offsets = [0, 0], sizes = [8, 64], strides = [1, 1]} : vector<8x128xf32> to vector<8x64xf32>
    %320 = vector.extract_strided_slice %318 {offsets = [0, 64], sizes = [8, 64], strides = [1, 1]} : vector<8x128xf32> to vector<8x64xf32>
    %321 = vector.extract_strided_slice %308 {offsets = [0, 128], sizes = [8, 64], strides = [1, 1]} : vector<8x256xf32> to vector<8x64xf32>
    %322 = vector.extract_strided_slice %310 {offsets = [0, 128], sizes = [8, 64], strides = [1, 1]} : vector<8x256xf32> to vector<8x64xf32>
    %323 = arith.mulf %319, %322 : vector<8x64xf32>
    %324 = arith.addf %321, %323 : vector<8x64xf32>
    %325 = math.tanh %324 : vector<8x64xf32>
    %cst_118 = arith.constant 1.000000e+00 : f32
    %326 = vector.broadcast %cst_118 : f32 to vector<8x64xf32>
    %327 = arith.subf %326, %320 : vector<8x64xf32>
    %328 = arith.mulf %327, %325 : vector<8x64xf32>
    %329 = arith.mulf %320, %307 : vector<8x64xf32>
    %330 = arith.addf %328, %329 : vector<8x64xf32>
    %c32_119 = arith.constant 32 : index
    %c0_120 = arith.constant 0 : index
    %331 = vector.load %arg15[%c32_119, %c0_120] : memref<64x256xf32, #tpu.memory_space<vmem>>, vector<8x256xf32>
    %cst_121 = arith.constant dense<0.000000e+00> : vector<8x256xf32>
    %332 = tpu.matmul %330, %233, %cst_121 {dimension_numbers = #tpu.dot_dimension_numbers<[1], [0], [0], [1], [0, 0, 1, 1], [], []>} : vector<8x64xf32>, vector<64x256xf32>, vector<8x256xf32> -> vector<8x256xf32>
    %333 = arith.addf %332, %237 : vector<8x256xf32>
    %334 = vector.extract_strided_slice %331 {offsets = [0, 0], sizes = [8, 128], strides = [1, 1]} : vector<8x256xf32> to vector<8x128xf32>
    %335 = vector.extract_strided_slice %333 {offsets = [0, 0], sizes = [8, 128], strides = [1, 1]} : vector<8x256xf32> to vector<8x128xf32>
    %336 = arith.addf %334, %335 : vector<8x128xf32>
    %337 = arith.negf %336 : vector<8x128xf32>
    %338 = math.exp %337 : vector<8x128xf32>
    %cst_122 = arith.constant 1.000000e+00 : f32
    %339 = vector.broadcast %cst_122 : f32 to vector<8x128xf32>
    %340 = arith.addf %339, %338 : vector<8x128xf32>
    %341 = arith.divf %339, %340 : vector<8x128xf32>
    %342 = vector.extract_strided_slice %341 {offsets = [0, 0], sizes = [8, 64], strides = [1, 1]} : vector<8x128xf32> to vector<8x64xf32>
    %343 = vector.extract_strided_slice %341 {offsets = [0, 64], sizes = [8, 64], strides = [1, 1]} : vector<8x128xf32> to vector<8x64xf32>
    %344 = vector.extract_strided_slice %331 {offsets = [0, 128], sizes = [8, 64], strides = [1, 1]} : vector<8x256xf32> to vector<8x64xf32>
    %345 = vector.extract_strided_slice %333 {offsets = [0, 128], sizes = [8, 64], strides = [1, 1]} : vector<8x256xf32> to vector<8x64xf32>
    %346 = arith.mulf %342, %345 : vector<8x64xf32>
    %347 = arith.addf %344, %346 : vector<8x64xf32>
    %348 = math.tanh %347 : vector<8x64xf32>
    %cst_123 = arith.constant 1.000000e+00 : f32
    %349 = vector.broadcast %cst_123 : f32 to vector<8x64xf32>
    %350 = arith.subf %349, %343 : vector<8x64xf32>
    %351 = arith.mulf %350, %348 : vector<8x64xf32>
    %352 = arith.mulf %343, %330 : vector<8x64xf32>
    %353 = arith.addf %351, %352 : vector<8x64xf32>
    %c40_124 = arith.constant 40 : index
    %c0_125 = arith.constant 0 : index
    %354 = vector.load %arg15[%c40_124, %c0_125] : memref<64x256xf32, #tpu.memory_space<vmem>>, vector<8x256xf32>
    %cst_126 = arith.constant dense<0.000000e+00> : vector<8x256xf32>
    %355 = tpu.matmul %353, %233, %cst_126 {dimension_numbers = #tpu.dot_dimension_numbers<[1], [0], [0], [1], [0, 0, 1, 1], [], []>} : vector<8x64xf32>, vector<64x256xf32>, vector<8x256xf32> -> vector<8x256xf32>
    %356 = arith.addf %355, %237 : vector<8x256xf32>
    %357 = vector.extract_strided_slice %354 {offsets = [0, 0], sizes = [8, 128], strides = [1, 1]} : vector<8x256xf32> to vector<8x128xf32>
    %358 = vector.extract_strided_slice %356 {offsets = [0, 0], sizes = [8, 128], strides = [1, 1]} : vector<8x256xf32> to vector<8x128xf32>
    %359 = arith.addf %357, %358 : vector<8x128xf32>
    %360 = arith.negf %359 : vector<8x128xf32>
    %361 = math.exp %360 : vector<8x128xf32>
    %cst_127 = arith.constant 1.000000e+00 : f32
    %362 = vector.broadcast %cst_127 : f32 to vector<8x128xf32>
    %363 = arith.addf %362, %361 : vector<8x128xf32>
    %364 = arith.divf %362, %363 : vector<8x128xf32>
    %365 = vector.extract_strided_slice %364 {offsets = [0, 0], sizes = [8, 64], strides = [1, 1]} : vector<8x128xf32> to vector<8x64xf32>
    %366 = vector.extract_strided_slice %364 {offsets = [0, 64], sizes = [8, 64], strides = [1, 1]} : vector<8x128xf32> to vector<8x64xf32>
    %367 = vector.extract_strided_slice %354 {offsets = [0, 128], sizes = [8, 64], strides = [1, 1]} : vector<8x256xf32> to vector<8x64xf32>
    %368 = vector.extract_strided_slice %356 {offsets = [0, 128], sizes = [8, 64], strides = [1, 1]} : vector<8x256xf32> to vector<8x64xf32>
    %369 = arith.mulf %365, %368 : vector<8x64xf32>
    %370 = arith.addf %367, %369 : vector<8x64xf32>
    %371 = math.tanh %370 : vector<8x64xf32>
    %cst_128 = arith.constant 1.000000e+00 : f32
    %372 = vector.broadcast %cst_128 : f32 to vector<8x64xf32>
    %373 = arith.subf %372, %366 : vector<8x64xf32>
    %374 = arith.mulf %373, %371 : vector<8x64xf32>
    %375 = arith.mulf %366, %353 : vector<8x64xf32>
    %376 = arith.addf %374, %375 : vector<8x64xf32>
    %c48_129 = arith.constant 48 : index
    %c0_130 = arith.constant 0 : index
    %377 = vector.load %arg15[%c48_129, %c0_130] : memref<64x256xf32, #tpu.memory_space<vmem>>, vector<8x256xf32>
    %cst_131 = arith.constant dense<0.000000e+00> : vector<8x256xf32>
    %378 = tpu.matmul %376, %233, %cst_131 {dimension_numbers = #tpu.dot_dimension_numbers<[1], [0], [0], [1], [0, 0, 1, 1], [], []>} : vector<8x64xf32>, vector<64x256xf32>, vector<8x256xf32> -> vector<8x256xf32>
    %379 = arith.addf %378, %237 : vector<8x256xf32>
    %380 = vector.extract_strided_slice %377 {offsets = [0, 0], sizes = [8, 128], strides = [1, 1]} : vector<8x256xf32> to vector<8x128xf32>
    %381 = vector.extract_strided_slice %379 {offsets = [0, 0], sizes = [8, 128], strides = [1, 1]} : vector<8x256xf32> to vector<8x128xf32>
    %382 = arith.addf %380, %381 : vector<8x128xf32>
    %383 = arith.negf %382 : vector<8x128xf32>
    %384 = math.exp %383 : vector<8x128xf32>
    %cst_132 = arith.constant 1.000000e+00 : f32
    %385 = vector.broadcast %cst_132 : f32 to vector<8x128xf32>
    %386 = arith.addf %385, %384 : vector<8x128xf32>
    %387 = arith.divf %385, %386 : vector<8x128xf32>
    %388 = vector.extract_strided_slice %387 {offsets = [0, 0], sizes = [8, 64], strides = [1, 1]} : vector<8x128xf32> to vector<8x64xf32>
    %389 = vector.extract_strided_slice %387 {offsets = [0, 64], sizes = [8, 64], strides = [1, 1]} : vector<8x128xf32> to vector<8x64xf32>
    %390 = vector.extract_strided_slice %377 {offsets = [0, 128], sizes = [8, 64], strides = [1, 1]} : vector<8x256xf32> to vector<8x64xf32>
    %391 = vector.extract_strided_slice %379 {offsets = [0, 128], sizes = [8, 64], strides = [1, 1]} : vector<8x256xf32> to vector<8x64xf32>
    %392 = arith.mulf %388, %391 : vector<8x64xf32>
    %393 = arith.addf %390, %392 : vector<8x64xf32>
    %394 = math.tanh %393 : vector<8x64xf32>
    %cst_133 = arith.constant 1.000000e+00 : f32
    %395 = vector.broadcast %cst_133 : f32 to vector<8x64xf32>
    %396 = arith.subf %395, %389 : vector<8x64xf32>
    %397 = arith.mulf %396, %394 : vector<8x64xf32>
    %398 = arith.mulf %389, %376 : vector<8x64xf32>
    %399 = arith.addf %397, %398 : vector<8x64xf32>
    %c56_134 = arith.constant 56 : index
    %c0_135 = arith.constant 0 : index
    %400 = vector.load %arg15[%c56_134, %c0_135] : memref<64x256xf32, #tpu.memory_space<vmem>>, vector<8x256xf32>
    %cst_136 = arith.constant dense<0.000000e+00> : vector<8x256xf32>
    %401 = tpu.matmul %399, %233, %cst_136 {dimension_numbers = #tpu.dot_dimension_numbers<[1], [0], [0], [1], [0, 0, 1, 1], [], []>} : vector<8x64xf32>, vector<64x256xf32>, vector<8x256xf32> -> vector<8x256xf32>
    %402 = arith.addf %401, %237 : vector<8x256xf32>
    %403 = vector.extract_strided_slice %400 {offsets = [0, 0], sizes = [8, 128], strides = [1, 1]} : vector<8x256xf32> to vector<8x128xf32>
    %404 = vector.extract_strided_slice %402 {offsets = [0, 0], sizes = [8, 128], strides = [1, 1]} : vector<8x256xf32> to vector<8x128xf32>
    %405 = arith.addf %403, %404 : vector<8x128xf32>
    %406 = arith.negf %405 : vector<8x128xf32>
    %407 = math.exp %406 : vector<8x128xf32>
    %cst_137 = arith.constant 1.000000e+00 : f32
    %408 = vector.broadcast %cst_137 : f32 to vector<8x128xf32>
    %409 = arith.addf %408, %407 : vector<8x128xf32>
    %410 = arith.divf %408, %409 : vector<8x128xf32>
    %411 = vector.extract_strided_slice %410 {offsets = [0, 0], sizes = [8, 64], strides = [1, 1]} : vector<8x128xf32> to vector<8x64xf32>
    %412 = vector.extract_strided_slice %410 {offsets = [0, 64], sizes = [8, 64], strides = [1, 1]} : vector<8x128xf32> to vector<8x64xf32>
    %413 = vector.extract_strided_slice %400 {offsets = [0, 128], sizes = [8, 64], strides = [1, 1]} : vector<8x256xf32> to vector<8x64xf32>
    %414 = vector.extract_strided_slice %402 {offsets = [0, 128], sizes = [8, 64], strides = [1, 1]} : vector<8x256xf32> to vector<8x64xf32>
    %415 = arith.mulf %411, %414 : vector<8x64xf32>
    %416 = arith.addf %413, %415 : vector<8x64xf32>
    %417 = math.tanh %416 : vector<8x64xf32>
    %cst_138 = arith.constant 1.000000e+00 : f32
    %418 = vector.broadcast %cst_138 : f32 to vector<8x64xf32>
    %419 = arith.subf %418, %412 : vector<8x64xf32>
    %420 = arith.mulf %419, %417 : vector<8x64xf32>
    %421 = arith.mulf %412, %399 : vector<8x64xf32>
    %422 = arith.addf %420, %421 : vector<8x64xf32>
    %423 = tpu.concatenate %220, %422 in 1 : vector<8x64xf32>, vector<8x64xf32> -> vector<8x128xf32>
    %c0_139 = arith.constant 0 : index
    %c0_140 = arith.constant 0 : index
    %c0_141 = arith.constant 0 : index
    %424 = vector.load %arg6[%c0_139, %c0_140, %c0_141] : memref<2x128x32xf32, #tpu.memory_space<vmem>>, vector<1x128x32xf32>
    %425 = vector.shape_cast %424 : vector<1x128x32xf32> to vector<128x32xf32>
    %cst_142 = arith.constant dense<0.000000e+00> : vector<8x32xf32>
    %426 = tpu.matmul %423, %425, %cst_142 {dimension_numbers = #tpu.dot_dimension_numbers<[1], [0], [0], [1], [0, 0, 1, 1], [], []>} : vector<8x128xf32>, vector<128x32xf32>, vector<8x32xf32> -> vector<8x32xf32>
    %c0_143 = arith.constant 0 : index
    %c0_144 = arith.constant 0 : index
    %c0_145 = arith.constant 0 : index
    %427 = vector.load %arg7[%c0_143, %c0_144, %c0_145] : memref<2x1x32xf32, #tpu.memory_space<vmem>>, vector<1x1x32xf32>
    %428 = vector.shape_cast %427 : vector<1x1x32xf32> to vector<1x32xf32>
    %429 = vector.broadcast %428 : vector<1x32xf32> to vector<8x32xf32>
    %430 = arith.addf %426, %429 : vector<8x32xf32>
    %431 = arith.negf %430 : vector<8x32xf32>
    %432 = math.exp %431 : vector<8x32xf32>
    %cst_146 = arith.constant 1.000000e+00 : f32
    %433 = vector.broadcast %cst_146 : f32 to vector<8x32xf32>
    %434 = arith.addf %433, %432 : vector<8x32xf32>
    %435 = arith.divf %433, %434 : vector<8x32xf32>
    %c0_147 = arith.constant 0 : index
    %c0_148 = arith.constant 0 : index
    %c0_149 = arith.constant 0 : index
    %436 = vector.load %arg8[%c0_147, %c0_148, %c0_149] : memref<2x32x32xf32, #tpu.memory_space<vmem>>, vector<1x32x32xf32>
    %437 = vector.shape_cast %436 : vector<1x32x32xf32> to vector<32x32xf32>
    %cst_150 = arith.constant dense<0.000000e+00> : vector<8x32xf32>
    %438 = tpu.matmul %435, %437, %cst_150 {dimension_numbers = #tpu.dot_dimension_numbers<[1], [0], [0], [1], [0, 0, 1, 1], [], []>} : vector<8x32xf32>, vector<32x32xf32>, vector<8x32xf32> -> vector<8x32xf32>
    %c0_151 = arith.constant 0 : index
    %c0_152 = arith.constant 0 : index
    %c0_153 = arith.constant 0 : index
    %439 = vector.load %arg9[%c0_151, %c0_152, %c0_153] : memref<2x1x32xf32, #tpu.memory_space<vmem>>, vector<1x1x32xf32>
    %440 = vector.shape_cast %439 : vector<1x1x32xf32> to vector<1x32xf32>
    %441 = vector.broadcast %440 : vector<1x32xf32> to vector<8x32xf32>
    %442 = arith.addf %438, %441 : vector<8x32xf32>
    %443 = arith.negf %442 : vector<8x32xf32>
    %444 = math.exp %443 : vector<8x32xf32>
    %cst_154 = arith.constant 1.000000e+00 : f32
    %445 = vector.broadcast %cst_154 : f32 to vector<8x32xf32>
    %446 = arith.addf %445, %444 : vector<8x32xf32>
    %447 = arith.divf %445, %446 : vector<8x32xf32>
    %448 = vector.extract_strided_slice %447 {offsets = [0, 0], sizes = [2, 32], strides = [1, 1]} : vector<8x32xf32> to vector<2x32xf32>
    %449 = vector.extract_strided_slice %447 {offsets = [2, 0], sizes = [2, 32], strides = [1, 1]} : vector<8x32xf32> to vector<2x32xf32>
    %450 = tpu.concatenate %448, %449 in 1 : vector<2x32xf32>, vector<2x32xf32> -> vector<2x64xf32>
    %c0_155 = arith.constant 0 : index
    %c0_156 = arith.constant 0 : index
    %c0_157 = arith.constant 0 : index
    %451 = vector.load %arg10[%c0_155, %c0_156, %c0_157] : memref<2x64x32xf32, #tpu.memory_space<vmem>>, vector<1x64x32xf32>
    %452 = vector.shape_cast %451 : vector<1x64x32xf32> to vector<64x32xf32>
    %cst_158 = arith.constant dense<0.000000e+00> : vector<2x32xf32>
    %453 = tpu.matmul %450, %452, %cst_158 {dimension_numbers = #tpu.dot_dimension_numbers<[1], [0], [0], [1], [0, 0, 1, 1], [], []>} : vector<2x64xf32>, vector<64x32xf32>, vector<2x32xf32> -> vector<2x32xf32>
    %c0_159 = arith.constant 0 : index
    %c0_160 = arith.constant 0 : index
    %c0_161 = arith.constant 0 : index
    %454 = vector.load %arg11[%c0_159, %c0_160, %c0_161] : memref<2x1x32xf32, #tpu.memory_space<vmem>>, vector<1x1x32xf32>
    %455 = vector.shape_cast %454 : vector<1x1x32xf32> to vector<1x32xf32>
    %456 = vector.broadcast %455 : vector<1x32xf32> to vector<2x32xf32>
    %457 = arith.addf %453, %456 : vector<2x32xf32>
    %458 = arith.negf %457 : vector<2x32xf32>
    %459 = math.exp %458 : vector<2x32xf32>
    %cst_162 = arith.constant 1.000000e+00 : f32
    %460 = vector.broadcast %cst_162 : f32 to vector<2x32xf32>
    %461 = arith.addf %460, %459 : vector<2x32xf32>
    %462 = arith.divf %460, %461 : vector<2x32xf32>
    %c1_163 = arith.constant 1 : index
    %c0_164 = arith.constant 0 : index
    %c0_165 = arith.constant 0 : index
    %463 = vector.load %arg0[%c1_163, %c0_164, %c0_165] : memref<2x64x2xi32, #tpu.memory_space<vmem>>, vector<1x64x2xi32>
    %464 = vector.shape_cast %463 : vector<1x64x2xi32> to vector<64x2xi32>
    %465 = vector.extract_strided_slice %464 {offsets = [0, 0], sizes = [64, 1], strides = [1, 1]} : vector<64x2xi32> to vector<64x1xi32>
    %466 = vector.broadcast %465 : vector<64x1xi32> to vector<64x64xi32>
    %467 = arith.cmpi eq, %466, %0 : vector<64x64xi32>
    %468 = vector.extract_strided_slice %464 {offsets = [0, 1], sizes = [64, 1], strides = [1, 1]} : vector<64x2xi32> to vector<64x1xi32>
    %469 = vector.broadcast %468 : vector<64x1xi32> to vector<64x64xi32>
    %470 = arith.cmpi eq, %469, %0 : vector<64x64xi32>
    %471 = arith.ori %467, %470 : vector<64x64xi1>
    %472 = arith.extui %471 : vector<64x64xi1> to vector<64x64xi32>
    %473 = arith.sitofp %472 : vector<64x64xi32> to vector<64x64xf32>
    %c1_166 = arith.constant 1 : index
    %c0_167 = arith.constant 0 : index
    %c0_168 = arith.constant 0 : index
    %474 = vector.load %arg1[%c1_166, %c0_167, %c0_168] : memref<2x64x256xf32, #tpu.memory_space<vmem>>, vector<1x64x256xf32>
    %475 = vector.shape_cast %474 : vector<1x64x256xf32> to vector<64x256xf32>
    %cst_169 = arith.constant dense<0.000000e+00> : vector<64x256xf32>
    %476 = tpu.matmul %473, %475, %cst_169 {dimension_numbers = #tpu.dot_dimension_numbers<[1], [0], [0], [1], [0, 0, 1, 1], [], []>} : vector<64x64xf32>, vector<64x256xf32>, vector<64x256xf32> -> vector<64x256xf32>
    %c0_170 = arith.constant 0 : index
    %c0_171 = arith.constant 0 : index
    %477 = vector.load %arg15[%c0_170, %c0_171] : memref<64x256xf32, #tpu.memory_space<vmem>>, vector<64x256xf32>
    tpu.vector_store %arg15[%c0_170, %c0_171], %476 {strides = array<i32>} : memref<64x256xf32, #tpu.memory_space<vmem>>, vector<64x256xf32>,
    %c1_172 = arith.constant 1 : index
    %c0_173 = arith.constant 0 : index
    %c0_174 = arith.constant 0 : index
    %c0_175 = arith.constant 0 : index
    %478 = vector.load %arg4[%c1_172, %c0_173, %c0_174, %c0_175] : memref<2x2x64x256xf32, #tpu.memory_space<vmem>>, vector<1x1x64x256xf32>
    %479 = vector.shape_cast %478 : vector<1x1x64x256xf32> to vector<64x256xf32>
    %c1_176 = arith.constant 1 : index
    %c0_177 = arith.constant 0 : index
    %c0_178 = arith.constant 0 : index
    %c0_179 = arith.constant 0 : index
    %480 = vector.load %arg5[%c1_176, %c0_177, %c0_178, %c0_179] : memref<2x2x1x256xf32, #tpu.memory_space<vmem>>, vector<1x1x1x256xf32>
    %481 = vector.shape_cast %480 : vector<1x1x1x256xf32> to vector<1x256xf32>
    %482 = vector.shape_cast %481 : vector<1x256xf32> to vector<1x256xf32>
    %483 = vector.broadcast %482 : vector<1x256xf32> to vector<8x256xf32>
    %cst_180 = arith.constant 0.000000e+00 : f32
    %484 = vector.broadcast %cst_180 : f32 to vector<8x64xf32>
    %c0_181 = arith.constant 0 : index
    %c0_182 = arith.constant 0 : index
    %485 = vector.load %arg15[%c0_181, %c0_182] : memref<64x256xf32, #tpu.memory_space<vmem>>, vector<8x256xf32>
    %cst_183 = arith.constant dense<0.000000e+00> : vector<8x256xf32>
    %486 = tpu.matmul %484, %479, %cst_183 {dimension_numbers = #tpu.dot_dimension_numbers<[1], [0], [0], [1], [0, 0, 1, 1], [], []>} : vector<8x64xf32>, vector<64x256xf32>, vector<8x256xf32> -> vector<8x256xf32>
    %487 = arith.addf %486, %483 : vector<8x256xf32>
    %488 = vector.extract_strided_slice %485 {offsets = [0, 0], sizes = [8, 128], strides = [1, 1]} : vector<8x256xf32> to vector<8x128xf32>
    %489 = vector.extract_strided_slice %487 {offsets = [0, 0], sizes = [8, 128], strides = [1, 1]} : vector<8x256xf32> to vector<8x128xf32>
    %490 = arith.addf %488, %489 : vector<8x128xf32>
    %491 = arith.negf %490 : vector<8x128xf32>
    %492 = math.exp %491 : vector<8x128xf32>
    %cst_184 = arith.constant 1.000000e+00 : f32
    %493 = vector.broadcast %cst_184 : f32 to vector<8x128xf32>
    %494 = arith.addf %493, %492 : vector<8x128xf32>
    %495 = arith.divf %493, %494 : vector<8x128xf32>
    %496 = vector.extract_strided_slice %495 {offsets = [0, 0], sizes = [8, 64], strides = [1, 1]} : vector<8x128xf32> to vector<8x64xf32>
    %497 = vector.extract_strided_slice %495 {offsets = [0, 64], sizes = [8, 64], strides = [1, 1]} : vector<8x128xf32> to vector<8x64xf32>
    %498 = vector.extract_strided_slice %485 {offsets = [0, 128], sizes = [8, 64], strides = [1, 1]} : vector<8x256xf32> to vector<8x64xf32>
    %499 = vector.extract_strided_slice %487 {offsets = [0, 128], sizes = [8, 64], strides = [1, 1]} : vector<8x256xf32> to vector<8x64xf32>
    %500 = arith.mulf %496, %499 : vector<8x64xf32>
    %501 = arith.addf %498, %500 : vector<8x64xf32>
    %502 = math.tanh %501 : vector<8x64xf32>
    %cst_185 = arith.constant 1.000000e+00 : f32
    %503 = vector.broadcast %cst_185 : f32 to vector<8x64xf32>
    %504 = arith.subf %503, %497 : vector<8x64xf32>
    %505 = arith.mulf %504, %502 : vector<8x64xf32>
    %506 = arith.mulf %497, %484 : vector<8x64xf32>
    %507 = arith.addf %505, %506 : vector<8x64xf32>
    %c0_186 = arith.constant 0 : index
    %c0_187 = arith.constant 0 : index
    %508 = vector.load %arg16[%c0_186, %c0_187] : memref<64x128xf32, #tpu.memory_space<vmem>>, vector<8x64xf32>
    tpu.vector_store %arg16[%c0_186, %c0_187], %507 {strides = array<i32>} : memref<64x128xf32, #tpu.memory_space<vmem>>, vector<8x64xf32>,
    %c56_188 = arith.constant 56 : index
    %c64_189 = arith.constant 64 : index
    %509 = vector.load %arg16[%c56_188, %c64_189] : memref<64x128xf32, #tpu.memory_space<vmem>>, vector<8x64xf32>
    tpu.vector_store %arg16[%c56_188, %c64_189], %507 {strides = array<i32>} : memref<64x128xf32, #tpu.memory_space<vmem>>, vector<8x64xf32>,
    %c8_190 = arith.constant 8 : index
    %c0_191 = arith.constant 0 : index
    %510 = vector.load %arg15[%c8_190, %c0_191] : memref<64x256xf32, #tpu.memory_space<vmem>>, vector<8x256xf32>
    %cst_192 = arith.constant dense<0.000000e+00> : vector<8x256xf32>
    %511 = tpu.matmul %507, %479, %cst_192 {dimension_numbers = #tpu.dot_dimension_numbers<[1], [0], [0], [1], [0, 0, 1, 1], [], []>} : vector<8x64xf32>, vector<64x256xf32>, vector<8x256xf32> -> vector<8x256xf32>
    %512 = arith.addf %511, %483 : vector<8x256xf32>
    %513 = vector.extract_strided_slice %510 {offsets = [0, 0], sizes = [8, 128], strides = [1, 1]} : vector<8x256xf32> to vector<8x128xf32>
    %514 = vector.extract_strided_slice %512 {offsets = [0, 0], sizes = [8, 128], strides = [1, 1]} : vector<8x256xf32> to vector<8x128xf32>
    %515 = arith.addf %513, %514 : vector<8x128xf32>
    %516 = arith.negf %515 : vector<8x128xf32>
    %517 = math.exp %516 : vector<8x128xf32>
    %cst_193 = arith.constant 1.000000e+00 : f32
    %518 = vector.broadcast %cst_193 : f32 to vector<8x128xf32>
    %519 = arith.addf %518, %517 : vector<8x128xf32>
    %520 = arith.divf %518, %519 : vector<8x128xf32>
    %521 = vector.extract_strided_slice %520 {offsets = [0, 0], sizes = [8, 64], strides = [1, 1]} : vector<8x128xf32> to vector<8x64xf32>
    %522 = vector.extract_strided_slice %520 {offsets = [0, 64], sizes = [8, 64], strides = [1, 1]} : vector<8x128xf32> to vector<8x64xf32>
    %523 = vector.extract_strided_slice %510 {offsets = [0, 128], sizes = [8, 64], strides = [1, 1]} : vector<8x256xf32> to vector<8x64xf32>
    %524 = vector.extract_strided_slice %512 {offsets = [0, 128], sizes = [8, 64], strides = [1, 1]} : vector<8x256xf32> to vector<8x64xf32>
    %525 = arith.mulf %521, %524 : vector<8x64xf32>
    %526 = arith.addf %523, %525 : vector<8x64xf32>
    %527 = math.tanh %526 : vector<8x64xf32>
    %cst_194 = arith.constant 1.000000e+00 : f32
    %528 = vector.broadcast %cst_194 : f32 to vector<8x64xf32>
    %529 = arith.subf %528, %522 : vector<8x64xf32>
    %530 = arith.mulf %529, %527 : vector<8x64xf32>
    %531 = arith.mulf %522, %507 : vector<8x64xf32>
    %532 = arith.addf %530, %531 : vector<8x64xf32>
    %c8_195 = arith.constant 8 : index
    %c0_196 = arith.constant 0 : index
    %533 = vector.load %arg16[%c8_195, %c0_196] : memref<64x128xf32, #tpu.memory_space<vmem>>, vector<8x64xf32>
    tpu.vector_store %arg16[%c8_195, %c0_196], %532 {strides = array<i32>} : memref<64x128xf32, #tpu.memory_space<vmem>>, vector<8x64xf32>,
    %c48_197 = arith.constant 48 : index
    %c64_198 = arith.constant 64 : index
    %534 = vector.load %arg16[%c48_197, %c64_198] : memref<64x128xf32, #tpu.memory_space<vmem>>, vector<8x64xf32>
    tpu.vector_store %arg16[%c48_197, %c64_198], %532 {strides = array<i32>} : memref<64x128xf32, #tpu.memory_space<vmem>>, vector<8x64xf32>,
    %c16_199 = arith.constant 16 : index
    %c0_200 = arith.constant 0 : index
    %535 = vector.load %arg15[%c16_199, %c0_200] : memref<64x256xf32, #tpu.memory_space<vmem>>, vector<8x256xf32>
    %cst_201 = arith.constant dense<0.000000e+00> : vector<8x256xf32>
    %536 = tpu.matmul %532, %479, %cst_201 {dimension_numbers = #tpu.dot_dimension_numbers<[1], [0], [0], [1], [0, 0, 1, 1], [], []>} : vector<8x64xf32>, vector<64x256xf32>, vector<8x256xf32> -> vector<8x256xf32>
    %537 = arith.addf %536, %483 : vector<8x256xf32>
    %538 = vector.extract_strided_slice %535 {offsets = [0, 0], sizes = [8, 128], strides = [1, 1]} : vector<8x256xf32> to vector<8x128xf32>
    %539 = vector.extract_strided_slice %537 {offsets = [0, 0], sizes = [8, 128], strides = [1, 1]} : vector<8x256xf32> to vector<8x128xf32>
    %540 = arith.addf %538, %539 : vector<8x128xf32>
    %541 = arith.negf %540 : vector<8x128xf32>
    %542 = math.exp %541 : vector<8x128xf32>
    %cst_202 = arith.constant 1.000000e+00 : f32
    %543 = vector.broadcast %cst_202 : f32 to vector<8x128xf32>
    %544 = arith.addf %543, %542 : vector<8x128xf32>
    %545 = arith.divf %543, %544 : vector<8x128xf32>
    %546 = vector.extract_strided_slice %545 {offsets = [0, 0], sizes = [8, 64], strides = [1, 1]} : vector<8x128xf32> to vector<8x64xf32>
    %547 = vector.extract_strided_slice %545 {offsets = [0, 64], sizes = [8, 64], strides = [1, 1]} : vector<8x128xf32> to vector<8x64xf32>
    %548 = vector.extract_strided_slice %535 {offsets = [0, 128], sizes = [8, 64], strides = [1, 1]} : vector<8x256xf32> to vector<8x64xf32>
    %549 = vector.extract_strided_slice %537 {offsets = [0, 128], sizes = [8, 64], strides = [1, 1]} : vector<8x256xf32> to vector<8x64xf32>
    %550 = arith.mulf %546, %549 : vector<8x64xf32>
    %551 = arith.addf %548, %550 : vector<8x64xf32>
    %552 = math.tanh %551 : vector<8x64xf32>
    %cst_203 = arith.constant 1.000000e+00 : f32
    %553 = vector.broadcast %cst_203 : f32 to vector<8x64xf32>
    %554 = arith.subf %553, %547 : vector<8x64xf32>
    %555 = arith.mulf %554, %552 : vector<8x64xf32>
    %556 = arith.mulf %547, %532 : vector<8x64xf32>
    %557 = arith.addf %555, %556 : vector<8x64xf32>
    %c16_204 = arith.constant 16 : index
    %c0_205 = arith.constant 0 : index
    %558 = vector.load %arg16[%c16_204, %c0_205] : memref<64x128xf32, #tpu.memory_space<vmem>>, vector<8x64xf32>
    tpu.vector_store %arg16[%c16_204, %c0_205], %557 {strides = array<i32>} : memref<64x128xf32, #tpu.memory_space<vmem>>, vector<8x64xf32>,
    %c40_206 = arith.constant 40 : index
    %c64_207 = arith.constant 64 : index
    %559 = vector.load %arg16[%c40_206, %c64_207] : memref<64x128xf32, #tpu.memory_space<vmem>>, vector<8x64xf32>
    tpu.vector_store %arg16[%c40_206, %c64_207], %557 {strides = array<i32>} : memref<64x128xf32, #tpu.memory_space<vmem>>, vector<8x64xf32>,
    %c24_208 = arith.constant 24 : index
    %c0_209 = arith.constant 0 : index
    %560 = vector.load %arg15[%c24_208, %c0_209] : memref<64x256xf32, #tpu.memory_space<vmem>>, vector<8x256xf32>
    %cst_210 = arith.constant dense<0.000000e+00> : vector<8x256xf32>
    %561 = tpu.matmul %557, %479, %cst_210 {dimension_numbers = #tpu.dot_dimension_numbers<[1], [0], [0], [1], [0, 0, 1, 1], [], []>} : vector<8x64xf32>, vector<64x256xf32>, vector<8x256xf32> -> vector<8x256xf32>
    %562 = arith.addf %561, %483 : vector<8x256xf32>
    %563 = vector.extract_strided_slice %560 {offsets = [0, 0], sizes = [8, 128], strides = [1, 1]} : vector<8x256xf32> to vector<8x128xf32>
    %564 = vector.extract_strided_slice %562 {offsets = [0, 0], sizes = [8, 128], strides = [1, 1]} : vector<8x256xf32> to vector<8x128xf32>
    %565 = arith.addf %563, %564 : vector<8x128xf32>
    %566 = arith.negf %565 : vector<8x128xf32>
    %567 = math.exp %566 : vector<8x128xf32>
    %cst_211 = arith.constant 1.000000e+00 : f32
    %568 = vector.broadcast %cst_211 : f32 to vector<8x128xf32>
    %569 = arith.addf %568, %567 : vector<8x128xf32>
    %570 = arith.divf %568, %569 : vector<8x128xf32>
    %571 = vector.extract_strided_slice %570 {offsets = [0, 0], sizes = [8, 64], strides = [1, 1]} : vector<8x128xf32> to vector<8x64xf32>
    %572 = vector.extract_strided_slice %570 {offsets = [0, 64], sizes = [8, 64], strides = [1, 1]} : vector<8x128xf32> to vector<8x64xf32>
    %573 = vector.extract_strided_slice %560 {offsets = [0, 128], sizes = [8, 64], strides = [1, 1]} : vector<8x256xf32> to vector<8x64xf32>
    %574 = vector.extract_strided_slice %562 {offsets = [0, 128], sizes = [8, 64], strides = [1, 1]} : vector<8x256xf32> to vector<8x64xf32>
    %575 = arith.mulf %571, %574 : vector<8x64xf32>
    %576 = arith.addf %573, %575 : vector<8x64xf32>
    %577 = math.tanh %576 : vector<8x64xf32>
    %cst_212 = arith.constant 1.000000e+00 : f32
    %578 = vector.broadcast %cst_212 : f32 to vector<8x64xf32>
    %579 = arith.subf %578, %572 : vector<8x64xf32>
    %580 = arith.mulf %579, %577 : vector<8x64xf32>
    %581 = arith.mulf %572, %557 : vector<8x64xf32>
    %582 = arith.addf %580, %581 : vector<8x64xf32>
    %c24_213 = arith.constant 24 : index
    %c0_214 = arith.constant 0 : index
    %583 = vector.load %arg16[%c24_213, %c0_214] : memref<64x128xf32, #tpu.memory_space<vmem>>, vector<8x64xf32>
    tpu.vector_store %arg16[%c24_213, %c0_214], %582 {strides = array<i32>} : memref<64x128xf32, #tpu.memory_space<vmem>>, vector<8x64xf32>,
    %c32_215 = arith.constant 32 : index
    %c64_216 = arith.constant 64 : index
    %584 = vector.load %arg16[%c32_215, %c64_216] : memref<64x128xf32, #tpu.memory_space<vmem>>, vector<8x64xf32>
    tpu.vector_store %arg16[%c32_215, %c64_216], %582 {strides = array<i32>} : memref<64x128xf32, #tpu.memory_space<vmem>>, vector<8x64xf32>,
    %c32_217 = arith.constant 32 : index
    %c0_218 = arith.constant 0 : index
    %585 = vector.load %arg15[%c32_217, %c0_218] : memref<64x256xf32, #tpu.memory_space<vmem>>, vector<8x256xf32>
    %cst_219 = arith.constant dense<0.000000e+00> : vector<8x256xf32>
    %586 = tpu.matmul %582, %479, %cst_219 {dimension_numbers = #tpu.dot_dimension_numbers<[1], [0], [0], [1], [0, 0, 1, 1], [], []>} : vector<8x64xf32>, vector<64x256xf32>, vector<8x256xf32> -> vector<8x256xf32>
    %587 = arith.addf %586, %483 : vector<8x256xf32>
    %588 = vector.extract_strided_slice %585 {offsets = [0, 0], sizes = [8, 128], strides = [1, 1]} : vector<8x256xf32> to vector<8x128xf32>
    %589 = vector.extract_strided_slice %587 {offsets = [0, 0], sizes = [8, 128], strides = [1, 1]} : vector<8x256xf32> to vector<8x128xf32>
    %590 = arith.addf %588, %589 : vector<8x128xf32>
    %591 = arith.negf %590 : vector<8x128xf32>
    %592 = math.exp %591 : vector<8x128xf32>
    %cst_220 = arith.constant 1.000000e+00 : f32
    %593 = vector.broadcast %cst_220 : f32 to vector<8x128xf32>
    %594 = arith.addf %593, %592 : vector<8x128xf32>
    %595 = arith.divf %593, %594 : vector<8x128xf32>
    %596 = vector.extract_strided_slice %595 {offsets = [0, 0], sizes = [8, 64], strides = [1, 1]} : vector<8x128xf32> to vector<8x64xf32>
    %597 = vector.extract_strided_slice %595 {offsets = [0, 64], sizes = [8, 64], strides = [1, 1]} : vector<8x128xf32> to vector<8x64xf32>
    %598 = vector.extract_strided_slice %585 {offsets = [0, 128], sizes = [8, 64], strides = [1, 1]} : vector<8x256xf32> to vector<8x64xf32>
    %599 = vector.extract_strided_slice %587 {offsets = [0, 128], sizes = [8, 64], strides = [1, 1]} : vector<8x256xf32> to vector<8x64xf32>
    %600 = arith.mulf %596, %599 : vector<8x64xf32>
    %601 = arith.addf %598, %600 : vector<8x64xf32>
    %602 = math.tanh %601 : vector<8x64xf32>
    %cst_221 = arith.constant 1.000000e+00 : f32
    %603 = vector.broadcast %cst_221 : f32 to vector<8x64xf32>
    %604 = arith.subf %603, %597 : vector<8x64xf32>
    %605 = arith.mulf %604, %602 : vector<8x64xf32>
    %606 = arith.mulf %597, %582 : vector<8x64xf32>
    %607 = arith.addf %605, %606 : vector<8x64xf32>
    %c32_222 = arith.constant 32 : index
    %c0_223 = arith.constant 0 : index
    %608 = vector.load %arg16[%c32_222, %c0_223] : memref<64x128xf32, #tpu.memory_space<vmem>>, vector<8x64xf32>
    tpu.vector_store %arg16[%c32_222, %c0_223], %607 {strides = array<i32>} : memref<64x128xf32, #tpu.memory_space<vmem>>, vector<8x64xf32>,
    %c24_224 = arith.constant 24 : index
    %c64_225 = arith.constant 64 : index
    %609 = vector.load %arg16[%c24_224, %c64_225] : memref<64x128xf32, #tpu.memory_space<vmem>>, vector<8x64xf32>
    tpu.vector_store %arg16[%c24_224, %c64_225], %607 {strides = array<i32>} : memref<64x128xf32, #tpu.memory_space<vmem>>, vector<8x64xf32>,
    %c40_226 = arith.constant 40 : index
    %c0_227 = arith.constant 0 : index
    %610 = vector.load %arg15[%c40_226, %c0_227] : memref<64x256xf32, #tpu.memory_space<vmem>>, vector<8x256xf32>
    %cst_228 = arith.constant dense<0.000000e+00> : vector<8x256xf32>
    %611 = tpu.matmul %607, %479, %cst_228 {dimension_numbers = #tpu.dot_dimension_numbers<[1], [0], [0], [1], [0, 0, 1, 1], [], []>} : vector<8x64xf32>, vector<64x256xf32>, vector<8x256xf32> -> vector<8x256xf32>
    %612 = arith.addf %611, %483 : vector<8x256xf32>
    %613 = vector.extract_strided_slice %610 {offsets = [0, 0], sizes = [8, 128], strides = [1, 1]} : vector<8x256xf32> to vector<8x128xf32>
    %614 = vector.extract_strided_slice %612 {offsets = [0, 0], sizes = [8, 128], strides = [1, 1]} : vector<8x256xf32> to vector<8x128xf32>
    %615 = arith.addf %613, %614 : vector<8x128xf32>
    %616 = arith.negf %615 : vector<8x128xf32>
    %617 = math.exp %616 : vector<8x128xf32>
    %cst_229 = arith.constant 1.000000e+00 : f32
    %618 = vector.broadcast %cst_229 : f32 to vector<8x128xf32>
    %619 = arith.addf %618, %617 : vector<8x128xf32>
    %620 = arith.divf %618, %619 : vector<8x128xf32>
    %621 = vector.extract_strided_slice %620 {offsets = [0, 0], sizes = [8, 64], strides = [1, 1]} : vector<8x128xf32> to vector<8x64xf32>
    %622 = vector.extract_strided_slice %620 {offsets = [0, 64], sizes = [8, 64], strides = [1, 1]} : vector<8x128xf32> to vector<8x64xf32>
    %623 = vector.extract_strided_slice %610 {offsets = [0, 128], sizes = [8, 64], strides = [1, 1]} : vector<8x256xf32> to vector<8x64xf32>
    %624 = vector.extract_strided_slice %612 {offsets = [0, 128], sizes = [8, 64], strides = [1, 1]} : vector<8x256xf32> to vector<8x64xf32>
    %625 = arith.mulf %621, %624 : vector<8x64xf32>
    %626 = arith.addf %623, %625 : vector<8x64xf32>
    %627 = math.tanh %626 : vector<8x64xf32>
    %cst_230 = arith.constant 1.000000e+00 : f32
    %628 = vector.broadcast %cst_230 : f32 to vector<8x64xf32>
    %629 = arith.subf %628, %622 : vector<8x64xf32>
    %630 = arith.mulf %629, %627 : vector<8x64xf32>
    %631 = arith.mulf %622, %607 : vector<8x64xf32>
    %632 = arith.addf %630, %631 : vector<8x64xf32>
    %c40_231 = arith.constant 40 : index
    %c0_232 = arith.constant 0 : index
    %633 = vector.load %arg16[%c40_231, %c0_232] : memref<64x128xf32, #tpu.memory_space<vmem>>, vector<8x64xf32>
    tpu.vector_store %arg16[%c40_231, %c0_232], %632 {strides = array<i32>} : memref<64x128xf32, #tpu.memory_space<vmem>>, vector<8x64xf32>,
    %c16_233 = arith.constant 16 : index
    %c64_234 = arith.constant 64 : index
    %634 = vector.load %arg16[%c16_233, %c64_234] : memref<64x128xf32, #tpu.memory_space<vmem>>, vector<8x64xf32>
    tpu.vector_store %arg16[%c16_233, %c64_234], %632 {strides = array<i32>} : memref<64x128xf32, #tpu.memory_space<vmem>>, vector<8x64xf32>,
    %c48_235 = arith.constant 48 : index
    %c0_236 = arith.constant 0 : index
    %635 = vector.load %arg15[%c48_235, %c0_236] : memref<64x256xf32, #tpu.memory_space<vmem>>, vector<8x256xf32>
    %cst_237 = arith.constant dense<0.000000e+00> : vector<8x256xf32>
    %636 = tpu.matmul %632, %479, %cst_237 {dimension_numbers = #tpu.dot_dimension_numbers<[1], [0], [0], [1], [0, 0, 1, 1], [], []>} : vector<8x64xf32>, vector<64x256xf32>, vector<8x256xf32> -> vector<8x256xf32>
    %637 = arith.addf %636, %483 : vector<8x256xf32>
    %638 = vector.extract_strided_slice %635 {offsets = [0, 0], sizes = [8, 128], strides = [1, 1]} : vector<8x256xf32> to vector<8x128xf32>
    %639 = vector.extract_strided_slice %637 {offsets = [0, 0], sizes = [8, 128], strides = [1, 1]} : vector<8x256xf32> to vector<8x128xf32>
    %640 = arith.addf %638, %639 : vector<8x128xf32>
    %641 = arith.negf %640 : vector<8x128xf32>
    %642 = math.exp %641 : vector<8x128xf32>
    %cst_238 = arith.constant 1.000000e+00 : f32
    %643 = vector.broadcast %cst_238 : f32 to vector<8x128xf32>
    %644 = arith.addf %643, %642 : vector<8x128xf32>
    %645 = arith.divf %643, %644 : vector<8x128xf32>
    %646 = vector.extract_strided_slice %645 {offsets = [0, 0], sizes = [8, 64], strides = [1, 1]} : vector<8x128xf32> to vector<8x64xf32>
    %647 = vector.extract_strided_slice %645 {offsets = [0, 64], sizes = [8, 64], strides = [1, 1]} : vector<8x128xf32> to vector<8x64xf32>
    %648 = vector.extract_strided_slice %635 {offsets = [0, 128], sizes = [8, 64], strides = [1, 1]} : vector<8x256xf32> to vector<8x64xf32>
    %649 = vector.extract_strided_slice %637 {offsets = [0, 128], sizes = [8, 64], strides = [1, 1]} : vector<8x256xf32> to vector<8x64xf32>
    %650 = arith.mulf %646, %649 : vector<8x64xf32>
    %651 = arith.addf %648, %650 : vector<8x64xf32>
    %652 = math.tanh %651 : vector<8x64xf32>
    %cst_239 = arith.constant 1.000000e+00 : f32
    %653 = vector.broadcast %cst_239 : f32 to vector<8x64xf32>
    %654 = arith.subf %653, %647 : vector<8x64xf32>
    %655 = arith.mulf %654, %652 : vector<8x64xf32>
    %656 = arith.mulf %647, %632 : vector<8x64xf32>
    %657 = arith.addf %655, %656 : vector<8x64xf32>
    %c48_240 = arith.constant 48 : index
    %c0_241 = arith.constant 0 : index
    %658 = vector.load %arg16[%c48_240, %c0_241] : memref<64x128xf32, #tpu.memory_space<vmem>>, vector<8x64xf32>
    tpu.vector_store %arg16[%c48_240, %c0_241], %657 {strides = array<i32>} : memref<64x128xf32, #tpu.memory_space<vmem>>, vector<8x64xf32>,
    %c8_242 = arith.constant 8 : index
    %c64_243 = arith.constant 64 : index
    %659 = vector.load %arg16[%c8_242, %c64_243] : memref<64x128xf32, #tpu.memory_space<vmem>>, vector<8x64xf32>
    tpu.vector_store %arg16[%c8_242, %c64_243], %657 {strides = array<i32>} : memref<64x128xf32, #tpu.memory_space<vmem>>, vector<8x64xf32>,
    %c56_244 = arith.constant 56 : index
    %c0_245 = arith.constant 0 : index
    %660 = vector.load %arg15[%c56_244, %c0_245] : memref<64x256xf32, #tpu.memory_space<vmem>>, vector<8x256xf32>
    %cst_246 = arith.constant dense<0.000000e+00> : vector<8x256xf32>
    %661 = tpu.matmul %657, %479, %cst_246 {dimension_numbers = #tpu.dot_dimension_numbers<[1], [0], [0], [1], [0, 0, 1, 1], [], []>} : vector<8x64xf32>, vector<64x256xf32>, vector<8x256xf32> -> vector<8x256xf32>
    %662 = arith.addf %661, %483 : vector<8x256xf32>
    %663 = vector.extract_strided_slice %660 {offsets = [0, 0], sizes = [8, 128], strides = [1, 1]} : vector<8x256xf32> to vector<8x128xf32>
    %664 = vector.extract_strided_slice %662 {offsets = [0, 0], sizes = [8, 128], strides = [1, 1]} : vector<8x256xf32> to vector<8x128xf32>
    %665 = arith.addf %663, %664 : vector<8x128xf32>
    %666 = arith.negf %665 : vector<8x128xf32>
    %667 = math.exp %666 : vector<8x128xf32>
    %cst_247 = arith.constant 1.000000e+00 : f32
    %668 = vector.broadcast %cst_247 : f32 to vector<8x128xf32>
    %669 = arith.addf %668, %667 : vector<8x128xf32>
    %670 = arith.divf %668, %669 : vector<8x128xf32>
    %671 = vector.extract_strided_slice %670 {offsets = [0, 0], sizes = [8, 64], strides = [1, 1]} : vector<8x128xf32> to vector<8x64xf32>
    %672 = vector.extract_strided_slice %670 {offsets = [0, 64], sizes = [8, 64], strides = [1, 1]} : vector<8x128xf32> to vector<8x64xf32>
    %673 = vector.extract_strided_slice %660 {offsets = [0, 128], sizes = [8, 64], strides = [1, 1]} : vector<8x256xf32> to vector<8x64xf32>
    %674 = vector.extract_strided_slice %662 {offsets = [0, 128], sizes = [8, 64], strides = [1, 1]} : vector<8x256xf32> to vector<8x64xf32>
    %675 = arith.mulf %671, %674 : vector<8x64xf32>
    %676 = arith.addf %673, %675 : vector<8x64xf32>
    %677 = math.tanh %676 : vector<8x64xf32>
    %cst_248 = arith.constant 1.000000e+00 : f32
    %678 = vector.broadcast %cst_248 : f32 to vector<8x64xf32>
    %679 = arith.subf %678, %672 : vector<8x64xf32>
    %680 = arith.mulf %679, %677 : vector<8x64xf32>
    %681 = arith.mulf %672, %657 : vector<8x64xf32>
    %682 = arith.addf %680, %681 : vector<8x64xf32>
    %c56_249 = arith.constant 56 : index
    %c0_250 = arith.constant 0 : index
    %683 = vector.load %arg16[%c56_249, %c0_250] : memref<64x128xf32, #tpu.memory_space<vmem>>, vector<8x64xf32>
    tpu.vector_store %arg16[%c56_249, %c0_250], %682 {strides = array<i32>} : memref<64x128xf32, #tpu.memory_space<vmem>>, vector<8x64xf32>,
    %c0_251 = arith.constant 0 : index
    %c64_252 = arith.constant 64 : index
    %684 = vector.load %arg16[%c0_251, %c64_252] : memref<64x128xf32, #tpu.memory_space<vmem>>, vector<8x64xf32>
    tpu.vector_store %arg16[%c0_251, %c64_252], %682 {strides = array<i32>} : memref<64x128xf32, #tpu.memory_space<vmem>>, vector<8x64xf32>,
    %c0_253 = arith.constant 0 : index
    %c0_254 = arith.constant 0 : index
    %685 = vector.load %arg16[%c0_253, %c0_254] : memref<64x128xf32, #tpu.memory_space<vmem>>, vector<64x128xf32>
    %c1_255 = arith.constant 1 : index
    %c0_256 = arith.constant 0 : index
    %c0_257 = arith.constant 0 : index
    %686 = vector.load %arg2[%c1_255, %c0_256, %c0_257] : memref<2x128x256xf32, #tpu.memory_space<vmem>>, vector<1x128x256xf32>
    %687 = vector.shape_cast %686 : vector<1x128x256xf32> to vector<128x256xf32>
    %cst_258 = arith.constant dense<0.000000e+00> : vector<64x256xf32>
    %688 = tpu.matmul %685, %687, %cst_258 {dimension_numbers = #tpu.dot_dimension_numbers<[1], [0], [0], [1], [0, 0, 1, 1], [], []>} : vector<64x128xf32>, vector<128x256xf32>, vector<64x256xf32> -> vector<64x256xf32>
    %c1_259 = arith.constant 1 : index
    %c0_260 = arith.constant 0 : index
    %c0_261 = arith.constant 0 : index
    %689 = vector.load %arg3[%c1_259, %c0_260, %c0_261] : memref<2x1x256xf32, #tpu.memory_space<vmem>>, vector<1x1x256xf32>
    %690 = vector.shape_cast %689 : vector<1x1x256xf32> to vector<1x256xf32>
    %691 = vector.broadcast %690 : vector<1x256xf32> to vector<64x256xf32>
    %692 = arith.addf %688, %691 : vector<64x256xf32>
    %c0_262 = arith.constant 0 : index
    %c0_263 = arith.constant 0 : index
    %693 = vector.load %arg15[%c0_262, %c0_263] : memref<64x256xf32, #tpu.memory_space<vmem>>, vector<64x256xf32>
    tpu.vector_store %arg15[%c0_262, %c0_263], %692 {strides = array<i32>} : memref<64x256xf32, #tpu.memory_space<vmem>>, vector<64x256xf32>,
    %c1_264 = arith.constant 1 : index
    %c1_265 = arith.constant 1 : index
    %c0_266 = arith.constant 0 : index
    %c0_267 = arith.constant 0 : index
    %694 = vector.load %arg4[%c1_264, %c1_265, %c0_266, %c0_267] : memref<2x2x64x256xf32, #tpu.memory_space<vmem>>, vector<1x1x64x256xf32>
    %695 = vector.shape_cast %694 : vector<1x1x64x256xf32> to vector<64x256xf32>
    %c1_268 = arith.constant 1 : index
    %c1_269 = arith.constant 1 : index
    %c0_270 = arith.constant 0 : index
    %c0_271 = arith.constant 0 : index
    %696 = vector.load %arg5[%c1_268, %c1_269, %c0_270, %c0_271] : memref<2x2x1x256xf32, #tpu.memory_space<vmem>>, vector<1x1x1x256xf32>
    %697 = vector.shape_cast %696 : vector<1x1x1x256xf32> to vector<1x256xf32>
    %698 = vector.shape_cast %697 : vector<1x256xf32> to vector<1x256xf32>
    %699 = vector.broadcast %698 : vector<1x256xf32> to vector<8x256xf32>
    %cst_272 = arith.constant 0.000000e+00 : f32
    %700 = vector.broadcast %cst_272 : f32 to vector<8x64xf32>
    %c0_273 = arith.constant 0 : index
    %c0_274 = arith.constant 0 : index
    %701 = vector.load %arg15[%c0_273, %c0_274] : memref<64x256xf32, #tpu.memory_space<vmem>>, vector<8x256xf32>
    %cst_275 = arith.constant dense<0.000000e+00> : vector<8x256xf32>
    %702 = tpu.matmul %700, %695, %cst_275 {dimension_numbers = #tpu.dot_dimension_numbers<[1], [0], [0], [1], [0, 0, 1, 1], [], []>} : vector<8x64xf32>, vector<64x256xf32>, vector<8x256xf32> -> vector<8x256xf32>
    %703 = arith.addf %702, %699 : vector<8x256xf32>
    %704 = vector.extract_strided_slice %701 {offsets = [0, 0], sizes = [8, 128], strides = [1, 1]} : vector<8x256xf32> to vector<8x128xf32>
    %705 = vector.extract_strided_slice %703 {offsets = [0, 0], sizes = [8, 128], strides = [1, 1]} : vector<8x256xf32> to vector<8x128xf32>
    %706 = arith.addf %704, %705 : vector<8x128xf32>
    %707 = arith.negf %706 : vector<8x128xf32>
    %708 = math.exp %707 : vector<8x128xf32>
    %cst_276 = arith.constant 1.000000e+00 : f32
    %709 = vector.broadcast %cst_276 : f32 to vector<8x128xf32>
    %710 = arith.addf %709, %708 : vector<8x128xf32>
    %711 = arith.divf %709, %710 : vector<8x128xf32>
    %712 = vector.extract_strided_slice %711 {offsets = [0, 0], sizes = [8, 64], strides = [1, 1]} : vector<8x128xf32> to vector<8x64xf32>
    %713 = vector.extract_strided_slice %711 {offsets = [0, 64], sizes = [8, 64], strides = [1, 1]} : vector<8x128xf32> to vector<8x64xf32>
    %714 = vector.extract_strided_slice %701 {offsets = [0, 128], sizes = [8, 64], strides = [1, 1]} : vector<8x256xf32> to vector<8x64xf32>
    %715 = vector.extract_strided_slice %703 {offsets = [0, 128], sizes = [8, 64], strides = [1, 1]} : vector<8x256xf32> to vector<8x64xf32>
    %716 = arith.mulf %712, %715 : vector<8x64xf32>
    %717 = arith.addf %714, %716 : vector<8x64xf32>
    %718 = math.tanh %717 : vector<8x64xf32>
    %cst_277 = arith.constant 1.000000e+00 : f32
    %719 = vector.broadcast %cst_277 : f32 to vector<8x64xf32>
    %720 = arith.subf %719, %713 : vector<8x64xf32>
    %721 = arith.mulf %720, %718 : vector<8x64xf32>
    %722 = arith.mulf %713, %700 : vector<8x64xf32>
    %723 = arith.addf %721, %722 : vector<8x64xf32>
    %c8_278 = arith.constant 8 : index
    %c0_279 = arith.constant 0 : index
    %724 = vector.load %arg15[%c8_278, %c0_279] : memref<64x256xf32, #tpu.memory_space<vmem>>, vector<8x256xf32>
    %cst_280 = arith.constant dense<0.000000e+00> : vector<8x256xf32>
    %725 = tpu.matmul %723, %695, %cst_280 {dimension_numbers = #tpu.dot_dimension_numbers<[1], [0], [0], [1], [0, 0, 1, 1], [], []>} : vector<8x64xf32>, vector<64x256xf32>, vector<8x256xf32> -> vector<8x256xf32>
    %726 = arith.addf %725, %699 : vector<8x256xf32>
    %727 = vector.extract_strided_slice %724 {offsets = [0, 0], sizes = [8, 128], strides = [1, 1]} : vector<8x256xf32> to vector<8x128xf32>
    %728 = vector.extract_strided_slice %726 {offsets = [0, 0], sizes = [8, 128], strides = [1, 1]} : vector<8x256xf32> to vector<8x128xf32>
    %729 = arith.addf %727, %728 : vector<8x128xf32>
    %730 = arith.negf %729 : vector<8x128xf32>
    %731 = math.exp %730 : vector<8x128xf32>
    %cst_281 = arith.constant 1.000000e+00 : f32
    %732 = vector.broadcast %cst_281 : f32 to vector<8x128xf32>
    %733 = arith.addf %732, %731 : vector<8x128xf32>
    %734 = arith.divf %732, %733 : vector<8x128xf32>
    %735 = vector.extract_strided_slice %734 {offsets = [0, 0], sizes = [8, 64], strides = [1, 1]} : vector<8x128xf32> to vector<8x64xf32>
    %736 = vector.extract_strided_slice %734 {offsets = [0, 64], sizes = [8, 64], strides = [1, 1]} : vector<8x128xf32> to vector<8x64xf32>
    %737 = vector.extract_strided_slice %724 {offsets = [0, 128], sizes = [8, 64], strides = [1, 1]} : vector<8x256xf32> to vector<8x64xf32>
    %738 = vector.extract_strided_slice %726 {offsets = [0, 128], sizes = [8, 64], strides = [1, 1]} : vector<8x256xf32> to vector<8x64xf32>
    %739 = arith.mulf %735, %738 : vector<8x64xf32>
    %740 = arith.addf %737, %739 : vector<8x64xf32>
    %741 = math.tanh %740 : vector<8x64xf32>
    %cst_282 = arith.constant 1.000000e+00 : f32
    %742 = vector.broadcast %cst_282 : f32 to vector<8x64xf32>
    %743 = arith.subf %742, %736 : vector<8x64xf32>
    %744 = arith.mulf %743, %741 : vector<8x64xf32>
    %745 = arith.mulf %736, %723 : vector<8x64xf32>
    %746 = arith.addf %744, %745 : vector<8x64xf32>
    %c16_283 = arith.constant 16 : index
    %c0_284 = arith.constant 0 : index
    %747 = vector.load %arg15[%c16_283, %c0_284] : memref<64x256xf32, #tpu.memory_space<vmem>>, vector<8x256xf32>
    %cst_285 = arith.constant dense<0.000000e+00> : vector<8x256xf32>
    %748 = tpu.matmul %746, %695, %cst_285 {dimension_numbers = #tpu.dot_dimension_numbers<[1], [0], [0], [1], [0, 0, 1, 1], [], []>} : vector<8x64xf32>, vector<64x256xf32>, vector<8x256xf32> -> vector<8x256xf32>
    %749 = arith.addf %748, %699 : vector<8x256xf32>
    %750 = vector.extract_strided_slice %747 {offsets = [0, 0], sizes = [8, 128], strides = [1, 1]} : vector<8x256xf32> to vector<8x128xf32>
    %751 = vector.extract_strided_slice %749 {offsets = [0, 0], sizes = [8, 128], strides = [1, 1]} : vector<8x256xf32> to vector<8x128xf32>
    %752 = arith.addf %750, %751 : vector<8x128xf32>
    %753 = arith.negf %752 : vector<8x128xf32>
    %754 = math.exp %753 : vector<8x128xf32>
    %cst_286 = arith.constant 1.000000e+00 : f32
    %755 = vector.broadcast %cst_286 : f32 to vector<8x128xf32>
    %756 = arith.addf %755, %754 : vector<8x128xf32>
    %757 = arith.divf %755, %756 : vector<8x128xf32>
    %758 = vector.extract_strided_slice %757 {offsets = [0, 0], sizes = [8, 64], strides = [1, 1]} : vector<8x128xf32> to vector<8x64xf32>
    %759 = vector.extract_strided_slice %757 {offsets = [0, 64], sizes = [8, 64], strides = [1, 1]} : vector<8x128xf32> to vector<8x64xf32>
    %760 = vector.extract_strided_slice %747 {offsets = [0, 128], sizes = [8, 64], strides = [1, 1]} : vector<8x256xf32> to vector<8x64xf32>
    %761 = vector.extract_strided_slice %749 {offsets = [0, 128], sizes = [8, 64], strides = [1, 1]} : vector<8x256xf32> to vector<8x64xf32>
    %762 = arith.mulf %758, %761 : vector<8x64xf32>
    %763 = arith.addf %760, %762 : vector<8x64xf32>
    %764 = math.tanh %763 : vector<8x64xf32>
    %cst_287 = arith.constant 1.000000e+00 : f32
    %765 = vector.broadcast %cst_287 : f32 to vector<8x64xf32>
    %766 = arith.subf %765, %759 : vector<8x64xf32>
    %767 = arith.mulf %766, %764 : vector<8x64xf32>
    %768 = arith.mulf %759, %746 : vector<8x64xf32>
    %769 = arith.addf %767, %768 : vector<8x64xf32>
    %c24_288 = arith.constant 24 : index
    %c0_289 = arith.constant 0 : index
    %770 = vector.load %arg15[%c24_288, %c0_289] : memref<64x256xf32, #tpu.memory_space<vmem>>, vector<8x256xf32>
    %cst_290 = arith.constant dense<0.000000e+00> : vector<8x256xf32>
    %771 = tpu.matmul %769, %695, %cst_290 {dimension_numbers = #tpu.dot_dimension_numbers<[1], [0], [0], [1], [0, 0, 1, 1], [], []>} : vector<8x64xf32>, vector<64x256xf32>, vector<8x256xf32> -> vector<8x256xf32>
    %772 = arith.addf %771, %699 : vector<8x256xf32>
    %773 = vector.extract_strided_slice %770 {offsets = [0, 0], sizes = [8, 128], strides = [1, 1]} : vector<8x256xf32> to vector<8x128xf32>
    %774 = vector.extract_strided_slice %772 {offsets = [0, 0], sizes = [8, 128], strides = [1, 1]} : vector<8x256xf32> to vector<8x128xf32>
    %775 = arith.addf %773, %774 : vector<8x128xf32>
    %776 = arith.negf %775 : vector<8x128xf32>
    %777 = math.exp %776 : vector<8x128xf32>
    %cst_291 = arith.constant 1.000000e+00 : f32
    %778 = vector.broadcast %cst_291 : f32 to vector<8x128xf32>
    %779 = arith.addf %778, %777 : vector<8x128xf32>
    %780 = arith.divf %778, %779 : vector<8x128xf32>
    %781 = vector.extract_strided_slice %780 {offsets = [0, 0], sizes = [8, 64], strides = [1, 1]} : vector<8x128xf32> to vector<8x64xf32>
    %782 = vector.extract_strided_slice %780 {offsets = [0, 64], sizes = [8, 64], strides = [1, 1]} : vector<8x128xf32> to vector<8x64xf32>
    %783 = vector.extract_strided_slice %770 {offsets = [0, 128], sizes = [8, 64], strides = [1, 1]} : vector<8x256xf32> to vector<8x64xf32>
    %784 = vector.extract_strided_slice %772 {offsets = [0, 128], sizes = [8, 64], strides = [1, 1]} : vector<8x256xf32> to vector<8x64xf32>
    %785 = arith.mulf %781, %784 : vector<8x64xf32>
    %786 = arith.addf %783, %785 : vector<8x64xf32>
    %787 = math.tanh %786 : vector<8x64xf32>
    %cst_292 = arith.constant 1.000000e+00 : f32
    %788 = vector.broadcast %cst_292 : f32 to vector<8x64xf32>
    %789 = arith.subf %788, %782 : vector<8x64xf32>
    %790 = arith.mulf %789, %787 : vector<8x64xf32>
    %791 = arith.mulf %782, %769 : vector<8x64xf32>
    %792 = arith.addf %790, %791 : vector<8x64xf32>
    %c32_293 = arith.constant 32 : index
    %c0_294 = arith.constant 0 : index
    %793 = vector.load %arg15[%c32_293, %c0_294] : memref<64x256xf32, #tpu.memory_space<vmem>>, vector<8x256xf32>
    %cst_295 = arith.constant dense<0.000000e+00> : vector<8x256xf32>
    %794 = tpu.matmul %792, %695, %cst_295 {dimension_numbers = #tpu.dot_dimension_numbers<[1], [0], [0], [1], [0, 0, 1, 1], [], []>} : vector<8x64xf32>, vector<64x256xf32>, vector<8x256xf32> -> vector<8x256xf32>
    %795 = arith.addf %794, %699 : vector<8x256xf32>
    %796 = vector.extract_strided_slice %793 {offsets = [0, 0], sizes = [8, 128], strides = [1, 1]} : vector<8x256xf32> to vector<8x128xf32>
    %797 = vector.extract_strided_slice %795 {offsets = [0, 0], sizes = [8, 128], strides = [1, 1]} : vector<8x256xf32> to vector<8x128xf32>
    %798 = arith.addf %796, %797 : vector<8x128xf32>
    %799 = arith.negf %798 : vector<8x128xf32>
    %800 = math.exp %799 : vector<8x128xf32>
    %cst_296 = arith.constant 1.000000e+00 : f32
    %801 = vector.broadcast %cst_296 : f32 to vector<8x128xf32>
    %802 = arith.addf %801, %800 : vector<8x128xf32>
    %803 = arith.divf %801, %802 : vector<8x128xf32>
    %804 = vector.extract_strided_slice %803 {offsets = [0, 0], sizes = [8, 64], strides = [1, 1]} : vector<8x128xf32> to vector<8x64xf32>
    %805 = vector.extract_strided_slice %803 {offsets = [0, 64], sizes = [8, 64], strides = [1, 1]} : vector<8x128xf32> to vector<8x64xf32>
    %806 = vector.extract_strided_slice %793 {offsets = [0, 128], sizes = [8, 64], strides = [1, 1]} : vector<8x256xf32> to vector<8x64xf32>
    %807 = vector.extract_strided_slice %795 {offsets = [0, 128], sizes = [8, 64], strides = [1, 1]} : vector<8x256xf32> to vector<8x64xf32>
    %808 = arith.mulf %804, %807 : vector<8x64xf32>
    %809 = arith.addf %806, %808 : vector<8x64xf32>
    %810 = math.tanh %809 : vector<8x64xf32>
    %cst_297 = arith.constant 1.000000e+00 : f32
    %811 = vector.broadcast %cst_297 : f32 to vector<8x64xf32>
    %812 = arith.subf %811, %805 : vector<8x64xf32>
    %813 = arith.mulf %812, %810 : vector<8x64xf32>
    %814 = arith.mulf %805, %792 : vector<8x64xf32>
    %815 = arith.addf %813, %814 : vector<8x64xf32>
    %c40_298 = arith.constant 40 : index
    %c0_299 = arith.constant 0 : index
    %816 = vector.load %arg15[%c40_298, %c0_299] : memref<64x256xf32, #tpu.memory_space<vmem>>, vector<8x256xf32>
    %cst_300 = arith.constant dense<0.000000e+00> : vector<8x256xf32>
    %817 = tpu.matmul %815, %695, %cst_300 {dimension_numbers = #tpu.dot_dimension_numbers<[1], [0], [0], [1], [0, 0, 1, 1], [], []>} : vector<8x64xf32>, vector<64x256xf32>, vector<8x256xf32> -> vector<8x256xf32>
    %818 = arith.addf %817, %699 : vector<8x256xf32>
    %819 = vector.extract_strided_slice %816 {offsets = [0, 0], sizes = [8, 128], strides = [1, 1]} : vector<8x256xf32> to vector<8x128xf32>
    %820 = vector.extract_strided_slice %818 {offsets = [0, 0], sizes = [8, 128], strides = [1, 1]} : vector<8x256xf32> to vector<8x128xf32>
    %821 = arith.addf %819, %820 : vector<8x128xf32>
    %822 = arith.negf %821 : vector<8x128xf32>
    %823 = math.exp %822 : vector<8x128xf32>
    %cst_301 = arith.constant 1.000000e+00 : f32
    %824 = vector.broadcast %cst_301 : f32 to vector<8x128xf32>
    %825 = arith.addf %824, %823 : vector<8x128xf32>
    %826 = arith.divf %824, %825 : vector<8x128xf32>
    %827 = vector.extract_strided_slice %826 {offsets = [0, 0], sizes = [8, 64], strides = [1, 1]} : vector<8x128xf32> to vector<8x64xf32>
    %828 = vector.extract_strided_slice %826 {offsets = [0, 64], sizes = [8, 64], strides = [1, 1]} : vector<8x128xf32> to vector<8x64xf32>
    %829 = vector.extract_strided_slice %816 {offsets = [0, 128], sizes = [8, 64], strides = [1, 1]} : vector<8x256xf32> to vector<8x64xf32>
    %830 = vector.extract_strided_slice %818 {offsets = [0, 128], sizes = [8, 64], strides = [1, 1]} : vector<8x256xf32> to vector<8x64xf32>
    %831 = arith.mulf %827, %830 : vector<8x64xf32>
    %832 = arith.addf %829, %831 : vector<8x64xf32>
    %833 = math.tanh %832 : vector<8x64xf32>
    %cst_302 = arith.constant 1.000000e+00 : f32
    %834 = vector.broadcast %cst_302 : f32 to vector<8x64xf32>
    %835 = arith.subf %834, %828 : vector<8x64xf32>
    %836 = arith.mulf %835, %833 : vector<8x64xf32>
    %837 = arith.mulf %828, %815 : vector<8x64xf32>
    %838 = arith.addf %836, %837 : vector<8x64xf32>
    %c48_303 = arith.constant 48 : index
    %c0_304 = arith.constant 0 : index
    %839 = vector.load %arg15[%c48_303, %c0_304] : memref<64x256xf32, #tpu.memory_space<vmem>>, vector<8x256xf32>
    %cst_305 = arith.constant dense<0.000000e+00> : vector<8x256xf32>
    %840 = tpu.matmul %838, %695, %cst_305 {dimension_numbers = #tpu.dot_dimension_numbers<[1], [0], [0], [1], [0, 0, 1, 1], [], []>} : vector<8x64xf32>, vector<64x256xf32>, vector<8x256xf32> -> vector<8x256xf32>
    %841 = arith.addf %840, %699 : vector<8x256xf32>
    %842 = vector.extract_strided_slice %839 {offsets = [0, 0], sizes = [8, 128], strides = [1, 1]} : vector<8x256xf32> to vector<8x128xf32>
    %843 = vector.extract_strided_slice %841 {offsets = [0, 0], sizes = [8, 128], strides = [1, 1]} : vector<8x256xf32> to vector<8x128xf32>
    %844 = arith.addf %842, %843 : vector<8x128xf32>
    %845 = arith.negf %844 : vector<8x128xf32>
    %846 = math.exp %845 : vector<8x128xf32>
    %cst_306 = arith.constant 1.000000e+00 : f32
    %847 = vector.broadcast %cst_306 : f32 to vector<8x128xf32>
    %848 = arith.addf %847, %846 : vector<8x128xf32>
    %849 = arith.divf %847, %848 : vector<8x128xf32>
    %850 = vector.extract_strided_slice %849 {offsets = [0, 0], sizes = [8, 64], strides = [1, 1]} : vector<8x128xf32> to vector<8x64xf32>
    %851 = vector.extract_strided_slice %849 {offsets = [0, 64], sizes = [8, 64], strides = [1, 1]} : vector<8x128xf32> to vector<8x64xf32>
    %852 = vector.extract_strided_slice %839 {offsets = [0, 128], sizes = [8, 64], strides = [1, 1]} : vector<8x256xf32> to vector<8x64xf32>
    %853 = vector.extract_strided_slice %841 {offsets = [0, 128], sizes = [8, 64], strides = [1, 1]} : vector<8x256xf32> to vector<8x64xf32>
    %854 = arith.mulf %850, %853 : vector<8x64xf32>
    %855 = arith.addf %852, %854 : vector<8x64xf32>
    %856 = math.tanh %855 : vector<8x64xf32>
    %cst_307 = arith.constant 1.000000e+00 : f32
    %857 = vector.broadcast %cst_307 : f32 to vector<8x64xf32>
    %858 = arith.subf %857, %851 : vector<8x64xf32>
    %859 = arith.mulf %858, %856 : vector<8x64xf32>
    %860 = arith.mulf %851, %838 : vector<8x64xf32>
    %861 = arith.addf %859, %860 : vector<8x64xf32>
    %c56_308 = arith.constant 56 : index
    %c0_309 = arith.constant 0 : index
    %862 = vector.load %arg15[%c56_308, %c0_309] : memref<64x256xf32, #tpu.memory_space<vmem>>, vector<8x256xf32>
    %cst_310 = arith.constant dense<0.000000e+00> : vector<8x256xf32>
    %863 = tpu.matmul %861, %695, %cst_310 {dimension_numbers = #tpu.dot_dimension_numbers<[1], [0], [0], [1], [0, 0, 1, 1], [], []>} : vector<8x64xf32>, vector<64x256xf32>, vector<8x256xf32> -> vector<8x256xf32>
    %864 = arith.addf %863, %699 : vector<8x256xf32>
    %865 = vector.extract_strided_slice %862 {offsets = [0, 0], sizes = [8, 128], strides = [1, 1]} : vector<8x256xf32> to vector<8x128xf32>
    %866 = vector.extract_strided_slice %864 {offsets = [0, 0], sizes = [8, 128], strides = [1, 1]} : vector<8x256xf32> to vector<8x128xf32>
    %867 = arith.addf %865, %866 : vector<8x128xf32>
    %868 = arith.negf %867 : vector<8x128xf32>
    %869 = math.exp %868 : vector<8x128xf32>
    %cst_311 = arith.constant 1.000000e+00 : f32
    %870 = vector.broadcast %cst_311 : f32 to vector<8x128xf32>
    %871 = arith.addf %870, %869 : vector<8x128xf32>
    %872 = arith.divf %870, %871 : vector<8x128xf32>
    %873 = vector.extract_strided_slice %872 {offsets = [0, 0], sizes = [8, 64], strides = [1, 1]} : vector<8x128xf32> to vector<8x64xf32>
    %874 = vector.extract_strided_slice %872 {offsets = [0, 64], sizes = [8, 64], strides = [1, 1]} : vector<8x128xf32> to vector<8x64xf32>
    %875 = vector.extract_strided_slice %862 {offsets = [0, 128], sizes = [8, 64], strides = [1, 1]} : vector<8x256xf32> to vector<8x64xf32>
    %876 = vector.extract_strided_slice %864 {offsets = [0, 128], sizes = [8, 64], strides = [1, 1]} : vector<8x256xf32> to vector<8x64xf32>
    %877 = arith.mulf %873, %876 : vector<8x64xf32>
    %878 = arith.addf %875, %877 : vector<8x64xf32>
    %879 = math.tanh %878 : vector<8x64xf32>
    %cst_312 = arith.constant 1.000000e+00 : f32
    %880 = vector.broadcast %cst_312 : f32 to vector<8x64xf32>
    %881 = arith.subf %880, %874 : vector<8x64xf32>
    %882 = arith.mulf %881, %879 : vector<8x64xf32>
    %883 = arith.mulf %874, %861 : vector<8x64xf32>
    %884 = arith.addf %882, %883 : vector<8x64xf32>
    %885 = tpu.concatenate %682, %884 in 1 : vector<8x64xf32>, vector<8x64xf32> -> vector<8x128xf32>
    %c1_313 = arith.constant 1 : index
    %c0_314 = arith.constant 0 : index
    %c0_315 = arith.constant 0 : index
    %886 = vector.load %arg6[%c1_313, %c0_314, %c0_315] : memref<2x128x32xf32, #tpu.memory_space<vmem>>, vector<1x128x32xf32>
    %887 = vector.shape_cast %886 : vector<1x128x32xf32> to vector<128x32xf32>
    %cst_316 = arith.constant dense<0.000000e+00> : vector<8x32xf32>
    %888 = tpu.matmul %885, %887, %cst_316 {dimension_numbers = #tpu.dot_dimension_numbers<[1], [0], [0], [1], [0, 0, 1, 1], [], []>} : vector<8x128xf32>, vector<128x32xf32>, vector<8x32xf32> -> vector<8x32xf32>
    %c1_317 = arith.constant 1 : index
    %c0_318 = arith.constant 0 : index
    %c0_319 = arith.constant 0 : index
    %889 = vector.load %arg7[%c1_317, %c0_318, %c0_319] : memref<2x1x32xf32, #tpu.memory_space<vmem>>, vector<1x1x32xf32>
    %890 = vector.shape_cast %889 : vector<1x1x32xf32> to vector<1x32xf32>
    %891 = vector.broadcast %890 : vector<1x32xf32> to vector<8x32xf32>
    %892 = arith.addf %888, %891 : vector<8x32xf32>
    %893 = arith.negf %892 : vector<8x32xf32>
    %894 = math.exp %893 : vector<8x32xf32>
    %cst_320 = arith.constant 1.000000e+00 : f32
    %895 = vector.broadcast %cst_320 : f32 to vector<8x32xf32>
    %896 = arith.addf %895, %894 : vector<8x32xf32>
    %897 = arith.divf %895, %896 : vector<8x32xf32>
    %c1_321 = arith.constant 1 : index
    %c0_322 = arith.constant 0 : index
    %c0_323 = arith.constant 0 : index
    %898 = vector.load %arg8[%c1_321, %c0_322, %c0_323] : memref<2x32x32xf32, #tpu.memory_space<vmem>>, vector<1x32x32xf32>
    %899 = vector.shape_cast %898 : vector<1x32x32xf32> to vector<32x32xf32>
    %cst_324 = arith.constant dense<0.000000e+00> : vector<8x32xf32>
    %900 = tpu.matmul %897, %899, %cst_324 {dimension_numbers = #tpu.dot_dimension_numbers<[1], [0], [0], [1], [0, 0, 1, 1], [], []>} : vector<8x32xf32>, vector<32x32xf32>, vector<8x32xf32> -> vector<8x32xf32>
    %c1_325 = arith.constant 1 : index
    %c0_326 = arith.constant 0 : index
    %c0_327 = arith.constant 0 : index
    %901 = vector.load %arg9[%c1_325, %c0_326, %c0_327] : memref<2x1x32xf32, #tpu.memory_space<vmem>>, vector<1x1x32xf32>
    %902 = vector.shape_cast %901 : vector<1x1x32xf32> to vector<1x32xf32>
    %903 = vector.broadcast %902 : vector<1x32xf32> to vector<8x32xf32>
    %904 = arith.addf %900, %903 : vector<8x32xf32>
    %905 = arith.negf %904 : vector<8x32xf32>
    %906 = math.exp %905 : vector<8x32xf32>
    %cst_328 = arith.constant 1.000000e+00 : f32
    %907 = vector.broadcast %cst_328 : f32 to vector<8x32xf32>
    %908 = arith.addf %907, %906 : vector<8x32xf32>
    %909 = arith.divf %907, %908 : vector<8x32xf32>
    %910 = vector.extract_strided_slice %909 {offsets = [0, 0], sizes = [2, 32], strides = [1, 1]} : vector<8x32xf32> to vector<2x32xf32>
    %911 = vector.extract_strided_slice %909 {offsets = [2, 0], sizes = [2, 32], strides = [1, 1]} : vector<8x32xf32> to vector<2x32xf32>
    %912 = tpu.concatenate %910, %911 in 1 : vector<2x32xf32>, vector<2x32xf32> -> vector<2x64xf32>
    %c1_329 = arith.constant 1 : index
    %c0_330 = arith.constant 0 : index
    %c0_331 = arith.constant 0 : index
    %913 = vector.load %arg10[%c1_329, %c0_330, %c0_331] : memref<2x64x32xf32, #tpu.memory_space<vmem>>, vector<1x64x32xf32>
    %914 = vector.shape_cast %913 : vector<1x64x32xf32> to vector<64x32xf32>
    %cst_332 = arith.constant dense<0.000000e+00> : vector<2x32xf32>
    %915 = tpu.matmul %912, %914, %cst_332 {dimension_numbers = #tpu.dot_dimension_numbers<[1], [0], [0], [1], [0, 0, 1, 1], [], []>} : vector<2x64xf32>, vector<64x32xf32>, vector<2x32xf32> -> vector<2x32xf32>
    %c1_333 = arith.constant 1 : index
    %c0_334 = arith.constant 0 : index
    %c0_335 = arith.constant 0 : index
    %916 = vector.load %arg11[%c1_333, %c0_334, %c0_335] : memref<2x1x32xf32, #tpu.memory_space<vmem>>, vector<1x1x32xf32>
    %917 = vector.shape_cast %916 : vector<1x1x32xf32> to vector<1x32xf32>
    %918 = vector.broadcast %917 : vector<1x32xf32> to vector<2x32xf32>
    %919 = arith.addf %915, %918 : vector<2x32xf32>
    %920 = arith.negf %919 : vector<2x32xf32>
    %921 = math.exp %920 : vector<2x32xf32>
    %cst_336 = arith.constant 1.000000e+00 : f32
    %922 = vector.broadcast %cst_336 : f32 to vector<2x32xf32>
    %923 = arith.addf %922, %921 : vector<2x32xf32>
    %924 = arith.divf %922, %923 : vector<2x32xf32>
    %925 = tpu.concatenate %462, %924 in 1 : vector<2x32xf32>, vector<2x32xf32> -> vector<2x64xf32>
    %c0_337 = arith.constant 0 : index
    %c0_338 = arith.constant 0 : index
    %926 = vector.load %arg12[%c0_337, %c0_338] : memref<64x2xf32, #tpu.memory_space<vmem>>, vector<64x2xf32>
    %cst_339 = arith.constant dense<0.000000e+00> : vector<2x2xf32>
    %927 = tpu.matmul %925, %926, %cst_339 {dimension_numbers = #tpu.dot_dimension_numbers<[1], [0], [0], [1], [0, 0, 1, 1], [], []>} : vector<2x64xf32>, vector<64x2xf32>, vector<2x2xf32> -> vector<2x2xf32>
    %c0_340 = arith.constant 0 : index
    %c0_341 = arith.constant 0 : index
    %928 = vector.load %arg13[%c0_340, %c0_341] : memref<1x2xf32, #tpu.memory_space<vmem>>, vector<1x2xf32>
    %929 = vector.broadcast %928 : vector<1x2xf32> to vector<2x2xf32>
    %930 = arith.addf %927, %929 : vector<2x2xf32>
    %931 = arith.negf %930 : vector<2x2xf32>
    %932 = math.exp %931 : vector<2x2xf32>
    %cst_342 = arith.constant 1.000000e+00 : f32
    %933 = vector.broadcast %cst_342 : f32 to vector<2x2xf32>
    %934 = arith.addf %933, %932 : vector<2x2xf32>
    %935 = arith.divf %933, %934 : vector<2x2xf32>
    %c0_343 = arith.constant 0 : index
    %c0_344 = arith.constant 0 : index
    %936 = vector.load %arg14[%c0_343, %c0_344] : memref<2x2xf32, #tpu.memory_space<vmem>>, vector<2x2xf32>
    tpu.vector_store %arg14[%c0_343, %c0_344], %935 {strides = array<i32>} : memref<2x2xf32, #tpu.memory_space<vmem>>, vector<2x2xf32>,
    return
  }
}

</mosaic_0001>

<llo_original>
// kernel: forward.1
$region0: #{forward.1}
  #allocation0 [shape = 'u32[]', space=smem, size = 0x4, offset = 0x4, fixed_abs, tag = 'smem constant byte address 0x4 - core index']
  #allocation1 [shape = 'u32[144,128]{1,0:T(1,128)}', space=vmem, size = 0x12000, scoped, tag = 'internal scratch']
  #allocation2 [shape = 'f32[64,256]{1,0:T(8,128)}', space=vmem, size = 0x10000, scoped, tag = 'scratch operand']
  #allocation3 [shape = 'f32[64,128]{1,0:T(8,128)}', space=vmem, size = 0x8000, scoped, tag = 'scratch operand']
  %s0 = inlined_call_operand.vmem [shape: s32[2,64,2], index: 0, kind: input, shape index: {}]
  %s1 = inlined_call_operand.vmem [shape: f32[2,64,256], index: 1, kind: input, shape index: {}]
  %s2 = inlined_call_operand.vmem [shape: f32[2,128,256], index: 2, kind: input, shape index: {}]
  %s3 = inlined_call_operand.vmem [shape: f32[2,1,256], index: 3, kind: input, shape index: {}]
  %s4 = inlined_call_operand.hbm [shape: f32[2,2,64,256], index: 4, kind: input, shape index: {}]
  %s5 = inlined_call_operand.hbm [shape: f32[2,2,1,256], index: 5, kind: input, shape index: {}]
  %s6 = inlined_call_operand.vmem [shape: f32[2,128,32], index: 6, kind: input, shape index: {}]
  %s7 = inlined_call_operand.hbm [shape: f32[2,1,32], index: 7, kind: input, shape index: {}]
  %s8 = inlined_call_operand.vmem [shape: f32[2,32,32], index: 8, kind: input, shape index: {}]
  %s9 = inlined_call_operand.hbm [shape: f32[2,1,32], index: 9, kind: input, shape index: {}]
  %s10 = inlined_call_operand.vmem [shape: f32[2,64,32], index: 10, kind: input, shape index: {}]
  %s11 = inlined_call_operand.hbm [shape: f32[2,1,32], index: 11, kind: input, shape index: {}]
  %s12 = inlined_call_operand.vmem [shape: f32[64,2], index: 12, kind: input, shape index: {}]
  %s13 = inlined_call_operand.hbm [shape: f32[1,2], index: 13, kind: input, shape index: {}]
  %s14 = inlined_call_operand.hbm [shape: f32[2,2], index: 14, kind: output, shape index: {}]
  %s15 = sld [smem:[#allocation0]]
  $region90: #{forward.1} parent=0
    _
  %s17 = ssub.s32 1, %s15
  %s18 = scalar_select 0, %s17, %s15
  $region1: #{forward.1} parent=0
    #allocation4 [shape = 'u8[262144]{0}', space=vmem, size = 0x40000, scoped, tag = 'input window, operand 4, single buffered']
    #allocation5 [shape = 's32[1]{0}', space=sflag, size = 0x4, scoped, tag = 'scoped memory for forward.1']
    #allocation6 [shape = 's32[1]{0}', space=sflag, size = 0x4, scoped, tag = 'scoped memory for forward.1']
    #allocation7 [shape = 'u8[4096]{0}', space=vmem, size = 0x1000, scoped, tag = 'input window, operand 5, single buffered']
    #allocation8 [shape = 's32[1]{0}', space=sflag, size = 0x4, scoped, tag = 'scoped memory for forward.1']
    #allocation9 [shape = 'u8[1024]{0}', space=vmem, size = 0x400, scoped, tag = 'input window, operand 7, single buffered']
    #allocation10 [shape = 'u8[1024]{0}', space=vmem, size = 0x400, scoped, tag = 'input window, operand 9, single buffered']
    #allocation11 [shape = 's32[1]{0}', space=sflag, size = 0x4, scoped, tag = 'scoped memory for forward.1']
    #allocation12 [shape = 'u8[1024]{0}', space=vmem, size = 0x400, scoped, tag = 'input window, operand 11, single buffered']
    #allocation13 [shape = 'u8[512]{0}', space=vmem, size = 0x400, scoped, tag = 'input window, operand 13, single buffered']
    #allocation14 [shape = 's32[1]{0}', space=sflag, size = 0x4, scoped, tag = 'scoped memory for forward.1']
    #allocation15 [shape = 'u8[1024]{0}', space=vmem, size = 0x400, scoped, tag = 'output window, operand 0, single buffered']
    %19 = vsyncpa [#allocation5], 0
    %20 = vsyncpa [#allocation8], 0
    %21 = vsyncpa [#allocation11], 0
    %22 = vsyncpa [#allocation14], 0
    %23 = vsyncpa [#allocation6], 0
    // Predicated region
    $region2: #{forward.1} parent=1 // pred_check
      _
    $region3: #{forward.1} parent=1 // pred_check_branch
      %25 = sbr.rel (0) target = $region5
    $region4: #{forward.1} parent=1 // pred_region
      _
    $region5: #{forward.1} parent=1 // pred_fallthru
      _
    // Predicated region
    $region6: #{forward.1} parent=1 // pred_check
      _
    $region7: #{forward.1} parent=1 // pred_check_branch
      %27 = sbr.rel (0) target = $region9
    $region8: #{forward.1} parent=1 // pred_region
      _
    $region9: #{forward.1} parent=1 // pred_fallthru
      _
    // Predicated region
    $region10: #{forward.1} parent=1 // pred_check
      _
    $region11: #{forward.1} parent=1 // pred_check_branch
      %29 = sbr.rel (0) target = $region13
    $region12: #{forward.1} parent=1 // pred_region
      _
    $region13: #{forward.1} parent=1 // pred_fallthru
      _
    // Predicated region
    $region14: #{forward.1} parent=1 // pred_check
      _
    $region15: #{forward.1} parent=1 // pred_check_branch
      %31 = sbr.rel (0) target = $region17
    $region16: #{forward.1} parent=1 // pred_region
      _
    $region17: #{forward.1} parent=1 // pred_fallthru
      _
    // Predicated region
    $region18: #{forward.1} parent=1 // pred_check
      _
    $region19: #{forward.1} parent=1 // pred_check_branch
      %33 = sbr.rel (0) target = $region21
    $region20: #{forward.1} parent=1 // pred_region
      %s35 = ssub.s32 8192, 8192
      %36 = vsyncadd [#allocation5], %s35
      %s37 = sshll.u32 [#allocation4], 4
      %s38 = int_to_ptr.vmem [resolvable:$true] %s37
      %43 = dma.hbm_to_vmem [thread:$0]  %s4, 8192, %s38, [#allocation5], 256, 256, 16
    $region21: #{forward.1} parent=1 // pred_fallthru
      _
    // Predicated region
    $region22: #{forward.1} parent=1 // pred_check
      _
    $region23: #{forward.1} parent=1 // pred_check_branch
      %45 = sbr.rel (0) target = $region25
    $region24: #{forward.1} parent=1 // pred_region
      %s47 = ssub.s32 128, 128
      %48 = vsyncadd [#allocation8], %s47
      %s49 = sshll.u32 [#allocation7], 4
      %s50 = int_to_ptr.vmem [resolvable:$true] %s49
      %55 = dma.hbm_to_vmem [thread:$0]  %s5, 128, %s50, [#allocation8], 32, 32, 2
    $region25: #{forward.1} parent=1 // pred_fallthru
      _
    // Predicated region
    $region26: #{forward.1} parent=1 // pred_check
      _
    $region27: #{forward.1} parent=1 // pred_check_branch
      %57 = sbr.rel (0) target = $region29
    $region28: #{forward.1} parent=1 // pred_region
      _
    $region29: #{forward.1} parent=1 // pred_fallthru
      _
    // Predicated region
    $region30: #{forward.1} parent=1 // pred_check
      _
    $region31: #{forward.1} parent=1 // pred_check_branch
      %59 = sbr.rel (0) target = $region33
    $region32: #{forward.1} parent=1 // pred_region
      %s61 = ssub.s32 32, 32
      %62 = vsyncadd [#allocation8], %s61
      %s63 = sshll.u32 [#allocation9], 4
      %s64 = int_to_ptr.vmem [resolvable:$true] %s63
      %69 = dma.hbm_to_vmem [thread:$0]  %s7, 32, %s64, [#allocation8], 16, 16, 1
    $region33: #{forward.1} parent=1 // pred_fallthru
      _
    // Predicated region
    $region34: #{forward.1} parent=1 // pred_check
      _
    $region35: #{forward.1} parent=1 // pred_check_branch
      %71 = sbr.rel (0) target = $region37
    $region36: #{forward.1} parent=1 // pred_region
      _
    $region37: #{forward.1} parent=1 // pred_fallthru
      _
    // Predicated region
    $region38: #{forward.1} parent=1 // pred_check
      _
    $region39: #{forward.1} parent=1 // pred_check_branch
      %73 = sbr.rel (0) target = $region41
    $region40: #{forward.1} parent=1 // pred_region
      %s75 = ssub.s32 32, 32
      %76 = vsyncadd [#allocation11], %s75
      %s77 = sshll.u32 [#allocation10], 4
      %s78 = int_to_ptr.vmem [resolvable:$true] %s77
      %83 = dma.hbm_to_vmem [thread:$0]  %s9, 32, %s78, [#allocation11], 16, 16, 1
    $region41: #{forward.1} parent=1 // pred_fallthru
      _
    // Predicated region
    $region42: #{forward.1} parent=1 // pred_check
      _
    $region43: #{forward.1} parent=1 // pred_check_branch
      %85 = sbr.rel (0) target = $region45
    $region44: #{forward.1} parent=1 // pred_region
      _
    $region45: #{forward.1} parent=1 // pred_fallthru
      _
    // Predicated region
    $region46: #{forward.1} parent=1 // pred_check
      _
    $region47: #{forward.1} parent=1 // pred_check_branch
      %87 = sbr.rel (0) target = $region49
    $region48: #{forward.1} parent=1 // pred_region
      %s89 = ssub.s32 32, 32
      %90 = vsyncadd [#allocation11], %s89
      %s91 = sshll.u32 [#allocation12], 4
      %s92 = int_to_ptr.vmem [resolvable:$true] %s91
      %97 = dma.hbm_to_vmem [thread:$0]  %s11, 32, %s92, [#allocation11], 16, 16, 1
    $region49: #{forward.1} parent=1 // pred_fallthru
      _
    // Predicated region
    $region50: #{forward.1} parent=1 // pred_check
      _
    $region51: #{forward.1} parent=1 // pred_check_branch
      %99 = sbr.rel (0) target = $region53
    $region52: #{forward.1} parent=1 // pred_region
      _
    $region53: #{forward.1} parent=1 // pred_fallthru
      _
    // Predicated region
    $region54: #{forward.1} parent=1 // pred_check
      _
    $region55: #{forward.1} parent=1 // pred_check_branch
      %101 = sbr.rel (0) target = $region57
    $region56: #{forward.1} parent=1 // pred_region
      %s103 = ssub.s32 16, 16
      %104 = vsyncadd [#allocation14], %s103
      %s106 = sshll.u32 [#allocation13], 4
      %s107 = int_to_ptr.vmem [resolvable:$true] %s106
      %109 = dma.hbm_to_vmem [thread:$0]  %s13, 16, %s107, [#allocation14]
    $region57: #{forward.1} parent=1 // pred_fallthru
      _
    // Predicated region
    $region58: #{forward.1} parent=1 // pred_check
      _
    $region59: #{forward.1} parent=1 // pred_check_branch
      %111 = sbr.rel (0) target = $region61
    $region60: #{forward.1} parent=1 // pred_region
      %112 = dma.done [#allocation5], 8192
    $region61: #{forward.1} parent=1 // pred_fallthru
      _
    // Predicated region
    $region62: #{forward.1} parent=1 // pred_check
      _
    $region63: #{forward.1} parent=1 // pred_check_branch
      %114 = sbr.rel (0) target = $region65
    $region64: #{forward.1} parent=1 // pred_region
      %115 = dma.done [#allocation8], 128
    $region65: #{forward.1} parent=1 // pred_fallthru
      _
    // Predicated region
    $region66: #{forward.1} parent=1 // pred_check
      _
    $region67: #{forward.1} parent=1 // pred_check_branch
      %117 = sbr.rel (0) target = $region69
    $region68: #{forward.1} parent=1 // pred_region
      %118 = dma.done [#allocation8], 32
    $region69: #{forward.1} parent=1 // pred_fallthru
      _
    // Predicated region
    $region70: #{forward.1} parent=1 // pred_check
      _
    $region71: #{forward.1} parent=1 // pred_check_branch
      %120 = sbr.rel (0) target = $region73
    $region72: #{forward.1} parent=1 // pred_region
      %121 = dma.done [#allocation11], 32
    $region73: #{forward.1} parent=1 // pred_fallthru
      _
    // Predicated region
    $region74: #{forward.1} parent=1 // pred_check
      _
    $region75: #{forward.1} parent=1 // pred_check_branch
      %123 = sbr.rel (0) target = $region77
    $region76: #{forward.1} parent=1 // pred_region
      %124 = dma.done [#allocation11], 32
    $region77: #{forward.1} parent=1 // pred_fallthru
      _
    // Predicated region
    $region78: #{forward.1} parent=1 // pred_check
      _
    $region79: #{forward.1} parent=1 // pred_check_branch
      %126 = sbr.rel (0) target = $region81
    $region80: #{forward.1} parent=1 // pred_region
      %127 = dma.done [#allocation14], 16
    $region81: #{forward.1} parent=1 // pred_fallthru
      _
    %v128 = vlaneseq
    %v129 = vand.u32 %v128, 127
    %v130 = vld [vmem:[%s0] sm:$0xff]
    %v131 = vld [vmem:[%s0 + $0x8] sm:$0xff]
    %v132 = vld [vmem:[%s0 + $0x10] sm:$0xff]
    %v133 = vld [vmem:[%s0 + $0x18] sm:$0xff]
    %v134 = vld [vmem:[%s0 + $0x20] sm:$0xff]
    %v135 = vld [vmem:[%s0 + $0x28] sm:$0xff]
    %v136 = vld [vmem:[%s0 + $0x30] sm:$0xff]
    %v137 = vld [vmem:[%s0 + $0x38] sm:$0xff]
    %138 = vset.pattern.permute.xlu0 0
    %139 = vperm.xlu0 %138, %v130
    %v140 = vpop.permute.xlu0 %139
    %141 = vset.pattern.permute.xlu0 0
    %142 = vperm.xlu0 %141, %v131
    %v143 = vpop.permute.xlu0 %142
    %144 = vset.pattern.permute.xlu0 0
    %145 = vperm.xlu0 %144, %v132
    %v146 = vpop.permute.xlu0 %145
    %147 = vset.pattern.permute.xlu0 0
    %148 = vperm.xlu0 %147, %v133
    %v149 = vpop.permute.xlu0 %148
    %150 = vset.pattern.permute.xlu0 0
    %151 = vperm.xlu0 %150, %v134
    %v152 = vpop.permute.xlu0 %151
    %153 = vset.pattern.permute.xlu0 0
    %154 = vperm.xlu0 %153, %v135
    %v155 = vpop.permute.xlu0 %154
    %156 = vset.pattern.permute.xlu0 0
    %157 = vperm.xlu0 %156, %v136
    %v158 = vpop.permute.xlu0 %157
    %159 = vset.pattern.permute.xlu0 0
    %160 = vperm.xlu0 %159, %v137
    %v161 = vpop.permute.xlu0 %160
    %vm162 = vcmp.eq.s32.totalorder %v140, %v129
    %vm163 = vcmp.eq.s32.totalorder %v143, %v129
    %vm164 = vcmp.eq.s32.totalorder %v146, %v129
    %vm165 = vcmp.eq.s32.totalorder %v149, %v129
    %vm166 = vcmp.eq.s32.totalorder %v152, %v129
    %vm167 = vcmp.eq.s32.totalorder %v155, %v129
    %vm168 = vcmp.eq.s32.totalorder %v158, %v129
    %vm169 = vcmp.eq.s32.totalorder %v161, %v129
    %170 = vset.pattern.permute.xlu0 1
    %171 = vperm.xlu0 %170, %v130
    %v172 = vpop.permute.xlu0 %171
    %173 = vset.pattern.permute.xlu0 1
    %174 = vperm.xlu0 %173, %v131
    %v175 = vpop.permute.xlu0 %174
    %176 = vset.pattern.permute.xlu0 1
    %177 = vperm.xlu0 %176, %v132
    %v178 = vpop.permute.xlu0 %177
    %179 = vset.pattern.permute.xlu0 1
    %180 = vperm.xlu0 %179, %v133
    %v181 = vpop.permute.xlu0 %180
    %182 = vset.pattern.permute.xlu0 1
    %183 = vperm.xlu0 %182, %v134
    %v184 = vpop.permute.xlu0 %183
    %185 = vset.pattern.permute.xlu0 1
    %186 = vperm.xlu0 %185, %v135
    %v187 = vpop.permute.xlu0 %186
    %188 = vset.pattern.permute.xlu0 1
    %189 = vperm.xlu0 %188, %v136
    %v190 = vpop.permute.xlu0 %189
    %191 = vset.pattern.permute.xlu0 1
    %192 = vperm.xlu0 %191, %v137
    %v193 = vpop.permute.xlu0 %192
    %vm194 = vcmp.eq.s32.totalorder %v172, %v129
    %vm195 = vcmp.eq.s32.totalorder %v175, %v129
    %vm196 = vcmp.eq.s32.totalorder %v178, %v129
    %vm197 = vcmp.eq.s32.totalorder %v181, %v129
    %vm198 = vcmp.eq.s32.totalorder %v184, %v129
    %vm199 = vcmp.eq.s32.totalorder %v187, %v129
    %vm200 = vcmp.eq.s32.totalorder %v190, %v129
    %vm201 = vcmp.eq.s32.totalorder %v193, %v129
    %vm202 = vmor %vm162, %vm194
    %vm203 = vmor %vm163, %vm195
    %vm204 = vmor %vm164, %vm196
    %vm205 = vmor %vm165, %vm197
    %vm206 = vmor %vm166, %vm198
    %vm207 = vmor %vm167, %vm199
    %vm208 = vmor %vm168, %vm200
    %vm209 = vmor %vm169, %vm201
    %v210 = vsel %vm202, 1, 0
    %v211 = vsel %vm203, 1, 0
    %v212 = vsel %vm204, 1, 0
    %v213 = vsel %vm205, 1, 0
    %v214 = vsel %vm206, 1, 0
    %v215 = vsel %vm207, 1, 0
    %v216 = vsel %vm208, 1, 0
    %v217 = vsel %vm209, 1, 0
    %v218 = vcvt.s32.f32 %v210
    %v219 = vcvt.s32.f32 %v211
    %v220 = vcvt.s32.f32 %v212
    %v221 = vcvt.s32.f32 %v213
    %v222 = vcvt.s32.f32 %v214
    %v223 = vcvt.s32.f32 %v215
    %v224 = vcvt.s32.f32 %v216
    %v225 = vcvt.s32.f32 %v217
    %v226 = vld [vmem:[%s1] sm:$0xff]
    %v227 = vld [vmem:[%s1 + $0x8] sm:$0xff]
    %v228 = vld [vmem:[%s1 + $0x10] sm:$0xff]
    %v229 = vld [vmem:[%s1 + $0x18] sm:$0xff]
    %v230 = vld [vmem:[%s1 + $0x20] sm:$0xff]
    %v231 = vld [vmem:[%s1 + $0x28] sm:$0xff]
    %v232 = vld [vmem:[%s1 + $0x30] sm:$0xff]
    %v233 = vld [vmem:[%s1 + $0x38] sm:$0xff]
    %v234 = vld [vmem:[%s1 + $0x40] sm:$0xff]
    %v235 = vld [vmem:[%s1 + $0x48] sm:$0xff]
    %v236 = vld [vmem:[%s1 + $0x50] sm:$0xff]
    %v237 = vld [vmem:[%s1 + $0x58] sm:$0xff]
    %v238 = vld [vmem:[%s1 + $0x60] sm:$0xff]
    %v239 = vld [vmem:[%s1 + $0x68] sm:$0xff]
    %v240 = vld [vmem:[%s1 + $0x70] sm:$0xff]
    %v241 = vld [vmem:[%s1 + $0x78] sm:$0xff]
    %vm242 = vcmask 523264
    %v244 = vsel %vm242, %v218, 0
    %v247 = vsel %vm242, %v219, 0
    %v250 = vsel %vm242, %v220, 0
    %v253 = vsel %vm242, %v221, 0
    %v256 = vsel %vm242, %v222, 0
    %v259 = vsel %vm242, %v223, 0
    %v262 = vsel %vm242, %v224, 0
    %v265 = vsel %vm242, %v225, 0
    %267 = vmatprep.subr.mxu0 %v227
    %268 = vmatpush1.msra.mxu0 %v226
    %269 = vmatprep.subr.mxu0 %v229
    %270 = vmatpush1.msra.mxu0 %v228
    %271 = vmatprep.subr.mxu0 %v231
    %272 = vmatpush1.msra.mxu0 %v230
    %273 = vmatprep.subr.mxu0 %v233
    %274 = vmatpush1.msra.mxu0 %v232
    %275 = vmatprep.subr.mxu0 %v235
    %276 = vmatpush1.msra.mxu0 %v234
    %277 = vmatprep.subr.mxu0 %v237
    %278 = vmatpush1.msra.mxu0 %v236
    %279 = vmatprep.subr.mxu0 %v239
    %280 = vmatpush1.msra.mxu0 %v238
    %281 = vmatprep.subr.mxu0 %v241
    %282 = vmatpush1.msra.mxu0 %v240
    %283 = vmatprep.subr.mxu0 0.0
    %284 = vmatpush1.msra.mxu0 0.0
    %285 = vmatprep.subr.mxu0 0.0
    %286 = vmatpush1.msra.mxu0 0.0
    %287 = vmatprep.subr.mxu0 0.0
    %288 = vmatpush1.msra.mxu0 0.0
    %289 = vmatprep.subr.mxu0 0.0
    %290 = vmatpush1.msra.mxu0 0.0
    %291 = vmatprep.subr.mxu0 0.0
    %292 = vmatpush1.msra.mxu0 0.0
    %293 = vmatprep.subr.mxu0 0.0
    %294 = vmatpush1.msra.mxu0 0.0
    %295 = vmatprep.subr.mxu0 0.0
    %296 = vmatpush1.msra.mxu0 0.0
    %297 = vmatprep.subr.mxu0 0.0
    %298 = vmatpush1.msra.mxu0 0.0
    %299 = vmatprep.subr.mxu0 0.0
    %300 = vmatpush1.msra.mxu0 0.0
    %301 = vmatprep.subr.mxu0 0.0
    %302 = vmatpush1.msra.mxu0 0.0
    %303 = vmatprep.subr.mxu0 0.0
    %304 = vmatpush1.msra.mxu0 0.0
    %305 = vmatprep.subr.mxu0 0.0
    %306 = vmatpush1.msra.mxu0 0.0
    %307 = vmatprep.subr.mxu0 0.0
    %308 = vmatpush1.msra.mxu0 0.0
    %309 = vmatprep.subr.mxu0 0.0
    %310 = vmatpush1.msra.mxu0 0.0
    %311 = vmatprep.subr.mxu0 0.0
    %312 = vmatpush1.msra.mxu0 0.0
    %313 = vmatprep.subr.mxu0 0.0
    %314 = vmatpush1.msra.mxu0 0.0
    %315 = vmatprep.subr.mxu0 0.0
    %316 = vmatpush1.msra.mxu0 0.0
    %317 = vmatprep.subr.mxu0 0.0
    %318 = vmatpush1.msra.mxu0 0.0
    %319 = vmatprep.subr.mxu0 0.0
    %320 = vmatpush1.msra.mxu0 0.0
    %321 = vmatprep.subr.mxu0 0.0
    %322 = vmatpush1.msra.mxu0 0.0
    %323 = vmatprep.subr.mxu0 0.0
    %324 = vmatpush1.msra.mxu0 0.0
    %325 = vmatprep.subr.mxu0 0.0
    %326 = vmatpush1.msra.mxu0 0.0
    %327 = vmatprep.subr.mxu0 0.0
    %328 = vmatpush1.msra.mxu0 0.0
    %329 = vmatprep.subr.mxu0 0.0
    %330 = vmatpush1.msra.mxu0 0.0
    %331 = vmatprep.mubr.f32.mxu0 0.0
    %332 = vmatmul.mubr.f32.gmra.mrb[0].mxu0 %v244
    %v333 = vpop.f32.mrb[0].mxu0
    %v334 = vadd.f32 0.0, %v333
    %v335 = vpop.f32.mrb[0].mxu0
    %v336 = vadd.f32 0.0, %v335
    %337 = vmatprep.mubr.f32.mxu0 0.0
    %338 = vmatmul.mubr.f32.gmra.mrb[0].mxu0 %v247
    %v339 = vpop.f32.mrb[0].mxu0
    %v340 = vadd.f32 0.0, %v339
    %v341 = vpop.f32.mrb[0].mxu0
    %v342 = vadd.f32 0.0, %v341
    %343 = vmatprep.mubr.f32.mxu0 0.0
    %344 = vmatmul.mubr.f32.gmra.mrb[0].mxu0 %v250
    %v345 = vpop.f32.mrb[0].mxu0
    %v346 = vadd.f32 0.0, %v345
    %v347 = vpop.f32.mrb[0].mxu0
    %v348 = vadd.f32 0.0, %v347
    %349 = vmatprep.mubr.f32.mxu0 0.0
    %350 = vmatmul.mubr.f32.gmra.mrb[0].mxu0 %v253
    %v351 = vpop.f32.mrb[0].mxu0
    %v352 = vadd.f32 0.0, %v351
    %v353 = vpop.f32.mrb[0].mxu0
    %v354 = vadd.f32 0.0, %v353
    %355 = vmatprep.mubr.f32.mxu0 0.0
    %356 = vmatmul.mubr.f32.gmra.mrb[0].mxu0 %v256
    %v357 = vpop.f32.mrb[0].mxu0
    %v358 = vadd.f32 0.0, %v357
    %v359 = vpop.f32.mrb[0].mxu0
    %v360 = vadd.f32 0.0, %v359
    %361 = vmatprep.mubr.f32.mxu0 0.0
    %362 = vmatmul.mubr.f32.gmra.mrb[0].mxu0 %v259
    %v363 = vpop.f32.mrb[0].mxu0
    %v364 = vadd.f32 0.0, %v363
    %v365 = vpop.f32.mrb[0].mxu0
    %v366 = vadd.f32 0.0, %v365
    %367 = vmatprep.mubr.f32.mxu0 0.0
    %368 = vmatmul.mubr.f32.gmra.mrb[0].mxu0 %v262
    %v369 = vpop.f32.mrb[0].mxu0
    %v370 = vadd.f32 0.0, %v369
    %v371 = vpop.f32.mrb[0].mxu0
    %v372 = vadd.f32 0.0, %v371
    %373 = vmatprep.mubr.f32.mxu0 0.0
    %374 = vmatmul.mubr.f32.gmra.mrb[0].mxu0 %v265
    %v375 = vpop.f32.mrb[0].mxu0
    %v376 = vadd.f32 0.0, %v375
    %v377 = vpop.f32.mrb[0].mxu0
    %v378 = vadd.f32 0.0, %v377
    %379 = vdwg.mxu0
    %380 = vst [vmem:[#allocation2] sm:$0xff] %v334
    %381 = vst [vmem:[#allocation2 + $0x8] sm:$0xff] %v336
    %382 = vst [vmem:[#allocation2 + $0x10] sm:$0xff] %v340
    %383 = vst [vmem:[#allocation2 + $0x18] sm:$0xff] %v342
    %384 = vst [vmem:[#allocation2 + $0x20] sm:$0xff] %v346
    %385 = vst [vmem:[#allocation2 + $0x28] sm:$0xff] %v348
    %386 = vst [vmem:[#allocation2 + $0x30] sm:$0xff] %v352
    %387 = vst [vmem:[#allocation2 + $0x38] sm:$0xff] %v354
    %388 = vst [vmem:[#allocation2 + $0x40] sm:$0xff] %v358
    %389 = vst [vmem:[#allocation2 + $0x48] sm:$0xff] %v360
    %390 = vst [vmem:[#allocation2 + $0x50] sm:$0xff] %v364
    %391 = vst [vmem:[#allocation2 + $0x58] sm:$0xff] %v366
    %392 = vst [vmem:[#allocation2 + $0x60] sm:$0xff] %v370
    %393 = vst [vmem:[#allocation2 + $0x68] sm:$0xff] %v372
    %394 = vst [vmem:[#allocation2 + $0x70] sm:$0xff] %v376
    %395 = vst [vmem:[#allocation2 + $0x78] sm:$0xff] %v378
    %v396 = vld [vmem:[#allocation4] sm:$0xff]
    %v397 = vld [vmem:[#allocation4 + $0x8] sm:$0xff]
    %v398 = vld [vmem:[#allocation4 + $0x10] sm:$0xff]
    %v399 = vld [vmem:[#allocation4 + $0x18] sm:$0xff]
    %v400 = vld [vmem:[#allocation4 + $0x20] sm:$0xff]
    %v401 = vld [vmem:[#allocation4 + $0x28] sm:$0xff]
    %v402 = vld [vmem:[#allocation4 + $0x30] sm:$0xff]
    %v403 = vld [vmem:[#allocation4 + $0x38] sm:$0xff]
    %v404 = vld [vmem:[#allocation4 + $0x40] sm:$0xff]
    %v405 = vld [vmem:[#allocation4 + $0x48] sm:$0xff]
    %v406 = vld [vmem:[#allocation4 + $0x50] sm:$0xff]
    %v407 = vld [vmem:[#allocation4 + $0x58] sm:$0xff]
    %v408 = vld [vmem:[#allocation4 + $0x60] sm:$0xff]
    %v409 = vld [vmem:[#allocation4 + $0x68] sm:$0xff]
    %v410 = vld [vmem:[#allocation4 + $0x70] sm:$0xff]
    %v411 = vld [vmem:[#allocation4 + $0x78] sm:$0xff]
    %v412 = vld [vmem:[#allocation7] sm:$0x3]
    %v414 = vlaneseq
    %v415 = vshrl.u32 %v414, 7
    %v416 = vsub.s32 0, %v415
    %v417 = vrot.slane %v412, %v416
    %v418 = vlaneseq
    %v419 = vshrl.u32 %v418, 7
    %v420 = vsub.s32 1, %v419
    %v421 = vrot.slane %v412, %v420
    %v424 = vld [vmem:[#allocation2] sm:$0xff]
    %v425 = vld [vmem:[#allocation2 + $0x8] sm:$0xff]
    %v427 = vsel %vm242, 0.0, 0
    %429 = vmatprep.subr.mxu0 %v397
    %430 = vmatpush1.msra.mxu0 %v396
    %431 = vmatprep.subr.mxu0 %v399
    %432 = vmatpush1.msra.mxu0 %v398
    %433 = vmatprep.subr.mxu0 %v401
    %434 = vmatpush1.msra.mxu0 %v400
    %435 = vmatprep.subr.mxu0 %v403
    %436 = vmatpush1.msra.mxu0 %v402
    %437 = vmatprep.subr.mxu0 %v405
    %438 = vmatpush1.msra.mxu0 %v404
    %439 = vmatprep.subr.mxu0 %v407
    %440 = vmatpush1.msra.mxu0 %v406
    %441 = vmatprep.subr.mxu0 %v409
    %442 = vmatpush1.msra.mxu0 %v408
    %443 = vmatprep.subr.mxu0 %v411
    %444 = vmatpush1.msra.mxu0 %v410
    %445 = vmatprep.subr.mxu0 0.0
    %446 = vmatpush1.msra.mxu0 0.0
    %447 = vmatprep.subr.mxu0 0.0
    %448 = vmatpush1.msra.mxu0 0.0
    %449 = vmatprep.subr.mxu0 0.0
    %450 = vmatpush1.msra.mxu0 0.0
    %451 = vmatprep.subr.mxu0 0.0
    %452 = vmatpush1.msra.mxu0 0.0
    %453 = vmatprep.subr.mxu0 0.0
    %454 = vmatpush1.msra.mxu0 0.0
    %455 = vmatprep.subr.mxu0 0.0
    %456 = vmatpush1.msra.mxu0 0.0
    %457 = vmatprep.subr.mxu0 0.0
    %458 = vmatpush1.msra.mxu0 0.0
    %459 = vmatprep.subr.mxu0 0.0
    %460 = vmatpush1.msra.mxu0 0.0
    %461 = vmatprep.subr.mxu0 0.0
    %462 = vmatpush1.msra.mxu0 0.0
    %463 = vmatprep.subr.mxu0 0.0
    %464 = vmatpush1.msra.mxu0 0.0
    %465 = vmatprep.subr.mxu0 0.0
    %466 = vmatpush1.msra.mxu0 0.0
    %467 = vmatprep.subr.mxu0 0.0
    %468 = vmatpush1.msra.mxu0 0.0
    %469 = vmatprep.subr.mxu0 0.0
    %470 = vmatpush1.msra.mxu0 0.0
    %471 = vmatprep.subr.mxu0 0.0
    %472 = vmatpush1.msra.mxu0 0.0
    %473 = vmatprep.subr.mxu0 0.0
    %474 = vmatpush1.msra.mxu0 0.0
    %475 = vmatprep.subr.mxu0 0.0
    %476 = vmatpush1.msra.mxu0 0.0
    %477 = vmatprep.subr.mxu0 0.0
    %478 = vmatpush1.msra.mxu0 0.0
    %479 = vmatprep.subr.mxu0 0.0
    %480 = vmatpush1.msra.mxu0 0.0
    %481 = vmatprep.subr.mxu0 0.0
    %482 = vmatpush1.msra.mxu0 0.0
    %483 = vmatprep.subr.mxu0 0.0
    %484 = vmatpush1.msra.mxu0 0.0
    %485 = vmatprep.subr.mxu0 0.0
    %486 = vmatpush1.msra.mxu0 0.0
    %487 = vmatprep.subr.mxu0 0.0
    %488 = vmatpush1.msra.mxu0 0.0
    %489 = vmatprep.subr.mxu0 0.0
    %490 = vmatpush1.msra.mxu0 0.0
    %491 = vmatprep.subr.mxu0 0.0
    %492 = vmatpush1.msra.mxu0 0.0
    %493 = vmatprep.mubr.f32.mxu0 0.0
    %494 = vmatmul.mubr.f32.gmra.mrb[0].mxu0 %v427
    %v495 = vpop.f32.mrb[0].mxu0
    %v496 = vadd.f32 %v417, %v495
    %v497 = vpop.f32.mrb[0].mxu0
    %v498 = vadd.f32 %v421, %v497
    %499 = vdwg.mxu0
    %v500 = vadd.f32 %v424, %v496
    %v501 = vxor.u32 %v500, 2147483648
    %v502 = vmul.f32 %v501, 1.442695
    %v503 = vpow.pop %v502
    %v504 = vadd.f32 %v503, 1.0
    %v505 = vrcp.pop %v504
    %v506 = vmul.f32 1.0, %v505
    %v507 = vmul.f32 %v506, %v498
    %v508 = vadd.f32 %v425, %v507
    %v509 = vtanh.pop %v508
    %v510 = vsub.f32 1.0, %v506
    %512 = vrot.lane.b32.xlu0 %v509, 64
    %v513 = vpop.permute.xlu0 %512
    %v515 = vmul.f32 %v510, %v513
    %v516 = vmul.f32 %v506, 0.0
    %v517 = vadd.f32 %v515, %v516
    %519 = vrot.lane.b32.xlu0 %v517, 64
    %v520 = vpop.permute.xlu0 %519
    %522 = vst.msk [vmem:[#allocation3] sm:$0xff] %vm242, %v520
    %vm523 = vcmask 1048064
    %524 = vst.msk [vmem:[#allocation3 + $0x38] sm:$0xff] %vm523, %v517
    %v525 = vld [vmem:[#allocation2 + $0x10] sm:$0xff]
    %v526 = vld [vmem:[#allocation2 + $0x18] sm:$0xff]
    %v527 = vsel %vm242, %v520, 0
    %529 = vmatprep.subr.mxu0 %v397
    %530 = vmatpush1.msra.mxu0 %v396
    %531 = vmatprep.subr.mxu0 %v399
    %532 = vmatpush1.msra.mxu0 %v398
    %533 = vmatprep.subr.mxu0 %v401
    %534 = vmatpush1.msra.mxu0 %v400
    %535 = vmatprep.subr.mxu0 %v403
    %536 = vmatpush1.msra.mxu0 %v402
    %537 = vmatprep.subr.mxu0 %v405
    %538 = vmatpush1.msra.mxu0 %v404
    %539 = vmatprep.subr.mxu0 %v407
    %540 = vmatpush1.msra.mxu0 %v406
    %541 = vmatprep.subr.mxu0 %v409
    %542 = vmatpush1.msra.mxu0 %v408
    %543 = vmatprep.subr.mxu0 %v411
    %544 = vmatpush1.msra.mxu0 %v410
    %545 = vmatprep.subr.mxu0 0.0
    %546 = vmatpush1.msra.mxu0 0.0
    %547 = vmatprep.subr.mxu0 0.0
    %548 = vmatpush1.msra.mxu0 0.0
    %549 = vmatprep.subr.mxu0 0.0
    %550 = vmatpush1.msra.mxu0 0.0
    %551 = vmatprep.subr.mxu0 0.0
    %552 = vmatpush1.msra.mxu0 0.0
    %553 = vmatprep.subr.mxu0 0.0
    %554 = vmatpush1.msra.mxu0 0.0
    %555 = vmatprep.subr.mxu0 0.0
    %556 = vmatpush1.msra.mxu0 0.0
    %557 = vmatprep.subr.mxu0 0.0
    %558 = vmatpush1.msra.mxu0 0.0
    %559 = vmatprep.subr.mxu0 0.0
    %560 = vmatpush1.msra.mxu0 0.0
    %561 = vmatprep.subr.mxu0 0.0
    %562 = vmatpush1.msra.mxu0 0.0
    %563 = vmatprep.subr.mxu0 0.0
    %564 = vmatpush1.msra.mxu0 0.0
    %565 = vmatprep.subr.mxu0 0.0
    %566 = vmatpush1.msra.mxu0 0.0
    %567 = vmatprep.subr.mxu0 0.0
    %568 = vmatpush1.msra.mxu0 0.0
    %569 = vmatprep.subr.mxu0 0.0
    %570 = vmatpush1.msra.mxu0 0.0
    %571 = vmatprep.subr.mxu0 0.0
    %572 = vmatpush1.msra.mxu0 0.0
    %573 = vmatprep.subr.mxu0 0.0
    %574 = vmatpush1.msra.mxu0 0.0
    %575 = vmatprep.subr.mxu0 0.0
    %576 = vmatpush1.msra.mxu0 0.0
    %577 = vmatprep.subr.mxu0 0.0
    %578 = vmatpush1.msra.mxu0 0.0
    %579 = vmatprep.subr.mxu0 0.0
    %580 = vmatpush1.msra.mxu0 0.0
    %581 = vmatprep.subr.mxu0 0.0
    %582 = vmatpush1.msra.mxu0 0.0
    %583 = vmatprep.subr.mxu0 0.0
    %584 = vmatpush1.msra.mxu0 0.0
    %585 = vmatprep.subr.mxu0 0.0
    %586 = vmatpush1.msra.mxu0 0.0
    %587 = vmatprep.subr.mxu0 0.0
    %588 = vmatpush1.msra.mxu0 0.0
    %589 = vmatprep.subr.mxu0 0.0
    %590 = vmatpush1.msra.mxu0 0.0
    %591 = vmatprep.subr.mxu0 0.0
    %592 = vmatpush1.msra.mxu0 0.0
    %593 = vmatprep.mubr.f32.mxu0 0.0
    %594 = vmatmul.mubr.f32.gmra.mrb[0].mxu0 %v527
    %v595 = vpop.f32.mrb[0].mxu0
    %v596 = vadd.f32 %v417, %v595
    %v597 = vpop.f32.mrb[0].mxu0
    %v598 = vadd.f32 %v421, %v597
    %599 = vdwg.mxu0
    %v600 = vadd.f32 %v525, %v596
    %v601 = vxor.u32 %v600, 2147483648
    %v602 = vmul.f32 %v601, 1.442695
    %v603 = vpow.pop %v602
    %v604 = vadd.f32 %v603, 1.0
    %v605 = vrcp.pop %v604
    %v606 = vmul.f32 1.0, %v605
    %v607 = vmul.f32 %v606, %v598
    %v608 = vadd.f32 %v526, %v607
    %v609 = vtanh.pop %v608
    %v610 = vsub.f32 1.0, %v606
    %612 = vrot.lane.b32.xlu0 %v609, 64
    %v613 = vpop.permute.xlu0 %612
    %v615 = vmul.f32 %v610, %v613
    %v616 = vmul.f32 %v606, %v517
    %v617 = vadd.f32 %v615, %v616
    %619 = vrot.lane.b32.xlu0 %v617, 64
    %v620 = vpop.permute.xlu0 %619
    %622 = vst.msk [vmem:[#allocation3 + $0x8] sm:$0xff] %vm242, %v620
    %623 = vst.msk [vmem:[#allocation3 + $0x30] sm:$0xff] %vm523, %v617
    %v624 = vld [vmem:[#allocation2 + $0x20] sm:$0xff]
    %v625 = vld [vmem:[#allocation2 + $0x28] sm:$0xff]
    %v626 = vsel %vm242, %v620, 0
    %628 = vmatprep.subr.mxu0 %v397
    %629 = vmatpush1.msra.mxu0 %v396
    %630 = vmatprep.subr.mxu0 %v399
    %631 = vmatpush1.msra.mxu0 %v398
    %632 = vmatprep.subr.mxu0 %v401
    %633 = vmatpush1.msra.mxu0 %v400
    %634 = vmatprep.subr.mxu0 %v403
    %635 = vmatpush1.msra.mxu0 %v402
    %636 = vmatprep.subr.mxu0 %v405
    %637 = vmatpush1.msra.mxu0 %v404
    %638 = vmatprep.subr.mxu0 %v407
    %639 = vmatpush1.msra.mxu0 %v406
    %640 = vmatprep.subr.mxu0 %v409
    %641 = vmatpush1.msra.mxu0 %v408
    %642 = vmatprep.subr.mxu0 %v411
    %643 = vmatpush1.msra.mxu0 %v410
    %644 = vmatprep.subr.mxu0 0.0
    %645 = vmatpush1.msra.mxu0 0.0
    %646 = vmatprep.subr.mxu0 0.0
    %647 = vmatpush1.msra.mxu0 0.0
    %648 = vmatprep.subr.mxu0 0.0
    %649 = vmatpush1.msra.mxu0 0.0
    %650 = vmatprep.subr.mxu0 0.0
    %651 = vmatpush1.msra.mxu0 0.0
    %652 = vmatprep.subr.mxu0 0.0
    %653 = vmatpush1.msra.mxu0 0.0
    %654 = vmatprep.subr.mxu0 0.0
    %655 = vmatpush1.msra.mxu0 0.0
    %656 = vmatprep.subr.mxu0 0.0
    %657 = vmatpush1.msra.mxu0 0.0
    %658 = vmatprep.subr.mxu0 0.0
    %659 = vmatpush1.msra.mxu0 0.0
    %660 = vmatprep.subr.mxu0 0.0
    %661 = vmatpush1.msra.mxu0 0.0
    %662 = vmatprep.subr.mxu0 0.0
    %663 = vmatpush1.msra.mxu0 0.0
    %664 = vmatprep.subr.mxu0 0.0
    %665 = vmatpush1.msra.mxu0 0.0
    %666 = vmatprep.subr.mxu0 0.0
    %667 = vmatpush1.msra.mxu0 0.0
    %668 = vmatprep.subr.mxu0 0.0
    %669 = vmatpush1.msra.mxu0 0.0
    %670 = vmatprep.subr.mxu0 0.0
    %671 = vmatpush1.msra.mxu0 0.0
    %672 = vmatprep.subr.mxu0 0.0
    %673 = vmatpush1.msra.mxu0 0.0
    %674 = vmatprep.subr.mxu0 0.0
    %675 = vmatpush1.msra.mxu0 0.0
    %676 = vmatprep.subr.mxu0 0.0
    %677 = vmatpush1.msra.mxu0 0.0
    %678 = vmatprep.subr.mxu0 0.0
    %679 = vmatpush1.msra.mxu0 0.0
    %680 = vmatprep.subr.mxu0 0.0
    %681 = vmatpush1.msra.mxu0 0.0
    %682 = vmatprep.subr.mxu0 0.0
    %683 = vmatpush1.msra.mxu0 0.0
    %684 = vmatprep.subr.mxu0 0.0
    %685 = vmatpush1.msra.mxu0 0.0
    %686 = vmatprep.subr.mxu0 0.0
    %687 = vmatpush1.msra.mxu0 0.0
    %688 = vmatprep.subr.mxu0 0.0
    %689 = vmatpush1.msra.mxu0 0.0
    %690 = vmatprep.subr.mxu0 0.0
    %691 = vmatpush1.msra.mxu0 0.0
    %692 = vmatprep.mubr.f32.mxu0 0.0
    %693 = vmatmul.mubr.f32.gmra.mrb[0].mxu0 %v626
    %v694 = vpop.f32.mrb[0].mxu0
    %v695 = vadd.f32 %v417, %v694
    %v696 = vpop.f32.mrb[0].mxu0
    %v697 = vadd.f32 %v421, %v696
    %698 = vdwg.mxu0
    %v699 = vadd.f32 %v624, %v695
    %v700 = vxor.u32 %v699, 2147483648
    %v701 = vmul.f32 %v700, 1.442695
    %v702 = vpow.pop %v701
    %v703 = vadd.f32 %v702, 1.0
    %v704 = vrcp.pop %v703
    %v705 = vmul.f32 1.0, %v704
    %v706 = vmul.f32 %v705, %v697
    %v707 = vadd.f32 %v625, %v706
    %v708 = vtanh.pop %v707
    %v709 = vsub.f32 1.0, %v705
    %711 = vrot.lane.b32.xlu0 %v708, 64
    %v712 = vpop.permute.xlu0 %711
    %v714 = vmul.f32 %v709, %v712
    %v715 = vmul.f32 %v705, %v617
    %v716 = vadd.f32 %v714, %v715
    %718 = vrot.lane.b32.xlu0 %v716, 64
    %v719 = vpop.permute.xlu0 %718
    %721 = vst.msk [vmem:[#allocation3 + $0x10] sm:$0xff] %vm242, %v719
    %722 = vst.msk [vmem:[#allocation3 + $0x28] sm:$0xff] %vm523, %v716
    %v723 = vld [vmem:[#allocation2 + $0x30] sm:$0xff]
    %v724 = vld [vmem:[#allocation2 + $0x38] sm:$0xff]
    %v725 = vsel %vm242, %v719, 0
    %727 = vmatprep.subr.mxu0 %v397
    %728 = vmatpush1.msra.mxu0 %v396
    %729 = vmatprep.subr.mxu0 %v399
    %730 = vmatpush1.msra.mxu0 %v398
    %731 = vmatprep.subr.mxu0 %v401
    %732 = vmatpush1.msra.mxu0 %v400
    %733 = vmatprep.subr.mxu0 %v403
    %734 = vmatpush1.msra.mxu0 %v402
    %735 = vmatprep.subr.mxu0 %v405
    %736 = vmatpush1.msra.mxu0 %v404
    %737 = vmatprep.subr.mxu0 %v407
    %738 = vmatpush1.msra.mxu0 %v406
    %739 = vmatprep.subr.mxu0 %v409
    %740 = vmatpush1.msra.mxu0 %v408
    %741 = vmatprep.subr.mxu0 %v411
    %742 = vmatpush1.msra.mxu0 %v410
    %743 = vmatprep.subr.mxu0 0.0
    %744 = vmatpush1.msra.mxu0 0.0
    %745 = vmatprep.subr.mxu0 0.0
    %746 = vmatpush1.msra.mxu0 0.0
    %747 = vmatprep.subr.mxu0 0.0
    %748 = vmatpush1.msra.mxu0 0.0
    %749 = vmatprep.subr.mxu0 0.0
    %750 = vmatpush1.msra.mxu0 0.0
    %751 = vmatprep.subr.mxu0 0.0
    %752 = vmatpush1.msra.mxu0 0.0
    %753 = vmatprep.subr.mxu0 0.0
    %754 = vmatpush1.msra.mxu0 0.0
    %755 = vmatprep.subr.mxu0 0.0
    %756 = vmatpush1.msra.mxu0 0.0
    %757 = vmatprep.subr.mxu0 0.0
    %758 = vmatpush1.msra.mxu0 0.0
    %759 = vmatprep.subr.mxu0 0.0
    %760 = vmatpush1.msra.mxu0 0.0
    %761 = vmatprep.subr.mxu0 0.0
    %762 = vmatpush1.msra.mxu0 0.0
    %763 = vmatprep.subr.mxu0 0.0
    %764 = vmatpush1.msra.mxu0 0.0
    %765 = vmatprep.subr.mxu0 0.0
    %766 = vmatpush1.msra.mxu0 0.0
    %767 = vmatprep.subr.mxu0 0.0
    %768 = vmatpush1.msra.mxu0 0.0
    %769 = vmatprep.subr.mxu0 0.0
    %770 = vmatpush1.msra.mxu0 0.0
    %771 = vmatprep.subr.mxu0 0.0
    %772 = vmatpush1.msra.mxu0 0.0
    %773 = vmatprep.subr.mxu0 0.0
    %774 = vmatpush1.msra.mxu0 0.0
    %775 = vmatprep.subr.mxu0 0.0
    %776 = vmatpush1.msra.mxu0 0.0
    %777 = vmatprep.subr.mxu0 0.0
    %778 = vmatpush1.msra.mxu0 0.0
    %779 = vmatprep.subr.mxu0 0.0
    %780 = vmatpush1.msra.mxu0 0.0
    %781 = vmatprep.subr.mxu0 0.0
    %782 = vmatpush1.msra.mxu0 0.0
    %783 = vmatprep.subr.mxu0 0.0
    %784 = vmatpush1.msra.mxu0 0.0
    %785 = vmatprep.subr.mxu0 0.0
    %786 = vmatpush1.msra.mxu0 0.0
    %787 = vmatprep.subr.mxu0 0.0
    %788 = vmatpush1.msra.mxu0 0.0
    %789 = vmatprep.subr.mxu0 0.0
    %790 = vmatpush1.msra.mxu0 0.0
    %791 = vmatprep.mubr.f32.mxu0 0.0
    %792 = vmatmul.mubr.f32.gmra.mrb[0].mxu0 %v725
    %v793 = vpop.f32.mrb[0].mxu0
    %v794 = vadd.f32 %v417, %v793
    %v795 = vpop.f32.mrb[0].mxu0
    %v796 = vadd.f32 %v421, %v795
    %797 = vdwg.mxu0
    %v798 = vadd.f32 %v723, %v794
    %v799 = vxor.u32 %v798, 2147483648
    %v800 = vmul.f32 %v799, 1.442695
    %v801 = vpow.pop %v800
    %v802 = vadd.f32 %v801, 1.0
    %v803 = vrcp.pop %v802
    %v804 = vmul.f32 1.0, %v803
    %v805 = vmul.f32 %v804, %v796
    %v806 = vadd.f32 %v724, %v805
    %v807 = vtanh.pop %v806
    %v808 = vsub.f32 1.0, %v804
    %810 = vrot.lane.b32.xlu0 %v807, 64
    %v811 = vpop.permute.xlu0 %810
    %v813 = vmul.f32 %v808, %v811
    %v814 = vmul.f32 %v804, %v716
    %v815 = vadd.f32 %v813, %v814
    %817 = vrot.lane.b32.xlu0 %v815, 64
    %v818 = vpop.permute.xlu0 %817
    %820 = vst.msk [vmem:[#allocation3 + $0x18] sm:$0xff] %vm242, %v818
    %821 = vst.msk [vmem:[#allocation3 + $0x20] sm:$0xff] %vm523, %v815
    %v822 = vld [vmem:[#allocation2 + $0x40] sm:$0xff]
    %v823 = vld [vmem:[#allocation2 + $0x48] sm:$0xff]
    %v824 = vsel %vm242, %v818, 0
    %826 = vmatprep.subr.mxu0 %v397
    %827 = vmatpush1.msra.mxu0 %v396
    %828 = vmatprep.subr.mxu0 %v399
    %829 = vmatpush1.msra.mxu0 %v398
    %830 = vmatprep.subr.mxu0 %v401
    %831 = vmatpush1.msra.mxu0 %v400
    %832 = vmatprep.subr.mxu0 %v403
    %833 = vmatpush1.msra.mxu0 %v402
    %834 = vmatprep.subr.mxu0 %v405
    %835 = vmatpush1.msra.mxu0 %v404
    %836 = vmatprep.subr.mxu0 %v407
    %837 = vmatpush1.msra.mxu0 %v406
    %838 = vmatprep.subr.mxu0 %v409
    %839 = vmatpush1.msra.mxu0 %v408
    %840 = vmatprep.subr.mxu0 %v411
    %841 = vmatpush1.msra.mxu0 %v410
    %842 = vmatprep.subr.mxu0 0.0
    %843 = vmatpush1.msra.mxu0 0.0
    %844 = vmatprep.subr.mxu0 0.0
    %845 = vmatpush1.msra.mxu0 0.0
    %846 = vmatprep.subr.mxu0 0.0
    %847 = vmatpush1.msra.mxu0 0.0
    %848 = vmatprep.subr.mxu0 0.0
    %849 = vmatpush1.msra.mxu0 0.0
    %850 = vmatprep.subr.mxu0 0.0
    %851 = vmatpush1.msra.mxu0 0.0
    %852 = vmatprep.subr.mxu0 0.0
    %853 = vmatpush1.msra.mxu0 0.0
    %854 = vmatprep.subr.mxu0 0.0
    %855 = vmatpush1.msra.mxu0 0.0
    %856 = vmatprep.subr.mxu0 0.0
    %857 = vmatpush1.msra.mxu0 0.0
    %858 = vmatprep.subr.mxu0 0.0
    %859 = vmatpush1.msra.mxu0 0.0
    %860 = vmatprep.subr.mxu0 0.0
    %861 = vmatpush1.msra.mxu0 0.0
    %862 = vmatprep.subr.mxu0 0.0
    %863 = vmatpush1.msra.mxu0 0.0
    %864 = vmatprep.subr.mxu0 0.0
    %865 = vmatpush1.msra.mxu0 0.0
    %866 = vmatprep.subr.mxu0 0.0
    %867 = vmatpush1.msra.mxu0 0.0
    %868 = vmatprep.subr.mxu0 0.0
    %869 = vmatpush1.msra.mxu0 0.0
    %870 = vmatprep.subr.mxu0 0.0
    %871 = vmatpush1.msra.mxu0 0.0
    %872 = vmatprep.subr.mxu0 0.0
    %873 = vmatpush1.msra.mxu0 0.0
    %874 = vmatprep.subr.mxu0 0.0
    %875 = vmatpush1.msra.mxu0 0.0
    %876 = vmatprep.subr.mxu0 0.0
    %877 = vmatpush1.msra.mxu0 0.0
    %878 = vmatprep.subr.mxu0 0.0
    %879 = vmatpush1.msra.mxu0 0.0
    %880 = vmatprep.subr.mxu0 0.0
    %881 = vmatpush1.msra.mxu0 0.0
    %882 = vmatprep.subr.mxu0 0.0
    %883 = vmatpush1.msra.mxu0 0.0
    %884 = vmatprep.subr.mxu0 0.0
    %885 = vmatpush1.msra.mxu0 0.0
    %886 = vmatprep.subr.mxu0 0.0
    %887 = vmatpush1.msra.mxu0 0.0
    %888 = vmatprep.subr.mxu0 0.0
    %889 = vmatpush1.msra.mxu0 0.0
    %890 = vmatprep.mubr.f32.mxu0 0.0
    %891 = vmatmul.mubr.f32.gmra.mrb[0].mxu0 %v824
    %v892 = vpop.f32.mrb[0].mxu0
    %v893 = vadd.f32 %v417, %v892
    %v894 = vpop.f32.mrb[0].mxu0
    %v895 = vadd.f32 %v421, %v894
    %896 = vdwg.mxu0
    %v897 = vadd.f32 %v822, %v893
    %v898 = vxor.u32 %v897, 2147483648
    %v899 = vmul.f32 %v898, 1.442695
    %v900 = vpow.pop %v899
    %v901 = vadd.f32 %v900, 1.0
    %v902 = vrcp.pop %v901
    %v903 = vmul.f32 1.0, %v902
    %v904 = vmul.f32 %v903, %v895
    %v905 = vadd.f32 %v823, %v904
    %v906 = vtanh.pop %v905
    %v907 = vsub.f32 1.0, %v903
    %909 = vrot.lane.b32.xlu0 %v906, 64
    %v910 = vpop.permute.xlu0 %909
    %v912 = vmul.f32 %v907, %v910
    %v913 = vmul.f32 %v903, %v815
    %v914 = vadd.f32 %v912, %v913
    %916 = vrot.lane.b32.xlu0 %v914, 64
    %v917 = vpop.permute.xlu0 %916
    %919 = vst.msk [vmem:[#allocation3 + $0x20] sm:$0xff] %vm242, %v917
    %920 = vst.msk [vmem:[#allocation3 + $0x18] sm:$0xff] %vm523, %v914
    %v921 = vld [vmem:[#allocation2 + $0x50] sm:$0xff]
    %v922 = vld [vmem:[#allocation2 + $0x58] sm:$0xff]
    %v923 = vsel %vm242, %v917, 0
    %925 = vmatprep.subr.mxu0 %v397
    %926 = vmatpush1.msra.mxu0 %v396
    %927 = vmatprep.subr.mxu0 %v399
    %928 = vmatpush1.msra.mxu0 %v398
    %929 = vmatprep.subr.mxu0 %v401
    %930 = vmatpush1.msra.mxu0 %v400
    %931 = vmatprep.subr.mxu0 %v403
    %932 = vmatpush1.msra.mxu0 %v402
    %933 = vmatprep.subr.mxu0 %v405
    %934 = vmatpush1.msra.mxu0 %v404
    %935 = vmatprep.subr.mxu0 %v407
    %936 = vmatpush1.msra.mxu0 %v406
    %937 = vmatprep.subr.mxu0 %v409
    %938 = vmatpush1.msra.mxu0 %v408
    %939 = vmatprep.subr.mxu0 %v411
    %940 = vmatpush1.msra.mxu0 %v410
    %941 = vmatprep.subr.mxu0 0.0
    %942 = vmatpush1.msra.mxu0 0.0
    %943 = vmatprep.subr.mxu0 0.0
    %944 = vmatpush1.msra.mxu0 0.0
    %945 = vmatprep.subr.mxu0 0.0
    %946 = vmatpush1.msra.mxu0 0.0
    %947 = vmatprep.subr.mxu0 0.0
    %948 = vmatpush1.msra.mxu0 0.0
    %949 = vmatprep.subr.mxu0 0.0
    %950 = vmatpush1.msra.mxu0 0.0
    %951 = vmatprep.subr.mxu0 0.0
    %952 = vmatpush1.msra.mxu0 0.0
    %953 = vmatprep.subr.mxu0 0.0
    %954 = vmatpush1.msra.mxu0 0.0
    %955 = vmatprep.subr.mxu0 0.0
    %956 = vmatpush1.msra.mxu0 0.0
    %957 = vmatprep.subr.mxu0 0.0
    %958 = vmatpush1.msra.mxu0 0.0
    %959 = vmatprep.subr.mxu0 0.0
    %960 = vmatpush1.msra.mxu0 0.0
    %961 = vmatprep.subr.mxu0 0.0
    %962 = vmatpush1.msra.mxu0 0.0
    %963 = vmatprep.subr.mxu0 0.0
    %964 = vmatpush1.msra.mxu0 0.0
    %965 = vmatprep.subr.mxu0 0.0
    %966 = vmatpush1.msra.mxu0 0.0
    %967 = vmatprep.subr.mxu0 0.0
    %968 = vmatpush1.msra.mxu0 0.0
    %969 = vmatprep.subr.mxu0 0.0
    %970 = vmatpush1.msra.mxu0 0.0
    %971 = vmatprep.subr.mxu0 0.0
    %972 = vmatpush1.msra.mxu0 0.0
    %973 = vmatprep.subr.mxu0 0.0
    %974 = vmatpush1.msra.mxu0 0.0
    %975 = vmatprep.subr.mxu0 0.0
    %976 = vmatpush1.msra.mxu0 0.0
    %977 = vmatprep.subr.mxu0 0.0
    %978 = vmatpush1.msra.mxu0 0.0
    %979 = vmatprep.subr.mxu0 0.0
    %980 = vmatpush1.msra.mxu0 0.0
    %981 = vmatprep.subr.mxu0 0.0
    %982 = vmatpush1.msra.mxu0 0.0
    %983 = vmatprep.subr.mxu0 0.0
    %984 = vmatpush1.msra.mxu0 0.0
    %985 = vmatprep.subr.mxu0 0.0
    %986 = vmatpush1.msra.mxu0 0.0
    %987 = vmatprep.subr.mxu0 0.0
    %988 = vmatpush1.msra.mxu0 0.0
    %989 = vmatprep.mubr.f32.mxu0 0.0
    %990 = vmatmul.mubr.f32.gmra.mrb[0].mxu0 %v923
    %v991 = vpop.f32.mrb[0].mxu0
    %v992 = vadd.f32 %v417, %v991
    %v993 = vpop.f32.mrb[0].mxu0
    %v994 = vadd.f32 %v421, %v993
    %995 = vdwg.mxu0
    %v996 = vadd.f32 %v921, %v992
    %v997 = vxor.u32 %v996, 2147483648
    %v998 = vmul.f32 %v997, 1.442695
    %v999 = vpow.pop %v998
    %v1000 = vadd.f32 %v999, 1.0
    %v1001 = vrcp.pop %v1000
    %v1002 = vmul.f32 1.0, %v1001
    %v1003 = vmul.f32 %v1002, %v994
    %v1004 = vadd.f32 %v922, %v1003
    %v1005 = vtanh.pop %v1004
    %v1006 = vsub.f32 1.0, %v1002
    %1008 = vrot.lane.b32.xlu0 %v1005, 64
    %v1009 = vpop.permute.xlu0 %1008
    %v1011 = vmul.f32 %v1006, %v1009
    %v1012 = vmul.f32 %v1002, %v914
    %v1013 = vadd.f32 %v1011, %v1012
    %1015 = vrot.lane.b32.xlu0 %v1013, 64
    %v1016 = vpop.permute.xlu0 %1015
    %1018 = vst.msk [vmem:[#allocation3 + $0x28] sm:$0xff] %vm242, %v1016
    %1019 = vst.msk [vmem:[#allocation3 + $0x10] sm:$0xff] %vm523, %v1013
    %v1020 = vld [vmem:[#allocation2 + $0x60] sm:$0xff]
    %v1021 = vld [vmem:[#allocation2 + $0x68] sm:$0xff]
    %v1022 = vsel %vm242, %v1016, 0
    %1024 = vmatprep.subr.mxu0 %v397
    %1025 = vmatpush1.msra.mxu0 %v396
    %1026 = vmatprep.subr.mxu0 %v399
    %1027 = vmatpush1.msra.mxu0 %v398
    %1028 = vmatprep.subr.mxu0 %v401
    %1029 = vmatpush1.msra.mxu0 %v400
    %1030 = vmatprep.subr.mxu0 %v403
    %1031 = vmatpush1.msra.mxu0 %v402
    %1032 = vmatprep.subr.mxu0 %v405
    %1033 = vmatpush1.msra.mxu0 %v404
    %1034 = vmatprep.subr.mxu0 %v407
    %1035 = vmatpush1.msra.mxu0 %v406
    %1036 = vmatprep.subr.mxu0 %v409
    %1037 = vmatpush1.msra.mxu0 %v408
    %1038 = vmatprep.subr.mxu0 %v411
    %1039 = vmatpush1.msra.mxu0 %v410
    %1040 = vmatprep.subr.mxu0 0.0
    %1041 = vmatpush1.msra.mxu0 0.0
    %1042 = vmatprep.subr.mxu0 0.0
    %1043 = vmatpush1.msra.mxu0 0.0
    %1044 = vmatprep.subr.mxu0 0.0
    %1045 = vmatpush1.msra.mxu0 0.0
    %1046 = vmatprep.subr.mxu0 0.0
    %1047 = vmatpush1.msra.mxu0 0.0
    %1048 = vmatprep.subr.mxu0 0.0
    %1049 = vmatpush1.msra.mxu0 0.0
    %1050 = vmatprep.subr.mxu0 0.0
    %1051 = vmatpush1.msra.mxu0 0.0
    %1052 = vmatprep.subr.mxu0 0.0
    %1053 = vmatpush1.msra.mxu0 0.0
    %1054 = vmatprep.subr.mxu0 0.0
    %1055 = vmatpush1.msra.mxu0 0.0
    %1056 = vmatprep.subr.mxu0 0.0
    %1057 = vmatpush1.msra.mxu0 0.0
    %1058 = vmatprep.subr.mxu0 0.0
    %1059 = vmatpush1.msra.mxu0 0.0
    %1060 = vmatprep.subr.mxu0 0.0
    %1061 = vmatpush1.msra.mxu0 0.0
    %1062 = vmatprep.subr.mxu0 0.0
    %1063 = vmatpush1.msra.mxu0 0.0
    %1064 = vmatprep.subr.mxu0 0.0
    %1065 = vmatpush1.msra.mxu0 0.0
    %1066 = vmatprep.subr.mxu0 0.0
    %1067 = vmatpush1.msra.mxu0 0.0
    %1068 = vmatprep.subr.mxu0 0.0
    %1069 = vmatpush1.msra.mxu0 0.0
    %1070 = vmatprep.subr.mxu0 0.0
    %1071 = vmatpush1.msra.mxu0 0.0
    %1072 = vmatprep.subr.mxu0 0.0
    %1073 = vmatpush1.msra.mxu0 0.0
    %1074 = vmatprep.subr.mxu0 0.0
    %1075 = vmatpush1.msra.mxu0 0.0
    %1076 = vmatprep.subr.mxu0 0.0
    %1077 = vmatpush1.msra.mxu0 0.0
    %1078 = vmatprep.subr.mxu0 0.0
    %1079 = vmatpush1.msra.mxu0 0.0
    %1080 = vmatprep.subr.mxu0 0.0
    %1081 = vmatpush1.msra.mxu0 0.0
    %1082 = vmatprep.subr.mxu0 0.0
    %1083 = vmatpush1.msra.mxu0 0.0
    %1084 = vmatprep.subr.mxu0 0.0
    %1085 = vmatpush1.msra.mxu0 0.0
    %1086 = vmatprep.subr.mxu0 0.0
    %1087 = vmatpush1.msra.mxu0 0.0
    %1088 = vmatprep.mubr.f32.mxu0 0.0
    %1089 = vmatmul.mubr.f32.gmra.mrb[0].mxu0 %v1022
    %v1090 = vpop.f32.mrb[0].mxu0
    %v1091 = vadd.f32 %v417, %v1090
    %v1092 = vpop.f32.mrb[0].mxu0
    %v1093 = vadd.f32 %v421, %v1092
    %1094 = vdwg.mxu0
    %v1095 = vadd.f32 %v1020, %v1091
    %v1096 = vxor.u32 %v1095, 2147483648
    %v1097 = vmul.f32 %v1096, 1.442695
    %v1098 = vpow.pop %v1097
    %v1099 = vadd.f32 %v1098, 1.0
    %v1100 = vrcp.pop %v1099
    %v1101 = vmul.f32 1.0, %v1100
    %v1102 = vmul.f32 %v1101, %v1093
    %v1103 = vadd.f32 %v1021, %v1102
    %v1104 = vtanh.pop %v1103
    %v1105 = vsub.f32 1.0, %v1101
    %1107 = vrot.lane.b32.xlu0 %v1104, 64
    %v1108 = vpop.permute.xlu0 %1107
    %v1110 = vmul.f32 %v1105, %v1108
    %v1111 = vmul.f32 %v1101, %v1013
    %v1112 = vadd.f32 %v1110, %v1111
    %1114 = vrot.lane.b32.xlu0 %v1112, 64
    %v1115 = vpop.permute.xlu0 %1114
    %1117 = vst.msk [vmem:[#allocation3 + $0x30] sm:$0xff] %vm242, %v1115
    %1118 = vst.msk [vmem:[#allocation3 + $0x8] sm:$0xff] %vm523, %v1112
    %v1119 = vld [vmem:[#allocation2 + $0x70] sm:$0xff]
    %v1120 = vld [vmem:[#allocation2 + $0x78] sm:$0xff]
    %v1121 = vsel %vm242, %v1115, 0
    %1123 = vmatprep.subr.mxu0 %v397
    %1124 = vmatpush1.msra.mxu0 %v396
    %1125 = vmatprep.subr.mxu0 %v399
    %1126 = vmatpush1.msra.mxu0 %v398
    %1127 = vmatprep.subr.mxu0 %v401
    %1128 = vmatpush1.msra.mxu0 %v400
    %1129 = vmatprep.subr.mxu0 %v403
    %1130 = vmatpush1.msra.mxu0 %v402
    %1131 = vmatprep.subr.mxu0 %v405
    %1132 = vmatpush1.msra.mxu0 %v404
    %1133 = vmatprep.subr.mxu0 %v407
    %1134 = vmatpush1.msra.mxu0 %v406
    %1135 = vmatprep.subr.mxu0 %v409
    %1136 = vmatpush1.msra.mxu0 %v408
    %1137 = vmatprep.subr.mxu0 %v411
    %1138 = vmatpush1.msra.mxu0 %v410
    %1139 = vmatprep.subr.mxu0 0.0
    %1140 = vmatpush1.msra.mxu0 0.0
    %1141 = vmatprep.subr.mxu0 0.0
    %1142 = vmatpush1.msra.mxu0 0.0
    %1143 = vmatprep.subr.mxu0 0.0
    %1144 = vmatpush1.msra.mxu0 0.0
    %1145 = vmatprep.subr.mxu0 0.0
    %1146 = vmatpush1.msra.mxu0 0.0
    %1147 = vmatprep.subr.mxu0 0.0
    %1148 = vmatpush1.msra.mxu0 0.0
    %1149 = vmatprep.subr.mxu0 0.0
    %1150 = vmatpush1.msra.mxu0 0.0
    %1151 = vmatprep.subr.mxu0 0.0
    %1152 = vmatpush1.msra.mxu0 0.0
    %1153 = vmatprep.subr.mxu0 0.0
    %1154 = vmatpush1.msra.mxu0 0.0
    %1155 = vmatprep.subr.mxu0 0.0
    %1156 = vmatpush1.msra.mxu0 0.0
    %1157 = vmatprep.subr.mxu0 0.0
    %1158 = vmatpush1.msra.mxu0 0.0
    %1159 = vmatprep.subr.mxu0 0.0
    %1160 = vmatpush1.msra.mxu0 0.0
    %1161 = vmatprep.subr.mxu0 0.0
    %1162 = vmatpush1.msra.mxu0 0.0
    %1163 = vmatprep.subr.mxu0 0.0
    %1164 = vmatpush1.msra.mxu0 0.0
    %1165 = vmatprep.subr.mxu0 0.0
    %1166 = vmatpush1.msra.mxu0 0.0
    %1167 = vmatprep.subr.mxu0 0.0
    %1168 = vmatpush1.msra.mxu0 0.0
    %1169 = vmatprep.subr.mxu0 0.0
    %1170 = vmatpush1.msra.mxu0 0.0
    %1171 = vmatprep.subr.mxu0 0.0
    %1172 = vmatpush1.msra.mxu0 0.0
    %1173 = vmatprep.subr.mxu0 0.0
    %1174 = vmatpush1.msra.mxu0 0.0
    %1175 = vmatprep.subr.mxu0 0.0
    %1176 = vmatpush1.msra.mxu0 0.0
    %1177 = vmatprep.subr.mxu0 0.0
    %1178 = vmatpush1.msra.mxu0 0.0
    %1179 = vmatprep.subr.mxu0 0.0
    %1180 = vmatpush1.msra.mxu0 0.0
    %1181 = vmatprep.subr.mxu0 0.0
    %1182 = vmatpush1.msra.mxu0 0.0
    %1183 = vmatprep.subr.mxu0 0.0
    %1184 = vmatpush1.msra.mxu0 0.0
    %1185 = vmatprep.subr.mxu0 0.0
    %1186 = vmatpush1.msra.mxu0 0.0
    %1187 = vmatprep.mubr.f32.mxu0 0.0
    %1188 = vmatmul.mubr.f32.gmra.mrb[0].mxu0 %v1121
    %v1189 = vpop.f32.mrb[0].mxu0
    %v1190 = vadd.f32 %v417, %v1189
    %v1191 = vpop.f32.mrb[0].mxu0
    %v1192 = vadd.f32 %v421, %v1191
    %1193 = vdwg.mxu0
    %v1194 = vadd.f32 %v1119, %v1190
    %v1195 = vxor.u32 %v1194, 2147483648
    %v1196 = vmul.f32 %v1195, 1.442695
    %v1197 = vpow.pop %v1196
    %v1198 = vadd.f32 %v1197, 1.0
    %v1199 = vrcp.pop %v1198
    %v1200 = vmul.f32 1.0, %v1199
    %v1201 = vmul.f32 %v1200, %v1192
    %v1202 = vadd.f32 %v1120, %v1201
    %v1203 = vtanh.pop %v1202
    %v1204 = vsub.f32 1.0, %v1200
    %1206 = vrot.lane.b32.xlu0 %v1203, 64
    %v1207 = vpop.permute.xlu0 %1206
    %v1209 = vmul.f32 %v1204, %v1207
    %v1210 = vmul.f32 %v1200, %v1112
    %v1211 = vadd.f32 %v1209, %v1210
    %1213 = vrot.lane.b32.xlu0 %v1211, 64
    %v1214 = vpop.permute.xlu0 %1213
    %1216 = vst.msk [vmem:[#allocation3 + $0x38] sm:$0xff] %vm242, %v1214
    %1217 = vst.msk [vmem:[#allocation3] sm:$0xff] %vm523, %v1211
    %v1218 = vld [vmem:[#allocation3] sm:$0xff]
    %v1219 = vld [vmem:[#allocation3 + $0x8] sm:$0xff]
    %v1220 = vld [vmem:[#allocation3 + $0x10] sm:$0xff]
    %v1221 = vld [vmem:[#allocation3 + $0x18] sm:$0xff]
    %v1222 = vld [vmem:[#allocation3 + $0x20] sm:$0xff]
    %v1223 = vld [vmem:[#allocation3 + $0x28] sm:$0xff]
    %v1224 = vld [vmem:[#allocation3 + $0x30] sm:$0xff]
    %v1225 = vld [vmem:[#allocation3 + $0x38] sm:$0xff]
    %v1226 = vld [vmem:[%s2] sm:$0xff]
    %v1227 = vld [vmem:[%s2 + $0x8] sm:$0xff]
    %v1228 = vld [vmem:[%s2 + $0x10] sm:$0xff]
    %v1229 = vld [vmem:[%s2 + $0x18] sm:$0xff]
    %v1230 = vld [vmem:[%s2 + $0x20] sm:$0xff]
    %v1231 = vld [vmem:[%s2 + $0x28] sm:$0xff]
    %v1232 = vld [vmem:[%s2 + $0x30] sm:$0xff]
    %v1233 = vld [vmem:[%s2 + $0x38] sm:$0xff]
    %v1234 = vld [vmem:[%s2 + $0x40] sm:$0xff]
    %v1235 = vld [vmem:[%s2 + $0x48] sm:$0xff]
    %v1236 = vld [vmem:[%s2 + $0x50] sm:$0xff]
    %v1237 = vld [vmem:[%s2 + $0x58] sm:$0xff]
    %v1238 = vld [vmem:[%s2 + $0x60] sm:$0xff]
    %v1239 = vld [vmem:[%s2 + $0x68] sm:$0xff]
    %v1240 = vld [vmem:[%s2 + $0x70] sm:$0xff]
    %v1241 = vld [vmem:[%s2 + $0x78] sm:$0xff]
    %v1242 = vld [vmem:[%s2 + $0x80] sm:$0xff]
    %v1243 = vld [vmem:[%s2 + $0x88] sm:$0xff]
    %v1244 = vld [vmem:[%s2 + $0x90] sm:$0xff]
    %v1245 = vld [vmem:[%s2 + $0x98] sm:$0xff]
    %v1246 = vld [vmem:[%s2 + $0xa0] sm:$0xff]
    %v1247 = vld [vmem:[%s2 + $0xa8] sm:$0xff]
    %v1248 = vld [vmem:[%s2 + $0xb0] sm:$0xff]
    %v1249 = vld [vmem:[%s2 + $0xb8] sm:$0xff]
    %v1250 = vld [vmem:[%s2 + $0xc0] sm:$0xff]
    %v1251 = vld [vmem:[%s2 + $0xc8] sm:$0xff]
    %v1252 = vld [vmem:[%s2 + $0xd0] sm:$0xff]
    %v1253 = vld [vmem:[%s2 + $0xd8] sm:$0xff]
    %v1254 = vld [vmem:[%s2 + $0xe0] sm:$0xff]
    %v1255 = vld [vmem:[%s2 + $0xe8] sm:$0xff]
    %v1256 = vld [vmem:[%s2 + $0xf0] sm:$0xff]
    %v1257 = vld [vmem:[%s2 + $0xf8] sm:$0xff]
    %v1258 = vld [vmem:[%s3] sm:$0x3]
    %v1260 = vlaneseq
    %v1261 = vshrl.u32 %v1260, 7
    %v1262 = vsub.s32 0, %v1261
    %v1263 = vrot.slane %v1258, %v1262
    %v1264 = vlaneseq
    %v1265 = vshrl.u32 %v1264, 7
    %v1266 = vsub.s32 1, %v1265
    %v1267 = vrot.slane %v1258, %v1266
    %1270 = vmatprep.subr.mxu0 %v1227
    %1271 = vmatpush1.msra.mxu0 %v1226
    %1272 = vmatprep.subr.mxu0 %v1229
    %1273 = vmatpush1.msra.mxu0 %v1228
    %1274 = vmatprep.subr.mxu0 %v1231
    %1275 = vmatpush1.msra.mxu0 %v1230
    %1276 = vmatprep.subr.mxu0 %v1233
    %1277 = vmatpush1.msra.mxu0 %v1232
    %1278 = vmatprep.subr.mxu0 %v1235
    %1279 = vmatpush1.msra.mxu0 %v1234
    %1280 = vmatprep.subr.mxu0 %v1237
    %1281 = vmatpush1.msra.mxu0 %v1236
    %1282 = vmatprep.subr.mxu0 %v1239
    %1283 = vmatpush1.msra.mxu0 %v1238
    %1284 = vmatprep.subr.mxu0 %v1241
    %1285 = vmatpush1.msra.mxu0 %v1240
    %1286 = vmatprep.subr.mxu0 %v1243
    %1287 = vmatpush1.msra.mxu0 %v1242
    %1288 = vmatprep.subr.mxu0 %v1245
    %1289 = vmatpush1.msra.mxu0 %v1244
    %1290 = vmatprep.subr.mxu0 %v1247
    %1291 = vmatpush1.msra.mxu0 %v1246
    %1292 = vmatprep.subr.mxu0 %v1249
    %1293 = vmatpush1.msra.mxu0 %v1248
    %1294 = vmatprep.subr.mxu0 %v1251
    %1295 = vmatpush1.msra.mxu0 %v1250
    %1296 = vmatprep.subr.mxu0 %v1253
    %1297 = vmatpush1.msra.mxu0 %v1252
    %1298 = vmatprep.subr.mxu0 %v1255
    %1299 = vmatpush1.msra.mxu0 %v1254
    %1300 = vmatprep.subr.mxu0 %v1257
    %1301 = vmatpush1.msra.mxu0 %v1256
    %1302 = vmatprep.subr.mxu0 0.0
    %1303 = vmatpush1.msra.mxu0 0.0
    %1304 = vmatprep.subr.mxu0 0.0
    %1305 = vmatpush1.msra.mxu0 0.0
    %1306 = vmatprep.subr.mxu0 0.0
    %1307 = vmatpush1.msra.mxu0 0.0
    %1308 = vmatprep.subr.mxu0 0.0
    %1309 = vmatpush1.msra.mxu0 0.0
    %1310 = vmatprep.subr.mxu0 0.0
    %1311 = vmatpush1.msra.mxu0 0.0
    %1312 = vmatprep.subr.mxu0 0.0
    %1313 = vmatpush1.msra.mxu0 0.0
    %1314 = vmatprep.subr.mxu0 0.0
    %1315 = vmatpush1.msra.mxu0 0.0
    %1316 = vmatprep.subr.mxu0 0.0
    %1317 = vmatpush1.msra.mxu0 0.0
    %1318 = vmatprep.subr.mxu0 0.0
    %1319 = vmatpush1.msra.mxu0 0.0
    %1320 = vmatprep.subr.mxu0 0.0
    %1321 = vmatpush1.msra.mxu0 0.0
    %1322 = vmatprep.subr.mxu0 0.0
    %1323 = vmatpush1.msra.mxu0 0.0
    %1324 = vmatprep.subr.mxu0 0.0
    %1325 = vmatpush1.msra.mxu0 0.0
    %1326 = vmatprep.subr.mxu0 0.0
    %1327 = vmatpush1.msra.mxu0 0.0
    %1328 = vmatprep.subr.mxu0 0.0
    %1329 = vmatpush1.msra.mxu0 0.0
    %1330 = vmatprep.subr.mxu0 0.0
    %1331 = vmatpush1.msra.mxu0 0.0
    %1332 = vmatprep.subr.mxu0 0.0
    %1333 = vmatpush1.msra.mxu0 0.0
    %1334 = vmatprep.mubr.f32.mxu0 0.0
    %1335 = vmatmul.mubr.f32.gmra.mrb[0].mxu0 %v1218
    %v1336 = vpop.f32.mrb[0].mxu0
    %v1337 = vadd.f32 %v1263, %v1336
    %v1338 = vpop.f32.mrb[0].mxu0
    %v1339 = vadd.f32 %v1267, %v1338
    %1340 = vmatprep.mubr.f32.mxu0 0.0
    %1341 = vmatmul.mubr.f32.gmra.mrb[0].mxu0 %v1219
    %v1342 = vpop.f32.mrb[0].mxu0
    %v1343 = vadd.f32 %v1263, %v1342
    %v1344 = vpop.f32.mrb[0].mxu0
    %v1345 = vadd.f32 %v1267, %v1344
    %1346 = vmatprep.mubr.f32.mxu0 0.0
    %1347 = vmatmul.mubr.f32.gmra.mrb[0].mxu0 %v1220
    %v1348 = vpop.f32.mrb[0].mxu0
    %v1349 = vadd.f32 %v1263, %v1348
    %v1350 = vpop.f32.mrb[0].mxu0
    %v1351 = vadd.f32 %v1267, %v1350
    %1352 = vmatprep.mubr.f32.mxu0 0.0
    %1353 = vmatmul.mubr.f32.gmra.mrb[0].mxu0 %v1221
    %v1354 = vpop.f32.mrb[0].mxu0
    %v1355 = vadd.f32 %v1263, %v1354
    %v1356 = vpop.f32.mrb[0].mxu0
    %v1357 = vadd.f32 %v1267, %v1356
    %1358 = vmatprep.mubr.f32.mxu0 0.0
    %1359 = vmatmul.mubr.f32.gmra.mrb[0].mxu0 %v1222
    %v1360 = vpop.f32.mrb[0].mxu0
    %v1361 = vadd.f32 %v1263, %v1360
    %v1362 = vpop.f32.mrb[0].mxu0
    %v1363 = vadd.f32 %v1267, %v1362
    %1364 = vmatprep.mubr.f32.mxu0 0.0
    %1365 = vmatmul.mubr.f32.gmra.mrb[0].mxu0 %v1223
    %v1366 = vpop.f32.mrb[0].mxu0
    %v1367 = vadd.f32 %v1263, %v1366
    %v1368 = vpop.f32.mrb[0].mxu0
    %v1369 = vadd.f32 %v1267, %v1368
    %1370 = vmatprep.mubr.f32.mxu0 0.0
    %1371 = vmatmul.mubr.f32.gmra.mrb[0].mxu0 %v1224
    %v1372 = vpop.f32.mrb[0].mxu0
    %v1373 = vadd.f32 %v1263, %v1372
    %v1374 = vpop.f32.mrb[0].mxu0
    %v1375 = vadd.f32 %v1267, %v1374
    %1376 = vmatprep.mubr.f32.mxu0 0.0
    %1377 = vmatmul.mubr.f32.gmra.mrb[0].mxu0 %v1225
    %v1378 = vpop.f32.mrb[0].mxu0
    %v1379 = vadd.f32 %v1263, %v1378
    %v1380 = vpop.f32.mrb[0].mxu0
    %v1381 = vadd.f32 %v1267, %v1380
    %1382 = vdwg.mxu0
    %1383 = vst [vmem:[#allocation2] sm:$0xff] %v1337
    %1384 = vst [vmem:[#allocation2 + $0x8] sm:$0xff] %v1339
    %1385 = vst [vmem:[#allocation2 + $0x10] sm:$0xff] %v1343
    %1386 = vst [vmem:[#allocation2 + $0x18] sm:$0xff] %v1345
    %1387 = vst [vmem:[#allocation2 + $0x20] sm:$0xff] %v1349
    %1388 = vst [vmem:[#allocation2 + $0x28] sm:$0xff] %v1351
    %1389 = vst [vmem:[#allocation2 + $0x30] sm:$0xff] %v1355
    %1390 = vst [vmem:[#allocation2 + $0x38] sm:$0xff] %v1357
    %1391 = vst [vmem:[#allocation2 + $0x40] sm:$0xff] %v1361
    %1392 = vst [vmem:[#allocation2 + $0x48] sm:$0xff] %v1363
    %1393 = vst [vmem:[#allocation2 + $0x50] sm:$0xff] %v1367
    %1394 = vst [vmem:[#allocation2 + $0x58] sm:$0xff] %v1369
    %1395 = vst [vmem:[#allocation2 + $0x60] sm:$0xff] %v1373
    %1396 = vst [vmem:[#allocation2 + $0x68] sm:$0xff] %v1375
    %1397 = vst [vmem:[#allocation2 + $0x70] sm:$0xff] %v1379
    %1398 = vst [vmem:[#allocation2 + $0x78] sm:$0xff] %v1381
    %s1399 = scalar_lea.vmem [#allocation4], 128
    %v1400 = vld [vmem:[%s1399] sm:$0xff]
    %v1401 = vld [vmem:[%s1399 + $0x8] sm:$0xff]
    %v1402 = vld [vmem:[%s1399 + $0x10] sm:$0xff]
    %v1403 = vld [vmem:[%s1399 + $0x18] sm:$0xff]
    %v1404 = vld [vmem:[%s1399 + $0x20] sm:$0xff]
    %v1405 = vld [vmem:[%s1399 + $0x28] sm:$0xff]
    %v1406 = vld [vmem:[%s1399 + $0x30] sm:$0xff]
    %v1407 = vld [vmem:[%s1399 + $0x38] sm:$0xff]
    %v1408 = vld [vmem:[%s1399 + $0x40] sm:$0xff]
    %v1409 = vld [vmem:[%s1399 + $0x48] sm:$0xff]
    %v1410 = vld [vmem:[%s1399 + $0x50] sm:$0xff]
    %v1411 = vld [vmem:[%s1399 + $0x58] sm:$0xff]
    %v1412 = vld [vmem:[%s1399 + $0x60] sm:$0xff]
    %v1413 = vld [vmem:[%s1399 + $0x68] sm:$0xff]
    %v1414 = vld [vmem:[%s1399 + $0x70] sm:$0xff]
    %v1415 = vld [vmem:[%s1399 + $0x78] sm:$0xff]
    %s1416 = scalar_lea.vmem [#allocation7], 2
    %v1417 = vld [vmem:[%s1416] sm:$0x3]
    %v1419 = vlaneseq
    %v1420 = vshrl.u32 %v1419, 7
    %v1421 = vsub.s32 0, %v1420
    %v1422 = vrot.slane %v1417, %v1421
    %v1423 = vlaneseq
    %v1424 = vshrl.u32 %v1423, 7
    %v1425 = vsub.s32 1, %v1424
    %v1426 = vrot.slane %v1417, %v1425
    %v1429 = vld [vmem:[#allocation2] sm:$0xff]
    %v1430 = vld [vmem:[#allocation2 + $0x8] sm:$0xff]
    %1431 = vmatprep.subr.mxu0 %v1401
    %1432 = vmatpush1.msra.mxu0 %v1400
    %1433 = vmatprep.subr.mxu0 %v1403
    %1434 = vmatpush1.msra.mxu0 %v1402
    %1435 = vmatprep.subr.mxu0 %v1405
    %1436 = vmatpush1.msra.mxu0 %v1404
    %1437 = vmatprep.subr.mxu0 %v1407
    %1438 = vmatpush1.msra.mxu0 %v1406
    %1439 = vmatprep.subr.mxu0 %v1409
    %1440 = vmatpush1.msra.mxu0 %v1408
    %1441 = vmatprep.subr.mxu0 %v1411
    %1442 = vmatpush1.msra.mxu0 %v1410
    %1443 = vmatprep.subr.mxu0 %v1413
    %1444 = vmatpush1.msra.mxu0 %v1412
    %1445 = vmatprep.subr.mxu0 %v1415
    %1446 = vmatpush1.msra.mxu0 %v1414
    %1447 = vmatprep.subr.mxu0 0.0
    %1448 = vmatpush1.msra.mxu0 0.0
    %1449 = vmatprep.subr.mxu0 0.0
    %1450 = vmatpush1.msra.mxu0 0.0
    %1451 = vmatprep.subr.mxu0 0.0
    %1452 = vmatpush1.msra.mxu0 0.0
    %1453 = vmatprep.subr.mxu0 0.0
    %1454 = vmatpush1.msra.mxu0 0.0
    %1455 = vmatprep.subr.mxu0 0.0
    %1456 = vmatpush1.msra.mxu0 0.0
    %1457 = vmatprep.subr.mxu0 0.0
    %1458 = vmatpush1.msra.mxu0 0.0
    %1459 = vmatprep.subr.mxu0 0.0
    %1460 = vmatpush1.msra.mxu0 0.0
    %1461 = vmatprep.subr.mxu0 0.0
    %1462 = vmatpush1.msra.mxu0 0.0
    %1463 = vmatprep.subr.mxu0 0.0
    %1464 = vmatpush1.msra.mxu0 0.0
    %1465 = vmatprep.subr.mxu0 0.0
    %1466 = vmatpush1.msra.mxu0 0.0
    %1467 = vmatprep.subr.mxu0 0.0
    %1468 = vmatpush1.msra.mxu0 0.0
    %1469 = vmatprep.subr.mxu0 0.0
    %1470 = vmatpush1.msra.mxu0 0.0
    %1471 = vmatprep.subr.mxu0 0.0
    %1472 = vmatpush1.msra.mxu0 0.0
    %1473 = vmatprep.subr.mxu0 0.0
    %1474 = vmatpush1.msra.mxu0 0.0
    %1475 = vmatprep.subr.mxu0 0.0
    %1476 = vmatpush1.msra.mxu0 0.0
    %1477 = vmatprep.subr.mxu0 0.0
    %1478 = vmatpush1.msra.mxu0 0.0
    %1479 = vmatprep.subr.mxu0 0.0
    %1480 = vmatpush1.msra.mxu0 0.0
    %1481 = vmatprep.subr.mxu0 0.0
    %1482 = vmatpush1.msra.mxu0 0.0
    %1483 = vmatprep.subr.mxu0 0.0
    %1484 = vmatpush1.msra.mxu0 0.0
    %1485 = vmatprep.subr.mxu0 0.0
    %1486 = vmatpush1.msra.mxu0 0.0
    %1487 = vmatprep.subr.mxu0 0.0
    %1488 = vmatpush1.msra.mxu0 0.0
    %1489 = vmatprep.subr.mxu0 0.0
    %1490 = vmatpush1.msra.mxu0 0.0
    %1491 = vmatprep.subr.mxu0 0.0
    %1492 = vmatpush1.msra.mxu0 0.0
    %1493 = vmatprep.subr.mxu0 0.0
    %1494 = vmatpush1.msra.mxu0 0.0
    %1495 = vmatprep.mubr.f32.mxu0 0.0
    %1496 = vmatmul.mubr.f32.gmra.mrb[0].mxu0 %v427
    %v1497 = vpop.f32.mrb[0].mxu0
    %v1498 = vadd.f32 %v1422, %v1497
    %v1499 = vpop.f32.mrb[0].mxu0
    %v1500 = vadd.f32 %v1426, %v1499
    %1501 = vdwg.mxu0
    %v1502 = vadd.f32 %v1429, %v1498
    %v1503 = vxor.u32 %v1502, 2147483648
    %v1504 = vmul.f32 %v1503, 1.442695
    %v1505 = vpow.pop %v1504
    %v1506 = vadd.f32 %v1505, 1.0
    %v1507 = vrcp.pop %v1506
    %v1508 = vmul.f32 1.0, %v1507
    %v1509 = vmul.f32 %v1508, %v1500
    %v1510 = vadd.f32 %v1430, %v1509
    %v1511 = vtanh.pop %v1510
    %v1512 = vsub.f32 1.0, %v1508
    %1514 = vrot.lane.b32.xlu0 %v1511, 64
    %v1515 = vpop.permute.xlu0 %1514
    %v1517 = vmul.f32 %v1512, %v1515
    %v1518 = vmul.f32 %v1508, 0.0
    %v1519 = vadd.f32 %v1517, %v1518
    %v1520 = vld [vmem:[#allocation2 + $0x10] sm:$0xff]
    %v1521 = vld [vmem:[#allocation2 + $0x18] sm:$0xff]
    %1523 = vrot.lane.b32.xlu0 %v1519, 64
    %v1524 = vpop.permute.xlu0 %1523
    %v1525 = vsel %vm242, %v1524, 0
    %1527 = vmatprep.subr.mxu0 %v1401
    %1528 = vmatpush1.msra.mxu0 %v1400
    %1529 = vmatprep.subr.mxu0 %v1403
    %1530 = vmatpush1.msra.mxu0 %v1402
    %1531 = vmatprep.subr.mxu0 %v1405
    %1532 = vmatpush1.msra.mxu0 %v1404
    %1533 = vmatprep.subr.mxu0 %v1407
    %1534 = vmatpush1.msra.mxu0 %v1406
    %1535 = vmatprep.subr.mxu0 %v1409
    %1536 = vmatpush1.msra.mxu0 %v1408
    %1537 = vmatprep.subr.mxu0 %v1411
    %1538 = vmatpush1.msra.mxu0 %v1410
    %1539 = vmatprep.subr.mxu0 %v1413
    %1540 = vmatpush1.msra.mxu0 %v1412
    %1541 = vmatprep.subr.mxu0 %v1415
    %1542 = vmatpush1.msra.mxu0 %v1414
    %1543 = vmatprep.subr.mxu0 0.0
    %1544 = vmatpush1.msra.mxu0 0.0
    %1545 = vmatprep.subr.mxu0 0.0
    %1546 = vmatpush1.msra.mxu0 0.0
    %1547 = vmatprep.subr.mxu0 0.0
    %1548 = vmatpush1.msra.mxu0 0.0
    %1549 = vmatprep.subr.mxu0 0.0
    %1550 = vmatpush1.msra.mxu0 0.0
    %1551 = vmatprep.subr.mxu0 0.0
    %1552 = vmatpush1.msra.mxu0 0.0
    %1553 = vmatprep.subr.mxu0 0.0
    %1554 = vmatpush1.msra.mxu0 0.0
    %1555 = vmatprep.subr.mxu0 0.0
    %1556 = vmatpush1.msra.mxu0 0.0
    %1557 = vmatprep.subr.mxu0 0.0
    %1558 = vmatpush1.msra.mxu0 0.0
    %1559 = vmatprep.subr.mxu0 0.0
    %1560 = vmatpush1.msra.mxu0 0.0
    %1561 = vmatprep.subr.mxu0 0.0
    %1562 = vmatpush1.msra.mxu0 0.0
    %1563 = vmatprep.subr.mxu0 0.0
    %1564 = vmatpush1.msra.mxu0 0.0
    %1565 = vmatprep.subr.mxu0 0.0
    %1566 = vmatpush1.msra.mxu0 0.0
    %1567 = vmatprep.subr.mxu0 0.0
    %1568 = vmatpush1.msra.mxu0 0.0
    %1569 = vmatprep.subr.mxu0 0.0
    %1570 = vmatpush1.msra.mxu0 0.0
    %1571 = vmatprep.subr.mxu0 0.0
    %1572 = vmatpush1.msra.mxu0 0.0
    %1573 = vmatprep.subr.mxu0 0.0
    %1574 = vmatpush1.msra.mxu0 0.0
    %1575 = vmatprep.subr.mxu0 0.0
    %1576 = vmatpush1.msra.mxu0 0.0
    %1577 = vmatprep.subr.mxu0 0.0
    %1578 = vmatpush1.msra.mxu0 0.0
    %1579 = vmatprep.subr.mxu0 0.0
    %1580 = vmatpush1.msra.mxu0 0.0
    %1581 = vmatprep.subr.mxu0 0.0
    %1582 = vmatpush1.msra.mxu0 0.0
    %1583 = vmatprep.subr.mxu0 0.0
    %1584 = vmatpush1.msra.mxu0 0.0
    %1585 = vmatprep.subr.mxu0 0.0
    %1586 = vmatpush1.msra.mxu0 0.0
    %1587 = vmatprep.subr.mxu0 0.0
    %1588 = vmatpush1.msra.mxu0 0.0
    %1589 = vmatprep.subr.mxu0 0.0
    %1590 = vmatpush1.msra.mxu0 0.0
    %1591 = vmatprep.mubr.f32.mxu0 0.0
    %1592 = vmatmul.mubr.f32.gmra.mrb[0].mxu0 %v1525
    %v1593 = vpop.f32.mrb[0].mxu0
    %v1594 = vadd.f32 %v1422, %v1593
    %v1595 = vpop.f32.mrb[0].mxu0
    %v1596 = vadd.f32 %v1426, %v1595
    %1597 = vdwg.mxu0
    %v1598 = vadd.f32 %v1520, %v1594
    %v1599 = vxor.u32 %v1598, 2147483648
    %v1600 = vmul.f32 %v1599, 1.442695
    %v1601 = vpow.pop %v1600
    %v1602 = vadd.f32 %v1601, 1.0
    %v1603 = vrcp.pop %v1602
    %v1604 = vmul.f32 1.0, %v1603
    %v1605 = vmul.f32 %v1604, %v1596
    %v1606 = vadd.f32 %v1521, %v1605
    %v1607 = vtanh.pop %v1606
    %v1608 = vsub.f32 1.0, %v1604
    %1610 = vrot.lane.b32.xlu0 %v1607, 64
    %v1611 = vpop.permute.xlu0 %1610
    %v1613 = vmul.f32 %v1608, %v1611
    %v1614 = vmul.f32 %v1604, %v1519
    %v1615 = vadd.f32 %v1613, %v1614
    %v1616 = vld [vmem:[#allocation2 + $0x20] sm:$0xff]
    %v1617 = vld [vmem:[#allocation2 + $0x28] sm:$0xff]
    %1619 = vrot.lane.b32.xlu0 %v1615, 64
    %v1620 = vpop.permute.xlu0 %1619
    %v1621 = vsel %vm242, %v1620, 0
    %1623 = vmatprep.subr.mxu0 %v1401
    %1624 = vmatpush1.msra.mxu0 %v1400
    %1625 = vmatprep.subr.mxu0 %v1403
    %1626 = vmatpush1.msra.mxu0 %v1402
    %1627 = vmatprep.subr.mxu0 %v1405
    %1628 = vmatpush1.msra.mxu0 %v1404
    %1629 = vmatprep.subr.mxu0 %v1407
    %1630 = vmatpush1.msra.mxu0 %v1406
    %1631 = vmatprep.subr.mxu0 %v1409
    %1632 = vmatpush1.msra.mxu0 %v1408
    %1633 = vmatprep.subr.mxu0 %v1411
    %1634 = vmatpush1.msra.mxu0 %v1410
    %1635 = vmatprep.subr.mxu0 %v1413
    %1636 = vmatpush1.msra.mxu0 %v1412
    %1637 = vmatprep.subr.mxu0 %v1415
    %1638 = vmatpush1.msra.mxu0 %v1414
    %1639 = vmatprep.subr.mxu0 0.0
    %1640 = vmatpush1.msra.mxu0 0.0
    %1641 = vmatprep.subr.mxu0 0.0
    %1642 = vmatpush1.msra.mxu0 0.0
    %1643 = vmatprep.subr.mxu0 0.0
    %1644 = vmatpush1.msra.mxu0 0.0
    %1645 = vmatprep.subr.mxu0 0.0
    %1646 = vmatpush1.msra.mxu0 0.0
    %1647 = vmatprep.subr.mxu0 0.0
    %1648 = vmatpush1.msra.mxu0 0.0
    %1649 = vmatprep.subr.mxu0 0.0
    %1650 = vmatpush1.msra.mxu0 0.0
    %1651 = vmatprep.subr.mxu0 0.0
    %1652 = vmatpush1.msra.mxu0 0.0
    %1653 = vmatprep.subr.mxu0 0.0
    %1654 = vmatpush1.msra.mxu0 0.0
    %1655 = vmatprep.subr.mxu0 0.0
    %1656 = vmatpush1.msra.mxu0 0.0
    %1657 = vmatprep.subr.mxu0 0.0
    %1658 = vmatpush1.msra.mxu0 0.0
    %1659 = vmatprep.subr.mxu0 0.0
    %1660 = vmatpush1.msra.mxu0 0.0
    %1661 = vmatprep.subr.mxu0 0.0
    %1662 = vmatpush1.msra.mxu0 0.0
    %1663 = vmatprep.subr.mxu0 0.0
    %1664 = vmatpush1.msra.mxu0 0.0
    %1665 = vmatprep.subr.mxu0 0.0
    %1666 = vmatpush1.msra.mxu0 0.0
    %1667 = vmatprep.subr.mxu0 0.0
    %1668 = vmatpush1.msra.mxu0 0.0
    %1669 = vmatprep.subr.mxu0 0.0
    %1670 = vmatpush1.msra.mxu0 0.0
    %1671 = vmatprep.subr.mxu0 0.0
    %1672 = vmatpush1.msra.mxu0 0.0
    %1673 = vmatprep.subr.mxu0 0.0
    %1674 = vmatpush1.msra.mxu0 0.0
    %1675 = vmatprep.subr.mxu0 0.0
    %1676 = vmatpush1.msra.mxu0 0.0
    %1677 = vmatprep.subr.mxu0 0.0
    %1678 = vmatpush1.msra.mxu0 0.0
    %1679 = vmatprep.subr.mxu0 0.0
    %1680 = vmatpush1.msra.mxu0 0.0
    %1681 = vmatprep.subr.mxu0 0.0
    %1682 = vmatpush1.msra.mxu0 0.0
    %1683 = vmatprep.subr.mxu0 0.0
    %1684 = vmatpush1.msra.mxu0 0.0
    %1685 = vmatprep.subr.mxu0 0.0
    %1686 = vmatpush1.msra.mxu0 0.0
    %1687 = vmatprep.mubr.f32.mxu0 0.0
    %1688 = vmatmul.mubr.f32.gmra.mrb[0].mxu0 %v1621
    %v1689 = vpop.f32.mrb[0].mxu0
    %v1690 = vadd.f32 %v1422, %v1689
    %v1691 = vpop.f32.mrb[0].mxu0
    %v1692 = vadd.f32 %v1426, %v1691
    %1693 = vdwg.mxu0
    %v1694 = vadd.f32 %v1616, %v1690
    %v1695 = vxor.u32 %v1694, 2147483648
    %v1696 = vmul.f32 %v1695, 1.442695
    %v1697 = vpow.pop %v1696
    %v1698 = vadd.f32 %v1697, 1.0
    %v1699 = vrcp.pop %v1698
    %v1700 = vmul.f32 1.0, %v1699
    %v1701 = vmul.f32 %v1700, %v1692
    %v1702 = vadd.f32 %v1617, %v1701
    %v1703 = vtanh.pop %v1702
    %v1704 = vsub.f32 1.0, %v1700
    %1706 = vrot.lane.b32.xlu0 %v1703, 64
    %v1707 = vpop.permute.xlu0 %1706
    %v1709 = vmul.f32 %v1704, %v1707
    %v1710 = vmul.f32 %v1700, %v1615
    %v1711 = vadd.f32 %v1709, %v1710
    %v1712 = vld [vmem:[#allocation2 + $0x30] sm:$0xff]
    %v1713 = vld [vmem:[#allocation2 + $0x38] sm:$0xff]
    %1715 = vrot.lane.b32.xlu0 %v1711, 64
    %v1716 = vpop.permute.xlu0 %1715
    %v1717 = vsel %vm242, %v1716, 0
    %1719 = vmatprep.subr.mxu0 %v1401
    %1720 = vmatpush1.msra.mxu0 %v1400
    %1721 = vmatprep.subr.mxu0 %v1403
    %1722 = vmatpush1.msra.mxu0 %v1402
    %1723 = vmatprep.subr.mxu0 %v1405
    %1724 = vmatpush1.msra.mxu0 %v1404
    %1725 = vmatprep.subr.mxu0 %v1407
    %1726 = vmatpush1.msra.mxu0 %v1406
    %1727 = vmatprep.subr.mxu0 %v1409
    %1728 = vmatpush1.msra.mxu0 %v1408
    %1729 = vmatprep.subr.mxu0 %v1411
    %1730 = vmatpush1.msra.mxu0 %v1410
    %1731 = vmatprep.subr.mxu0 %v1413
    %1732 = vmatpush1.msra.mxu0 %v1412
    %1733 = vmatprep.subr.mxu0 %v1415
    %1734 = vmatpush1.msra.mxu0 %v1414
    %1735 = vmatprep.subr.mxu0 0.0
    %1736 = vmatpush1.msra.mxu0 0.0
    %1737 = vmatprep.subr.mxu0 0.0
    %1738 = vmatpush1.msra.mxu0 0.0
    %1739 = vmatprep.subr.mxu0 0.0
    %1740 = vmatpush1.msra.mxu0 0.0
    %1741 = vmatprep.subr.mxu0 0.0
    %1742 = vmatpush1.msra.mxu0 0.0
    %1743 = vmatprep.subr.mxu0 0.0
    %1744 = vmatpush1.msra.mxu0 0.0
    %1745 = vmatprep.subr.mxu0 0.0
    %1746 = vmatpush1.msra.mxu0 0.0
    %1747 = vmatprep.subr.mxu0 0.0
    %1748 = vmatpush1.msra.mxu0 0.0
    %1749 = vmatprep.subr.mxu0 0.0
    %1750 = vmatpush1.msra.mxu0 0.0
    %1751 = vmatprep.subr.mxu0 0.0
    %1752 = vmatpush1.msra.mxu0 0.0
    %1753 = vmatprep.subr.mxu0 0.0
    %1754 = vmatpush1.msra.mxu0 0.0
    %1755 = vmatprep.subr.mxu0 0.0
    %1756 = vmatpush1.msra.mxu0 0.0
    %1757 = vmatprep.subr.mxu0 0.0
    %1758 = vmatpush1.msra.mxu0 0.0
    %1759 = vmatprep.subr.mxu0 0.0
    %1760 = vmatpush1.msra.mxu0 0.0
    %1761 = vmatprep.subr.mxu0 0.0
    %1762 = vmatpush1.msra.mxu0 0.0
    %1763 = vmatprep.subr.mxu0 0.0
    %1764 = vmatpush1.msra.mxu0 0.0
    %1765 = vmatprep.subr.mxu0 0.0
    %1766 = vmatpush1.msra.mxu0 0.0
    %1767 = vmatprep.subr.mxu0 0.0
    %1768 = vmatpush1.msra.mxu0 0.0
    %1769 = vmatprep.subr.mxu0 0.0
    %1770 = vmatpush1.msra.mxu0 0.0
    %1771 = vmatprep.subr.mxu0 0.0
    %1772 = vmatpush1.msra.mxu0 0.0
    %1773 = vmatprep.subr.mxu0 0.0
    %1774 = vmatpush1.msra.mxu0 0.0
    %1775 = vmatprep.subr.mxu0 0.0
    %1776 = vmatpush1.msra.mxu0 0.0
    %1777 = vmatprep.subr.mxu0 0.0
    %1778 = vmatpush1.msra.mxu0 0.0
    %1779 = vmatprep.subr.mxu0 0.0
    %1780 = vmatpush1.msra.mxu0 0.0
    %1781 = vmatprep.subr.mxu0 0.0
    %1782 = vmatpush1.msra.mxu0 0.0
    %1783 = vmatprep.mubr.f32.mxu0 0.0
    %1784 = vmatmul.mubr.f32.gmra.mrb[0].mxu0 %v1717
    %v1785 = vpop.f32.mrb[0].mxu0
    %v1786 = vadd.f32 %v1422, %v1785
    %v1787 = vpop.f32.mrb[0].mxu0
    %v1788 = vadd.f32 %v1426, %v1787
    %1789 = vdwg.mxu0
    %v1790 = vadd.f32 %v1712, %v1786
    %v1791 = vxor.u32 %v1790, 2147483648
    %v1792 = vmul.f32 %v1791, 1.442695
    %v1793 = vpow.pop %v1792
    %v1794 = vadd.f32 %v1793, 1.0
    %v1795 = vrcp.pop %v1794
    %v1796 = vmul.f32 1.0, %v1795
    %v1797 = vmul.f32 %v1796, %v1788
    %v1798 = vadd.f32 %v1713, %v1797
    %v1799 = vtanh.pop %v1798
    %v1800 = vsub.f32 1.0, %v1796
    %1802 = vrot.lane.b32.xlu0 %v1799, 64
    %v1803 = vpop.permute.xlu0 %1802
    %v1805 = vmul.f32 %v1800, %v1803
    %v1806 = vmul.f32 %v1796, %v1711
    %v1807 = vadd.f32 %v1805, %v1806
    %v1808 = vld [vmem:[#allocation2 + $0x40] sm:$0xff]
    %v1809 = vld [vmem:[#allocation2 + $0x48] sm:$0xff]
    %1811 = vrot.lane.b32.xlu0 %v1807, 64
    %v1812 = vpop.permute.xlu0 %1811
    %v1813 = vsel %vm242, %v1812, 0
    %1815 = vmatprep.subr.mxu0 %v1401
    %1816 = vmatpush1.msra.mxu0 %v1400
    %1817 = vmatprep.subr.mxu0 %v1403
    %1818 = vmatpush1.msra.mxu0 %v1402
    %1819 = vmatprep.subr.mxu0 %v1405
    %1820 = vmatpush1.msra.mxu0 %v1404
    %1821 = vmatprep.subr.mxu0 %v1407
    %1822 = vmatpush1.msra.mxu0 %v1406
    %1823 = vmatprep.subr.mxu0 %v1409
    %1824 = vmatpush1.msra.mxu0 %v1408
    %1825 = vmatprep.subr.mxu0 %v1411
    %1826 = vmatpush1.msra.mxu0 %v1410
    %1827 = vmatprep.subr.mxu0 %v1413
    %1828 = vmatpush1.msra.mxu0 %v1412
    %1829 = vmatprep.subr.mxu0 %v1415
    %1830 = vmatpush1.msra.mxu0 %v1414
    %1831 = vmatprep.subr.mxu0 0.0
    %1832 = vmatpush1.msra.mxu0 0.0
    %1833 = vmatprep.subr.mxu0 0.0
    %1834 = vmatpush1.msra.mxu0 0.0
    %1835 = vmatprep.subr.mxu0 0.0
    %1836 = vmatpush1.msra.mxu0 0.0
    %1837 = vmatprep.subr.mxu0 0.0
    %1838 = vmatpush1.msra.mxu0 0.0
    %1839 = vmatprep.subr.mxu0 0.0
    %1840 = vmatpush1.msra.mxu0 0.0
    %1841 = vmatprep.subr.mxu0 0.0
    %1842 = vmatpush1.msra.mxu0 0.0
    %1843 = vmatprep.subr.mxu0 0.0
    %1844 = vmatpush1.msra.mxu0 0.0
    %1845 = vmatprep.subr.mxu0 0.0
    %1846 = vmatpush1.msra.mxu0 0.0
    %1847 = vmatprep.subr.mxu0 0.0
    %1848 = vmatpush1.msra.mxu0 0.0
    %1849 = vmatprep.subr.mxu0 0.0
    %1850 = vmatpush1.msra.mxu0 0.0
    %1851 = vmatprep.subr.mxu0 0.0
    %1852 = vmatpush1.msra.mxu0 0.0
    %1853 = vmatprep.subr.mxu0 0.0
    %1854 = vmatpush1.msra.mxu0 0.0
    %1855 = vmatprep.subr.mxu0 0.0
    %1856 = vmatpush1.msra.mxu0 0.0
    %1857 = vmatprep.subr.mxu0 0.0
    %1858 = vmatpush1.msra.mxu0 0.0
    %1859 = vmatprep.subr.mxu0 0.0
    %1860 = vmatpush1.msra.mxu0 0.0
    %1861 = vmatprep.subr.mxu0 0.0
    %1862 = vmatpush1.msra.mxu0 0.0
    %1863 = vmatprep.subr.mxu0 0.0
    %1864 = vmatpush1.msra.mxu0 0.0
    %1865 = vmatprep.subr.mxu0 0.0
    %1866 = vmatpush1.msra.mxu0 0.0
    %1867 = vmatprep.subr.mxu0 0.0
    %1868 = vmatpush1.msra.mxu0 0.0
    %1869 = vmatprep.subr.mxu0 0.0
    %1870 = vmatpush1.msra.mxu0 0.0
    %1871 = vmatprep.subr.mxu0 0.0
    %1872 = vmatpush1.msra.mxu0 0.0
    %1873 = vmatprep.subr.mxu0 0.0
    %1874 = vmatpush1.msra.mxu0 0.0
    %1875 = vmatprep.subr.mxu0 0.0
    %1876 = vmatpush1.msra.mxu0 0.0
    %1877 = vmatprep.subr.mxu0 0.0
    %1878 = vmatpush1.msra.mxu0 0.0
    %1879 = vmatprep.mubr.f32.mxu0 0.0
    %1880 = vmatmul.mubr.f32.gmra.mrb[0].mxu0 %v1813
    %v1881 = vpop.f32.mrb[0].mxu0
    %v1882 = vadd.f32 %v1422, %v1881
    %v1883 = vpop.f32.mrb[0].mxu0
    %v1884 = vadd.f32 %v1426, %v1883
    %1885 = vdwg.mxu0
    %v1886 = vadd.f32 %v1808, %v1882
    %v1887 = vxor.u32 %v1886, 2147483648
    %v1888 = vmul.f32 %v1887, 1.442695
    %v1889 = vpow.pop %v1888
    %v1890 = vadd.f32 %v1889, 1.0
    %v1891 = vrcp.pop %v1890
    %v1892 = vmul.f32 1.0, %v1891
    %v1893 = vmul.f32 %v1892, %v1884
    %v1894 = vadd.f32 %v1809, %v1893
    %v1895 = vtanh.pop %v1894
    %v1896 = vsub.f32 1.0, %v1892
    %1898 = vrot.lane.b32.xlu0 %v1895, 64
    %v1899 = vpop.permute.xlu0 %1898
    %v1901 = vmul.f32 %v1896, %v1899
    %v1902 = vmul.f32 %v1892, %v1807
    %v1903 = vadd.f32 %v1901, %v1902
    %v1904 = vld [vmem:[#allocation2 + $0x50] sm:$0xff]
    %v1905 = vld [vmem:[#allocation2 + $0x58] sm:$0xff]
    %1907 = vrot.lane.b32.xlu0 %v1903, 64
    %v1908 = vpop.permute.xlu0 %1907
    %v1909 = vsel %vm242, %v1908, 0
    %1911 = vmatprep.subr.mxu0 %v1401
    %1912 = vmatpush1.msra.mxu0 %v1400
    %1913 = vmatprep.subr.mxu0 %v1403
    %1914 = vmatpush1.msra.mxu0 %v1402
    %1915 = vmatprep.subr.mxu0 %v1405
    %1916 = vmatpush1.msra.mxu0 %v1404
    %1917 = vmatprep.subr.mxu0 %v1407
    %1918 = vmatpush1.msra.mxu0 %v1406
    %1919 = vmatprep.subr.mxu0 %v1409
    %1920 = vmatpush1.msra.mxu0 %v1408
    %1921 = vmatprep.subr.mxu0 %v1411
    %1922 = vmatpush1.msra.mxu0 %v1410
    %1923 = vmatprep.subr.mxu0 %v1413
    %1924 = vmatpush1.msra.mxu0 %v1412
    %1925 = vmatprep.subr.mxu0 %v1415
    %1926 = vmatpush1.msra.mxu0 %v1414
    %1927 = vmatprep.subr.mxu0 0.0
    %1928 = vmatpush1.msra.mxu0 0.0
    %1929 = vmatprep.subr.mxu0 0.0
    %1930 = vmatpush1.msra.mxu0 0.0
    %1931 = vmatprep.subr.mxu0 0.0
    %1932 = vmatpush1.msra.mxu0 0.0
    %1933 = vmatprep.subr.mxu0 0.0
    %1934 = vmatpush1.msra.mxu0 0.0
    %1935 = vmatprep.subr.mxu0 0.0
    %1936 = vmatpush1.msra.mxu0 0.0
    %1937 = vmatprep.subr.mxu0 0.0
    %1938 = vmatpush1.msra.mxu0 0.0
    %1939 = vmatprep.subr.mxu0 0.0
    %1940 = vmatpush1.msra.mxu0 0.0
    %1941 = vmatprep.subr.mxu0 0.0
    %1942 = vmatpush1.msra.mxu0 0.0
    %1943 = vmatprep.subr.mxu0 0.0
    %1944 = vmatpush1.msra.mxu0 0.0
    %1945 = vmatprep.subr.mxu0 0.0
    %1946 = vmatpush1.msra.mxu0 0.0
    %1947 = vmatprep.subr.mxu0 0.0
    %1948 = vmatpush1.msra.mxu0 0.0
    %1949 = vmatprep.subr.mxu0 0.0
    %1950 = vmatpush1.msra.mxu0 0.0
    %1951 = vmatprep.subr.mxu0 0.0
    %1952 = vmatpush1.msra.mxu0 0.0
    %1953 = vmatprep.subr.mxu0 0.0
    %1954 = vmatpush1.msra.mxu0 0.0
    %1955 = vmatprep.subr.mxu0 0.0
    %1956 = vmatpush1.msra.mxu0 0.0
    %1957 = vmatprep.subr.mxu0 0.0
    %1958 = vmatpush1.msra.mxu0 0.0
    %1959 = vmatprep.subr.mxu0 0.0
    %1960 = vmatpush1.msra.mxu0 0.0
    %1961 = vmatprep.subr.mxu0 0.0
    %1962 = vmatpush1.msra.mxu0 0.0
    %1963 = vmatprep.subr.mxu0 0.0
    %1964 = vmatpush1.msra.mxu0 0.0
    %1965 = vmatprep.subr.mxu0 0.0
    %1966 = vmatpush1.msra.mxu0 0.0
    %1967 = vmatprep.subr.mxu0 0.0
    %1968 = vmatpush1.msra.mxu0 0.0
    %1969 = vmatprep.subr.mxu0 0.0
    %1970 = vmatpush1.msra.mxu0 0.0
    %1971 = vmatprep.subr.mxu0 0.0
    %1972 = vmatpush1.msra.mxu0 0.0
    %1973 = vmatprep.subr.mxu0 0.0
    %1974 = vmatpush1.msra.mxu0 0.0
    %1975 = vmatprep.mubr.f32.mxu0 0.0
    %1976 = vmatmul.mubr.f32.gmra.mrb[0].mxu0 %v1909
    %v1977 = vpop.f32.mrb[0].mxu0
    %v1978 = vadd.f32 %v1422, %v1977
    %v1979 = vpop.f32.mrb[0].mxu0
    %v1980 = vadd.f32 %v1426, %v1979
    %1981 = vdwg.mxu0
    %v1982 = vadd.f32 %v1904, %v1978
    %v1983 = vxor.u32 %v1982, 2147483648
    %v1984 = vmul.f32 %v1983, 1.442695
    %v1985 = vpow.pop %v1984
    %v1986 = vadd.f32 %v1985, 1.0
    %v1987 = vrcp.pop %v1986
    %v1988 = vmul.f32 1.0, %v1987
    %v1989 = vmul.f32 %v1988, %v1980
    %v1990 = vadd.f32 %v1905, %v1989
    %v1991 = vtanh.pop %v1990
    %v1992 = vsub.f32 1.0, %v1988
    %1994 = vrot.lane.b32.xlu0 %v1991, 64
    %v1995 = vpop.permute.xlu0 %1994
    %v1997 = vmul.f32 %v1992, %v1995
    %v1998 = vmul.f32 %v1988, %v1903
    %v1999 = vadd.f32 %v1997, %v1998
    %v2000 = vld [vmem:[#allocation2 + $0x60] sm:$0xff]
    %v2001 = vld [vmem:[#allocation2 + $0x68] sm:$0xff]
    %2003 = vrot.lane.b32.xlu0 %v1999, 64
    %v2004 = vpop.permute.xlu0 %2003
    %v2005 = vsel %vm242, %v2004, 0
    %2007 = vmatprep.subr.mxu0 %v1401
    %2008 = vmatpush1.msra.mxu0 %v1400
    %2009 = vmatprep.subr.mxu0 %v1403
    %2010 = vmatpush1.msra.mxu0 %v1402
    %2011 = vmatprep.subr.mxu0 %v1405
    %2012 = vmatpush1.msra.mxu0 %v1404
    %2013 = vmatprep.subr.mxu0 %v1407
    %2014 = vmatpush1.msra.mxu0 %v1406
    %2015 = vmatprep.subr.mxu0 %v1409
    %2016 = vmatpush1.msra.mxu0 %v1408
    %2017 = vmatprep.subr.mxu0 %v1411
    %2018 = vmatpush1.msra.mxu0 %v1410
    %2019 = vmatprep.subr.mxu0 %v1413
    %2020 = vmatpush1.msra.mxu0 %v1412
    %2021 = vmatprep.subr.mxu0 %v1415
    %2022 = vmatpush1.msra.mxu0 %v1414
    %2023 = vmatprep.subr.mxu0 0.0
    %2024 = vmatpush1.msra.mxu0 0.0
    %2025 = vmatprep.subr.mxu0 0.0
    %2026 = vmatpush1.msra.mxu0 0.0
    %2027 = vmatprep.subr.mxu0 0.0
    %2028 = vmatpush1.msra.mxu0 0.0
    %2029 = vmatprep.subr.mxu0 0.0
    %2030 = vmatpush1.msra.mxu0 0.0
    %2031 = vmatprep.subr.mxu0 0.0
    %2032 = vmatpush1.msra.mxu0 0.0
    %2033 = vmatprep.subr.mxu0 0.0
    %2034 = vmatpush1.msra.mxu0 0.0
    %2035 = vmatprep.subr.mxu0 0.0
    %2036 = vmatpush1.msra.mxu0 0.0
    %2037 = vmatprep.subr.mxu0 0.0
    %2038 = vmatpush1.msra.mxu0 0.0
    %2039 = vmatprep.subr.mxu0 0.0
    %2040 = vmatpush1.msra.mxu0 0.0
    %2041 = vmatprep.subr.mxu0 0.0
    %2042 = vmatpush1.msra.mxu0 0.0
    %2043 = vmatprep.subr.mxu0 0.0
    %2044 = vmatpush1.msra.mxu0 0.0
    %2045 = vmatprep.subr.mxu0 0.0
    %2046 = vmatpush1.msra.mxu0 0.0
    %2047 = vmatprep.subr.mxu0 0.0
    %2048 = vmatpush1.msra.mxu0 0.0
    %2049 = vmatprep.subr.mxu0 0.0
    %2050 = vmatpush1.msra.mxu0 0.0
    %2051 = vmatprep.subr.mxu0 0.0
    %2052 = vmatpush1.msra.mxu0 0.0
    %2053 = vmatprep.subr.mxu0 0.0
    %2054 = vmatpush1.msra.mxu0 0.0
    %2055 = vmatprep.subr.mxu0 0.0
    %2056 = vmatpush1.msra.mxu0 0.0
    %2057 = vmatprep.subr.mxu0 0.0
    %2058 = vmatpush1.msra.mxu0 0.0
    %2059 = vmatprep.subr.mxu0 0.0
    %2060 = vmatpush1.msra.mxu0 0.0
    %2061 = vmatprep.subr.mxu0 0.0
    %2062 = vmatpush1.msra.mxu0 0.0
    %2063 = vmatprep.subr.mxu0 0.0
    %2064 = vmatpush1.msra.mxu0 0.0
    %2065 = vmatprep.subr.mxu0 0.0
    %2066 = vmatpush1.msra.mxu0 0.0
    %2067 = vmatprep.subr.mxu0 0.0
    %2068 = vmatpush1.msra.mxu0 0.0
    %2069 = vmatprep.subr.mxu0 0.0
    %2070 = vmatpush1.msra.mxu0 0.0
    %2071 = vmatprep.mubr.f32.mxu0 0.0
    %2072 = vmatmul.mubr.f32.gmra.mrb[0].mxu0 %v2005
    %v2073 = vpop.f32.mrb[0].mxu0
    %v2074 = vadd.f32 %v1422, %v2073
    %v2075 = vpop.f32.mrb[0].mxu0
    %v2076 = vadd.f32 %v1426, %v2075
    %2077 = vdwg.mxu0
    %v2078 = vadd.f32 %v2000, %v2074
    %v2079 = vxor.u32 %v2078, 2147483648
    %v2080 = vmul.f32 %v2079, 1.442695
    %v2081 = vpow.pop %v2080
    %v2082 = vadd.f32 %v2081, 1.0
    %v2083 = vrcp.pop %v2082
    %v2084 = vmul.f32 1.0, %v2083
    %v2085 = vmul.f32 %v2084, %v2076
    %v2086 = vadd.f32 %v2001, %v2085
    %v2087 = vtanh.pop %v2086
    %v2088 = vsub.f32 1.0, %v2084
    %2090 = vrot.lane.b32.xlu0 %v2087, 64
    %v2091 = vpop.permute.xlu0 %2090
    %v2093 = vmul.f32 %v2088, %v2091
    %v2094 = vmul.f32 %v2084, %v1999
    %v2095 = vadd.f32 %v2093, %v2094
    %v2096 = vld [vmem:[#allocation2 + $0x70] sm:$0xff]
    %v2097 = vld [vmem:[#allocation2 + $0x78] sm:$0xff]
    %2099 = vrot.lane.b32.xlu0 %v2095, 64
    %v2100 = vpop.permute.xlu0 %2099
    %v2101 = vsel %vm242, %v2100, 0
    %2103 = vmatprep.subr.mxu0 %v1401
    %2104 = vmatpush1.msra.mxu0 %v1400
    %2105 = vmatprep.subr.mxu0 %v1403
    %2106 = vmatpush1.msra.mxu0 %v1402
    %2107 = vmatprep.subr.mxu0 %v1405
    %2108 = vmatpush1.msra.mxu0 %v1404
    %2109 = vmatprep.subr.mxu0 %v1407
    %2110 = vmatpush1.msra.mxu0 %v1406
    %2111 = vmatprep.subr.mxu0 %v1409
    %2112 = vmatpush1.msra.mxu0 %v1408
    %2113 = vmatprep.subr.mxu0 %v1411
    %2114 = vmatpush1.msra.mxu0 %v1410
    %2115 = vmatprep.subr.mxu0 %v1413
    %2116 = vmatpush1.msra.mxu0 %v1412
    %2117 = vmatprep.subr.mxu0 %v1415
    %2118 = vmatpush1.msra.mxu0 %v1414
    %2119 = vmatprep.subr.mxu0 0.0
    %2120 = vmatpush1.msra.mxu0 0.0
    %2121 = vmatprep.subr.mxu0 0.0
    %2122 = vmatpush1.msra.mxu0 0.0
    %2123 = vmatprep.subr.mxu0 0.0
    %2124 = vmatpush1.msra.mxu0 0.0
    %2125 = vmatprep.subr.mxu0 0.0
    %2126 = vmatpush1.msra.mxu0 0.0
    %2127 = vmatprep.subr.mxu0 0.0
    %2128 = vmatpush1.msra.mxu0 0.0
    %2129 = vmatprep.subr.mxu0 0.0
    %2130 = vmatpush1.msra.mxu0 0.0
    %2131 = vmatprep.subr.mxu0 0.0
    %2132 = vmatpush1.msra.mxu0 0.0
    %2133 = vmatprep.subr.mxu0 0.0
    %2134 = vmatpush1.msra.mxu0 0.0
    %2135 = vmatprep.subr.mxu0 0.0
    %2136 = vmatpush1.msra.mxu0 0.0
    %2137 = vmatprep.subr.mxu0 0.0
    %2138 = vmatpush1.msra.mxu0 0.0
    %2139 = vmatprep.subr.mxu0 0.0
    %2140 = vmatpush1.msra.mxu0 0.0
    %2141 = vmatprep.subr.mxu0 0.0
    %2142 = vmatpush1.msra.mxu0 0.0
    %2143 = vmatprep.subr.mxu0 0.0
    %2144 = vmatpush1.msra.mxu0 0.0
    %2145 = vmatprep.subr.mxu0 0.0
    %2146 = vmatpush1.msra.mxu0 0.0
    %2147 = vmatprep.subr.mxu0 0.0
    %2148 = vmatpush1.msra.mxu0 0.0
    %2149 = vmatprep.subr.mxu0 0.0
    %2150 = vmatpush1.msra.mxu0 0.0
    %2151 = vmatprep.subr.mxu0 0.0
    %2152 = vmatpush1.msra.mxu0 0.0
    %2153 = vmatprep.subr.mxu0 0.0
    %2154 = vmatpush1.msra.mxu0 0.0
    %2155 = vmatprep.subr.mxu0 0.0
    %2156 = vmatpush1.msra.mxu0 0.0
    %2157 = vmatprep.subr.mxu0 0.0
    %2158 = vmatpush1.msra.mxu0 0.0
    %2159 = vmatprep.subr.mxu0 0.0
    %2160 = vmatpush1.msra.mxu0 0.0
    %2161 = vmatprep.subr.mxu0 0.0
    %2162 = vmatpush1.msra.mxu0 0.0
    %2163 = vmatprep.subr.mxu0 0.0
    %2164 = vmatpush1.msra.mxu0 0.0
    %2165 = vmatprep.subr.mxu0 0.0
    %2166 = vmatpush1.msra.mxu0 0.0
    %2167 = vmatprep.mubr.f32.mxu0 0.0
    %2168 = vmatmul.mubr.f32.gmra.mrb[0].mxu0 %v2101
    %v2169 = vpop.f32.mrb[0].mxu0
    %v2170 = vadd.f32 %v1422, %v2169
    %v2171 = vpop.f32.mrb[0].mxu0
    %v2172 = vadd.f32 %v1426, %v2171
    %2173 = vdwg.mxu0
    %v2174 = vadd.f32 %v2096, %v2170
    %v2175 = vxor.u32 %v2174, 2147483648
    %v2176 = vmul.f32 %v2175, 1.442695
    %v2177 = vpow.pop %v2176
    %v2178 = vadd.f32 %v2177, 1.0
    %v2179 = vrcp.pop %v2178
    %v2180 = vmul.f32 1.0, %v2179
    %v2181 = vmul.f32 %v2180, %v2172
    %v2182 = vadd.f32 %v2097, %v2181
    %v2183 = vtanh.pop %v2182
    %v2184 = vsub.f32 1.0, %v2180
    %2186 = vrot.lane.b32.xlu0 %v2183, 64
    %v2187 = vpop.permute.xlu0 %2186
    %v2189 = vmul.f32 %v2184, %v2187
    %v2190 = vmul.f32 %v2180, %v2095
    %v2191 = vadd.f32 %v2189, %v2190
    %v2192 = vsel %vm242, %v1214, %v2191
    %v2193 = vld [vmem:[%s6] sm:$0xff]
    %v2194 = vld [vmem:[%s6 + $0x8] sm:$0xff]
    %v2195 = vld [vmem:[%s6 + $0x10] sm:$0xff]
    %v2196 = vld [vmem:[%s6 + $0x18] sm:$0xff]
    %v2197 = vld [vmem:[%s6 + $0x20] sm:$0xff]
    %v2198 = vld [vmem:[%s6 + $0x28] sm:$0xff]
    %v2199 = vld [vmem:[%s6 + $0x30] sm:$0xff]
    %v2200 = vld [vmem:[%s6 + $0x38] sm:$0xff]
    %v2201 = vld [vmem:[%s6 + $0x40] sm:$0xff]
    %v2202 = vld [vmem:[%s6 + $0x48] sm:$0xff]
    %v2203 = vld [vmem:[%s6 + $0x50] sm:$0xff]
    %v2204 = vld [vmem:[%s6 + $0x58] sm:$0xff]
    %v2205 = vld [vmem:[%s6 + $0x60] sm:$0xff]
    %v2206 = vld [vmem:[%s6 + $0x68] sm:$0xff]
    %v2207 = vld [vmem:[%s6 + $0x70] sm:$0xff]
    %v2208 = vld [vmem:[%s6 + $0x78] sm:$0xff]
    %v2209 = vld [vmem:[#allocation9] sm:$0x1]
    %v2211 = vlaneseq
    %v2212 = vshrl.u32 %v2211, 7
    %v2213 = vsub.s32 0, %v2212
    %v2214 = vrot.slane %v2209, %v2213
    %2216 = vmatprep.subr.mxu0 0.0
    %2217 = vmatpush1.msra.mxu0 %v2193
    %2218 = vmatprep.subr.mxu0 0.0
    %2219 = vmatpush1.msra.mxu0 %v2194
    %2220 = vmatprep.subr.mxu0 0.0
    %2221 = vmatpush1.msra.mxu0 %v2195
    %2222 = vmatprep.subr.mxu0 0.0
    %2223 = vmatpush1.msra.mxu0 %v2196
    %2224 = vmatprep.subr.mxu0 0.0
    %2225 = vmatpush1.msra.mxu0 %v2197
    %2226 = vmatprep.subr.mxu0 0.0
    %2227 = vmatpush1.msra.mxu0 %v2198
    %2228 = vmatprep.subr.mxu0 0.0
    %2229 = vmatpush1.msra.mxu0 %v2199
    %2230 = vmatprep.subr.mxu0 0.0
    %2231 = vmatpush1.msra.mxu0 %v2200
    %2232 = vmatprep.subr.mxu0 0.0
    %2233 = vmatpush1.msra.mxu0 %v2201
    %2234 = vmatprep.subr.mxu0 0.0
    %2235 = vmatpush1.msra.mxu0 %v2202
    %2236 = vmatprep.subr.mxu0 0.0
    %2237 = vmatpush1.msra.mxu0 %v2203
    %2238 = vmatprep.subr.mxu0 0.0
    %2239 = vmatpush1.msra.mxu0 %v2204
    %2240 = vmatprep.subr.mxu0 0.0
    %2241 = vmatpush1.msra.mxu0 %v2205
    %2242 = vmatprep.subr.mxu0 0.0
    %2243 = vmatpush1.msra.mxu0 %v2206
    %2244 = vmatprep.subr.mxu0 0.0
    %2245 = vmatpush1.msra.mxu0 %v2207
    %2246 = vmatprep.subr.mxu0 0.0
    %2247 = vmatpush1.msra.mxu0 %v2208
    %2248 = vmatprep.subr.mxu0 0.0
    %2249 = vmatpush1.msra.mxu0 0.0
    %2250 = vmatprep.subr.mxu0 0.0
    %2251 = vmatpush1.msra.mxu0 0.0
    %2252 = vmatprep.subr.mxu0 0.0
    %2253 = vmatpush1.msra.mxu0 0.0
    %2254 = vmatprep.subr.mxu0 0.0
    %2255 = vmatpush1.msra.mxu0 0.0
    %2256 = vmatprep.subr.mxu0 0.0
    %2257 = vmatpush1.msra.mxu0 0.0
    %2258 = vmatprep.subr.mxu0 0.0
    %2259 = vmatpush1.msra.mxu0 0.0
    %2260 = vmatprep.subr.mxu0 0.0
    %2261 = vmatpush1.msra.mxu0 0.0
    %2262 = vmatprep.subr.mxu0 0.0
    %2263 = vmatpush1.msra.mxu0 0.0
    %2264 = vmatprep.subr.mxu0 0.0
    %2265 = vmatpush1.msra.mxu0 0.0
    %2266 = vmatprep.subr.mxu0 0.0
    %2267 = vmatpush1.msra.mxu0 0.0
    %2268 = vmatprep.subr.mxu0 0.0
    %2269 = vmatpush1.msra.mxu0 0.0
    %2270 = vmatprep.subr.mxu0 0.0
    %2271 = vmatpush1.msra.mxu0 0.0
    %2272 = vmatprep.subr.mxu0 0.0
    %2273 = vmatpush1.msra.mxu0 0.0
    %2274 = vmatprep.subr.mxu0 0.0
    %2275 = vmatpush1.msra.mxu0 0.0
    %2276 = vmatprep.subr.mxu0 0.0
    %2277 = vmatpush1.msra.mxu0 0.0
    %2278 = vmatprep.subr.mxu0 0.0
    %2279 = vmatpush1.msra.mxu0 0.0
    %2280 = vmatprep.mubr.f32.mxu0 0.0
    %2281 = vmatmul.mubr.f32.gmra.mrb[0].mxu0 %v2192
    %v2282 = vpop.f32.mrb[0].mxu0
    %v2283 = vadd.f32 %v2214, %v2282
    %v2284 = vpop.f32.mrb[0].mxu0
    %2285 = vdwg.mxu0
    %v2286 = vxor.u32 %v2283, 2147483648
    %v2287 = vmul.f32 %v2286, 1.442695
    %v2288 = vpow.pop %v2287
    %v2289 = vadd.f32 %v2288, 1.0
    %v2290 = vrcp.pop %v2289
    %v2291 = vmul.f32 1.0, %v2290
    %v2292 = vld [vmem:[%s8] sm:$0xff]
    %v2293 = vld [vmem:[%s8 + $0x8] sm:$0xff]
    %v2294 = vld [vmem:[%s8 + $0x10] sm:$0xff]
    %v2295 = vld [vmem:[%s8 + $0x18] sm:$0xff]
    %v2296 = vld [vmem:[#allocation10] sm:$0x1]
    %v2298 = vlaneseq
    %v2299 = vshrl.u32 %v2298, 7
    %v2300 = vsub.s32 0, %v2299
    %v2301 = vrot.slane %v2296, %v2300
    %vm2303 = vcmask 261120
    %v2305 = vsel %vm2303, %v2291, 0
    %2307 = vmatprep.subr.mxu0 0.0
    %2308 = vmatpush1.msra.mxu0 %v2292
    %2309 = vmatprep.subr.mxu0 0.0
    %2310 = vmatpush1.msra.mxu0 %v2293
    %2311 = vmatprep.subr.mxu0 0.0
    %2312 = vmatpush1.msra.mxu0 %v2294
    %2313 = vmatprep.subr.mxu0 0.0
    %2314 = vmatpush1.msra.mxu0 %v2295
    %2315 = vmatprep.subr.mxu0 0.0
    %2316 = vmatpush1.msra.mxu0 0.0
    %2317 = vmatprep.subr.mxu0 0.0
    %2318 = vmatpush1.msra.mxu0 0.0
    %2319 = vmatprep.subr.mxu0 0.0
    %2320 = vmatpush1.msra.mxu0 0.0
    %2321 = vmatprep.subr.mxu0 0.0
    %2322 = vmatpush1.msra.mxu0 0.0
    %2323 = vmatprep.subr.mxu0 0.0
    %2324 = vmatpush1.msra.mxu0 0.0
    %2325 = vmatprep.subr.mxu0 0.0
    %2326 = vmatpush1.msra.mxu0 0.0
    %2327 = vmatprep.subr.mxu0 0.0
    %2328 = vmatpush1.msra.mxu0 0.0
    %2329 = vmatprep.subr.mxu0 0.0
    %2330 = vmatpush1.msra.mxu0 0.0
    %2331 = vmatprep.subr.mxu0 0.0
    %2332 = vmatpush1.msra.mxu0 0.0
    %2333 = vmatprep.subr.mxu0 0.0
    %2334 = vmatpush1.msra.mxu0 0.0
    %2335 = vmatprep.subr.mxu0 0.0
    %2336 = vmatpush1.msra.mxu0 0.0
    %2337 = vmatprep.subr.mxu0 0.0
    %2338 = vmatpush1.msra.mxu0 0.0
    %2339 = vmatprep.subr.mxu0 0.0
    %2340 = vmatpush1.msra.mxu0 0.0
    %2341 = vmatprep.subr.mxu0 0.0
    %2342 = vmatpush1.msra.mxu0 0.0
    %2343 = vmatprep.subr.mxu0 0.0
    %2344 = vmatpush1.msra.mxu0 0.0
    %2345 = vmatprep.subr.mxu0 0.0
    %2346 = vmatpush1.msra.mxu0 0.0
    %2347 = vmatprep.subr.mxu0 0.0
    %2348 = vmatpush1.msra.mxu0 0.0
    %2349 = vmatprep.subr.mxu0 0.0
    %2350 = vmatpush1.msra.mxu0 0.0
    %2351 = vmatprep.subr.mxu0 0.0
    %2352 = vmatpush1.msra.mxu0 0.0
    %2353 = vmatprep.subr.mxu0 0.0
    %2354 = vmatpush1.msra.mxu0 0.0
    %2355 = vmatprep.subr.mxu0 0.0
    %2356 = vmatpush1.msra.mxu0 0.0
    %2357 = vmatprep.subr.mxu0 0.0
    %2358 = vmatpush1.msra.mxu0 0.0
    %2359 = vmatprep.subr.mxu0 0.0
    %2360 = vmatpush1.msra.mxu0 0.0
    %2361 = vmatprep.subr.mxu0 0.0
    %2362 = vmatpush1.msra.mxu0 0.0
    %2363 = vmatprep.subr.mxu0 0.0
    %2364 = vmatpush1.msra.mxu0 0.0
    %2365 = vmatprep.subr.mxu0 0.0
    %2366 = vmatpush1.msra.mxu0 0.0
    %2367 = vmatprep.subr.mxu0 0.0
    %2368 = vmatpush1.msra.mxu0 0.0
    %2369 = vmatprep.subr.mxu0 0.0
    %2370 = vmatpush1.msra.mxu0 0.0
    %2371 = vmatprep.mubr.f32.mxu0 0.0
    %2372 = vmatmul.mubr.f32.gmra.mrb[0].mxu0 %v2305
    %v2373 = vpop.f32.mrb[0].mxu0
    %v2374 = vadd.f32 %v2301, %v2373
    %v2375 = vpop.f32.mrb[0].mxu0
    %2376 = vdwg.mxu0
    %v2377 = vxor.u32 %v2374, 2147483648
    %v2378 = vmul.f32 %v2377, 1.442695
    %v2379 = vpow.pop %v2378
    %v2380 = vadd.f32 %v2379, 1.0
    %v2381 = vrcp.pop %v2380
    %v2382 = vmul.f32 1.0, %v2381
    %v2384 = vrot.slane %v2382, 2
    %2385 = vrot.lane.b32.xlu0 %v2384, 32
    %v2386 = vpop.permute.xlu0 %2385
    %v2388 = vsel %vm2303, %v2382, %v2386
    %v2389 = vld [vmem:[%s10] sm:$0xff]
    %v2390 = vld [vmem:[%s10 + $0x8] sm:$0xff]
    %v2391 = vld [vmem:[%s10 + $0x10] sm:$0xff]
    %v2392 = vld [vmem:[%s10 + $0x18] sm:$0xff]
    %v2393 = vld [vmem:[%s10 + $0x20] sm:$0xff]
    %v2394 = vld [vmem:[%s10 + $0x28] sm:$0xff]
    %v2395 = vld [vmem:[%s10 + $0x30] sm:$0xff]
    %v2396 = vld [vmem:[%s10 + $0x38] sm:$0xff]
    %v2397 = vld [vmem:[#allocation12] sm:$0x1]
    %v2399 = vlaneseq
    %v2400 = vshrl.u32 %v2399, 7
    %v2401 = vsub.s32 0, %v2400
    %v2402 = vrot.slane %v2397, %v2401
    %v2405 = vsel %vm242, %v2388, 0
    %2407 = vmatprep.subr.mxu0 0.0
    %2408 = vmatpush1.msra.mxu0 %v2389
    %2409 = vmatprep.subr.mxu0 0.0
    %2410 = vmatpush1.msra.mxu0 %v2390
    %2411 = vmatprep.subr.mxu0 0.0
    %2412 = vmatpush1.msra.mxu0 %v2391
    %2413 = vmatprep.subr.mxu0 0.0
    %2414 = vmatpush1.msra.mxu0 %v2392
    %2415 = vmatprep.subr.mxu0 0.0
    %2416 = vmatpush1.msra.mxu0 %v2393
    %2417 = vmatprep.subr.mxu0 0.0
    %2418 = vmatpush1.msra.mxu0 %v2394
    %2419 = vmatprep.subr.mxu0 0.0
    %2420 = vmatpush1.msra.mxu0 %v2395
    %2421 = vmatprep.subr.mxu0 0.0
    %2422 = vmatpush1.msra.mxu0 %v2396
    %2423 = vmatprep.subr.mxu0 0.0
    %2424 = vmatpush1.msra.mxu0 0.0
    %2425 = vmatprep.subr.mxu0 0.0
    %2426 = vmatpush1.msra.mxu0 0.0
    %2427 = vmatprep.subr.mxu0 0.0
    %2428 = vmatpush1.msra.mxu0 0.0
    %2429 = vmatprep.subr.mxu0 0.0
    %2430 = vmatpush1.msra.mxu0 0.0
    %2431 = vmatprep.subr.mxu0 0.0
    %2432 = vmatpush1.msra.mxu0 0.0
    %2433 = vmatprep.subr.mxu0 0.0
    %2434 = vmatpush1.msra.mxu0 0.0
    %2435 = vmatprep.subr.mxu0 0.0
    %2436 = vmatpush1.msra.mxu0 0.0
    %2437 = vmatprep.subr.mxu0 0.0
    %2438 = vmatpush1.msra.mxu0 0.0
    %2439 = vmatprep.subr.mxu0 0.0
    %2440 = vmatpush1.msra.mxu0 0.0
    %2441 = vmatprep.subr.mxu0 0.0
    %2442 = vmatpush1.msra.mxu0 0.0
    %2443 = vmatprep.subr.mxu0 0.0
    %2444 = vmatpush1.msra.mxu0 0.0
    %2445 = vmatprep.subr.mxu0 0.0
    %2446 = vmatpush1.msra.mxu0 0.0
    %2447 = vmatprep.subr.mxu0 0.0
    %2448 = vmatpush1.msra.mxu0 0.0
    %2449 = vmatprep.subr.mxu0 0.0
    %2450 = vmatpush1.msra.mxu0 0.0
    %2451 = vmatprep.subr.mxu0 0.0
    %2452 = vmatpush1.msra.mxu0 0.0
    %2453 = vmatprep.subr.mxu0 0.0
    %2454 = vmatpush1.msra.mxu0 0.0
    %2455 = vmatprep.subr.mxu0 0.0
    %2456 = vmatpush1.msra.mxu0 0.0
    %2457 = vmatprep.subr.mxu0 0.0
    %2458 = vmatpush1.msra.mxu0 0.0
    %2459 = vmatprep.subr.mxu0 0.0
    %2460 = vmatpush1.msra.mxu0 0.0
    %2461 = vmatprep.subr.mxu0 0.0
    %2462 = vmatpush1.msra.mxu0 0.0
    %2463 = vmatprep.subr.mxu0 0.0
    %2464 = vmatpush1.msra.mxu0 0.0
    %2465 = vmatprep.subr.mxu0 0.0
    %2466 = vmatpush1.msra.mxu0 0.0
    %2467 = vmatprep.subr.mxu0 0.0
    %2468 = vmatpush1.msra.mxu0 0.0
    %2469 = vmatprep.subr.mxu0 0.0
    %2470 = vmatpush1.msra.mxu0 0.0
    %2471 = vmatprep.mubr.f32.mxu0 0.0
    %2472 = vmatmul.mubr.f32.gmra.mrb[0].mxu0 %v2405
    %v2473 = vpop.f32.mrb[0].mxu0
    %v2474 = vadd.f32 %v2402, %v2473
    %v2475 = vpop.f32.mrb[0].mxu0
    %2476 = vdwg.mxu0
    %v2477 = vxor.u32 %v2474, 2147483648
    %v2478 = vmul.f32 %v2477, 1.442695
    %v2479 = vpow.pop %v2478
    %v2480 = vadd.f32 %v2479, 1.0
    %v2481 = vrcp.pop %v2480
    %v2482 = vmul.f32 1.0, %v2481
    %s2483 = scalar_lea.vmem %s0, 64
    %v2484 = vld [vmem:[%s2483] sm:$0xff]
    %v2485 = vld [vmem:[%s2483 + $0x8] sm:$0xff]
    %v2486 = vld [vmem:[%s2483 + $0x10] sm:$0xff]
    %v2487 = vld [vmem:[%s2483 + $0x18] sm:$0xff]
    %v2488 = vld [vmem:[%s2483 + $0x20] sm:$0xff]
    %v2489 = vld [vmem:[%s2483 + $0x28] sm:$0xff]
    %v2490 = vld [vmem:[%s2483 + $0x30] sm:$0xff]
    %v2491 = vld [vmem:[%s2483 + $0x38] sm:$0xff]
    %2492 = vset.pattern.permute.xlu0 0
    %2493 = vperm.xlu0 %2492, %v2484
    %v2494 = vpop.permute.xlu0 %2493
    %2495 = vset.pattern.permute.xlu0 0
    %2496 = vperm.xlu0 %2495, %v2485
    %v2497 = vpop.permute.xlu0 %2496
    %2498 = vset.pattern.permute.xlu0 0
    %2499 = vperm.xlu0 %2498, %v2486
    %v2500 = vpop.permute.xlu0 %2499
    %2501 = vset.pattern.permute.xlu0 0
    %2502 = vperm.xlu0 %2501, %v2487
    %v2503 = vpop.permute.xlu0 %2502
    %2504 = vset.pattern.permute.xlu0 0
    %2505 = vperm.xlu0 %2504, %v2488
    %v2506 = vpop.permute.xlu0 %2505
    %2507 = vset.pattern.permute.xlu0 0
    %2508 = vperm.xlu0 %2507, %v2489
    %v2509 = vpop.permute.xlu0 %2508
    %2510 = vset.pattern.permute.xlu0 0
    %2511 = vperm.xlu0 %2510, %v2490
    %v2512 = vpop.permute.xlu0 %2511
    %2513 = vset.pattern.permute.xlu0 0
    %2514 = vperm.xlu0 %2513, %v2491
    %v2515 = vpop.permute.xlu0 %2514
    %vm2516 = vcmp.eq.s32.totalorder %v2494, %v129
    %vm2517 = vcmp.eq.s32.totalorder %v2497, %v129
    %vm2518 = vcmp.eq.s32.totalorder %v2500, %v129
    %vm2519 = vcmp.eq.s32.totalorder %v2503, %v129
    %vm2520 = vcmp.eq.s32.totalorder %v2506, %v129
    %vm2521 = vcmp.eq.s32.totalorder %v2509, %v129
    %vm2522 = vcmp.eq.s32.totalorder %v2512, %v129
    %vm2523 = vcmp.eq.s32.totalorder %v2515, %v129
    %2524 = vset.pattern.permute.xlu0 1
    %2525 = vperm.xlu0 %2524, %v2484
    %v2526 = vpop.permute.xlu0 %2525
    %2527 = vset.pattern.permute.xlu0 1
    %2528 = vperm.xlu0 %2527, %v2485
    %v2529 = vpop.permute.xlu0 %2528
    %2530 = vset.pattern.permute.xlu0 1
    %2531 = vperm.xlu0 %2530, %v2486
    %v2532 = vpop.permute.xlu0 %2531
    %2533 = vset.pattern.permute.xlu0 1
    %2534 = vperm.xlu0 %2533, %v2487
    %v2535 = vpop.permute.xlu0 %2534
    %2536 = vset.pattern.permute.xlu0 1
    %2537 = vperm.xlu0 %2536, %v2488
    %v2538 = vpop.permute.xlu0 %2537
    %2539 = vset.pattern.permute.xlu0 1
    %2540 = vperm.xlu0 %2539, %v2489
    %v2541 = vpop.permute.xlu0 %2540
    %2542 = vset.pattern.permute.xlu0 1
    %2543 = vperm.xlu0 %2542, %v2490
    %v2544 = vpop.permute.xlu0 %2543
    %2545 = vset.pattern.permute.xlu0 1
    %2546 = vperm.xlu0 %2545, %v2491
    %v2547 = vpop.permute.xlu0 %2546
    %vm2548 = vcmp.eq.s32.totalorder %v2526, %v129
    %vm2549 = vcmp.eq.s32.totalorder %v2529, %v129
    %vm2550 = vcmp.eq.s32.totalorder %v2532, %v129
    %vm2551 = vcmp.eq.s32.totalorder %v2535, %v129
    %vm2552 = vcmp.eq.s32.totalorder %v2538, %v129
    %vm2553 = vcmp.eq.s32.totalorder %v2541, %v129
    %vm2554 = vcmp.eq.s32.totalorder %v2544, %v129
    %vm2555 = vcmp.eq.s32.totalorder %v2547, %v129
    %vm2556 = vmor %vm2516, %vm2548
    %vm2557 = vmor %vm2517, %vm2549
    %vm2558 = vmor %vm2518, %vm2550
    %vm2559 = vmor %vm2519, %vm2551
    %vm2560 = vmor %vm2520, %vm2552
    %vm2561 = vmor %vm2521, %vm2553
    %vm2562 = vmor %vm2522, %vm2554
    %vm2563 = vmor %vm2523, %vm2555
    %v2564 = vsel %vm2556, 1, 0
    %v2565 = vsel %vm2557, 1, 0
    %v2566 = vsel %vm2558, 1, 0
    %v2567 = vsel %vm2559, 1, 0
    %v2568 = vsel %vm2560, 1, 0
    %v2569 = vsel %vm2561, 1, 0
    %v2570 = vsel %vm2562, 1, 0
    %v2571 = vsel %vm2563, 1, 0
    %v2572 = vcvt.s32.f32 %v2564
    %v2573 = vcvt.s32.f32 %v2565
    %v2574 = vcvt.s32.f32 %v2566
    %v2575 = vcvt.s32.f32 %v2567
    %v2576 = vcvt.s32.f32 %v2568
    %v2577 = vcvt.s32.f32 %v2569
    %v2578 = vcvt.s32.f32 %v2570
    %v2579 = vcvt.s32.f32 %v2571
    %s2580 = scalar_lea.vmem %s1, 128
    %v2581 = vld [vmem:[%s2580] sm:$0xff]
    %v2582 = vld [vmem:[%s2580 + $0x8] sm:$0xff]
    %v2583 = vld [vmem:[%s2580 + $0x10] sm:$0xff]
    %v2584 = vld [vmem:[%s2580 + $0x18] sm:$0xff]
    %v2585 = vld [vmem:[%s2580 + $0x20] sm:$0xff]
    %v2586 = vld [vmem:[%s2580 + $0x28] sm:$0xff]
    %v2587 = vld [vmem:[%s2580 + $0x30] sm:$0xff]
    %v2588 = vld [vmem:[%s2580 + $0x38] sm:$0xff]
    %v2589 = vld [vmem:[%s2580 + $0x40] sm:$0xff]
    %v2590 = vld [vmem:[%s2580 + $0x48] sm:$0xff]
    %v2591 = vld [vmem:[%s2580 + $0x50] sm:$0xff]
    %v2592 = vld [vmem:[%s2580 + $0x58] sm:$0xff]
    %v2593 = vld [vmem:[%s2580 + $0x60] sm:$0xff]
    %v2594 = vld [vmem:[%s2580 + $0x68] sm:$0xff]
    %v2595 = vld [vmem:[%s2580 + $0x70] sm:$0xff]
    %v2596 = vld [vmem:[%s2580 + $0x78] sm:$0xff]
    %v2598 = vsel %vm242, %v2572, 0
    %v2601 = vsel %vm242, %v2573, 0
    %v2604 = vsel %vm242, %v2574, 0
    %v2607 = vsel %vm242, %v2575, 0
    %v2610 = vsel %vm242, %v2576, 0
    %v2613 = vsel %vm242, %v2577, 0
    %v2616 = vsel %vm242, %v2578, 0
    %v2619 = vsel %vm242, %v2579, 0
    %2621 = vmatprep.subr.mxu0 %v2582
    %2622 = vmatpush1.msra.mxu0 %v2581
    %2623 = vmatprep.subr.mxu0 %v2584
    %2624 = vmatpush1.msra.mxu0 %v2583
    %2625 = vmatprep.subr.mxu0 %v2586
    %2626 = vmatpush1.msra.mxu0 %v2585
    %2627 = vmatprep.subr.mxu0 %v2588
    %2628 = vmatpush1.msra.mxu0 %v2587
    %2629 = vmatprep.subr.mxu0 %v2590
    %2630 = vmatpush1.msra.mxu0 %v2589
    %2631 = vmatprep.subr.mxu0 %v2592
    %2632 = vmatpush1.msra.mxu0 %v2591
    %2633 = vmatprep.subr.mxu0 %v2594
    %2634 = vmatpush1.msra.mxu0 %v2593
    %2635 = vmatprep.subr.mxu0 %v2596
    %2636 = vmatpush1.msra.mxu0 %v2595
    %2637 = vmatprep.subr.mxu0 0.0
    %2638 = vmatpush1.msra.mxu0 0.0
    %2639 = vmatprep.subr.mxu0 0.0
    %2640 = vmatpush1.msra.mxu0 0.0
    %2641 = vmatprep.subr.mxu0 0.0
    %2642 = vmatpush1.msra.mxu0 0.0
    %2643 = vmatprep.subr.mxu0 0.0
    %2644 = vmatpush1.msra.mxu0 0.0
    %2645 = vmatprep.subr.mxu0 0.0
    %2646 = vmatpush1.msra.mxu0 0.0
    %2647 = vmatprep.subr.mxu0 0.0
    %2648 = vmatpush1.msra.mxu0 0.0
    %2649 = vmatprep.subr.mxu0 0.0
    %2650 = vmatpush1.msra.mxu0 0.0
    %2651 = vmatprep.subr.mxu0 0.0
    %2652 = vmatpush1.msra.mxu0 0.0
    %2653 = vmatprep.subr.mxu0 0.0
    %2654 = vmatpush1.msra.mxu0 0.0
    %2655 = vmatprep.subr.mxu0 0.0
    %2656 = vmatpush1.msra.mxu0 0.0
    %2657 = vmatprep.subr.mxu0 0.0
    %2658 = vmatpush1.msra.mxu0 0.0
    %2659 = vmatprep.subr.mxu0 0.0
    %2660 = vmatpush1.msra.mxu0 0.0
    %2661 = vmatprep.subr.mxu0 0.0
    %2662 = vmatpush1.msra.mxu0 0.0
    %2663 = vmatprep.subr.mxu0 0.0
    %2664 = vmatpush1.msra.mxu0 0.0
    %2665 = vmatprep.subr.mxu0 0.0
    %2666 = vmatpush1.msra.mxu0 0.0
    %2667 = vmatprep.subr.mxu0 0.0
    %2668 = vmatpush1.msra.mxu0 0.0
    %2669 = vmatprep.subr.mxu0 0.0
    %2670 = vmatpush1.msra.mxu0 0.0
    %2671 = vmatprep.subr.mxu0 0.0
    %2672 = vmatpush1.msra.mxu0 0.0
    %2673 = vmatprep.subr.mxu0 0.0
    %2674 = vmatpush1.msra.mxu0 0.0
    %2675 = vmatprep.subr.mxu0 0.0
    %2676 = vmatpush1.msra.mxu0 0.0
    %2677 = vmatprep.subr.mxu0 0.0
    %2678 = vmatpush1.msra.mxu0 0.0
    %2679 = vmatprep.subr.mxu0 0.0
    %2680 = vmatpush1.msra.mxu0 0.0
    %2681 = vmatprep.subr.mxu0 0.0
    %2682 = vmatpush1.msra.mxu0 0.0
    %2683 = vmatprep.subr.mxu0 0.0
    %2684 = vmatpush1.msra.mxu0 0.0
    %2685 = vmatprep.mubr.f32.mxu0 0.0
    %2686 = vmatmul.mubr.f32.gmra.mrb[0].mxu0 %v2598
    %v2687 = vpop.f32.mrb[0].mxu0
    %v2688 = vadd.f32 0.0, %v2687
    %v2689 = vpop.f32.mrb[0].mxu0
    %v2690 = vadd.f32 0.0, %v2689
    %2691 = vmatprep.mubr.f32.mxu0 0.0
    %2692 = vmatmul.mubr.f32.gmra.mrb[0].mxu0 %v2601
    %v2693 = vpop.f32.mrb[0].mxu0
    %v2694 = vadd.f32 0.0, %v2693
    %v2695 = vpop.f32.mrb[0].mxu0
    %v2696 = vadd.f32 0.0, %v2695
    %2697 = vmatprep.mubr.f32.mxu0 0.0
    %2698 = vmatmul.mubr.f32.gmra.mrb[0].mxu0 %v2604
    %v2699 = vpop.f32.mrb[0].mxu0
    %v2700 = vadd.f32 0.0, %v2699
    %v2701 = vpop.f32.mrb[0].mxu0
    %v2702 = vadd.f32 0.0, %v2701
    %2703 = vmatprep.mubr.f32.mxu0 0.0
    %2704 = vmatmul.mubr.f32.gmra.mrb[0].mxu0 %v2607
    %v2705 = vpop.f32.mrb[0].mxu0
    %v2706 = vadd.f32 0.0, %v2705
    %v2707 = vpop.f32.mrb[0].mxu0
    %v2708 = vadd.f32 0.0, %v2707
    %2709 = vmatprep.mubr.f32.mxu0 0.0
    %2710 = vmatmul.mubr.f32.gmra.mrb[0].mxu0 %v2610
    %v2711 = vpop.f32.mrb[0].mxu0
    %v2712 = vadd.f32 0.0, %v2711
    %v2713 = vpop.f32.mrb[0].mxu0
    %v2714 = vadd.f32 0.0, %v2713
    %2715 = vmatprep.mubr.f32.mxu0 0.0
    %2716 = vmatmul.mubr.f32.gmra.mrb[0].mxu0 %v2613
    %v2717 = vpop.f32.mrb[0].mxu0
    %v2718 = vadd.f32 0.0, %v2717
    %v2719 = vpop.f32.mrb[0].mxu0
    %v2720 = vadd.f32 0.0, %v2719
    %2721 = vmatprep.mubr.f32.mxu0 0.0
    %2722 = vmatmul.mubr.f32.gmra.mrb[0].mxu0 %v2616
    %v2723 = vpop.f32.mrb[0].mxu0
    %v2724 = vadd.f32 0.0, %v2723
    %v2725 = vpop.f32.mrb[0].mxu0
    %v2726 = vadd.f32 0.0, %v2725
    %2727 = vmatprep.mubr.f32.mxu0 0.0
    %2728 = vmatmul.mubr.f32.gmra.mrb[0].mxu0 %v2619
    %v2729 = vpop.f32.mrb[0].mxu0
    %v2730 = vadd.f32 0.0, %v2729
    %v2731 = vpop.f32.mrb[0].mxu0
    %v2732 = vadd.f32 0.0, %v2731
    %2733 = vdwg.mxu0
    %2734 = vst [vmem:[#allocation2] sm:$0xff] %v2688
    %2735 = vst [vmem:[#allocation2 + $0x8] sm:$0xff] %v2690
    %2736 = vst [vmem:[#allocation2 + $0x10] sm:$0xff] %v2694
    %2737 = vst [vmem:[#allocation2 + $0x18] sm:$0xff] %v2696
    %2738 = vst [vmem:[#allocation2 + $0x20] sm:$0xff] %v2700
    %2739 = vst [vmem:[#allocation2 + $0x28] sm:$0xff] %v2702
    %2740 = vst [vmem:[#allocation2 + $0x30] sm:$0xff] %v2706
    %2741 = vst [vmem:[#allocation2 + $0x38] sm:$0xff] %v2708
    %2742 = vst [vmem:[#allocation2 + $0x40] sm:$0xff] %v2712
    %2743 = vst [vmem:[#allocation2 + $0x48] sm:$0xff] %v2714
    %2744 = vst [vmem:[#allocation2 + $0x50] sm:$0xff] %v2718
    %2745 = vst [vmem:[#allocation2 + $0x58] sm:$0xff] %v2720
    %2746 = vst [vmem:[#allocation2 + $0x60] sm:$0xff] %v2724
    %2747 = vst [vmem:[#allocation2 + $0x68] sm:$0xff] %v2726
    %2748 = vst [vmem:[#allocation2 + $0x70] sm:$0xff] %v2730
    %2749 = vst [vmem:[#allocation2 + $0x78] sm:$0xff] %v2732
    %s2750 = scalar_lea.vmem [#allocation4], 256
    %v2751 = vld [vmem:[%s2750] sm:$0xff]
    %v2752 = vld [vmem:[%s2750 + $0x8] sm:$0xff]
    %v2753 = vld [vmem:[%s2750 + $0x10] sm:$0xff]
    %v2754 = vld [vmem:[%s2750 + $0x18] sm:$0xff]
    %v2755 = vld [vmem:[%s2750 + $0x20] sm:$0xff]
    %v2756 = vld [vmem:[%s2750 + $0x28] sm:$0xff]
    %v2757 = vld [vmem:[%s2750 + $0x30] sm:$0xff]
    %v2758 = vld [vmem:[%s2750 + $0x38] sm:$0xff]
    %v2759 = vld [vmem:[%s2750 + $0x40] sm:$0xff]
    %v2760 = vld [vmem:[%s2750 + $0x48] sm:$0xff]
    %v2761 = vld [vmem:[%s2750 + $0x50] sm:$0xff]
    %v2762 = vld [vmem:[%s2750 + $0x58] sm:$0xff]
    %v2763 = vld [vmem:[%s2750 + $0x60] sm:$0xff]
    %v2764 = vld [vmem:[%s2750 + $0x68] sm:$0xff]
    %v2765 = vld [vmem:[%s2750 + $0x70] sm:$0xff]
    %v2766 = vld [vmem:[%s2750 + $0x78] sm:$0xff]
    %s2767 = scalar_lea.vmem [#allocation7], 4
    %v2768 = vld [vmem:[%s2767] sm:$0x3]
    %v2770 = vlaneseq
    %v2771 = vshrl.u32 %v2770, 7
    %v2772 = vsub.s32 0, %v2771
    %v2773 = vrot.slane %v2768, %v2772
    %v2774 = vlaneseq
    %v2775 = vshrl.u32 %v2774, 7
    %v2776 = vsub.s32 1, %v2775
    %v2777 = vrot.slane %v2768, %v2776
    %v2780 = vld [vmem:[#allocation2] sm:$0xff]
    %v2781 = vld [vmem:[#allocation2 + $0x8] sm:$0xff]
    %2782 = vmatprep.subr.mxu0 %v2752
    %2783 = vmatpush1.msra.mxu0 %v2751
    %2784 = vmatprep.subr.mxu0 %v2754
    %2785 = vmatpush1.msra.mxu0 %v2753
    %2786 = vmatprep.subr.mxu0 %v2756
    %2787 = vmatpush1.msra.mxu0 %v2755
    %2788 = vmatprep.subr.mxu0 %v2758
    %2789 = vmatpush1.msra.mxu0 %v2757
    %2790 = vmatprep.subr.mxu0 %v2760
    %2791 = vmatpush1.msra.mxu0 %v2759
    %2792 = vmatprep.subr.mxu0 %v2762
    %2793 = vmatpush1.msra.mxu0 %v2761
    %2794 = vmatprep.subr.mxu0 %v2764
    %2795 = vmatpush1.msra.mxu0 %v2763
    %2796 = vmatprep.subr.mxu0 %v2766
    %2797 = vmatpush1.msra.mxu0 %v2765
    %2798 = vmatprep.subr.mxu0 0.0
    %2799 = vmatpush1.msra.mxu0 0.0
    %2800 = vmatprep.subr.mxu0 0.0
    %2801 = vmatpush1.msra.mxu0 0.0
    %2802 = vmatprep.subr.mxu0 0.0
    %2803 = vmatpush1.msra.mxu0 0.0
    %2804 = vmatprep.subr.mxu0 0.0
    %2805 = vmatpush1.msra.mxu0 0.0
    %2806 = vmatprep.subr.mxu0 0.0
    %2807 = vmatpush1.msra.mxu0 0.0
    %2808 = vmatprep.subr.mxu0 0.0
    %2809 = vmatpush1.msra.mxu0 0.0
    %2810 = vmatprep.subr.mxu0 0.0
    %2811 = vmatpush1.msra.mxu0 0.0
    %2812 = vmatprep.subr.mxu0 0.0
    %2813 = vmatpush1.msra.mxu0 0.0
    %2814 = vmatprep.subr.mxu0 0.0
    %2815 = vmatpush1.msra.mxu0 0.0
    %2816 = vmatprep.subr.mxu0 0.0
    %2817 = vmatpush1.msra.mxu0 0.0
    %2818 = vmatprep.subr.mxu0 0.0
    %2819 = vmatpush1.msra.mxu0 0.0
    %2820 = vmatprep.subr.mxu0 0.0
    %2821 = vmatpush1.msra.mxu0 0.0
    %2822 = vmatprep.subr.mxu0 0.0
    %2823 = vmatpush1.msra.mxu0 0.0
    %2824 = vmatprep.subr.mxu0 0.0
    %2825 = vmatpush1.msra.mxu0 0.0
    %2826 = vmatprep.subr.mxu0 0.0
    %2827 = vmatpush1.msra.mxu0 0.0
    %2828 = vmatprep.subr.mxu0 0.0
    %2829 = vmatpush1.msra.mxu0 0.0
    %2830 = vmatprep.subr.mxu0 0.0
    %2831 = vmatpush1.msra.mxu0 0.0
    %2832 = vmatprep.subr.mxu0 0.0
    %2833 = vmatpush1.msra.mxu0 0.0
    %2834 = vmatprep.subr.mxu0 0.0
    %2835 = vmatpush1.msra.mxu0 0.0
    %2836 = vmatprep.subr.mxu0 0.0
    %2837 = vmatpush1.msra.mxu0 0.0
    %2838 = vmatprep.subr.mxu0 0.0
    %2839 = vmatpush1.msra.mxu0 0.0
    %2840 = vmatprep.subr.mxu0 0.0
    %2841 = vmatpush1.msra.mxu0 0.0
    %2842 = vmatprep.subr.mxu0 0.0
    %2843 = vmatpush1.msra.mxu0 0.0
    %2844 = vmatprep.subr.mxu0 0.0
    %2845 = vmatpush1.msra.mxu0 0.0
    %2846 = vmatprep.mubr.f32.mxu0 0.0
    %2847 = vmatmul.mubr.f32.gmra.mrb[0].mxu0 %v427
    %v2848 = vpop.f32.mrb[0].mxu0
    %v2849 = vadd.f32 %v2773, %v2848
    %v2850 = vpop.f32.mrb[0].mxu0
    %v2851 = vadd.f32 %v2777, %v2850
    %2852 = vdwg.mxu0
    %v2853 = vadd.f32 %v2780, %v2849
    %v2854 = vxor.u32 %v2853, 2147483648
    %v2855 = vmul.f32 %v2854, 1.442695
    %v2856 = vpow.pop %v2855
    %v2857 = vadd.f32 %v2856, 1.0
    %v2858 = vrcp.pop %v2857
    %v2859 = vmul.f32 1.0, %v2858
    %v2860 = vmul.f32 %v2859, %v2851
    %v2861 = vadd.f32 %v2781, %v2860
    %v2862 = vtanh.pop %v2861
    %v2863 = vsub.f32 1.0, %v2859
    %2865 = vrot.lane.b32.xlu0 %v2862, 64
    %v2866 = vpop.permute.xlu0 %2865
    %v2868 = vmul.f32 %v2863, %v2866
    %v2869 = vmul.f32 %v2859, 0.0
    %v2870 = vadd.f32 %v2868, %v2869
    %2872 = vrot.lane.b32.xlu0 %v2870, 64
    %v2873 = vpop.permute.xlu0 %2872
    %2875 = vst.msk [vmem:[#allocation3] sm:$0xff] %vm242, %v2873
    %2876 = vst.msk [vmem:[#allocation3 + $0x38] sm:$0xff] %vm523, %v2870
    %v2877 = vld [vmem:[#allocation2 + $0x10] sm:$0xff]
    %v2878 = vld [vmem:[#allocation2 + $0x18] sm:$0xff]
    %v2879 = vsel %vm242, %v2873, 0
    %2881 = vmatprep.subr.mxu0 %v2752
    %2882 = vmatpush1.msra.mxu0 %v2751
    %2883 = vmatprep.subr.mxu0 %v2754
    %2884 = vmatpush1.msra.mxu0 %v2753
    %2885 = vmatprep.subr.mxu0 %v2756
    %2886 = vmatpush1.msra.mxu0 %v2755
    %2887 = vmatprep.subr.mxu0 %v2758
    %2888 = vmatpush1.msra.mxu0 %v2757
    %2889 = vmatprep.subr.mxu0 %v2760
    %2890 = vmatpush1.msra.mxu0 %v2759
    %2891 = vmatprep.subr.mxu0 %v2762
    %2892 = vmatpush1.msra.mxu0 %v2761
    %2893 = vmatprep.subr.mxu0 %v2764
    %2894 = vmatpush1.msra.mxu0 %v2763
    %2895 = vmatprep.subr.mxu0 %v2766
    %2896 = vmatpush1.msra.mxu0 %v2765
    %2897 = vmatprep.subr.mxu0 0.0
    %2898 = vmatpush1.msra.mxu0 0.0
    %2899 = vmatprep.subr.mxu0 0.0
    %2900 = vmatpush1.msra.mxu0 0.0
    %2901 = vmatprep.subr.mxu0 0.0
    %2902 = vmatpush1.msra.mxu0 0.0
    %2903 = vmatprep.subr.mxu0 0.0
    %2904 = vmatpush1.msra.mxu0 0.0
    %2905 = vmatprep.subr.mxu0 0.0
    %2906 = vmatpush1.msra.mxu0 0.0
    %2907 = vmatprep.subr.mxu0 0.0
    %2908 = vmatpush1.msra.mxu0 0.0
    %2909 = vmatprep.subr.mxu0 0.0
    %2910 = vmatpush1.msra.mxu0 0.0
    %2911 = vmatprep.subr.mxu0 0.0
    %2912 = vmatpush1.msra.mxu0 0.0
    %2913 = vmatprep.subr.mxu0 0.0
    %2914 = vmatpush1.msra.mxu0 0.0
    %2915 = vmatprep.subr.mxu0 0.0
    %2916 = vmatpush1.msra.mxu0 0.0
    %2917 = vmatprep.subr.mxu0 0.0
    %2918 = vmatpush1.msra.mxu0 0.0
    %2919 = vmatprep.subr.mxu0 0.0
    %2920 = vmatpush1.msra.mxu0 0.0
    %2921 = vmatprep.subr.mxu0 0.0
    %2922 = vmatpush1.msra.mxu0 0.0
    %2923 = vmatprep.subr.mxu0 0.0
    %2924 = vmatpush1.msra.mxu0 0.0
    %2925 = vmatprep.subr.mxu0 0.0
    %2926 = vmatpush1.msra.mxu0 0.0
    %2927 = vmatprep.subr.mxu0 0.0
    %2928 = vmatpush1.msra.mxu0 0.0
    %2929 = vmatprep.subr.mxu0 0.0
    %2930 = vmatpush1.msra.mxu0 0.0
    %2931 = vmatprep.subr.mxu0 0.0
    %2932 = vmatpush1.msra.mxu0 0.0
    %2933 = vmatprep.subr.mxu0 0.0
    %2934 = vmatpush1.msra.mxu0 0.0
    %2935 = vmatprep.subr.mxu0 0.0
    %2936 = vmatpush1.msra.mxu0 0.0
    %2937 = vmatprep.subr.mxu0 0.0
    %2938 = vmatpush1.msra.mxu0 0.0
    %2939 = vmatprep.subr.mxu0 0.0
    %2940 = vmatpush1.msra.mxu0 0.0
    %2941 = vmatprep.subr.mxu0 0.0
    %2942 = vmatpush1.msra.mxu0 0.0
    %2943 = vmatprep.subr.mxu0 0.0
    %2944 = vmatpush1.msra.mxu0 0.0
    %2945 = vmatprep.mubr.f32.mxu0 0.0
    %2946 = vmatmul.mubr.f32.gmra.mrb[0].mxu0 %v2879
    %v2947 = vpop.f32.mrb[0].mxu0
    %v2948 = vadd.f32 %v2773, %v2947
    %v2949 = vpop.f32.mrb[0].mxu0
    %v2950 = vadd.f32 %v2777, %v2949
    %2951 = vdwg.mxu0
    %v2952 = vadd.f32 %v2877, %v2948
    %v2953 = vxor.u32 %v2952, 2147483648
    %v2954 = vmul.f32 %v2953, 1.442695
    %v2955 = vpow.pop %v2954
    %v2956 = vadd.f32 %v2955, 1.0
    %v2957 = vrcp.pop %v2956
    %v2958 = vmul.f32 1.0, %v2957
    %v2959 = vmul.f32 %v2958, %v2950
    %v2960 = vadd.f32 %v2878, %v2959
    %v2961 = vtanh.pop %v2960
    %v2962 = vsub.f32 1.0, %v2958
    %2964 = vrot.lane.b32.xlu0 %v2961, 64
    %v2965 = vpop.permute.xlu0 %2964
    %v2967 = vmul.f32 %v2962, %v2965
    %v2968 = vmul.f32 %v2958, %v2870
    %v2969 = vadd.f32 %v2967, %v2968
    %2971 = vrot.lane.b32.xlu0 %v2969, 64
    %v2972 = vpop.permute.xlu0 %2971
    %2974 = vst.msk [vmem:[#allocation3 + $0x8] sm:$0xff] %vm242, %v2972
    %2975 = vst.msk [vmem:[#allocation3 + $0x30] sm:$0xff] %vm523, %v2969
    %v2976 = vld [vmem:[#allocation2 + $0x20] sm:$0xff]
    %v2977 = vld [vmem:[#allocation2 + $0x28] sm:$0xff]
    %v2978 = vsel %vm242, %v2972, 0
    %2980 = vmatprep.subr.mxu0 %v2752
    %2981 = vmatpush1.msra.mxu0 %v2751
    %2982 = vmatprep.subr.mxu0 %v2754
    %2983 = vmatpush1.msra.mxu0 %v2753
    %2984 = vmatprep.subr.mxu0 %v2756
    %2985 = vmatpush1.msra.mxu0 %v2755
    %2986 = vmatprep.subr.mxu0 %v2758
    %2987 = vmatpush1.msra.mxu0 %v2757
    %2988 = vmatprep.subr.mxu0 %v2760
    %2989 = vmatpush1.msra.mxu0 %v2759
    %2990 = vmatprep.subr.mxu0 %v2762
    %2991 = vmatpush1.msra.mxu0 %v2761
    %2992 = vmatprep.subr.mxu0 %v2764
    %2993 = vmatpush1.msra.mxu0 %v2763
    %2994 = vmatprep.subr.mxu0 %v2766
    %2995 = vmatpush1.msra.mxu0 %v2765
    %2996 = vmatprep.subr.mxu0 0.0
    %2997 = vmatpush1.msra.mxu0 0.0
    %2998 = vmatprep.subr.mxu0 0.0
    %2999 = vmatpush1.msra.mxu0 0.0
    %3000 = vmatprep.subr.mxu0 0.0
    %3001 = vmatpush1.msra.mxu0 0.0
    %3002 = vmatprep.subr.mxu0 0.0
    %3003 = vmatpush1.msra.mxu0 0.0
    %3004 = vmatprep.subr.mxu0 0.0
    %3005 = vmatpush1.msra.mxu0 0.0
    %3006 = vmatprep.subr.mxu0 0.0
    %3007 = vmatpush1.msra.mxu0 0.0
    %3008 = vmatprep.subr.mxu0 0.0
    %3009 = vmatpush1.msra.mxu0 0.0
    %3010 = vmatprep.subr.mxu0 0.0
    %3011 = vmatpush1.msra.mxu0 0.0
    %3012 = vmatprep.subr.mxu0 0.0
    %3013 = vmatpush1.msra.mxu0 0.0
    %3014 = vmatprep.subr.mxu0 0.0
    %3015 = vmatpush1.msra.mxu0 0.0
    %3016 = vmatprep.subr.mxu0 0.0
    %3017 = vmatpush1.msra.mxu0 0.0
    %3018 = vmatprep.subr.mxu0 0.0
    %3019 = vmatpush1.msra.mxu0 0.0
    %3020 = vmatprep.subr.mxu0 0.0
    %3021 = vmatpush1.msra.mxu0 0.0
    %3022 = vmatprep.subr.mxu0 0.0
    %3023 = vmatpush1.msra.mxu0 0.0
    %3024 = vmatprep.subr.mxu0 0.0
    %3025 = vmatpush1.msra.mxu0 0.0
    %3026 = vmatprep.subr.mxu0 0.0
    %3027 = vmatpush1.msra.mxu0 0.0
    %3028 = vmatprep.subr.mxu0 0.0
    %3029 = vmatpush1.msra.mxu0 0.0
    %3030 = vmatprep.subr.mxu0 0.0
    %3031 = vmatpush1.msra.mxu0 0.0
    %3032 = vmatprep.subr.mxu0 0.0
    %3033 = vmatpush1.msra.mxu0 0.0
    %3034 = vmatprep.subr.mxu0 0.0
    %3035 = vmatpush1.msra.mxu0 0.0
    %3036 = vmatprep.subr.mxu0 0.0
    %3037 = vmatpush1.msra.mxu0 0.0
    %3038 = vmatprep.subr.mxu0 0.0
    %3039 = vmatpush1.msra.mxu0 0.0
    %3040 = vmatprep.subr.mxu0 0.0
    %3041 = vmatpush1.msra.mxu0 0.0
    %3042 = vmatprep.subr.mxu0 0.0
    %3043 = vmatpush1.msra.mxu0 0.0
    %3044 = vmatprep.mubr.f32.mxu0 0.0
    %3045 = vmatmul.mubr.f32.gmra.mrb[0].mxu0 %v2978
    %v3046 = vpop.f32.mrb[0].mxu0
    %v3047 = vadd.f32 %v2773, %v3046
    %v3048 = vpop.f32.mrb[0].mxu0
    %v3049 = vadd.f32 %v2777, %v3048
    %3050 = vdwg.mxu0
    %v3051 = vadd.f32 %v2976, %v3047
    %v3052 = vxor.u32 %v3051, 2147483648
    %v3053 = vmul.f32 %v3052, 1.442695
    %v3054 = vpow.pop %v3053
    %v3055 = vadd.f32 %v3054, 1.0
    %v3056 = vrcp.pop %v3055
    %v3057 = vmul.f32 1.0, %v3056
    %v3058 = vmul.f32 %v3057, %v3049
    %v3059 = vadd.f32 %v2977, %v3058
    %v3060 = vtanh.pop %v3059
    %v3061 = vsub.f32 1.0, %v3057
    %3063 = vrot.lane.b32.xlu0 %v3060, 64
    %v3064 = vpop.permute.xlu0 %3063
    %v3066 = vmul.f32 %v3061, %v3064
    %v3067 = vmul.f32 %v3057, %v2969
    %v3068 = vadd.f32 %v3066, %v3067
    %3070 = vrot.lane.b32.xlu0 %v3068, 64
    %v3071 = vpop.permute.xlu0 %3070
    %3073 = vst.msk [vmem:[#allocation3 + $0x10] sm:$0xff] %vm242, %v3071
    %3074 = vst.msk [vmem:[#allocation3 + $0x28] sm:$0xff] %vm523, %v3068
    %v3075 = vld [vmem:[#allocation2 + $0x30] sm:$0xff]
    %v3076 = vld [vmem:[#allocation2 + $0x38] sm:$0xff]
    %v3077 = vsel %vm242, %v3071, 0
    %3079 = vmatprep.subr.mxu0 %v2752
    %3080 = vmatpush1.msra.mxu0 %v2751
    %3081 = vmatprep.subr.mxu0 %v2754
    %3082 = vmatpush1.msra.mxu0 %v2753
    %3083 = vmatprep.subr.mxu0 %v2756
    %3084 = vmatpush1.msra.mxu0 %v2755
    %3085 = vmatprep.subr.mxu0 %v2758
    %3086 = vmatpush1.msra.mxu0 %v2757
    %3087 = vmatprep.subr.mxu0 %v2760
    %3088 = vmatpush1.msra.mxu0 %v2759
    %3089 = vmatprep.subr.mxu0 %v2762
    %3090 = vmatpush1.msra.mxu0 %v2761
    %3091 = vmatprep.subr.mxu0 %v2764
    %3092 = vmatpush1.msra.mxu0 %v2763
    %3093 = vmatprep.subr.mxu0 %v2766
    %3094 = vmatpush1.msra.mxu0 %v2765
    %3095 = vmatprep.subr.mxu0 0.0
    %3096 = vmatpush1.msra.mxu0 0.0
    %3097 = vmatprep.subr.mxu0 0.0
    %3098 = vmatpush1.msra.mxu0 0.0
    %3099 = vmatprep.subr.mxu0 0.0
    %3100 = vmatpush1.msra.mxu0 0.0
    %3101 = vmatprep.subr.mxu0 0.0
    %3102 = vmatpush1.msra.mxu0 0.0
    %3103 = vmatprep.subr.mxu0 0.0
    %3104 = vmatpush1.msra.mxu0 0.0
    %3105 = vmatprep.subr.mxu0 0.0
    %3106 = vmatpush1.msra.mxu0 0.0
    %3107 = vmatprep.subr.mxu0 0.0
    %3108 = vmatpush1.msra.mxu0 0.0
    %3109 = vmatprep.subr.mxu0 0.0
    %3110 = vmatpush1.msra.mxu0 0.0
    %3111 = vmatprep.subr.mxu0 0.0
    %3112 = vmatpush1.msra.mxu0 0.0
    %3113 = vmatprep.subr.mxu0 0.0
    %3114 = vmatpush1.msra.mxu0 0.0
    %3115 = vmatprep.subr.mxu0 0.0
    %3116 = vmatpush1.msra.mxu0 0.0
    %3117 = vmatprep.subr.mxu0 0.0
    %3118 = vmatpush1.msra.mxu0 0.0
    %3119 = vmatprep.subr.mxu0 0.0
    %3120 = vmatpush1.msra.mxu0 0.0
    %3121 = vmatprep.subr.mxu0 0.0
    %3122 = vmatpush1.msra.mxu0 0.0
    %3123 = vmatprep.subr.mxu0 0.0
    %3124 = vmatpush1.msra.mxu0 0.0
    %3125 = vmatprep.subr.mxu0 0.0
    %3126 = vmatpush1.msra.mxu0 0.0
    %3127 = vmatprep.subr.mxu0 0.0
    %3128 = vmatpush1.msra.mxu0 0.0
    %3129 = vmatprep.subr.mxu0 0.0
    %3130 = vmatpush1.msra.mxu0 0.0
    %3131 = vmatprep.subr.mxu0 0.0
    %3132 = vmatpush1.msra.mxu0 0.0
    %3133 = vmatprep.subr.mxu0 0.0
    %3134 = vmatpush1.msra.mxu0 0.0
    %3135 = vmatprep.subr.mxu0 0.0
    %3136 = vmatpush1.msra.mxu0 0.0
    %3137 = vmatprep.subr.mxu0 0.0
    %3138 = vmatpush1.msra.mxu0 0.0
    %3139 = vmatprep.subr.mxu0 0.0
    %3140 = vmatpush1.msra.mxu0 0.0
    %3141 = vmatprep.subr.mxu0 0.0
    %3142 = vmatpush1.msra.mxu0 0.0
    %3143 = vmatprep.mubr.f32.mxu0 0.0
    %3144 = vmatmul.mubr.f32.gmra.mrb[0].mxu0 %v3077
    %v3145 = vpop.f32.mrb[0].mxu0
    %v3146 = vadd.f32 %v2773, %v3145
    %v3147 = vpop.f32.mrb[0].mxu0
    %v3148 = vadd.f32 %v2777, %v3147
    %3149 = vdwg.mxu0
    %v3150 = vadd.f32 %v3075, %v3146
    %v3151 = vxor.u32 %v3150, 2147483648
    %v3152 = vmul.f32 %v3151, 1.442695
    %v3153 = vpow.pop %v3152
    %v3154 = vadd.f32 %v3153, 1.0
    %v3155 = vrcp.pop %v3154
    %v3156 = vmul.f32 1.0, %v3155
    %v3157 = vmul.f32 %v3156, %v3148
    %v3158 = vadd.f32 %v3076, %v3157
    %v3159 = vtanh.pop %v3158
    %v3160 = vsub.f32 1.0, %v3156
    %3162 = vrot.lane.b32.xlu0 %v3159, 64
    %v3163 = vpop.permute.xlu0 %3162
    %v3165 = vmul.f32 %v3160, %v3163
    %v3166 = vmul.f32 %v3156, %v3068
    %v3167 = vadd.f32 %v3165, %v3166
    %3169 = vrot.lane.b32.xlu0 %v3167, 64
    %v3170 = vpop.permute.xlu0 %3169
    %3172 = vst.msk [vmem:[#allocation3 + $0x18] sm:$0xff] %vm242, %v3170
    %3173 = vst.msk [vmem:[#allocation3 + $0x20] sm:$0xff] %vm523, %v3167
    %v3174 = vld [vmem:[#allocation2 + $0x40] sm:$0xff]
    %v3175 = vld [vmem:[#allocation2 + $0x48] sm:$0xff]
    %v3176 = vsel %vm242, %v3170, 0
    %3178 = vmatprep.subr.mxu0 %v2752
    %3179 = vmatpush1.msra.mxu0 %v2751
    %3180 = vmatprep.subr.mxu0 %v2754
    %3181 = vmatpush1.msra.mxu0 %v2753
    %3182 = vmatprep.subr.mxu0 %v2756
    %3183 = vmatpush1.msra.mxu0 %v2755
    %3184 = vmatprep.subr.mxu0 %v2758
    %3185 = vmatpush1.msra.mxu0 %v2757
    %3186 = vmatprep.subr.mxu0 %v2760
    %3187 = vmatpush1.msra.mxu0 %v2759
    %3188 = vmatprep.subr.mxu0 %v2762
    %3189 = vmatpush1.msra.mxu0 %v2761
    %3190 = vmatprep.subr.mxu0 %v2764
    %3191 = vmatpush1.msra.mxu0 %v2763
    %3192 = vmatprep.subr.mxu0 %v2766
    %3193 = vmatpush1.msra.mxu0 %v2765
    %3194 = vmatprep.subr.mxu0 0.0
    %3195 = vmatpush1.msra.mxu0 0.0
    %3196 = vmatprep.subr.mxu0 0.0
    %3197 = vmatpush1.msra.mxu0 0.0
    %3198 = vmatprep.subr.mxu0 0.0
    %3199 = vmatpush1.msra.mxu0 0.0
    %3200 = vmatprep.subr.mxu0 0.0
    %3201 = vmatpush1.msra.mxu0 0.0
    %3202 = vmatprep.subr.mxu0 0.0
    %3203 = vmatpush1.msra.mxu0 0.0
    %3204 = vmatprep.subr.mxu0 0.0
    %3205 = vmatpush1.msra.mxu0 0.0
    %3206 = vmatprep.subr.mxu0 0.0
    %3207 = vmatpush1.msra.mxu0 0.0
    %3208 = vmatprep.subr.mxu0 0.0
    %3209 = vmatpush1.msra.mxu0 0.0
    %3210 = vmatprep.subr.mxu0 0.0
    %3211 = vmatpush1.msra.mxu0 0.0
    %3212 = vmatprep.subr.mxu0 0.0
    %3213 = vmatpush1.msra.mxu0 0.0
    %3214 = vmatprep.subr.mxu0 0.0
    %3215 = vmatpush1.msra.mxu0 0.0
    %3216 = vmatprep.subr.mxu0 0.0
    %3217 = vmatpush1.msra.mxu0 0.0
    %3218 = vmatprep.subr.mxu0 0.0
    %3219 = vmatpush1.msra.mxu0 0.0
    %3220 = vmatprep.subr.mxu0 0.0
    %3221 = vmatpush1.msra.mxu0 0.0
    %3222 = vmatprep.subr.mxu0 0.0
    %3223 = vmatpush1.msra.mxu0 0.0
    %3224 = vmatprep.subr.mxu0 0.0
    %3225 = vmatpush1.msra.mxu0 0.0
    %3226 = vmatprep.subr.mxu0 0.0
    %3227 = vmatpush1.msra.mxu0 0.0
    %3228 = vmatprep.subr.mxu0 0.0
    %3229 = vmatpush1.msra.mxu0 0.0
    %3230 = vmatprep.subr.mxu0 0.0
    %3231 = vmatpush1.msra.mxu0 0.0
    %3232 = vmatprep.subr.mxu0 0.0
    %3233 = vmatpush1.msra.mxu0 0.0
    %3234 = vmatprep.subr.mxu0 0.0
    %3235 = vmatpush1.msra.mxu0 0.0
    %3236 = vmatprep.subr.mxu0 0.0
    %3237 = vmatpush1.msra.mxu0 0.0
    %3238 = vmatprep.subr.mxu0 0.0
    %3239 = vmatpush1.msra.mxu0 0.0
    %3240 = vmatprep.subr.mxu0 0.0
    %3241 = vmatpush1.msra.mxu0 0.0
    %3242 = vmatprep.mubr.f32.mxu0 0.0
    %3243 = vmatmul.mubr.f32.gmra.mrb[0].mxu0 %v3176
    %v3244 = vpop.f32.mrb[0].mxu0
    %v3245 = vadd.f32 %v2773, %v3244
    %v3246 = vpop.f32.mrb[0].mxu0
    %v3247 = vadd.f32 %v2777, %v3246
    %3248 = vdwg.mxu0
    %v3249 = vadd.f32 %v3174, %v3245
    %v3250 = vxor.u32 %v3249, 2147483648
    %v3251 = vmul.f32 %v3250, 1.442695
    %v3252 = vpow.pop %v3251
    %v3253 = vadd.f32 %v3252, 1.0
    %v3254 = vrcp.pop %v3253
    %v3255 = vmul.f32 1.0, %v3254
    %v3256 = vmul.f32 %v3255, %v3247
    %v3257 = vadd.f32 %v3175, %v3256
    %v3258 = vtanh.pop %v3257
    %v3259 = vsub.f32 1.0, %v3255
    %3261 = vrot.lane.b32.xlu0 %v3258, 64
    %v3262 = vpop.permute.xlu0 %3261
    %v3264 = vmul.f32 %v3259, %v3262
    %v3265 = vmul.f32 %v3255, %v3167
    %v3266 = vadd.f32 %v3264, %v3265
    %3268 = vrot.lane.b32.xlu0 %v3266, 64
    %v3269 = vpop.permute.xlu0 %3268
    %3271 = vst.msk [vmem:[#allocation3 + $0x20] sm:$0xff] %vm242, %v3269
    %3272 = vst.msk [vmem:[#allocation3 + $0x18] sm:$0xff] %vm523, %v3266
    %v3273 = vld [vmem:[#allocation2 + $0x50] sm:$0xff]
    %v3274 = vld [vmem:[#allocation2 + $0x58] sm:$0xff]
    %v3275 = vsel %vm242, %v3269, 0
    %3277 = vmatprep.subr.mxu0 %v2752
    %3278 = vmatpush1.msra.mxu0 %v2751
    %3279 = vmatprep.subr.mxu0 %v2754
    %3280 = vmatpush1.msra.mxu0 %v2753
    %3281 = vmatprep.subr.mxu0 %v2756
    %3282 = vmatpush1.msra.mxu0 %v2755
    %3283 = vmatprep.subr.mxu0 %v2758
    %3284 = vmatpush1.msra.mxu0 %v2757
    %3285 = vmatprep.subr.mxu0 %v2760
    %3286 = vmatpush1.msra.mxu0 %v2759
    %3287 = vmatprep.subr.mxu0 %v2762
    %3288 = vmatpush1.msra.mxu0 %v2761
    %3289 = vmatprep.subr.mxu0 %v2764
    %3290 = vmatpush1.msra.mxu0 %v2763
    %3291 = vmatprep.subr.mxu0 %v2766
    %3292 = vmatpush1.msra.mxu0 %v2765
    %3293 = vmatprep.subr.mxu0 0.0
    %3294 = vmatpush1.msra.mxu0 0.0
    %3295 = vmatprep.subr.mxu0 0.0
    %3296 = vmatpush1.msra.mxu0 0.0
    %3297 = vmatprep.subr.mxu0 0.0
    %3298 = vmatpush1.msra.mxu0 0.0
    %3299 = vmatprep.subr.mxu0 0.0
    %3300 = vmatpush1.msra.mxu0 0.0
    %3301 = vmatprep.subr.mxu0 0.0
    %3302 = vmatpush1.msra.mxu0 0.0
    %3303 = vmatprep.subr.mxu0 0.0
    %3304 = vmatpush1.msra.mxu0 0.0
    %3305 = vmatprep.subr.mxu0 0.0
    %3306 = vmatpush1.msra.mxu0 0.0
    %3307 = vmatprep.subr.mxu0 0.0
    %3308 = vmatpush1.msra.mxu0 0.0
    %3309 = vmatprep.subr.mxu0 0.0
    %3310 = vmatpush1.msra.mxu0 0.0
    %3311 = vmatprep.subr.mxu0 0.0
    %3312 = vmatpush1.msra.mxu0 0.0
    %3313 = vmatprep.subr.mxu0 0.0
    %3314 = vmatpush1.msra.mxu0 0.0
    %3315 = vmatprep.subr.mxu0 0.0
    %3316 = vmatpush1.msra.mxu0 0.0
    %3317 = vmatprep.subr.mxu0 0.0
    %3318 = vmatpush1.msra.mxu0 0.0
    %3319 = vmatprep.subr.mxu0 0.0
    %3320 = vmatpush1.msra.mxu0 0.0
    %3321 = vmatprep.subr.mxu0 0.0
    %3322 = vmatpush1.msra.mxu0 0.0
    %3323 = vmatprep.subr.mxu0 0.0
    %3324 = vmatpush1.msra.mxu0 0.0
    %3325 = vmatprep.subr.mxu0 0.0
    %3326 = vmatpush1.msra.mxu0 0.0
    %3327 = vmatprep.subr.mxu0 0.0
    %3328 = vmatpush1.msra.mxu0 0.0
    %3329 = vmatprep.subr.mxu0 0.0
    %3330 = vmatpush1.msra.mxu0 0.0
    %3331 = vmatprep.subr.mxu0 0.0
    %3332 = vmatpush1.msra.mxu0 0.0
    %3333 = vmatprep.subr.mxu0 0.0
    %3334 = vmatpush1.msra.mxu0 0.0
    %3335 = vmatprep.subr.mxu0 0.0
    %3336 = vmatpush1.msra.mxu0 0.0
    %3337 = vmatprep.subr.mxu0 0.0
    %3338 = vmatpush1.msra.mxu0 0.0
    %3339 = vmatprep.subr.mxu0 0.0
    %3340 = vmatpush1.msra.mxu0 0.0
    %3341 = vmatprep.mubr.f32.mxu0 0.0
    %3342 = vmatmul.mubr.f32.gmra.mrb[0].mxu0 %v3275
    %v3343 = vpop.f32.mrb[0].mxu0
    %v3344 = vadd.f32 %v2773, %v3343
    %v3345 = vpop.f32.mrb[0].mxu0
    %v3346 = vadd.f32 %v2777, %v3345
    %3347 = vdwg.mxu0
    %v3348 = vadd.f32 %v3273, %v3344
    %v3349 = vxor.u32 %v3348, 2147483648
    %v3350 = vmul.f32 %v3349, 1.442695
    %v3351 = vpow.pop %v3350
    %v3352 = vadd.f32 %v3351, 1.0
    %v3353 = vrcp.pop %v3352
    %v3354 = vmul.f32 1.0, %v3353
    %v3355 = vmul.f32 %v3354, %v3346
    %v3356 = vadd.f32 %v3274, %v3355
    %v3357 = vtanh.pop %v3356
    %v3358 = vsub.f32 1.0, %v3354
    %3360 = vrot.lane.b32.xlu0 %v3357, 64
    %v3361 = vpop.permute.xlu0 %3360
    %v3363 = vmul.f32 %v3358, %v3361
    %v3364 = vmul.f32 %v3354, %v3266
    %v3365 = vadd.f32 %v3363, %v3364
    %3367 = vrot.lane.b32.xlu0 %v3365, 64
    %v3368 = vpop.permute.xlu0 %3367
    %3370 = vst.msk [vmem:[#allocation3 + $0x28] sm:$0xff] %vm242, %v3368
    %3371 = vst.msk [vmem:[#allocation3 + $0x10] sm:$0xff] %vm523, %v3365
    %v3372 = vld [vmem:[#allocation2 + $0x60] sm:$0xff]
    %v3373 = vld [vmem:[#allocation2 + $0x68] sm:$0xff]
    %v3374 = vsel %vm242, %v3368, 0
    %3376 = vmatprep.subr.mxu0 %v2752
    %3377 = vmatpush1.msra.mxu0 %v2751
    %3378 = vmatprep.subr.mxu0 %v2754
    %3379 = vmatpush1.msra.mxu0 %v2753
    %3380 = vmatprep.subr.mxu0 %v2756
    %3381 = vmatpush1.msra.mxu0 %v2755
    %3382 = vmatprep.subr.mxu0 %v2758
    %3383 = vmatpush1.msra.mxu0 %v2757
    %3384 = vmatprep.subr.mxu0 %v2760
    %3385 = vmatpush1.msra.mxu0 %v2759
    %3386 = vmatprep.subr.mxu0 %v2762
    %3387 = vmatpush1.msra.mxu0 %v2761
    %3388 = vmatprep.subr.mxu0 %v2764
    %3389 = vmatpush1.msra.mxu0 %v2763
    %3390 = vmatprep.subr.mxu0 %v2766
    %3391 = vmatpush1.msra.mxu0 %v2765
    %3392 = vmatprep.subr.mxu0 0.0
    %3393 = vmatpush1.msra.mxu0 0.0
    %3394 = vmatprep.subr.mxu0 0.0
    %3395 = vmatpush1.msra.mxu0 0.0
    %3396 = vmatprep.subr.mxu0 0.0
    %3397 = vmatpush1.msra.mxu0 0.0
    %3398 = vmatprep.subr.mxu0 0.0
    %3399 = vmatpush1.msra.mxu0 0.0
    %3400 = vmatprep.subr.mxu0 0.0
    %3401 = vmatpush1.msra.mxu0 0.0
    %3402 = vmatprep.subr.mxu0 0.0
    %3403 = vmatpush1.msra.mxu0 0.0
    %3404 = vmatprep.subr.mxu0 0.0
    %3405 = vmatpush1.msra.mxu0 0.0
    %3406 = vmatprep.subr.mxu0 0.0
    %3407 = vmatpush1.msra.mxu0 0.0
    %3408 = vmatprep.subr.mxu0 0.0
    %3409 = vmatpush1.msra.mxu0 0.0
    %3410 = vmatprep.subr.mxu0 0.0
    %3411 = vmatpush1.msra.mxu0 0.0
    %3412 = vmatprep.subr.mxu0 0.0
    %3413 = vmatpush1.msra.mxu0 0.0
    %3414 = vmatprep.subr.mxu0 0.0
    %3415 = vmatpush1.msra.mxu0 0.0
    %3416 = vmatprep.subr.mxu0 0.0
    %3417 = vmatpush1.msra.mxu0 0.0
    %3418 = vmatprep.subr.mxu0 0.0
    %3419 = vmatpush1.msra.mxu0 0.0
    %3420 = vmatprep.subr.mxu0 0.0
    %3421 = vmatpush1.msra.mxu0 0.0
    %3422 = vmatprep.subr.mxu0 0.0
    %3423 = vmatpush1.msra.mxu0 0.0
    %3424 = vmatprep.subr.mxu0 0.0
    %3425 = vmatpush1.msra.mxu0 0.0
    %3426 = vmatprep.subr.mxu0 0.0
    %3427 = vmatpush1.msra.mxu0 0.0
    %3428 = vmatprep.subr.mxu0 0.0
    %3429 = vmatpush1.msra.mxu0 0.0
    %3430 = vmatprep.subr.mxu0 0.0
    %3431 = vmatpush1.msra.mxu0 0.0
    %3432 = vmatprep.subr.mxu0 0.0
    %3433 = vmatpush1.msra.mxu0 0.0
    %3434 = vmatprep.subr.mxu0 0.0
    %3435 = vmatpush1.msra.mxu0 0.0
    %3436 = vmatprep.subr.mxu0 0.0
    %3437 = vmatpush1.msra.mxu0 0.0
    %3438 = vmatprep.subr.mxu0 0.0
    %3439 = vmatpush1.msra.mxu0 0.0
    %3440 = vmatprep.mubr.f32.mxu0 0.0
    %3441 = vmatmul.mubr.f32.gmra.mrb[0].mxu0 %v3374
    %v3442 = vpop.f32.mrb[0].mxu0
    %v3443 = vadd.f32 %v2773, %v3442
    %v3444 = vpop.f32.mrb[0].mxu0
    %v3445 = vadd.f32 %v2777, %v3444
    %3446 = vdwg.mxu0
    %v3447 = vadd.f32 %v3372, %v3443
    %v3448 = vxor.u32 %v3447, 2147483648
    %v3449 = vmul.f32 %v3448, 1.442695
    %v3450 = vpow.pop %v3449
    %v3451 = vadd.f32 %v3450, 1.0
    %v3452 = vrcp.pop %v3451
    %v3453 = vmul.f32 1.0, %v3452
    %v3454 = vmul.f32 %v3453, %v3445
    %v3455 = vadd.f32 %v3373, %v3454
    %v3456 = vtanh.pop %v3455
    %v3457 = vsub.f32 1.0, %v3453
    %3459 = vrot.lane.b32.xlu0 %v3456, 64
    %v3460 = vpop.permute.xlu0 %3459
    %v3462 = vmul.f32 %v3457, %v3460
    %v3463 = vmul.f32 %v3453, %v3365
    %v3464 = vadd.f32 %v3462, %v3463
    %3466 = vrot.lane.b32.xlu0 %v3464, 64
    %v3467 = vpop.permute.xlu0 %3466
    %3469 = vst.msk [vmem:[#allocation3 + $0x30] sm:$0xff] %vm242, %v3467
    %3470 = vst.msk [vmem:[#allocation3 + $0x8] sm:$0xff] %vm523, %v3464
    %v3471 = vld [vmem:[#allocation2 + $0x70] sm:$0xff]
    %v3472 = vld [vmem:[#allocation2 + $0x78] sm:$0xff]
    %v3473 = vsel %vm242, %v3467, 0
    %3475 = vmatprep.subr.mxu0 %v2752
    %3476 = vmatpush1.msra.mxu0 %v2751
    %3477 = vmatprep.subr.mxu0 %v2754
    %3478 = vmatpush1.msra.mxu0 %v2753
    %3479 = vmatprep.subr.mxu0 %v2756
    %3480 = vmatpush1.msra.mxu0 %v2755
    %3481 = vmatprep.subr.mxu0 %v2758
    %3482 = vmatpush1.msra.mxu0 %v2757
    %3483 = vmatprep.subr.mxu0 %v2760
    %3484 = vmatpush1.msra.mxu0 %v2759
    %3485 = vmatprep.subr.mxu0 %v2762
    %3486 = vmatpush1.msra.mxu0 %v2761
    %3487 = vmatprep.subr.mxu0 %v2764
    %3488 = vmatpush1.msra.mxu0 %v2763
    %3489 = vmatprep.subr.mxu0 %v2766
    %3490 = vmatpush1.msra.mxu0 %v2765
    %3491 = vmatprep.subr.mxu0 0.0
    %3492 = vmatpush1.msra.mxu0 0.0
    %3493 = vmatprep.subr.mxu0 0.0
    %3494 = vmatpush1.msra.mxu0 0.0
    %3495 = vmatprep.subr.mxu0 0.0
    %3496 = vmatpush1.msra.mxu0 0.0
    %3497 = vmatprep.subr.mxu0 0.0
    %3498 = vmatpush1.msra.mxu0 0.0
    %3499 = vmatprep.subr.mxu0 0.0
    %3500 = vmatpush1.msra.mxu0 0.0
    %3501 = vmatprep.subr.mxu0 0.0
    %3502 = vmatpush1.msra.mxu0 0.0
    %3503 = vmatprep.subr.mxu0 0.0
    %3504 = vmatpush1.msra.mxu0 0.0
    %3505 = vmatprep.subr.mxu0 0.0
    %3506 = vmatpush1.msra.mxu0 0.0
    %3507 = vmatprep.subr.mxu0 0.0
    %3508 = vmatpush1.msra.mxu0 0.0
    %3509 = vmatprep.subr.mxu0 0.0
    %3510 = vmatpush1.msra.mxu0 0.0
    %3511 = vmatprep.subr.mxu0 0.0
    %3512 = vmatpush1.msra.mxu0 0.0
    %3513 = vmatprep.subr.mxu0 0.0
    %3514 = vmatpush1.msra.mxu0 0.0
    %3515 = vmatprep.subr.mxu0 0.0
    %3516 = vmatpush1.msra.mxu0 0.0
    %3517 = vmatprep.subr.mxu0 0.0
    %3518 = vmatpush1.msra.mxu0 0.0
    %3519 = vmatprep.subr.mxu0 0.0
    %3520 = vmatpush1.msra.mxu0 0.0
    %3521 = vmatprep.subr.mxu0 0.0
    %3522 = vmatpush1.msra.mxu0 0.0
    %3523 = vmatprep.subr.mxu0 0.0
    %3524 = vmatpush1.msra.mxu0 0.0
    %3525 = vmatprep.subr.mxu0 0.0
    %3526 = vmatpush1.msra.mxu0 0.0
    %3527 = vmatprep.subr.mxu0 0.0
    %3528 = vmatpush1.msra.mxu0 0.0
    %3529 = vmatprep.subr.mxu0 0.0
    %3530 = vmatpush1.msra.mxu0 0.0
    %3531 = vmatprep.subr.mxu0 0.0
    %3532 = vmatpush1.msra.mxu0 0.0
    %3533 = vmatprep.subr.mxu0 0.0
    %3534 = vmatpush1.msra.mxu0 0.0
    %3535 = vmatprep.subr.mxu0 0.0
    %3536 = vmatpush1.msra.mxu0 0.0
    %3537 = vmatprep.subr.mxu0 0.0
    %3538 = vmatpush1.msra.mxu0 0.0
    %3539 = vmatprep.mubr.f32.mxu0 0.0
    %3540 = vmatmul.mubr.f32.gmra.mrb[0].mxu0 %v3473
    %v3541 = vpop.f32.mrb[0].mxu0
    %v3542 = vadd.f32 %v2773, %v3541
    %v3543 = vpop.f32.mrb[0].mxu0
    %v3544 = vadd.f32 %v2777, %v3543
    %3545 = vdwg.mxu0
    %v3546 = vadd.f32 %v3471, %v3542
    %v3547 = vxor.u32 %v3546, 2147483648
    %v3548 = vmul.f32 %v3547, 1.442695
    %v3549 = vpow.pop %v3548
    %v3550 = vadd.f32 %v3549, 1.0
    %v3551 = vrcp.pop %v3550
    %v3552 = vmul.f32 1.0, %v3551
    %v3553 = vmul.f32 %v3552, %v3544
    %v3554 = vadd.f32 %v3472, %v3553
    %v3555 = vtanh.pop %v3554
    %v3556 = vsub.f32 1.0, %v3552
    %3558 = vrot.lane.b32.xlu0 %v3555, 64
    %v3559 = vpop.permute.xlu0 %3558
    %v3561 = vmul.f32 %v3556, %v3559
    %v3562 = vmul.f32 %v3552, %v3464
    %v3563 = vadd.f32 %v3561, %v3562
    %3565 = vrot.lane.b32.xlu0 %v3563, 64
    %v3566 = vpop.permute.xlu0 %3565
    %3568 = vst.msk [vmem:[#allocation3 + $0x38] sm:$0xff] %vm242, %v3566
    %3569 = vst.msk [vmem:[#allocation3] sm:$0xff] %vm523, %v3563
    %v3570 = vld [vmem:[#allocation3] sm:$0xff]
    %v3571 = vld [vmem:[#allocation3 + $0x8] sm:$0xff]
    %v3572 = vld [vmem:[#allocation3 + $0x10] sm:$0xff]
    %v3573 = vld [vmem:[#allocation3 + $0x18] sm:$0xff]
    %v3574 = vld [vmem:[#allocation3 + $0x20] sm:$0xff]
    %v3575 = vld [vmem:[#allocation3 + $0x28] sm:$0xff]
    %v3576 = vld [vmem:[#allocation3 + $0x30] sm:$0xff]
    %v3577 = vld [vmem:[#allocation3 + $0x38] sm:$0xff]
    %s3578 = scalar_lea.vmem %s2, 256
    %v3579 = vld [vmem:[%s3578] sm:$0xff]
    %v3580 = vld [vmem:[%s3578 + $0x8] sm:$0xff]
    %v3581 = vld [vmem:[%s3578 + $0x10] sm:$0xff]
    %v3582 = vld [vmem:[%s3578 + $0x18] sm:$0xff]
    %v3583 = vld [vmem:[%s3578 + $0x20] sm:$0xff]
    %v3584 = vld [vmem:[%s3578 + $0x28] sm:$0xff]
    %v3585 = vld [vmem:[%s3578 + $0x30] sm:$0xff]
    %v3586 = vld [vmem:[%s3578 + $0x38] sm:$0xff]
    %v3587 = vld [vmem:[%s3578 + $0x40] sm:$0xff]
    %v3588 = vld [vmem:[%s3578 + $0x48] sm:$0xff]
    %v3589 = vld [vmem:[%s3578 + $0x50] sm:$0xff]
    %v3590 = vld [vmem:[%s3578 + $0x58] sm:$0xff]
    %v3591 = vld [vmem:[%s3578 + $0x60] sm:$0xff]
    %v3592 = vld [vmem:[%s3578 + $0x68] sm:$0xff]
    %v3593 = vld [vmem:[%s3578 + $0x70] sm:$0xff]
    %v3594 = vld [vmem:[%s3578 + $0x78] sm:$0xff]
    %v3595 = vld [vmem:[%s3578 + $0x80] sm:$0xff]
    %v3596 = vld [vmem:[%s3578 + $0x88] sm:$0xff]
    %v3597 = vld [vmem:[%s3578 + $0x90] sm:$0xff]
    %v3598 = vld [vmem:[%s3578 + $0x98] sm:$0xff]
    %v3599 = vld [vmem:[%s3578 + $0xa0] sm:$0xff]
    %v3600 = vld [vmem:[%s3578 + $0xa8] sm:$0xff]
    %v3601 = vld [vmem:[%s3578 + $0xb0] sm:$0xff]
    %v3602 = vld [vmem:[%s3578 + $0xb8] sm:$0xff]
    %v3603 = vld [vmem:[%s3578 + $0xc0] sm:$0xff]
    %v3604 = vld [vmem:[%s3578 + $0xc8] sm:$0xff]
    %v3605 = vld [vmem:[%s3578 + $0xd0] sm:$0xff]
    %v3606 = vld [vmem:[%s3578 + $0xd8] sm:$0xff]
    %v3607 = vld [vmem:[%s3578 + $0xe0] sm:$0xff]
    %v3608 = vld [vmem:[%s3578 + $0xe8] sm:$0xff]
    %v3609 = vld [vmem:[%s3578 + $0xf0] sm:$0xff]
    %v3610 = vld [vmem:[%s3578 + $0xf8] sm:$0xff]
    %s3611 = scalar_lea.vmem %s3, 2
    %v3612 = vld [vmem:[%s3611] sm:$0x3]
    %v3614 = vlaneseq
    %v3615 = vshrl.u32 %v3614, 7
    %v3616 = vsub.s32 0, %v3615
    %v3617 = vrot.slane %v3612, %v3616
    %v3618 = vlaneseq
    %v3619 = vshrl.u32 %v3618, 7
    %v3620 = vsub.s32 1, %v3619
    %v3621 = vrot.slane %v3612, %v3620
    %3624 = vmatprep.subr.mxu0 %v3580
    %3625 = vmatpush1.msra.mxu0 %v3579
    %3626 = vmatprep.subr.mxu0 %v3582
    %3627 = vmatpush1.msra.mxu0 %v3581
    %3628 = vmatprep.subr.mxu0 %v3584
    %3629 = vmatpush1.msra.mxu0 %v3583
    %3630 = vmatprep.subr.mxu0 %v3586
    %3631 = vmatpush1.msra.mxu0 %v3585
    %3632 = vmatprep.subr.mxu0 %v3588
    %3633 = vmatpush1.msra.mxu0 %v3587
    %3634 = vmatprep.subr.mxu0 %v3590
    %3635 = vmatpush1.msra.mxu0 %v3589
    %3636 = vmatprep.subr.mxu0 %v3592
    %3637 = vmatpush1.msra.mxu0 %v3591
    %3638 = vmatprep.subr.mxu0 %v3594
    %3639 = vmatpush1.msra.mxu0 %v3593
    %3640 = vmatprep.subr.mxu0 %v3596
    %3641 = vmatpush1.msra.mxu0 %v3595
    %3642 = vmatprep.subr.mxu0 %v3598
    %3643 = vmatpush1.msra.mxu0 %v3597
    %3644 = vmatprep.subr.mxu0 %v3600
    %3645 = vmatpush1.msra.mxu0 %v3599
    %3646 = vmatprep.subr.mxu0 %v3602
    %3647 = vmatpush1.msra.mxu0 %v3601
    %3648 = vmatprep.subr.mxu0 %v3604
    %3649 = vmatpush1.msra.mxu0 %v3603
    %3650 = vmatprep.subr.mxu0 %v3606
    %3651 = vmatpush1.msra.mxu0 %v3605
    %3652 = vmatprep.subr.mxu0 %v3608
    %3653 = vmatpush1.msra.mxu0 %v3607
    %3654 = vmatprep.subr.mxu0 %v3610
    %3655 = vmatpush1.msra.mxu0 %v3609
    %3656 = vmatprep.subr.mxu0 0.0
    %3657 = vmatpush1.msra.mxu0 0.0
    %3658 = vmatprep.subr.mxu0 0.0
    %3659 = vmatpush1.msra.mxu0 0.0
    %3660 = vmatprep.subr.mxu0 0.0
    %3661 = vmatpush1.msra.mxu0 0.0
    %3662 = vmatprep.subr.mxu0 0.0
    %3663 = vmatpush1.msra.mxu0 0.0
    %3664 = vmatprep.subr.mxu0 0.0
    %3665 = vmatpush1.msra.mxu0 0.0
    %3666 = vmatprep.subr.mxu0 0.0
    %3667 = vmatpush1.msra.mxu0 0.0
    %3668 = vmatprep.subr.mxu0 0.0
    %3669 = vmatpush1.msra.mxu0 0.0
    %3670 = vmatprep.subr.mxu0 0.0
    %3671 = vmatpush1.msra.mxu0 0.0
    %3672 = vmatprep.subr.mxu0 0.0
    %3673 = vmatpush1.msra.mxu0 0.0
    %3674 = vmatprep.subr.mxu0 0.0
    %3675 = vmatpush1.msra.mxu0 0.0
    %3676 = vmatprep.subr.mxu0 0.0
    %3677 = vmatpush1.msra.mxu0 0.0
    %3678 = vmatprep.subr.mxu0 0.0
    %3679 = vmatpush1.msra.mxu0 0.0
    %3680 = vmatprep.subr.mxu0 0.0
    %3681 = vmatpush1.msra.mxu0 0.0
    %3682 = vmatprep.subr.mxu0 0.0
    %3683 = vmatpush1.msra.mxu0 0.0
    %3684 = vmatprep.subr.mxu0 0.0
    %3685 = vmatpush1.msra.mxu0 0.0
    %3686 = vmatprep.subr.mxu0 0.0
    %3687 = vmatpush1.msra.mxu0 0.0
    %3688 = vmatprep.mubr.f32.mxu0 0.0
    %3689 = vmatmul.mubr.f32.gmra.mrb[0].mxu0 %v3570
    %v3690 = vpop.f32.mrb[0].mxu0
    %v3691 = vadd.f32 %v3617, %v3690
    %v3692 = vpop.f32.mrb[0].mxu0
    %v3693 = vadd.f32 %v3621, %v3692
    %3694 = vmatprep.mubr.f32.mxu0 0.0
    %3695 = vmatmul.mubr.f32.gmra.mrb[0].mxu0 %v3571
    %v3696 = vpop.f32.mrb[0].mxu0
    %v3697 = vadd.f32 %v3617, %v3696
    %v3698 = vpop.f32.mrb[0].mxu0
    %v3699 = vadd.f32 %v3621, %v3698
    %3700 = vmatprep.mubr.f32.mxu0 0.0
    %3701 = vmatmul.mubr.f32.gmra.mrb[0].mxu0 %v3572
    %v3702 = vpop.f32.mrb[0].mxu0
    %v3703 = vadd.f32 %v3617, %v3702
    %v3704 = vpop.f32.mrb[0].mxu0
    %v3705 = vadd.f32 %v3621, %v3704
    %3706 = vmatprep.mubr.f32.mxu0 0.0
    %3707 = vmatmul.mubr.f32.gmra.mrb[0].mxu0 %v3573
    %v3708 = vpop.f32.mrb[0].mxu0
    %v3709 = vadd.f32 %v3617, %v3708
    %v3710 = vpop.f32.mrb[0].mxu0
    %v3711 = vadd.f32 %v3621, %v3710
    %3712 = vmatprep.mubr.f32.mxu0 0.0
    %3713 = vmatmul.mubr.f32.gmra.mrb[0].mxu0 %v3574
    %v3714 = vpop.f32.mrb[0].mxu0
    %v3715 = vadd.f32 %v3617, %v3714
    %v3716 = vpop.f32.mrb[0].mxu0
    %v3717 = vadd.f32 %v3621, %v3716
    %3718 = vmatprep.mubr.f32.mxu0 0.0
    %3719 = vmatmul.mubr.f32.gmra.mrb[0].mxu0 %v3575
    %v3720 = vpop.f32.mrb[0].mxu0
    %v3721 = vadd.f32 %v3617, %v3720
    %v3722 = vpop.f32.mrb[0].mxu0
    %v3723 = vadd.f32 %v3621, %v3722
    %3724 = vmatprep.mubr.f32.mxu0 0.0
    %3725 = vmatmul.mubr.f32.gmra.mrb[0].mxu0 %v3576
    %v3726 = vpop.f32.mrb[0].mxu0
    %v3727 = vadd.f32 %v3617, %v3726
    %v3728 = vpop.f32.mrb[0].mxu0
    %v3729 = vadd.f32 %v3621, %v3728
    %3730 = vmatprep.mubr.f32.mxu0 0.0
    %3731 = vmatmul.mubr.f32.gmra.mrb[0].mxu0 %v3577
    %v3732 = vpop.f32.mrb[0].mxu0
    %v3733 = vadd.f32 %v3617, %v3732
    %v3734 = vpop.f32.mrb[0].mxu0
    %v3735 = vadd.f32 %v3621, %v3734
    %3736 = vdwg.mxu0
    %3737 = vst [vmem:[#allocation2] sm:$0xff] %v3691
    %3738 = vst [vmem:[#allocation2 + $0x8] sm:$0xff] %v3693
    %3739 = vst [vmem:[#allocation2 + $0x10] sm:$0xff] %v3697
    %3740 = vst [vmem:[#allocation2 + $0x18] sm:$0xff] %v3699
    %3741 = vst [vmem:[#allocation2 + $0x20] sm:$0xff] %v3703
    %3742 = vst [vmem:[#allocation2 + $0x28] sm:$0xff] %v3705
    %3743 = vst [vmem:[#allocation2 + $0x30] sm:$0xff] %v3709
    %3744 = vst [vmem:[#allocation2 + $0x38] sm:$0xff] %v3711
    %3745 = vst [vmem:[#allocation2 + $0x40] sm:$0xff] %v3715
    %3746 = vst [vmem:[#allocation2 + $0x48] sm:$0xff] %v3717
    %3747 = vst [vmem:[#allocation2 + $0x50] sm:$0xff] %v3721
    %3748 = vst [vmem:[#allocation2 + $0x58] sm:$0xff] %v3723
    %3749 = vst [vmem:[#allocation2 + $0x60] sm:$0xff] %v3727
    %3750 = vst [vmem:[#allocation2 + $0x68] sm:$0xff] %v3729
    %3751 = vst [vmem:[#allocation2 + $0x70] sm:$0xff] %v3733
    %3752 = vst [vmem:[#allocation2 + $0x78] sm:$0xff] %v3735
    %s3753 = scalar_lea.vmem [#allocation4], 384
    %v3754 = vld [vmem:[%s3753] sm:$0xff]
    %v3755 = vld [vmem:[%s3753 + $0x8] sm:$0xff]
    %v3756 = vld [vmem:[%s3753 + $0x10] sm:$0xff]
    %v3757 = vld [vmem:[%s3753 + $0x18] sm:$0xff]
    %v3758 = vld [vmem:[%s3753 + $0x20] sm:$0xff]
    %v3759 = vld [vmem:[%s3753 + $0x28] sm:$0xff]
    %v3760 = vld [vmem:[%s3753 + $0x30] sm:$0xff]
    %v3761 = vld [vmem:[%s3753 + $0x38] sm:$0xff]
    %v3762 = vld [vmem:[%s3753 + $0x40] sm:$0xff]
    %v3763 = vld [vmem:[%s3753 + $0x48] sm:$0xff]
    %v3764 = vld [vmem:[%s3753 + $0x50] sm:$0xff]
    %v3765 = vld [vmem:[%s3753 + $0x58] sm:$0xff]
    %v3766 = vld [vmem:[%s3753 + $0x60] sm:$0xff]
    %v3767 = vld [vmem:[%s3753 + $0x68] sm:$0xff]
    %v3768 = vld [vmem:[%s3753 + $0x70] sm:$0xff]
    %v3769 = vld [vmem:[%s3753 + $0x78] sm:$0xff]
    %s3770 = scalar_lea.vmem [#allocation7], 6
    %v3771 = vld [vmem:[%s3770] sm:$0x3]
    %v3773 = vlaneseq
    %v3774 = vshrl.u32 %v3773, 7
    %v3775 = vsub.s32 0, %v3774
    %v3776 = vrot.slane %v3771, %v3775
    %v3777 = vlaneseq
    %v3778 = vshrl.u32 %v3777, 7
    %v3779 = vsub.s32 1, %v3778
    %v3780 = vrot.slane %v3771, %v3779
    %v3783 = vld [vmem:[#allocation2] sm:$0xff]
    %v3784 = vld [vmem:[#allocation2 + $0x8] sm:$0xff]
    %3785 = vmatprep.subr.mxu0 %v3755
    %3786 = vmatpush1.msra.mxu0 %v3754
    %3787 = vmatprep.subr.mxu0 %v3757
    %3788 = vmatpush1.msra.mxu0 %v3756
    %3789 = vmatprep.subr.mxu0 %v3759
    %3790 = vmatpush1.msra.mxu0 %v3758
    %3791 = vmatprep.subr.mxu0 %v3761
    %3792 = vmatpush1.msra.mxu0 %v3760
    %3793 = vmatprep.subr.mxu0 %v3763
    %3794 = vmatpush1.msra.mxu0 %v3762
    %3795 = vmatprep.subr.mxu0 %v3765
    %3796 = vmatpush1.msra.mxu0 %v3764
    %3797 = vmatprep.subr.mxu0 %v3767
    %3798 = vmatpush1.msra.mxu0 %v3766
    %3799 = vmatprep.subr.mxu0 %v3769
    %3800 = vmatpush1.msra.mxu0 %v3768
    %3801 = vmatprep.subr.mxu0 0.0
    %3802 = vmatpush1.msra.mxu0 0.0
    %3803 = vmatprep.subr.mxu0 0.0
    %3804 = vmatpush1.msra.mxu0 0.0
    %3805 = vmatprep.subr.mxu0 0.0
    %3806 = vmatpush1.msra.mxu0 0.0
    %3807 = vmatprep.subr.mxu0 0.0
    %3808 = vmatpush1.msra.mxu0 0.0
    %3809 = vmatprep.subr.mxu0 0.0
    %3810 = vmatpush1.msra.mxu0 0.0
    %3811 = vmatprep.subr.mxu0 0.0
    %3812 = vmatpush1.msra.mxu0 0.0
    %3813 = vmatprep.subr.mxu0 0.0
    %3814 = vmatpush1.msra.mxu0 0.0
    %3815 = vmatprep.subr.mxu0 0.0
    %3816 = vmatpush1.msra.mxu0 0.0
    %3817 = vmatprep.subr.mxu0 0.0
    %3818 = vmatpush1.msra.mxu0 0.0
    %3819 = vmatprep.subr.mxu0 0.0
    %3820 = vmatpush1.msra.mxu0 0.0
    %3821 = vmatprep.subr.mxu0 0.0
    %3822 = vmatpush1.msra.mxu0 0.0
    %3823 = vmatprep.subr.mxu0 0.0
    %3824 = vmatpush1.msra.mxu0 0.0
    %3825 = vmatprep.subr.mxu0 0.0
    %3826 = vmatpush1.msra.mxu0 0.0
    %3827 = vmatprep.subr.mxu0 0.0
    %3828 = vmatpush1.msra.mxu0 0.0
    %3829 = vmatprep.subr.mxu0 0.0
    %3830 = vmatpush1.msra.mxu0 0.0
    %3831 = vmatprep.subr.mxu0 0.0
    %3832 = vmatpush1.msra.mxu0 0.0
    %3833 = vmatprep.subr.mxu0 0.0
    %3834 = vmatpush1.msra.mxu0 0.0
    %3835 = vmatprep.subr.mxu0 0.0
    %3836 = vmatpush1.msra.mxu0 0.0
    %3837 = vmatprep.subr.mxu0 0.0
    %3838 = vmatpush1.msra.mxu0 0.0
    %3839 = vmatprep.subr.mxu0 0.0
    %3840 = vmatpush1.msra.mxu0 0.0
    %3841 = vmatprep.subr.mxu0 0.0
    %3842 = vmatpush1.msra.mxu0 0.0
    %3843 = vmatprep.subr.mxu0 0.0
    %3844 = vmatpush1.msra.mxu0 0.0
    %3845 = vmatprep.subr.mxu0 0.0
    %3846 = vmatpush1.msra.mxu0 0.0
    %3847 = vmatprep.subr.mxu0 0.0
    %3848 = vmatpush1.msra.mxu0 0.0
    %3849 = vmatprep.mubr.f32.mxu0 0.0
    %3850 = vmatmul.mubr.f32.gmra.mrb[0].mxu0 %v427
    %v3851 = vpop.f32.mrb[0].mxu0
    %v3852 = vadd.f32 %v3776, %v3851
    %v3853 = vpop.f32.mrb[0].mxu0
    %v3854 = vadd.f32 %v3780, %v3853
    %3855 = vdwg.mxu0
    %v3856 = vadd.f32 %v3783, %v3852
    %v3857 = vxor.u32 %v3856, 2147483648
    %v3858 = vmul.f32 %v3857, 1.442695
    %v3859 = vpow.pop %v3858
    %v3860 = vadd.f32 %v3859, 1.0
    %v3861 = vrcp.pop %v3860
    %v3862 = vmul.f32 1.0, %v3861
    %v3863 = vmul.f32 %v3862, %v3854
    %v3864 = vadd.f32 %v3784, %v3863
    %v3865 = vtanh.pop %v3864
    %v3866 = vsub.f32 1.0, %v3862
    %3868 = vrot.lane.b32.xlu0 %v3865, 64
    %v3869 = vpop.permute.xlu0 %3868
    %v3871 = vmul.f32 %v3866, %v3869
    %v3872 = vmul.f32 %v3862, 0.0
    %v3873 = vadd.f32 %v3871, %v3872
    %v3874 = vld [vmem:[#allocation2 + $0x10] sm:$0xff]
    %v3875 = vld [vmem:[#allocation2 + $0x18] sm:$0xff]
    %3877 = vrot.lane.b32.xlu0 %v3873, 64
    %v3878 = vpop.permute.xlu0 %3877
    %v3879 = vsel %vm242, %v3878, 0
    %3881 = vmatprep.subr.mxu0 %v3755
    %3882 = vmatpush1.msra.mxu0 %v3754
    %3883 = vmatprep.subr.mxu0 %v3757
    %3884 = vmatpush1.msra.mxu0 %v3756
    %3885 = vmatprep.subr.mxu0 %v3759
    %3886 = vmatpush1.msra.mxu0 %v3758
    %3887 = vmatprep.subr.mxu0 %v3761
    %3888 = vmatpush1.msra.mxu0 %v3760
    %3889 = vmatprep.subr.mxu0 %v3763
    %3890 = vmatpush1.msra.mxu0 %v3762
    %3891 = vmatprep.subr.mxu0 %v3765
    %3892 = vmatpush1.msra.mxu0 %v3764
    %3893 = vmatprep.subr.mxu0 %v3767
    %3894 = vmatpush1.msra.mxu0 %v3766
    %3895 = vmatprep.subr.mxu0 %v3769
    %3896 = vmatpush1.msra.mxu0 %v3768
    %3897 = vmatprep.subr.mxu0 0.0
    %3898 = vmatpush1.msra.mxu0 0.0
    %3899 = vmatprep.subr.mxu0 0.0
    %3900 = vmatpush1.msra.mxu0 0.0
    %3901 = vmatprep.subr.mxu0 0.0
    %3902 = vmatpush1.msra.mxu0 0.0
    %3903 = vmatprep.subr.mxu0 0.0
    %3904 = vmatpush1.msra.mxu0 0.0
    %3905 = vmatprep.subr.mxu0 0.0
    %3906 = vmatpush1.msra.mxu0 0.0
    %3907 = vmatprep.subr.mxu0 0.0
    %3908 = vmatpush1.msra.mxu0 0.0
    %3909 = vmatprep.subr.mxu0 0.0
    %3910 = vmatpush1.msra.mxu0 0.0
    %3911 = vmatprep.subr.mxu0 0.0
    %3912 = vmatpush1.msra.mxu0 0.0
    %3913 = vmatprep.subr.mxu0 0.0
    %3914 = vmatpush1.msra.mxu0 0.0
    %3915 = vmatprep.subr.mxu0 0.0
    %3916 = vmatpush1.msra.mxu0 0.0
    %3917 = vmatprep.subr.mxu0 0.0
    %3918 = vmatpush1.msra.mxu0 0.0
    %3919 = vmatprep.subr.mxu0 0.0
    %3920 = vmatpush1.msra.mxu0 0.0
    %3921 = vmatprep.subr.mxu0 0.0
    %3922 = vmatpush1.msra.mxu0 0.0
    %3923 = vmatprep.subr.mxu0 0.0
    %3924 = vmatpush1.msra.mxu0 0.0
    %3925 = vmatprep.subr.mxu0 0.0
    %3926 = vmatpush1.msra.mxu0 0.0
    %3927 = vmatprep.subr.mxu0 0.0
    %3928 = vmatpush1.msra.mxu0 0.0
    %3929 = vmatprep.subr.mxu0 0.0
    %3930 = vmatpush1.msra.mxu0 0.0
    %3931 = vmatprep.subr.mxu0 0.0
    %3932 = vmatpush1.msra.mxu0 0.0
    %3933 = vmatprep.subr.mxu0 0.0
    %3934 = vmatpush1.msra.mxu0 0.0
    %3935 = vmatprep.subr.mxu0 0.0
    %3936 = vmatpush1.msra.mxu0 0.0
    %3937 = vmatprep.subr.mxu0 0.0
    %3938 = vmatpush1.msra.mxu0 0.0
    %3939 = vmatprep.subr.mxu0 0.0
    %3940 = vmatpush1.msra.mxu0 0.0
    %3941 = vmatprep.subr.mxu0 0.0
    %3942 = vmatpush1.msra.mxu0 0.0
    %3943 = vmatprep.subr.mxu0 0.0
    %3944 = vmatpush1.msra.mxu0 0.0
    %3945 = vmatprep.mubr.f32.mxu0 0.0
    %3946 = vmatmul.mubr.f32.gmra.mrb[0].mxu0 %v3879
    %v3947 = vpop.f32.mrb[0].mxu0
    %v3948 = vadd.f32 %v3776, %v3947
    %v3949 = vpop.f32.mrb[0].mxu0
    %v3950 = vadd.f32 %v3780, %v3949
    %3951 = vdwg.mxu0
    %v3952 = vadd.f32 %v3874, %v3948
    %v3953 = vxor.u32 %v3952, 2147483648
    %v3954 = vmul.f32 %v3953, 1.442695
    %v3955 = vpow.pop %v3954
    %v3956 = vadd.f32 %v3955, 1.0
    %v3957 = vrcp.pop %v3956
    %v3958 = vmul.f32 1.0, %v3957
    %v3959 = vmul.f32 %v3958, %v3950
    %v3960 = vadd.f32 %v3875, %v3959
    %v3961 = vtanh.pop %v3960
    %v3962 = vsub.f32 1.0, %v3958
    %3964 = vrot.lane.b32.xlu0 %v3961, 64
    %v3965 = vpop.permute.xlu0 %3964
    %v3967 = vmul.f32 %v3962, %v3965
    %v3968 = vmul.f32 %v3958, %v3873
    %v3969 = vadd.f32 %v3967, %v3968
    %v3970 = vld [vmem:[#allocation2 + $0x20] sm:$0xff]
    %v3971 = vld [vmem:[#allocation2 + $0x28] sm:$0xff]
    %3973 = vrot.lane.b32.xlu0 %v3969, 64
    %v3974 = vpop.permute.xlu0 %3973
    %v3975 = vsel %vm242, %v3974, 0
    %3977 = vmatprep.subr.mxu0 %v3755
    %3978 = vmatpush1.msra.mxu0 %v3754
    %3979 = vmatprep.subr.mxu0 %v3757
    %3980 = vmatpush1.msra.mxu0 %v3756
    %3981 = vmatprep.subr.mxu0 %v3759
    %3982 = vmatpush1.msra.mxu0 %v3758
    %3983 = vmatprep.subr.mxu0 %v3761
    %3984 = vmatpush1.msra.mxu0 %v3760
    %3985 = vmatprep.subr.mxu0 %v3763
    %3986 = vmatpush1.msra.mxu0 %v3762
    %3987 = vmatprep.subr.mxu0 %v3765
    %3988 = vmatpush1.msra.mxu0 %v3764
    %3989 = vmatprep.subr.mxu0 %v3767
    %3990 = vmatpush1.msra.mxu0 %v3766
    %3991 = vmatprep.subr.mxu0 %v3769
    %3992 = vmatpush1.msra.mxu0 %v3768
    %3993 = vmatprep.subr.mxu0 0.0
    %3994 = vmatpush1.msra.mxu0 0.0
    %3995 = vmatprep.subr.mxu0 0.0
    %3996 = vmatpush1.msra.mxu0 0.0
    %3997 = vmatprep.subr.mxu0 0.0
    %3998 = vmatpush1.msra.mxu0 0.0
    %3999 = vmatprep.subr.mxu0 0.0
    %4000 = vmatpush1.msra.mxu0 0.0
    %4001 = vmatprep.subr.mxu0 0.0
    %4002 = vmatpush1.msra.mxu0 0.0
    %4003 = vmatprep.subr.mxu0 0.0
    %4004 = vmatpush1.msra.mxu0 0.0
    %4005 = vmatprep.subr.mxu0 0.0
    %4006 = vmatpush1.msra.mxu0 0.0
    %4007 = vmatprep.subr.mxu0 0.0
    %4008 = vmatpush1.msra.mxu0 0.0
    %4009 = vmatprep.subr.mxu0 0.0
    %4010 = vmatpush1.msra.mxu0 0.0
    %4011 = vmatprep.subr.mxu0 0.0
    %4012 = vmatpush1.msra.mxu0 0.0
    %4013 = vmatprep.subr.mxu0 0.0
    %4014 = vmatpush1.msra.mxu0 0.0
    %4015 = vmatprep.subr.mxu0 0.0
    %4016 = vmatpush1.msra.mxu0 0.0
    %4017 = vmatprep.subr.mxu0 0.0
    %4018 = vmatpush1.msra.mxu0 0.0
    %4019 = vmatprep.subr.mxu0 0.0
    %4020 = vmatpush1.msra.mxu0 0.0
    %4021 = vmatprep.subr.mxu0 0.0
    %4022 = vmatpush1.msra.mxu0 0.0
    %4023 = vmatprep.subr.mxu0 0.0
    %4024 = vmatpush1.msra.mxu0 0.0
    %4025 = vmatprep.subr.mxu0 0.0
    %4026 = vmatpush1.msra.mxu0 0.0
    %4027 = vmatprep.subr.mxu0 0.0
    %4028 = vmatpush1.msra.mxu0 0.0
    %4029 = vmatprep.subr.mxu0 0.0
    %4030 = vmatpush1.msra.mxu0 0.0
    %4031 = vmatprep.subr.mxu0 0.0
    %4032 = vmatpush1.msra.mxu0 0.0
    %4033 = vmatprep.subr.mxu0 0.0
    %4034 = vmatpush1.msra.mxu0 0.0
    %4035 = vmatprep.subr.mxu0 0.0
    %4036 = vmatpush1.msra.mxu0 0.0
    %4037 = vmatprep.subr.mxu0 0.0
    %4038 = vmatpush1.msra.mxu0 0.0
    %4039 = vmatprep.subr.mxu0 0.0
    %4040 = vmatpush1.msra.mxu0 0.0
    %4041 = vmatprep.mubr.f32.mxu0 0.0
    %4042 = vmatmul.mubr.f32.gmra.mrb[0].mxu0 %v3975
    %v4043 = vpop.f32.mrb[0].mxu0
    %v4044 = vadd.f32 %v3776, %v4043
    %v4045 = vpop.f32.mrb[0].mxu0
    %v4046 = vadd.f32 %v3780, %v4045
    %4047 = vdwg.mxu0
    %v4048 = vadd.f32 %v3970, %v4044
    %v4049 = vxor.u32 %v4048, 2147483648
    %v4050 = vmul.f32 %v4049, 1.442695
    %v4051 = vpow.pop %v4050
    %v4052 = vadd.f32 %v4051, 1.0
    %v4053 = vrcp.pop %v4052
    %v4054 = vmul.f32 1.0, %v4053
    %v4055 = vmul.f32 %v4054, %v4046
    %v4056 = vadd.f32 %v3971, %v4055
    %v4057 = vtanh.pop %v4056
    %v4058 = vsub.f32 1.0, %v4054
    %4060 = vrot.lane.b32.xlu0 %v4057, 64
    %v4061 = vpop.permute.xlu0 %4060
    %v4063 = vmul.f32 %v4058, %v4061
    %v4064 = vmul.f32 %v4054, %v3969
    %v4065 = vadd.f32 %v4063, %v4064
    %v4066 = vld [vmem:[#allocation2 + $0x30] sm:$0xff]
    %v4067 = vld [vmem:[#allocation2 + $0x38] sm:$0xff]
    %4069 = vrot.lane.b32.xlu0 %v4065, 64
    %v4070 = vpop.permute.xlu0 %4069
    %v4071 = vsel %vm242, %v4070, 0
    %4073 = vmatprep.subr.mxu0 %v3755
    %4074 = vmatpush1.msra.mxu0 %v3754
    %4075 = vmatprep.subr.mxu0 %v3757
    %4076 = vmatpush1.msra.mxu0 %v3756
    %4077 = vmatprep.subr.mxu0 %v3759
    %4078 = vmatpush1.msra.mxu0 %v3758
    %4079 = vmatprep.subr.mxu0 %v3761
    %4080 = vmatpush1.msra.mxu0 %v3760
    %4081 = vmatprep.subr.mxu0 %v3763
    %4082 = vmatpush1.msra.mxu0 %v3762
    %4083 = vmatprep.subr.mxu0 %v3765
    %4084 = vmatpush1.msra.mxu0 %v3764
    %4085 = vmatprep.subr.mxu0 %v3767
    %4086 = vmatpush1.msra.mxu0 %v3766
    %4087 = vmatprep.subr.mxu0 %v3769
    %4088 = vmatpush1.msra.mxu0 %v3768
    %4089 = vmatprep.subr.mxu0 0.0
    %4090 = vmatpush1.msra.mxu0 0.0
    %4091 = vmatprep.subr.mxu0 0.0
    %4092 = vmatpush1.msra.mxu0 0.0
    %4093 = vmatprep.subr.mxu0 0.0
    %4094 = vmatpush1.msra.mxu0 0.0
    %4095 = vmatprep.subr.mxu0 0.0
    %4096 = vmatpush1.msra.mxu0 0.0
    %4097 = vmatprep.subr.mxu0 0.0
    %4098 = vmatpush1.msra.mxu0 0.0
    %4099 = vmatprep.subr.mxu0 0.0
    %4100 = vmatpush1.msra.mxu0 0.0
    %4101 = vmatprep.subr.mxu0 0.0
    %4102 = vmatpush1.msra.mxu0 0.0
    %4103 = vmatprep.subr.mxu0 0.0
    %4104 = vmatpush1.msra.mxu0 0.0
    %4105 = vmatprep.subr.mxu0 0.0
    %4106 = vmatpush1.msra.mxu0 0.0
    %4107 = vmatprep.subr.mxu0 0.0
    %4108 = vmatpush1.msra.mxu0 0.0
    %4109 = vmatprep.subr.mxu0 0.0
    %4110 = vmatpush1.msra.mxu0 0.0
    %4111 = vmatprep.subr.mxu0 0.0
    %4112 = vmatpush1.msra.mxu0 0.0
    %4113 = vmatprep.subr.mxu0 0.0
    %4114 = vmatpush1.msra.mxu0 0.0
    %4115 = vmatprep.subr.mxu0 0.0
    %4116 = vmatpush1.msra.mxu0 0.0
    %4117 = vmatprep.subr.mxu0 0.0
    %4118 = vmatpush1.msra.mxu0 0.0
    %4119 = vmatprep.subr.mxu0 0.0
    %4120 = vmatpush1.msra.mxu0 0.0
    %4121 = vmatprep.subr.mxu0 0.0
    %4122 = vmatpush1.msra.mxu0 0.0
    %4123 = vmatprep.subr.mxu0 0.0
    %4124 = vmatpush1.msra.mxu0 0.0
    %4125 = vmatprep.subr.mxu0 0.0
    %4126 = vmatpush1.msra.mxu0 0.0
    %4127 = vmatprep.subr.mxu0 0.0
    %4128 = vmatpush1.msra.mxu0 0.0
    %4129 = vmatprep.subr.mxu0 0.0
    %4130 = vmatpush1.msra.mxu0 0.0
    %4131 = vmatprep.subr.mxu0 0.0
    %4132 = vmatpush1.msra.mxu0 0.0
    %4133 = vmatprep.subr.mxu0 0.0
    %4134 = vmatpush1.msra.mxu0 0.0
    %4135 = vmatprep.subr.mxu0 0.0
    %4136 = vmatpush1.msra.mxu0 0.0
    %4137 = vmatprep.mubr.f32.mxu0 0.0
    %4138 = vmatmul.mubr.f32.gmra.mrb[0].mxu0 %v4071
    %v4139 = vpop.f32.mrb[0].mxu0
    %v4140 = vadd.f32 %v3776, %v4139
    %v4141 = vpop.f32.mrb[0].mxu0
    %v4142 = vadd.f32 %v3780, %v4141
    %4143 = vdwg.mxu0
    %v4144 = vadd.f32 %v4066, %v4140
    %v4145 = vxor.u32 %v4144, 2147483648
    %v4146 = vmul.f32 %v4145, 1.442695
    %v4147 = vpow.pop %v4146
    %v4148 = vadd.f32 %v4147, 1.0
    %v4149 = vrcp.pop %v4148
    %v4150 = vmul.f32 1.0, %v4149
    %v4151 = vmul.f32 %v4150, %v4142
    %v4152 = vadd.f32 %v4067, %v4151
    %v4153 = vtanh.pop %v4152
    %v4154 = vsub.f32 1.0, %v4150
    %4156 = vrot.lane.b32.xlu0 %v4153, 64
    %v4157 = vpop.permute.xlu0 %4156
    %v4159 = vmul.f32 %v4154, %v4157
    %v4160 = vmul.f32 %v4150, %v4065
    %v4161 = vadd.f32 %v4159, %v4160
    %v4162 = vld [vmem:[#allocation2 + $0x40] sm:$0xff]
    %v4163 = vld [vmem:[#allocation2 + $0x48] sm:$0xff]
    %4165 = vrot.lane.b32.xlu0 %v4161, 64
    %v4166 = vpop.permute.xlu0 %4165
    %v4167 = vsel %vm242, %v4166, 0
    %4169 = vmatprep.subr.mxu0 %v3755
    %4170 = vmatpush1.msra.mxu0 %v3754
    %4171 = vmatprep.subr.mxu0 %v3757
    %4172 = vmatpush1.msra.mxu0 %v3756
    %4173 = vmatprep.subr.mxu0 %v3759
    %4174 = vmatpush1.msra.mxu0 %v3758
    %4175 = vmatprep.subr.mxu0 %v3761
    %4176 = vmatpush1.msra.mxu0 %v3760
    %4177 = vmatprep.subr.mxu0 %v3763
    %4178 = vmatpush1.msra.mxu0 %v3762
    %4179 = vmatprep.subr.mxu0 %v3765
    %4180 = vmatpush1.msra.mxu0 %v3764
    %4181 = vmatprep.subr.mxu0 %v3767
    %4182 = vmatpush1.msra.mxu0 %v3766
    %4183 = vmatprep.subr.mxu0 %v3769
    %4184 = vmatpush1.msra.mxu0 %v3768
    %4185 = vmatprep.subr.mxu0 0.0
    %4186 = vmatpush1.msra.mxu0 0.0
    %4187 = vmatprep.subr.mxu0 0.0
    %4188 = vmatpush1.msra.mxu0 0.0
    %4189 = vmatprep.subr.mxu0 0.0
    %4190 = vmatpush1.msra.mxu0 0.0
    %4191 = vmatprep.subr.mxu0 0.0
    %4192 = vmatpush1.msra.mxu0 0.0
    %4193 = vmatprep.subr.mxu0 0.0
    %4194 = vmatpush1.msra.mxu0 0.0
    %4195 = vmatprep.subr.mxu0 0.0
    %4196 = vmatpush1.msra.mxu0 0.0
    %4197 = vmatprep.subr.mxu0 0.0
    %4198 = vmatpush1.msra.mxu0 0.0
    %4199 = vmatprep.subr.mxu0 0.0
    %4200 = vmatpush1.msra.mxu0 0.0
    %4201 = vmatprep.subr.mxu0 0.0
    %4202 = vmatpush1.msra.mxu0 0.0
    %4203 = vmatprep.subr.mxu0 0.0
    %4204 = vmatpush1.msra.mxu0 0.0
    %4205 = vmatprep.subr.mxu0 0.0
    %4206 = vmatpush1.msra.mxu0 0.0
    %4207 = vmatprep.subr.mxu0 0.0
    %4208 = vmatpush1.msra.mxu0 0.0
    %4209 = vmatprep.subr.mxu0 0.0
    %4210 = vmatpush1.msra.mxu0 0.0
    %4211 = vmatprep.subr.mxu0 0.0
    %4212 = vmatpush1.msra.mxu0 0.0
    %4213 = vmatprep.subr.mxu0 0.0
    %4214 = vmatpush1.msra.mxu0 0.0
    %4215 = vmatprep.subr.mxu0 0.0
    %4216 = vmatpush1.msra.mxu0 0.0
    %4217 = vmatprep.subr.mxu0 0.0
    %4218 = vmatpush1.msra.mxu0 0.0
    %4219 = vmatprep.subr.mxu0 0.0
    %4220 = vmatpush1.msra.mxu0 0.0
    %4221 = vmatprep.subr.mxu0 0.0
    %4222 = vmatpush1.msra.mxu0 0.0
    %4223 = vmatprep.subr.mxu0 0.0
    %4224 = vmatpush1.msra.mxu0 0.0
    %4225 = vmatprep.subr.mxu0 0.0
    %4226 = vmatpush1.msra.mxu0 0.0
    %4227 = vmatprep.subr.mxu0 0.0
    %4228 = vmatpush1.msra.mxu0 0.0
    %4229 = vmatprep.subr.mxu0 0.0
    %4230 = vmatpush1.msra.mxu0 0.0
    %4231 = vmatprep.subr.mxu0 0.0
    %4232 = vmatpush1.msra.mxu0 0.0
    %4233 = vmatprep.mubr.f32.mxu0 0.0
    %4234 = vmatmul.mubr.f32.gmra.mrb[0].mxu0 %v4167
    %v4235 = vpop.f32.mrb[0].mxu0
    %v4236 = vadd.f32 %v3776, %v4235
    %v4237 = vpop.f32.mrb[0].mxu0
    %v4238 = vadd.f32 %v3780, %v4237
    %4239 = vdwg.mxu0
    %v4240 = vadd.f32 %v4162, %v4236
    %v4241 = vxor.u32 %v4240, 2147483648
    %v4242 = vmul.f32 %v4241, 1.442695
    %v4243 = vpow.pop %v4242
    %v4244 = vadd.f32 %v4243, 1.0
    %v4245 = vrcp.pop %v4244
    %v4246 = vmul.f32 1.0, %v4245
    %v4247 = vmul.f32 %v4246, %v4238
    %v4248 = vadd.f32 %v4163, %v4247
    %v4249 = vtanh.pop %v4248
    %v4250 = vsub.f32 1.0, %v4246
    %4252 = vrot.lane.b32.xlu0 %v4249, 64
    %v4253 = vpop.permute.xlu0 %4252
    %v4255 = vmul.f32 %v4250, %v4253
    %v4256 = vmul.f32 %v4246, %v4161
    %v4257 = vadd.f32 %v4255, %v4256
    %v4258 = vld [vmem:[#allocation2 + $0x50] sm:$0xff]
    %v4259 = vld [vmem:[#allocation2 + $0x58] sm:$0xff]
    %4261 = vrot.lane.b32.xlu0 %v4257, 64
    %v4262 = vpop.permute.xlu0 %4261
    %v4263 = vsel %vm242, %v4262, 0
    %4265 = vmatprep.subr.mxu0 %v3755
    %4266 = vmatpush1.msra.mxu0 %v3754
    %4267 = vmatprep.subr.mxu0 %v3757
    %4268 = vmatpush1.msra.mxu0 %v3756
    %4269 = vmatprep.subr.mxu0 %v3759
    %4270 = vmatpush1.msra.mxu0 %v3758
    %4271 = vmatprep.subr.mxu0 %v3761
    %4272 = vmatpush1.msra.mxu0 %v3760
    %4273 = vmatprep.subr.mxu0 %v3763
    %4274 = vmatpush1.msra.mxu0 %v3762
    %4275 = vmatprep.subr.mxu0 %v3765
    %4276 = vmatpush1.msra.mxu0 %v3764
    %4277 = vmatprep.subr.mxu0 %v3767
    %4278 = vmatpush1.msra.mxu0 %v3766
    %4279 = vmatprep.subr.mxu0 %v3769
    %4280 = vmatpush1.msra.mxu0 %v3768
    %4281 = vmatprep.subr.mxu0 0.0
    %4282 = vmatpush1.msra.mxu0 0.0
    %4283 = vmatprep.subr.mxu0 0.0
    %4284 = vmatpush1.msra.mxu0 0.0
    %4285 = vmatprep.subr.mxu0 0.0
    %4286 = vmatpush1.msra.mxu0 0.0
    %4287 = vmatprep.subr.mxu0 0.0
    %4288 = vmatpush1.msra.mxu0 0.0
    %4289 = vmatprep.subr.mxu0 0.0
    %4290 = vmatpush1.msra.mxu0 0.0
    %4291 = vmatprep.subr.mxu0 0.0
    %4292 = vmatpush1.msra.mxu0 0.0
    %4293 = vmatprep.subr.mxu0 0.0
    %4294 = vmatpush1.msra.mxu0 0.0
    %4295 = vmatprep.subr.mxu0 0.0
    %4296 = vmatpush1.msra.mxu0 0.0
    %4297 = vmatprep.subr.mxu0 0.0
    %4298 = vmatpush1.msra.mxu0 0.0
    %4299 = vmatprep.subr.mxu0 0.0
    %4300 = vmatpush1.msra.mxu0 0.0
    %4301 = vmatprep.subr.mxu0 0.0
    %4302 = vmatpush1.msra.mxu0 0.0
    %4303 = vmatprep.subr.mxu0 0.0
    %4304 = vmatpush1.msra.mxu0 0.0
    %4305 = vmatprep.subr.mxu0 0.0
    %4306 = vmatpush1.msra.mxu0 0.0
    %4307 = vmatprep.subr.mxu0 0.0
    %4308 = vmatpush1.msra.mxu0 0.0
    %4309 = vmatprep.subr.mxu0 0.0
    %4310 = vmatpush1.msra.mxu0 0.0
    %4311 = vmatprep.subr.mxu0 0.0
    %4312 = vmatpush1.msra.mxu0 0.0
    %4313 = vmatprep.subr.mxu0 0.0
    %4314 = vmatpush1.msra.mxu0 0.0
    %4315 = vmatprep.subr.mxu0 0.0
    %4316 = vmatpush1.msra.mxu0 0.0
    %4317 = vmatprep.subr.mxu0 0.0
    %4318 = vmatpush1.msra.mxu0 0.0
    %4319 = vmatprep.subr.mxu0 0.0
    %4320 = vmatpush1.msra.mxu0 0.0
    %4321 = vmatprep.subr.mxu0 0.0
    %4322 = vmatpush1.msra.mxu0 0.0
    %4323 = vmatprep.subr.mxu0 0.0
    %4324 = vmatpush1.msra.mxu0 0.0
    %4325 = vmatprep.subr.mxu0 0.0
    %4326 = vmatpush1.msra.mxu0 0.0
    %4327 = vmatprep.subr.mxu0 0.0
    %4328 = vmatpush1.msra.mxu0 0.0
    %4329 = vmatprep.mubr.f32.mxu0 0.0
    %4330 = vmatmul.mubr.f32.gmra.mrb[0].mxu0 %v4263
    %v4331 = vpop.f32.mrb[0].mxu0
    %v4332 = vadd.f32 %v3776, %v4331
    %v4333 = vpop.f32.mrb[0].mxu0
    %v4334 = vadd.f32 %v3780, %v4333
    %4335 = vdwg.mxu0
    %v4336 = vadd.f32 %v4258, %v4332
    %v4337 = vxor.u32 %v4336, 2147483648
    %v4338 = vmul.f32 %v4337, 1.442695
    %v4339 = vpow.pop %v4338
    %v4340 = vadd.f32 %v4339, 1.0
    %v4341 = vrcp.pop %v4340
    %v4342 = vmul.f32 1.0, %v4341
    %v4343 = vmul.f32 %v4342, %v4334
    %v4344 = vadd.f32 %v4259, %v4343
    %v4345 = vtanh.pop %v4344
    %v4346 = vsub.f32 1.0, %v4342
    %4348 = vrot.lane.b32.xlu0 %v4345, 64
    %v4349 = vpop.permute.xlu0 %4348
    %v4351 = vmul.f32 %v4346, %v4349
    %v4352 = vmul.f32 %v4342, %v4257
    %v4353 = vadd.f32 %v4351, %v4352
    %v4354 = vld [vmem:[#allocation2 + $0x60] sm:$0xff]
    %v4355 = vld [vmem:[#allocation2 + $0x68] sm:$0xff]
    %4357 = vrot.lane.b32.xlu0 %v4353, 64
    %v4358 = vpop.permute.xlu0 %4357
    %v4359 = vsel %vm242, %v4358, 0
    %4361 = vmatprep.subr.mxu0 %v3755
    %4362 = vmatpush1.msra.mxu0 %v3754
    %4363 = vmatprep.subr.mxu0 %v3757
    %4364 = vmatpush1.msra.mxu0 %v3756
    %4365 = vmatprep.subr.mxu0 %v3759
    %4366 = vmatpush1.msra.mxu0 %v3758
    %4367 = vmatprep.subr.mxu0 %v3761
    %4368 = vmatpush1.msra.mxu0 %v3760
    %4369 = vmatprep.subr.mxu0 %v3763
    %4370 = vmatpush1.msra.mxu0 %v3762
    %4371 = vmatprep.subr.mxu0 %v3765
    %4372 = vmatpush1.msra.mxu0 %v3764
    %4373 = vmatprep.subr.mxu0 %v3767
    %4374 = vmatpush1.msra.mxu0 %v3766
    %4375 = vmatprep.subr.mxu0 %v3769
    %4376 = vmatpush1.msra.mxu0 %v3768
    %4377 = vmatprep.subr.mxu0 0.0
    %4378 = vmatpush1.msra.mxu0 0.0
    %4379 = vmatprep.subr.mxu0 0.0
    %4380 = vmatpush1.msra.mxu0 0.0
    %4381 = vmatprep.subr.mxu0 0.0
    %4382 = vmatpush1.msra.mxu0 0.0
    %4383 = vmatprep.subr.mxu0 0.0
    %4384 = vmatpush1.msra.mxu0 0.0
    %4385 = vmatprep.subr.mxu0 0.0
    %4386 = vmatpush1.msra.mxu0 0.0
    %4387 = vmatprep.subr.mxu0 0.0
    %4388 = vmatpush1.msra.mxu0 0.0
    %4389 = vmatprep.subr.mxu0 0.0
    %4390 = vmatpush1.msra.mxu0 0.0
    %4391 = vmatprep.subr.mxu0 0.0
    %4392 = vmatpush1.msra.mxu0 0.0
    %4393 = vmatprep.subr.mxu0 0.0
    %4394 = vmatpush1.msra.mxu0 0.0
    %4395 = vmatprep.subr.mxu0 0.0
    %4396 = vmatpush1.msra.mxu0 0.0
    %4397 = vmatprep.subr.mxu0 0.0
    %4398 = vmatpush1.msra.mxu0 0.0
    %4399 = vmatprep.subr.mxu0 0.0
    %4400 = vmatpush1.msra.mxu0 0.0
    %4401 = vmatprep.subr.mxu0 0.0
    %4402 = vmatpush1.msra.mxu0 0.0
    %4403 = vmatprep.subr.mxu0 0.0
    %4404 = vmatpush1.msra.mxu0 0.0
    %4405 = vmatprep.subr.mxu0 0.0
    %4406 = vmatpush1.msra.mxu0 0.0
    %4407 = vmatprep.subr.mxu0 0.0
    %4408 = vmatpush1.msra.mxu0 0.0
    %4409 = vmatprep.subr.mxu0 0.0
    %4410 = vmatpush1.msra.mxu0 0.0
    %4411 = vmatprep.subr.mxu0 0.0
    %4412 = vmatpush1.msra.mxu0 0.0
    %4413 = vmatprep.subr.mxu0 0.0
    %4414 = vmatpush1.msra.mxu0 0.0
    %4415 = vmatprep.subr.mxu0 0.0
    %4416 = vmatpush1.msra.mxu0 0.0
    %4417 = vmatprep.subr.mxu0 0.0
    %4418 = vmatpush1.msra.mxu0 0.0
    %4419 = vmatprep.subr.mxu0 0.0
    %4420 = vmatpush1.msra.mxu0 0.0
    %4421 = vmatprep.subr.mxu0 0.0
    %4422 = vmatpush1.msra.mxu0 0.0
    %4423 = vmatprep.subr.mxu0 0.0
    %4424 = vmatpush1.msra.mxu0 0.0
    %4425 = vmatprep.mubr.f32.mxu0 0.0
    %4426 = vmatmul.mubr.f32.gmra.mrb[0].mxu0 %v4359
    %v4427 = vpop.f32.mrb[0].mxu0
    %v4428 = vadd.f32 %v3776, %v4427
    %v4429 = vpop.f32.mrb[0].mxu0
    %v4430 = vadd.f32 %v3780, %v4429
    %4431 = vdwg.mxu0
    %v4432 = vadd.f32 %v4354, %v4428
    %v4433 = vxor.u32 %v4432, 2147483648
    %v4434 = vmul.f32 %v4433, 1.442695
    %v4435 = vpow.pop %v4434
    %v4436 = vadd.f32 %v4435, 1.0
    %v4437 = vrcp.pop %v4436
    %v4438 = vmul.f32 1.0, %v4437
    %v4439 = vmul.f32 %v4438, %v4430
    %v4440 = vadd.f32 %v4355, %v4439
    %v4441 = vtanh.pop %v4440
    %v4442 = vsub.f32 1.0, %v4438
    %4444 = vrot.lane.b32.xlu0 %v4441, 64
    %v4445 = vpop.permute.xlu0 %4444
    %v4447 = vmul.f32 %v4442, %v4445
    %v4448 = vmul.f32 %v4438, %v4353
    %v4449 = vadd.f32 %v4447, %v4448
    %v4450 = vld [vmem:[#allocation2 + $0x70] sm:$0xff]
    %v4451 = vld [vmem:[#allocation2 + $0x78] sm:$0xff]
    %4453 = vrot.lane.b32.xlu0 %v4449, 64
    %v4454 = vpop.permute.xlu0 %4453
    %v4455 = vsel %vm242, %v4454, 0
    %4457 = vmatprep.subr.mxu0 %v3755
    %4458 = vmatpush1.msra.mxu0 %v3754
    %4459 = vmatprep.subr.mxu0 %v3757
    %4460 = vmatpush1.msra.mxu0 %v3756
    %4461 = vmatprep.subr.mxu0 %v3759
    %4462 = vmatpush1.msra.mxu0 %v3758
    %4463 = vmatprep.subr.mxu0 %v3761
    %4464 = vmatpush1.msra.mxu0 %v3760
    %4465 = vmatprep.subr.mxu0 %v3763
    %4466 = vmatpush1.msra.mxu0 %v3762
    %4467 = vmatprep.subr.mxu0 %v3765
    %4468 = vmatpush1.msra.mxu0 %v3764
    %4469 = vmatprep.subr.mxu0 %v3767
    %4470 = vmatpush1.msra.mxu0 %v3766
    %4471 = vmatprep.subr.mxu0 %v3769
    %4472 = vmatpush1.msra.mxu0 %v3768
    %4473 = vmatprep.subr.mxu0 0.0
    %4474 = vmatpush1.msra.mxu0 0.0
    %4475 = vmatprep.subr.mxu0 0.0
    %4476 = vmatpush1.msra.mxu0 0.0
    %4477 = vmatprep.subr.mxu0 0.0
    %4478 = vmatpush1.msra.mxu0 0.0
    %4479 = vmatprep.subr.mxu0 0.0
    %4480 = vmatpush1.msra.mxu0 0.0
    %4481 = vmatprep.subr.mxu0 0.0
    %4482 = vmatpush1.msra.mxu0 0.0
    %4483 = vmatprep.subr.mxu0 0.0
    %4484 = vmatpush1.msra.mxu0 0.0
    %4485 = vmatprep.subr.mxu0 0.0
    %4486 = vmatpush1.msra.mxu0 0.0
    %4487 = vmatprep.subr.mxu0 0.0
    %4488 = vmatpush1.msra.mxu0 0.0
    %4489 = vmatprep.subr.mxu0 0.0
    %4490 = vmatpush1.msra.mxu0 0.0
    %4491 = vmatprep.subr.mxu0 0.0
    %4492 = vmatpush1.msra.mxu0 0.0
    %4493 = vmatprep.subr.mxu0 0.0
    %4494 = vmatpush1.msra.mxu0 0.0
    %4495 = vmatprep.subr.mxu0 0.0
    %4496 = vmatpush1.msra.mxu0 0.0
    %4497 = vmatprep.subr.mxu0 0.0
    %4498 = vmatpush1.msra.mxu0 0.0
    %4499 = vmatprep.subr.mxu0 0.0
    %4500 = vmatpush1.msra.mxu0 0.0
    %4501 = vmatprep.subr.mxu0 0.0
    %4502 = vmatpush1.msra.mxu0 0.0
    %4503 = vmatprep.subr.mxu0 0.0
    %4504 = vmatpush1.msra.mxu0 0.0
    %4505 = vmatprep.subr.mxu0 0.0
    %4506 = vmatpush1.msra.mxu0 0.0
    %4507 = vmatprep.subr.mxu0 0.0
    %4508 = vmatpush1.msra.mxu0 0.0
    %4509 = vmatprep.subr.mxu0 0.0
    %4510 = vmatpush1.msra.mxu0 0.0
    %4511 = vmatprep.subr.mxu0 0.0
    %4512 = vmatpush1.msra.mxu0 0.0
    %4513 = vmatprep.subr.mxu0 0.0
    %4514 = vmatpush1.msra.mxu0 0.0
    %4515 = vmatprep.subr.mxu0 0.0
    %4516 = vmatpush1.msra.mxu0 0.0
    %4517 = vmatprep.subr.mxu0 0.0
    %4518 = vmatpush1.msra.mxu0 0.0
    %4519 = vmatprep.subr.mxu0 0.0
    %4520 = vmatpush1.msra.mxu0 0.0
    %4521 = vmatprep.mubr.f32.mxu0 0.0
    %4522 = vmatmul.mubr.f32.gmra.mrb[0].mxu0 %v4455
    %v4523 = vpop.f32.mrb[0].mxu0
    %v4524 = vadd.f32 %v3776, %v4523
    %v4525 = vpop.f32.mrb[0].mxu0
    %v4526 = vadd.f32 %v3780, %v4525
    %4527 = vdwg.mxu0
    %v4528 = vadd.f32 %v4450, %v4524
    %v4529 = vxor.u32 %v4528, 2147483648
    %v4530 = vmul.f32 %v4529, 1.442695
    %v4531 = vpow.pop %v4530
    %v4532 = vadd.f32 %v4531, 1.0
    %v4533 = vrcp.pop %v4532
    %v4534 = vmul.f32 1.0, %v4533
    %v4535 = vmul.f32 %v4534, %v4526
    %v4536 = vadd.f32 %v4451, %v4535
    %v4537 = vtanh.pop %v4536
    %v4538 = vsub.f32 1.0, %v4534
    %4540 = vrot.lane.b32.xlu0 %v4537, 64
    %v4541 = vpop.permute.xlu0 %4540
    %v4543 = vmul.f32 %v4538, %v4541
    %v4544 = vmul.f32 %v4534, %v4449
    %v4545 = vadd.f32 %v4543, %v4544
    %v4546 = vsel %vm242, %v3566, %v4545
    %s4547 = scalar_lea.vmem %s6, 128
    %v4548 = vld [vmem:[%s4547] sm:$0xff]
    %v4549 = vld [vmem:[%s4547 + $0x8] sm:$0xff]
    %v4550 = vld [vmem:[%s4547 + $0x10] sm:$0xff]
    %v4551 = vld [vmem:[%s4547 + $0x18] sm:$0xff]
    %v4552 = vld [vmem:[%s4547 + $0x20] sm:$0xff]
    %v4553 = vld [vmem:[%s4547 + $0x28] sm:$0xff]
    %v4554 = vld [vmem:[%s4547 + $0x30] sm:$0xff]
    %v4555 = vld [vmem:[%s4547 + $0x38] sm:$0xff]
    %v4556 = vld [vmem:[%s4547 + $0x40] sm:$0xff]
    %v4557 = vld [vmem:[%s4547 + $0x48] sm:$0xff]
    %v4558 = vld [vmem:[%s4547 + $0x50] sm:$0xff]
    %v4559 = vld [vmem:[%s4547 + $0x58] sm:$0xff]
    %v4560 = vld [vmem:[%s4547 + $0x60] sm:$0xff]
    %v4561 = vld [vmem:[%s4547 + $0x68] sm:$0xff]
    %v4562 = vld [vmem:[%s4547 + $0x70] sm:$0xff]
    %v4563 = vld [vmem:[%s4547 + $0x78] sm:$0xff]
    %s4564 = scalar_lea.vmem [#allocation9], 1
    %v4565 = vld [vmem:[%s4564] sm:$0x1]
    %v4567 = vlaneseq
    %v4568 = vshrl.u32 %v4567, 7
    %v4569 = vsub.s32 0, %v4568
    %v4570 = vrot.slane %v4565, %v4569
    %4572 = vmatprep.subr.mxu0 0.0
    %4573 = vmatpush1.msra.mxu0 %v4548
    %4574 = vmatprep.subr.mxu0 0.0
    %4575 = vmatpush1.msra.mxu0 %v4549
    %4576 = vmatprep.subr.mxu0 0.0
    %4577 = vmatpush1.msra.mxu0 %v4550
    %4578 = vmatprep.subr.mxu0 0.0
    %4579 = vmatpush1.msra.mxu0 %v4551
    %4580 = vmatprep.subr.mxu0 0.0
    %4581 = vmatpush1.msra.mxu0 %v4552
    %4582 = vmatprep.subr.mxu0 0.0
    %4583 = vmatpush1.msra.mxu0 %v4553
    %4584 = vmatprep.subr.mxu0 0.0
    %4585 = vmatpush1.msra.mxu0 %v4554
    %4586 = vmatprep.subr.mxu0 0.0
    %4587 = vmatpush1.msra.mxu0 %v4555
    %4588 = vmatprep.subr.mxu0 0.0
    %4589 = vmatpush1.msra.mxu0 %v4556
    %4590 = vmatprep.subr.mxu0 0.0
    %4591 = vmatpush1.msra.mxu0 %v4557
    %4592 = vmatprep.subr.mxu0 0.0
    %4593 = vmatpush1.msra.mxu0 %v4558
    %4594 = vmatprep.subr.mxu0 0.0
    %4595 = vmatpush1.msra.mxu0 %v4559
    %4596 = vmatprep.subr.mxu0 0.0
    %4597 = vmatpush1.msra.mxu0 %v4560
    %4598 = vmatprep.subr.mxu0 0.0
    %4599 = vmatpush1.msra.mxu0 %v4561
    %4600 = vmatprep.subr.mxu0 0.0
    %4601 = vmatpush1.msra.mxu0 %v4562
    %4602 = vmatprep.subr.mxu0 0.0
    %4603 = vmatpush1.msra.mxu0 %v4563
    %4604 = vmatprep.subr.mxu0 0.0
    %4605 = vmatpush1.msra.mxu0 0.0
    %4606 = vmatprep.subr.mxu0 0.0
    %4607 = vmatpush1.msra.mxu0 0.0
    %4608 = vmatprep.subr.mxu0 0.0
    %4609 = vmatpush1.msra.mxu0 0.0
    %4610 = vmatprep.subr.mxu0 0.0
    %4611 = vmatpush1.msra.mxu0 0.0
    %4612 = vmatprep.subr.mxu0 0.0
    %4613 = vmatpush1.msra.mxu0 0.0
    %4614 = vmatprep.subr.mxu0 0.0
    %4615 = vmatpush1.msra.mxu0 0.0
    %4616 = vmatprep.subr.mxu0 0.0
    %4617 = vmatpush1.msra.mxu0 0.0
    %4618 = vmatprep.subr.mxu0 0.0
    %4619 = vmatpush1.msra.mxu0 0.0
    %4620 = vmatprep.subr.mxu0 0.0
    %4621 = vmatpush1.msra.mxu0 0.0
    %4622 = vmatprep.subr.mxu0 0.0
    %4623 = vmatpush1.msra.mxu0 0.0
    %4624 = vmatprep.subr.mxu0 0.0
    %4625 = vmatpush1.msra.mxu0 0.0
    %4626 = vmatprep.subr.mxu0 0.0
    %4627 = vmatpush1.msra.mxu0 0.0
    %4628 = vmatprep.subr.mxu0 0.0
    %4629 = vmatpush1.msra.mxu0 0.0
    %4630 = vmatprep.subr.mxu0 0.0
    %4631 = vmatpush1.msra.mxu0 0.0
    %4632 = vmatprep.subr.mxu0 0.0
    %4633 = vmatpush1.msra.mxu0 0.0
    %4634 = vmatprep.subr.mxu0 0.0
    %4635 = vmatpush1.msra.mxu0 0.0
    %4636 = vmatprep.mubr.f32.mxu0 0.0
    %4637 = vmatmul.mubr.f32.gmra.mrb[0].mxu0 %v4546
    %v4638 = vpop.f32.mrb[0].mxu0
    %v4639 = vadd.f32 %v4570, %v4638
    %v4640 = vpop.f32.mrb[0].mxu0
    %4641 = vdwg.mxu0
    %v4642 = vxor.u32 %v4639, 2147483648
    %v4643 = vmul.f32 %v4642, 1.442695
    %v4644 = vpow.pop %v4643
    %v4645 = vadd.f32 %v4644, 1.0
    %v4646 = vrcp.pop %v4645
    %v4647 = vmul.f32 1.0, %v4646
    %s4648 = scalar_lea.vmem %s8, 32
    %v4649 = vld [vmem:[%s4648] sm:$0xff]
    %v4650 = vld [vmem:[%s4648 + $0x8] sm:$0xff]
    %v4651 = vld [vmem:[%s4648 + $0x10] sm:$0xff]
    %v4652 = vld [vmem:[%s4648 + $0x18] sm:$0xff]
    %s4653 = scalar_lea.vmem [#allocation10], 1
    %v4654 = vld [vmem:[%s4653] sm:$0x1]
    %v4656 = vlaneseq
    %v4657 = vshrl.u32 %v4656, 7
    %v4658 = vsub.s32 0, %v4657
    %v4659 = vrot.slane %v4654, %v4658
    %v4662 = vsel %vm2303, %v4647, 0
    %4664 = vmatprep.subr.mxu0 0.0
    %4665 = vmatpush1.msra.mxu0 %v4649
    %4666 = vmatprep.subr.mxu0 0.0
    %4667 = vmatpush1.msra.mxu0 %v4650
    %4668 = vmatprep.subr.mxu0 0.0
    %4669 = vmatpush1.msra.mxu0 %v4651
    %4670 = vmatprep.subr.mxu0 0.0
    %4671 = vmatpush1.msra.mxu0 %v4652
    %4672 = vmatprep.subr.mxu0 0.0
    %4673 = vmatpush1.msra.mxu0 0.0
    %4674 = vmatprep.subr.mxu0 0.0
    %4675 = vmatpush1.msra.mxu0 0.0
    %4676 = vmatprep.subr.mxu0 0.0
    %4677 = vmatpush1.msra.mxu0 0.0
    %4678 = vmatprep.subr.mxu0 0.0
    %4679 = vmatpush1.msra.mxu0 0.0
    %4680 = vmatprep.subr.mxu0 0.0
    %4681 = vmatpush1.msra.mxu0 0.0
    %4682 = vmatprep.subr.mxu0 0.0
    %4683 = vmatpush1.msra.mxu0 0.0
    %4684 = vmatprep.subr.mxu0 0.0
    %4685 = vmatpush1.msra.mxu0 0.0
    %4686 = vmatprep.subr.mxu0 0.0
    %4687 = vmatpush1.msra.mxu0 0.0
    %4688 = vmatprep.subr.mxu0 0.0
    %4689 = vmatpush1.msra.mxu0 0.0
    %4690 = vmatprep.subr.mxu0 0.0
    %4691 = vmatpush1.msra.mxu0 0.0
    %4692 = vmatprep.subr.mxu0 0.0
    %4693 = vmatpush1.msra.mxu0 0.0
    %4694 = vmatprep.subr.mxu0 0.0
    %4695 = vmatpush1.msra.mxu0 0.0
    %4696 = vmatprep.subr.mxu0 0.0
    %4697 = vmatpush1.msra.mxu0 0.0
    %4698 = vmatprep.subr.mxu0 0.0
    %4699 = vmatpush1.msra.mxu0 0.0
    %4700 = vmatprep.subr.mxu0 0.0
    %4701 = vmatpush1.msra.mxu0 0.0
    %4702 = vmatprep.subr.mxu0 0.0
    %4703 = vmatpush1.msra.mxu0 0.0
    %4704 = vmatprep.subr.mxu0 0.0
    %4705 = vmatpush1.msra.mxu0 0.0
    %4706 = vmatprep.subr.mxu0 0.0
    %4707 = vmatpush1.msra.mxu0 0.0
    %4708 = vmatprep.subr.mxu0 0.0
    %4709 = vmatpush1.msra.mxu0 0.0
    %4710 = vmatprep.subr.mxu0 0.0
    %4711 = vmatpush1.msra.mxu0 0.0
    %4712 = vmatprep.subr.mxu0 0.0
    %4713 = vmatpush1.msra.mxu0 0.0
    %4714 = vmatprep.subr.mxu0 0.0
    %4715 = vmatpush1.msra.mxu0 0.0
    %4716 = vmatprep.subr.mxu0 0.0
    %4717 = vmatpush1.msra.mxu0 0.0
    %4718 = vmatprep.subr.mxu0 0.0
    %4719 = vmatpush1.msra.mxu0 0.0
    %4720 = vmatprep.subr.mxu0 0.0
    %4721 = vmatpush1.msra.mxu0 0.0
    %4722 = vmatprep.subr.mxu0 0.0
    %4723 = vmatpush1.msra.mxu0 0.0
    %4724 = vmatprep.subr.mxu0 0.0
    %4725 = vmatpush1.msra.mxu0 0.0
    %4726 = vmatprep.subr.mxu0 0.0
    %4727 = vmatpush1.msra.mxu0 0.0
    %4728 = vmatprep.mubr.f32.mxu0 0.0
    %4729 = vmatmul.mubr.f32.gmra.mrb[0].mxu0 %v4662
    %v4730 = vpop.f32.mrb[0].mxu0
    %v4731 = vadd.f32 %v4659, %v4730
    %v4732 = vpop.f32.mrb[0].mxu0
    %4733 = vdwg.mxu0
    %v4734 = vxor.u32 %v4731, 2147483648
    %v4735 = vmul.f32 %v4734, 1.442695
    %v4736 = vpow.pop %v4735
    %v4737 = vadd.f32 %v4736, 1.0
    %v4738 = vrcp.pop %v4737
    %v4739 = vmul.f32 1.0, %v4738
    %v4741 = vrot.slane %v4739, 2
    %4742 = vrot.lane.b32.xlu0 %v4741, 32
    %v4743 = vpop.permute.xlu0 %4742
    %v4745 = vsel %vm2303, %v4739, %v4743
    %s4746 = scalar_lea.vmem %s10, 64
    %v4747 = vld [vmem:[%s4746] sm:$0xff]
    %v4748 = vld [vmem:[%s4746 + $0x8] sm:$0xff]
    %v4749 = vld [vmem:[%s4746 + $0x10] sm:$0xff]
    %v4750 = vld [vmem:[%s4746 + $0x18] sm:$0xff]
    %v4751 = vld [vmem:[%s4746 + $0x20] sm:$0xff]
    %v4752 = vld [vmem:[%s4746 + $0x28] sm:$0xff]
    %v4753 = vld [vmem:[%s4746 + $0x30] sm:$0xff]
    %v4754 = vld [vmem:[%s4746 + $0x38] sm:$0xff]
    %s4755 = scalar_lea.vmem [#allocation12], 1
    %v4756 = vld [vmem:[%s4755] sm:$0x1]
    %v4758 = vlaneseq
    %v4759 = vshrl.u32 %v4758, 7
    %v4760 = vsub.s32 0, %v4759
    %v4761 = vrot.slane %v4756, %v4760
    %v4764 = vsel %vm242, %v4745, 0
    %4766 = vmatprep.subr.mxu0 0.0
    %4767 = vmatpush1.msra.mxu0 %v4747
    %4768 = vmatprep.subr.mxu0 0.0
    %4769 = vmatpush1.msra.mxu0 %v4748
    %4770 = vmatprep.subr.mxu0 0.0
    %4771 = vmatpush1.msra.mxu0 %v4749
    %4772 = vmatprep.subr.mxu0 0.0
    %4773 = vmatpush1.msra.mxu0 %v4750
    %4774 = vmatprep.subr.mxu0 0.0
    %4775 = vmatpush1.msra.mxu0 %v4751
    %4776 = vmatprep.subr.mxu0 0.0
    %4777 = vmatpush1.msra.mxu0 %v4752
    %4778 = vmatprep.subr.mxu0 0.0
    %4779 = vmatpush1.msra.mxu0 %v4753
    %4780 = vmatprep.subr.mxu0 0.0
    %4781 = vmatpush1.msra.mxu0 %v4754
    %4782 = vmatprep.subr.mxu0 0.0
    %4783 = vmatpush1.msra.mxu0 0.0
    %4784 = vmatprep.subr.mxu0 0.0
    %4785 = vmatpush1.msra.mxu0 0.0
    %4786 = vmatprep.subr.mxu0 0.0
    %4787 = vmatpush1.msra.mxu0 0.0
    %4788 = vmatprep.subr.mxu0 0.0
    %4789 = vmatpush1.msra.mxu0 0.0
    %4790 = vmatprep.subr.mxu0 0.0
    %4791 = vmatpush1.msra.mxu0 0.0
    %4792 = vmatprep.subr.mxu0 0.0
    %4793 = vmatpush1.msra.mxu0 0.0
    %4794 = vmatprep.subr.mxu0 0.0
    %4795 = vmatpush1.msra.mxu0 0.0
    %4796 = vmatprep.subr.mxu0 0.0
    %4797 = vmatpush1.msra.mxu0 0.0
    %4798 = vmatprep.subr.mxu0 0.0
    %4799 = vmatpush1.msra.mxu0 0.0
    %4800 = vmatprep.subr.mxu0 0.0
    %4801 = vmatpush1.msra.mxu0 0.0
    %4802 = vmatprep.subr.mxu0 0.0
    %4803 = vmatpush1.msra.mxu0 0.0
    %4804 = vmatprep.subr.mxu0 0.0
    %4805 = vmatpush1.msra.mxu0 0.0
    %4806 = vmatprep.subr.mxu0 0.0
    %4807 = vmatpush1.msra.mxu0 0.0
    %4808 = vmatprep.subr.mxu0 0.0
    %4809 = vmatpush1.msra.mxu0 0.0
    %4810 = vmatprep.subr.mxu0 0.0
    %4811 = vmatpush1.msra.mxu0 0.0
    %4812 = vmatprep.subr.mxu0 0.0
    %4813 = vmatpush1.msra.mxu0 0.0
    %4814 = vmatprep.subr.mxu0 0.0
    %4815 = vmatpush1.msra.mxu0 0.0
    %4816 = vmatprep.subr.mxu0 0.0
    %4817 = vmatpush1.msra.mxu0 0.0
    %4818 = vmatprep.subr.mxu0 0.0
    %4819 = vmatpush1.msra.mxu0 0.0
    %4820 = vmatprep.subr.mxu0 0.0
    %4821 = vmatpush1.msra.mxu0 0.0
    %4822 = vmatprep.subr.mxu0 0.0
    %4823 = vmatpush1.msra.mxu0 0.0
    %4824 = vmatprep.subr.mxu0 0.0
    %4825 = vmatpush1.msra.mxu0 0.0
    %4826 = vmatprep.subr.mxu0 0.0
    %4827 = vmatpush1.msra.mxu0 0.0
    %4828 = vmatprep.subr.mxu0 0.0
    %4829 = vmatpush1.msra.mxu0 0.0
    %4830 = vmatprep.mubr.f32.mxu0 0.0
    %4831 = vmatmul.mubr.f32.gmra.mrb[0].mxu0 %v4764
    %v4832 = vpop.f32.mrb[0].mxu0
    %v4833 = vadd.f32 %v4761, %v4832
    %v4834 = vpop.f32.mrb[0].mxu0
    %4835 = vdwg.mxu0
    %v4836 = vxor.u32 %v4833, 2147483648
    %v4837 = vmul.f32 %v4836, 1.442695
    %v4838 = vpow.pop %v4837
    %v4839 = vadd.f32 %v4838, 1.0
    %v4840 = vrcp.pop %v4839
    %v4841 = vmul.f32 1.0, %v4840
    %4843 = vrot.lane.b32.xlu0 %v4841, 32
    %v4844 = vpop.permute.xlu0 %4843
    %v4846 = vsel %vm2303, %v2482, %v4844
    %v4847 = vld [vmem:[%s12] sm:$0xff]
    %v4848 = vld [vmem:[%s12 + $0x8] sm:$0xff]
    %v4849 = vld [vmem:[%s12 + $0x10] sm:$0xff]
    %v4850 = vld [vmem:[%s12 + $0x18] sm:$0xff]
    %v4851 = vld [vmem:[%s12 + $0x20] sm:$0xff]
    %v4852 = vld [vmem:[%s12 + $0x28] sm:$0xff]
    %v4853 = vld [vmem:[%s12 + $0x30] sm:$0xff]
    %v4854 = vld [vmem:[%s12 + $0x38] sm:$0xff]
    %v4855 = vld [vmem:[#allocation13] sm:$0x1]
    %v4857 = vlaneseq
    %v4858 = vshrl.u32 %v4857, 7
    %v4859 = vsub.s32 0, %v4858
    %v4860 = vrot.slane %v4855, %v4859
    %v4863 = vsel %vm242, %v4846, 0
    %4865 = vmatprep.subr.mxu0 0.0
    %4866 = vmatpush1.msra.mxu0 %v4847
    %4867 = vmatprep.subr.mxu0 0.0
    %4868 = vmatpush1.msra.mxu0 %v4848
    %4869 = vmatprep.subr.mxu0 0.0
    %4870 = vmatpush1.msra.mxu0 %v4849
    %4871 = vmatprep.subr.mxu0 0.0
    %4872 = vmatpush1.msra.mxu0 %v4850
    %4873 = vmatprep.subr.mxu0 0.0
    %4874 = vmatpush1.msra.mxu0 %v4851
    %4875 = vmatprep.subr.mxu0 0.0
    %4876 = vmatpush1.msra.mxu0 %v4852
    %4877 = vmatprep.subr.mxu0 0.0
    %4878 = vmatpush1.msra.mxu0 %v4853
    %4879 = vmatprep.subr.mxu0 0.0
    %4880 = vmatpush1.msra.mxu0 %v4854
    %4881 = vmatprep.subr.mxu0 0.0
    %4882 = vmatpush1.msra.mxu0 0.0
    %4883 = vmatprep.subr.mxu0 0.0
    %4884 = vmatpush1.msra.mxu0 0.0
    %4885 = vmatprep.subr.mxu0 0.0
    %4886 = vmatpush1.msra.mxu0 0.0
    %4887 = vmatprep.subr.mxu0 0.0
    %4888 = vmatpush1.msra.mxu0 0.0
    %4889 = vmatprep.subr.mxu0 0.0
    %4890 = vmatpush1.msra.mxu0 0.0
    %4891 = vmatprep.subr.mxu0 0.0
    %4892 = vmatpush1.msra.mxu0 0.0
    %4893 = vmatprep.subr.mxu0 0.0
    %4894 = vmatpush1.msra.mxu0 0.0
    %4895 = vmatprep.subr.mxu0 0.0
    %4896 = vmatpush1.msra.mxu0 0.0
    %4897 = vmatprep.subr.mxu0 0.0
    %4898 = vmatpush1.msra.mxu0 0.0
    %4899 = vmatprep.subr.mxu0 0.0
    %4900 = vmatpush1.msra.mxu0 0.0
    %4901 = vmatprep.subr.mxu0 0.0
    %4902 = vmatpush1.msra.mxu0 0.0
    %4903 = vmatprep.subr.mxu0 0.0
    %4904 = vmatpush1.msra.mxu0 0.0
    %4905 = vmatprep.subr.mxu0 0.0
    %4906 = vmatpush1.msra.mxu0 0.0
    %4907 = vmatprep.subr.mxu0 0.0
    %4908 = vmatpush1.msra.mxu0 0.0
    %4909 = vmatprep.subr.mxu0 0.0
    %4910 = vmatpush1.msra.mxu0 0.0
    %4911 = vmatprep.subr.mxu0 0.0
    %4912 = vmatpush1.msra.mxu0 0.0
    %4913 = vmatprep.subr.mxu0 0.0
    %4914 = vmatpush1.msra.mxu0 0.0
    %4915 = vmatprep.subr.mxu0 0.0
    %4916 = vmatpush1.msra.mxu0 0.0
    %4917 = vmatprep.subr.mxu0 0.0
    %4918 = vmatpush1.msra.mxu0 0.0
    %4919 = vmatprep.subr.mxu0 0.0
    %4920 = vmatpush1.msra.mxu0 0.0
    %4921 = vmatprep.subr.mxu0 0.0
    %4922 = vmatpush1.msra.mxu0 0.0
    %4923 = vmatprep.subr.mxu0 0.0
    %4924 = vmatpush1.msra.mxu0 0.0
    %4925 = vmatprep.subr.mxu0 0.0
    %4926 = vmatpush1.msra.mxu0 0.0
    %4927 = vmatprep.subr.mxu0 0.0
    %4928 = vmatpush1.msra.mxu0 0.0
    %4929 = vmatprep.mubr.f32.mxu0 0.0
    %4930 = vmatmul.mubr.f32.gmra.mrb[0].mxu0 %v4863
    %v4931 = vpop.f32.mrb[0].mxu0
    %v4932 = vadd.f32 %v4860, %v4931
    %v4933 = vpop.f32.mrb[0].mxu0
    %4934 = vdwg.mxu0
    %v4935 = vxor.u32 %v4932, 2147483648
    %v4936 = vmul.f32 %v4935, 1.442695
    %v4937 = vpow.pop %v4936
    %v4938 = vadd.f32 %v4937, 1.0
    %v4939 = vrcp.pop %v4938
    %v4940 = vmul.f32 1.0, %v4939
    %vm4941 = vcmask 9216
    %4942 = vst.msk [vmem:[#allocation15] sm:$0x3] %vm4941, %v4940
    // Predicated region
    $region82: #{forward.1} parent=1 // pred_check
      _
    $region83: #{forward.1} parent=1 // pred_check_branch
      %4944 = sbr.rel (0) target = $region85
    $region84: #{forward.1} parent=1 // pred_region
      %s4946 = ssub.s32 32, 32
      %4947 = vsyncadd [#allocation6], %s4946
      %s4949 = sshll.u32 [#allocation15], 4
      %s4950 = int_to_ptr.vmem [resolvable:$true] %s4949
      %4952 = dma.vmem_to_hbm [thread:$0]  %s4950, 32, %s14, [#allocation6]
    $region85: #{forward.1} parent=1 // pred_fallthru
      _
    // Predicated region
    $region86: #{forward.1} parent=1 // pred_check
      _
    $region87: #{forward.1} parent=1 // pred_check_branch
      %4954 = sbr.rel (0) target = $region89
    $region88: #{forward.1} parent=1 // pred_region
      %4955 = dma.done [#allocation6], 32
    $region89: #{forward.1} parent=1 // pred_fallthru
      _
    %4956 = vsyncpa [#allocation5], 1
    %4957 = vsyncpa [#allocation8], 1
    %4958 = vsyncpa [#allocation11], 1
    %4959 = vsyncpa [#allocation14], 1
    %4960 = vsyncpa [#allocation6], 1

</llo_original>
